<compile_context>
chip_gen: v6e
topology: v6e:2x2x1
jax: 0.10.0
libtpu: 0.0.40
codegen_flags: <defaults>
</compile_context>

<pallas_src>
import jax
import jax.numpy as jnp
from jax.experimental import pallas as pl
from jax.experimental.pallas import tpu as pltpu


def _resnet_block_kernel(x_ref, w1_ref, s1_ref, b1_ref,
                         w2_ref, s2_ref, b2_ref, out_ref,
                         xpad, midpad):
    """Per-batch-element ResNet basic block.

    x_ref   : (H, W, Cin)        input (read once; also the residual)
    w1_ref  : (9, Cin,  Cout)    conv1 weights (kh*kw, Cin, Cout)
    s1/b1   : (1, Cout)          folded BN1 scale / bias (conv bias folded in)
    w2_ref  : (9, Cout, Cout)    conv2 weights
    s2/b2   : (1, Cout)          folded BN2 scale / bias
    out_ref : (H, W, Cout)       output
    xpad    : (H+2, W+2, Cin)    persistent VMEM scratch (padded input)
    midpad  : (H+2, W+2, Cout)   persistent VMEM scratch (padded intermediate)
    """
    H, W, cout = out_ref.shape
    cin = x_ref.shape[-1]
    dt = x_ref.dtype

    # ---- zero only the 1-pixel border of the padded scratches ----
    # (cheap thin stores; the interiors are fully overwritten below)
    def _zero_border(buf, c):
        zrow = jnp.zeros((1, W + 2, c), buf.dtype)
        zcol = jnp.zeros((H + 2, 1, c), buf.dtype)
        buf[0:1, :, :] = zrow
        buf[H + 1:H + 2, :, :] = zrow
        buf[:, 0:1, :] = zcol
        buf[:, W + 1:W + 2, :] = zcol

    _zero_border(xpad, cin)
    _zero_border(midpad, cout)

    # ---- load the input once; reused for conv1 taps and the residual ----
    x = x_ref[...]
    xpad[1:H + 1, 1:W + 1, :] = x

    # ---- conv1: 9 shifted channel-contraction matmuls on the MXU ----
    # operands stay in the native dtype; accumulate in f32.
    acc1 = jnp.zeros((H, W, cout), jnp.float32)
    for k in range(9):
        ki, kj = divmod(k, 3)
        patch = xpad[ki:ki + H, kj:kj + W, :]
        acc1 = acc1 + jnp.dot(patch, w1_ref[k],
                              preferred_element_type=jnp.float32)

    # folded BN1 + ReLU (f32 on the VPU); store intermediate in native dtype
    out1 = jnp.maximum(acc1 * s1_ref[...] + b1_ref[...], 0.0)
    midpad[1:H + 1, 1:W + 1, :] = out1.astype(dt)

    # ---- conv2 ----
    acc2 = jnp.zeros((H, W, cout), jnp.float32)
    for k in range(9):
        ki, kj = divmod(k, 3)
        patch = midpad[ki:ki + H, kj:kj + W, :]
        acc2 = acc2 + jnp.dot(patch, w2_ref[k],
                              preferred_element_type=jnp.float32)

    # folded BN2 + residual (reuses x already loaded) + ReLU
    out2 = acc2 * s2_ref[...] + b2_ref[...] + x.astype(jnp.float32)
    out_ref[...] = jnp.maximum(out2, 0.0).astype(out_ref.dtype)


@jax.jit
def resnet_block_forward(x_nhwc, w1, b1, g1, beta1, m1, v1,
                         w2, b2, g2, beta2, m2, v2, eps=1e-5):
    """x_nhwc: (N, H, W, Cin).  Weights wX: (3, 3, Cin, Cout) HWIO."""
    N, H, W, cin = x_nhwc.shape
    cout = w1.shape[-1]
    dtype = x_nhwc.dtype

    # fold BN (eval mode, running stats) + conv bias:  y = s*conv(x) + bias
    s1 = g1 / jnp.sqrt(v1 + eps)
    bb1 = s1 * (b1 - m1) + beta1
    s2 = g2 / jnp.sqrt(v2 + eps)
    bb2 = s2 * (b2 - m2) + beta2

    # weights in the input's native dtype so the MXU gets native operands
    w1f = w1.reshape(9, cin, cout).astype(dtype)
    w2f = w2.reshape(9, cout, cout).astype(dtype)
    # keep BN scale/bias in f32 (VPU math stays f32)
    s1r = s1.reshape(1, cout).astype(jnp.float32)
    bb1r = bb1.reshape(1, cout).astype(jnp.float32)
    s2r = s2.reshape(1, cout).astype(jnp.float32)
    bb2r = bb2.reshape(1, cout).astype(jnp.float32)

    # advisory cost hint for XLA's scheduler
    flops = 2 * N * H * W * 9 * (cin * cout + cout * cout)
    bytes_accessed = ((x_nhwc.size + N * H * W * cout) * x_nhwc.dtype.itemsize
                      + (w1f.size + w2f.size) * w1f.dtype.itemsize
                      + 4 * cout * 4)
    cost = pl.CostEstimate(flops=int(flops), transcendentals=0,
                           bytes_accessed=int(bytes_accessed))

    out = pl.pallas_call(
        _resnet_block_kernel,
        out_shape=jax.ShapeDtypeStruct((N, H, W, cout), dtype),
        grid_spec=pltpu.PrefetchScalarGridSpec(
            num_scalar_prefetch=0,
            grid=(N,),
            in_specs=[
                pl.BlockSpec((None, H, W, cin), lambda n: (n, 0, 0, 0)),
                pl.BlockSpec((9, cin, cout), lambda n: (0, 0, 0)),
                pl.BlockSpec((1, cout), lambda n: (0, 0)),
                pl.BlockSpec((1, cout), lambda n: (0, 0)),
                pl.BlockSpec((9, cout, cout), lambda n: (0, 0, 0)),
                pl.BlockSpec((1, cout), lambda n: (0, 0)),
                pl.BlockSpec((1, cout), lambda n: (0, 0)),
            ],
            out_specs=pl.BlockSpec((None, H, W, cout), lambda n: (n, 0, 0, 0)),
            scratch_shapes=[
                pltpu.VMEM((H + 2, W + 2, cin), dtype),    # padded input
                pltpu.VMEM((H + 2, W + 2, cout), dtype),   # padded conv1 out
            ],
        ),
        compiler_params=pltpu.CompilerParams(
            dimension_semantics=("parallel",)),
        cost_estimate=cost,
    )(x_nhwc, w1f, s1r, bb1r, w2f, s2r, bb2r)
    return out


def _reference(x_nhwc, w1, b1, g1, beta1, m1, v1,
               w2, b2, g2, beta2, m2, v2, eps=1e-5):
    """Pure-JAX reference (NHWC conv) for validation."""
    dn = jax.lax.conv_dimension_numbers(x_nhwc.shape, w1.shape,
                                        ("NHWC", "HWIO", "NHWC"))
    c1 = jax.lax.conv_general_dilated(x_nhwc, w1, (1, 1), "SAME",
                                      dimension_numbers=dn) + b1
    o1 = jax.nn.relu(g1 * (c1 - m1) / jnp.sqrt(v1 + eps) + beta1)
    c2 = jax.lax.conv_general_dilated(o1, w2, (1, 1), "SAME",
                                      dimension_numbers=dn) + b2
    o2 = g2 * (c2 - m2) / jnp.sqrt(v2 + eps) + beta2
    return jax.nn.relu(o2 + x_nhwc)


if __name__ == "__main__":
    N, C, Hs, Ws = 2, 4, 16, 16  # in_channels == out_channels, stride=1

    key = jax.random.PRNGKey(0)
    keys = jax.random.split(key, 12)

    # conv1 / bn1
    w1 = jax.random.normal(keys[0], (3, 3, C, C), jnp.float32) * 0.1
    b1 = jax.random.normal(keys[1], (C,), jnp.float32) * 0.05
    g1 = jax.random.uniform(keys[2], (C,), jnp.float32, 0.5, 1.5)
    beta1 = jax.random.normal(keys[3], (C,), jnp.float32) * 0.1
    m1 = jax.random.normal(keys[4], (C,), jnp.float32) * 0.1
    v1 = jax.random.uniform(keys[5], (C,), jnp.float32, 0.5, 1.5)

    # conv2 / bn2
    w2 = jax.random.normal(keys[6], (3, 3, C, C), jnp.float32) * 0.1
    b2 = jax.random.normal(keys[7], (C,), jnp.float32) * 0.05
    g2 = jax.random.uniform(keys[8], (C,), jnp.float32, 0.5, 1.5)
    beta2 = jax.random.normal(keys[9], (C,), jnp.float32) * 0.1
    m2 = jax.random.normal(keys[10], (C,), jnp.float32) * 0.1
    v2 = jax.random.uniform(keys[11], (C,), jnp.float32, 0.5, 1.5)

    # input: PyTorch would be NCHW (2, 4, 16, 16); kernel layout is NHWC.
    x_nchw = jax.random.normal(jax.random.PRNGKey(42), (N, C, Hs, Ws),
                               jnp.float32)
    x_nhwc = jnp.transpose(x_nchw, (0, 2, 3, 1))

    params = (w1, b1, g1, beta1, m1, v1, w2, b2, g2, beta2, m2, v2)

    out = resnet_block_forward(x_nhwc, *params)
    out = jax.block_until_ready(out)

    ref = jax.block_until_ready(_reference(x_nhwc, *params))
    assert out.shape == (N, Hs, Ws, C)
    assert jnp.allclose(out, ref, atol=1e-4, rtol=1e-4), "mismatch vs reference"

    print("KERNEL_OK")
</pallas_src>

<mosaic_0001>
module attributes {stable_mosaic.version = 11 : i64} {
  func.func @_resnet_block_kernel(%arg0: i32, %arg1: memref<1x16x16x4xf32, #tpu.memory_space<vmem>>, %arg2: memref<9x4x4xf32, #tpu.memory_space<vmem>>, %arg3: memref<1x4xf32, #tpu.memory_space<vmem>>, %arg4: memref<1x4xf32, #tpu.memory_space<vmem>>, %arg5: memref<9x4x4xf32, #tpu.memory_space<vmem>>, %arg6: memref<1x4xf32, #tpu.memory_space<vmem>>, %arg7: memref<1x4xf32, #tpu.memory_space<vmem>>, %arg8: memref<1x16x16x4xf32, #tpu.memory_space<vmem>>, %arg9: memref<18x18x4xf32, #tpu.memory_space<vmem>>, %arg10: memref<18x18x4xf32, #tpu.memory_space<vmem>>) attributes {dimension_semantics = [#tpu.dimension_semantics<parallel>], iteration_bounds = array<i64: 2>, scalar_prefetch = 0 : i64, scratch_operands = 2 : i64, tpu.core_type = #tpu.core_type<tc>, window_params = [{transform_indices = @transform_0, window_bounds = array<i64: 1, 16, 16, 4>}, {pipeline_mode = #tpu.pipeline_mode<synchronous>, transform_indices = @transform_1, window_bounds = array<i64: 9, 4, 4>}, {pipeline_mode = #tpu.pipeline_mode<synchronous>, transform_indices = @transform_2, window_bounds = array<i64: 1, 4>}, {pipeline_mode = #tpu.pipeline_mode<synchronous>, transform_indices = @transform_3, window_bounds = array<i64: 1, 4>}, {pipeline_mode = #tpu.pipeline_mode<synchronous>, transform_indices = @transform_4, window_bounds = array<i64: 9, 4, 4>}, {pipeline_mode = #tpu.pipeline_mode<synchronous>, transform_indices = @transform_5, window_bounds = array<i64: 1, 4>}, {pipeline_mode = #tpu.pipeline_mode<synchronous>, transform_indices = @transform_6, window_bounds = array<i64: 1, 4>}, {transform_indices = @transform_7, window_bounds = array<i64: 1, 16, 16, 4>}]} {
    %cst = arith.constant 0.000000e+00 : f32
    %0 = vector.broadcast %cst : f32 to vector<1x18x4xf32>
    %cst_0 = arith.constant 0.000000e+00 : f32
    %1 = vector.broadcast %cst_0 : f32 to vector<18x1x4xf32>
    %c0 = arith.constant 0 : index
    %c0_1 = arith.constant 0 : index
    %c0_2 = arith.constant 0 : index
    %2 = vector.load %arg9[%c0, %c0_1, %c0_2] : memref<18x18x4xf32, #tpu.memory_space<vmem>>, vector<1x18x4xf32>
    tpu.vector_store %arg9[%c0, %c0_1, %c0_2], %0 {strides = array<i32>} : memref<18x18x4xf32, #tpu.memory_space<vmem>>, vector<1x18x4xf32>,
    %c17 = arith.constant 17 : index
    %c0_3 = arith.constant 0 : index
    %c0_4 = arith.constant 0 : index
    %3 = vector.load %arg9[%c17, %c0_3, %c0_4] : memref<18x18x4xf32, #tpu.memory_space<vmem>>, vector<1x18x4xf32>
    tpu.vector_store %arg9[%c17, %c0_3, %c0_4], %0 {strides = array<i32>} : memref<18x18x4xf32, #tpu.memory_space<vmem>>, vector<1x18x4xf32>,
    %c0_5 = arith.constant 0 : index
    %c0_6 = arith.constant 0 : index
    %c0_7 = arith.constant 0 : index
    %4 = vector.load %arg9[%c0_5, %c0_6, %c0_7] : memref<18x18x4xf32, #tpu.memory_space<vmem>>, vector<18x1x4xf32>
    tpu.vector_store %arg9[%c0_5, %c0_6, %c0_7], %1 {strides = array<i32>} : memref<18x18x4xf32, #tpu.memory_space<vmem>>, vector<18x1x4xf32>,
    %c0_8 = arith.constant 0 : index
    %c17_9 = arith.constant 17 : index
    %c0_10 = arith.constant 0 : index
    %5 = vector.load %arg9[%c0_8, %c17_9, %c0_10] : memref<18x18x4xf32, #tpu.memory_space<vmem>>, vector<18x1x4xf32>
    tpu.vector_store %arg9[%c0_8, %c17_9, %c0_10], %1 {strides = array<i32>} : memref<18x18x4xf32, #tpu.memory_space<vmem>>, vector<18x1x4xf32>,
    %cst_11 = arith.constant 0.000000e+00 : f32
    %6 = vector.broadcast %cst_11 : f32 to vector<1x18x4xf32>
    %cst_12 = arith.constant 0.000000e+00 : f32
    %7 = vector.broadcast %cst_12 : f32 to vector<18x1x4xf32>
    %c0_13 = arith.constant 0 : index
    %c0_14 = arith.constant 0 : index
    %c0_15 = arith.constant 0 : index
    %8 = vector.load %arg10[%c0_13, %c0_14, %c0_15] : memref<18x18x4xf32, #tpu.memory_space<vmem>>, vector<1x18x4xf32>
    tpu.vector_store %arg10[%c0_13, %c0_14, %c0_15], %6 {strides = array<i32>} : memref<18x18x4xf32, #tpu.memory_space<vmem>>, vector<1x18x4xf32>,
    %c17_16 = arith.constant 17 : index
    %c0_17 = arith.constant 0 : index
    %c0_18 = arith.constant 0 : index
    %9 = vector.load %arg10[%c17_16, %c0_17, %c0_18] : memref<18x18x4xf32, #tpu.memory_space<vmem>>, vector<1x18x4xf32>
    tpu.vector_store %arg10[%c17_16, %c0_17, %c0_18], %6 {strides = array<i32>} : memref<18x18x4xf32, #tpu.memory_space<vmem>>, vector<1x18x4xf32>,
    %c0_19 = arith.constant 0 : index
    %c0_20 = arith.constant 0 : index
    %c0_21 = arith.constant 0 : index
    %10 = vector.load %arg10[%c0_19, %c0_20, %c0_21] : memref<18x18x4xf32, #tpu.memory_space<vmem>>, vector<18x1x4xf32>
    tpu.vector_store %arg10[%c0_19, %c0_20, %c0_21], %7 {strides = array<i32>} : memref<18x18x4xf32, #tpu.memory_space<vmem>>, vector<18x1x4xf32>,
    %c0_22 = arith.constant 0 : index
    %c17_23 = arith.constant 17 : index
    %c0_24 = arith.constant 0 : index
    %11 = vector.load %arg10[%c0_22, %c17_23, %c0_24] : memref<18x18x4xf32, #tpu.memory_space<vmem>>, vector<18x1x4xf32>
    tpu.vector_store %arg10[%c0_22, %c17_23, %c0_24], %7 {strides = array<i32>} : memref<18x18x4xf32, #tpu.memory_space<vmem>>, vector<18x1x4xf32>,
    %c0_25 = arith.constant 0 : index
    %c0_26 = arith.constant 0 : index
    %c0_27 = arith.constant 0 : index
    %c0_28 = arith.constant 0 : index
    %12 = vector.load %arg1[%c0_25, %c0_26, %c0_27, %c0_28] : memref<1x16x16x4xf32, #tpu.memory_space<vmem>>, vector<1x16x16x4xf32>
    %13 = vector.shape_cast %12 : vector<1x16x16x4xf32> to vector<16x16x4xf32>
    %c1 = arith.constant 1 : index
    %c1_29 = arith.constant 1 : index
    %c0_30 = arith.constant 0 : index
    %14 = vector.load %arg9[%c1, %c1_29, %c0_30] : memref<18x18x4xf32, #tpu.memory_space<vmem>>, vector<16x16x4xf32>
    tpu.vector_store %arg9[%c1, %c1_29, %c0_30], %13 {strides = array<i32>} : memref<18x18x4xf32, #tpu.memory_space<vmem>>, vector<16x16x4xf32>,
    %cst_31 = arith.constant 0.000000e+00 : f32
    %15 = vector.broadcast %cst_31 : f32 to vector<16x16x4xf32>
    %c0_32 = arith.constant 0 : index
    %c0_33 = arith.constant 0 : index
    %c0_34 = arith.constant 0 : index
    %16 = vector.load %arg9[%c0_32, %c0_33, %c0_34] : memref<18x18x4xf32, #tpu.memory_space<vmem>>, vector<16x16x4xf32>
    %c0_35 = arith.constant 0 : index
    %c0_36 = arith.constant 0 : index
    %c0_37 = arith.constant 0 : index
    %17 = vector.load %arg2[%c0_35, %c0_36, %c0_37] : memref<9x4x4xf32, #tpu.memory_space<vmem>>, vector<1x4x4xf32>
    %18 = vector.shape_cast %17 : vector<1x4x4xf32> to vector<4x4xf32>
    %cst_38 = arith.constant dense<0.000000e+00> : vector<16x16x4xf32>
    %19 = tpu.matmul %16, %18, %cst_38 {dimension_numbers = #tpu.dot_dimension_numbers<[2], [0], [0, 1], [1], [0, 0, 0, 1, 1, 1], [], []>} : vector<16x16x4xf32>, vector<4x4xf32>, vector<16x16x4xf32> -> vector<16x16x4xf32>
    %20 = arith.addf %15, %19 : vector<16x16x4xf32>
    %c0_39 = arith.constant 0 : index
    %c1_40 = arith.constant 1 : index
    %c0_41 = arith.constant 0 : index
    %21 = vector.load %arg9[%c0_39, %c1_40, %c0_41] : memref<18x18x4xf32, #tpu.memory_space<vmem>>, vector<16x16x4xf32>
    %c1_42 = arith.constant 1 : index
    %c0_43 = arith.constant 0 : index
    %c0_44 = arith.constant 0 : index
    %22 = vector.load %arg2[%c1_42, %c0_43, %c0_44] : memref<9x4x4xf32, #tpu.memory_space<vmem>>, vector<1x4x4xf32>
    %23 = vector.shape_cast %22 : vector<1x4x4xf32> to vector<4x4xf32>
    %cst_45 = arith.constant dense<0.000000e+00> : vector<16x16x4xf32>
    %24 = tpu.matmul %21, %23, %cst_45 {dimension_numbers = #tpu.dot_dimension_numbers<[2], [0], [0, 1], [1], [0, 0, 0, 1, 1, 1], [], []>} : vector<16x16x4xf32>, vector<4x4xf32>, vector<16x16x4xf32> -> vector<16x16x4xf32>
    %25 = arith.addf %20, %24 : vector<16x16x4xf32>
    %c0_46 = arith.constant 0 : index
    %c2 = arith.constant 2 : index
    %c0_47 = arith.constant 0 : index
    %26 = vector.load %arg9[%c0_46, %c2, %c0_47] : memref<18x18x4xf32, #tpu.memory_space<vmem>>, vector<16x16x4xf32>
    %c2_48 = arith.constant 2 : index
    %c0_49 = arith.constant 0 : index
    %c0_50 = arith.constant 0 : index
    %27 = vector.load %arg2[%c2_48, %c0_49, %c0_50] : memref<9x4x4xf32, #tpu.memory_space<vmem>>, vector<1x4x4xf32>
    %28 = vector.shape_cast %27 : vector<1x4x4xf32> to vector<4x4xf32>
    %cst_51 = arith.constant dense<0.000000e+00> : vector<16x16x4xf32>
    %29 = tpu.matmul %26, %28, %cst_51 {dimension_numbers = #tpu.dot_dimension_numbers<[2], [0], [0, 1], [1], [0, 0, 0, 1, 1, 1], [], []>} : vector<16x16x4xf32>, vector<4x4xf32>, vector<16x16x4xf32> -> vector<16x16x4xf32>
    %30 = arith.addf %25, %29 : vector<16x16x4xf32>
    %c1_52 = arith.constant 1 : index
    %c0_53 = arith.constant 0 : index
    %c0_54 = arith.constant 0 : index
    %31 = vector.load %arg9[%c1_52, %c0_53, %c0_54] : memref<18x18x4xf32, #tpu.memory_space<vmem>>, vector<16x16x4xf32>
    %c3 = arith.constant 3 : index
    %c0_55 = arith.constant 0 : index
    %c0_56 = arith.constant 0 : index
    %32 = vector.load %arg2[%c3, %c0_55, %c0_56] : memref<9x4x4xf32, #tpu.memory_space<vmem>>, vector<1x4x4xf32>
    %33 = vector.shape_cast %32 : vector<1x4x4xf32> to vector<4x4xf32>
    %cst_57 = arith.constant dense<0.000000e+00> : vector<16x16x4xf32>
    %34 = tpu.matmul %31, %33, %cst_57 {dimension_numbers = #tpu.dot_dimension_numbers<[2], [0], [0, 1], [1], [0, 0, 0, 1, 1, 1], [], []>} : vector<16x16x4xf32>, vector<4x4xf32>, vector<16x16x4xf32> -> vector<16x16x4xf32>
    %35 = arith.addf %30, %34 : vector<16x16x4xf32>
    %c1_58 = arith.constant 1 : index
    %c1_59 = arith.constant 1 : index
    %c0_60 = arith.constant 0 : index
    %36 = vector.load %arg9[%c1_58, %c1_59, %c0_60] : memref<18x18x4xf32, #tpu.memory_space<vmem>>, vector<16x16x4xf32>
    %c4 = arith.constant 4 : index
    %c0_61 = arith.constant 0 : index
    %c0_62 = arith.constant 0 : index
    %37 = vector.load %arg2[%c4, %c0_61, %c0_62] : memref<9x4x4xf32, #tpu.memory_space<vmem>>, vector<1x4x4xf32>
    %38 = vector.shape_cast %37 : vector<1x4x4xf32> to vector<4x4xf32>
    %cst_63 = arith.constant dense<0.000000e+00> : vector<16x16x4xf32>
    %39 = tpu.matmul %36, %38, %cst_63 {dimension_numbers = #tpu.dot_dimension_numbers<[2], [0], [0, 1], [1], [0, 0, 0, 1, 1, 1], [], []>} : vector<16x16x4xf32>, vector<4x4xf32>, vector<16x16x4xf32> -> vector<16x16x4xf32>
    %40 = arith.addf %35, %39 : vector<16x16x4xf32>
    %c1_64 = arith.constant 1 : index
    %c2_65 = arith.constant 2 : index
    %c0_66 = arith.constant 0 : index
    %41 = vector.load %arg9[%c1_64, %c2_65, %c0_66] : memref<18x18x4xf32, #tpu.memory_space<vmem>>, vector<16x16x4xf32>
    %c5 = arith.constant 5 : index
    %c0_67 = arith.constant 0 : index
    %c0_68 = arith.constant 0 : index
    %42 = vector.load %arg2[%c5, %c0_67, %c0_68] : memref<9x4x4xf32, #tpu.memory_space<vmem>>, vector<1x4x4xf32>
    %43 = vector.shape_cast %42 : vector<1x4x4xf32> to vector<4x4xf32>
    %cst_69 = arith.constant dense<0.000000e+00> : vector<16x16x4xf32>
    %44 = tpu.matmul %41, %43, %cst_69 {dimension_numbers = #tpu.dot_dimension_numbers<[2], [0], [0, 1], [1], [0, 0, 0, 1, 1, 1], [], []>} : vector<16x16x4xf32>, vector<4x4xf32>, vector<16x16x4xf32> -> vector<16x16x4xf32>
    %45 = arith.addf %40, %44 : vector<16x16x4xf32>
    %c2_70 = arith.constant 2 : index
    %c0_71 = arith.constant 0 : index
    %c0_72 = arith.constant 0 : index
    %46 = vector.load %arg9[%c2_70, %c0_71, %c0_72] : memref<18x18x4xf32, #tpu.memory_space<vmem>>, vector<16x16x4xf32>
    %c6 = arith.constant 6 : index
    %c0_73 = arith.constant 0 : index
    %c0_74 = arith.constant 0 : index
    %47 = vector.load %arg2[%c6, %c0_73, %c0_74] : memref<9x4x4xf32, #tpu.memory_space<vmem>>, vector<1x4x4xf32>
    %48 = vector.shape_cast %47 : vector<1x4x4xf32> to vector<4x4xf32>
    %cst_75 = arith.constant dense<0.000000e+00> : vector<16x16x4xf32>
    %49 = tpu.matmul %46, %48, %cst_75 {dimension_numbers = #tpu.dot_dimension_numbers<[2], [0], [0, 1], [1], [0, 0, 0, 1, 1, 1], [], []>} : vector<16x16x4xf32>, vector<4x4xf32>, vector<16x16x4xf32> -> vector<16x16x4xf32>
    %50 = arith.addf %45, %49 : vector<16x16x4xf32>
    %c2_76 = arith.constant 2 : index
    %c1_77 = arith.constant 1 : index
    %c0_78 = arith.constant 0 : index
    %51 = vector.load %arg9[%c2_76, %c1_77, %c0_78] : memref<18x18x4xf32, #tpu.memory_space<vmem>>, vector<16x16x4xf32>
    %c7 = arith.constant 7 : index
    %c0_79 = arith.constant 0 : index
    %c0_80 = arith.constant 0 : index
    %52 = vector.load %arg2[%c7, %c0_79, %c0_80] : memref<9x4x4xf32, #tpu.memory_space<vmem>>, vector<1x4x4xf32>
    %53 = vector.shape_cast %52 : vector<1x4x4xf32> to vector<4x4xf32>
    %cst_81 = arith.constant dense<0.000000e+00> : vector<16x16x4xf32>
    %54 = tpu.matmul %51, %53, %cst_81 {dimension_numbers = #tpu.dot_dimension_numbers<[2], [0], [0, 1], [1], [0, 0, 0, 1, 1, 1], [], []>} : vector<16x16x4xf32>, vector<4x4xf32>, vector<16x16x4xf32> -> vector<16x16x4xf32>
    %55 = arith.addf %50, %54 : vector<16x16x4xf32>
    %c2_82 = arith.constant 2 : index
    %c2_83 = arith.constant 2 : index
    %c0_84 = arith.constant 0 : index
    %56 = vector.load %arg9[%c2_82, %c2_83, %c0_84] : memref<18x18x4xf32, #tpu.memory_space<vmem>>, vector<16x16x4xf32>
    %c8 = arith.constant 8 : index
    %c0_85 = arith.constant 0 : index
    %c0_86 = arith.constant 0 : index
    %57 = vector.load %arg2[%c8, %c0_85, %c0_86] : memref<9x4x4xf32, #tpu.memory_space<vmem>>, vector<1x4x4xf32>
    %58 = vector.shape_cast %57 : vector<1x4x4xf32> to vector<4x4xf32>
    %cst_87 = arith.constant dense<0.000000e+00> : vector<16x16x4xf32>
    %59 = tpu.matmul %56, %58, %cst_87 {dimension_numbers = #tpu.dot_dimension_numbers<[2], [0], [0, 1], [1], [0, 0, 0, 1, 1, 1], [], []>} : vector<16x16x4xf32>, vector<4x4xf32>, vector<16x16x4xf32> -> vector<16x16x4xf32>
    %60 = arith.addf %55, %59 : vector<16x16x4xf32>
    %c0_88 = arith.constant 0 : index
    %c0_89 = arith.constant 0 : index
    %61 = vector.load %arg3[%c0_88, %c0_89] : memref<1x4xf32, #tpu.memory_space<vmem>>, vector<1x4xf32>
    %62 = vector.shape_cast %61 : vector<1x4xf32> to vector<1x1x4xf32>
    %63 = vector.broadcast %62 : vector<1x1x4xf32> to vector<16x16x4xf32>
    %64 = arith.mulf %60, %63 : vector<16x16x4xf32>
    %c0_90 = arith.constant 0 : index
    %c0_91 = arith.constant 0 : index
    %65 = vector.load %arg4[%c0_90, %c0_91] : memref<1x4xf32, #tpu.memory_space<vmem>>, vector<1x4xf32>
    %66 = vector.shape_cast %65 : vector<1x4xf32> to vector<1x1x4xf32>
    %67 = vector.broadcast %66 : vector<1x1x4xf32> to vector<16x16x4xf32>
    %68 = arith.addf %64, %67 : vector<16x16x4xf32>
    %cst_92 = arith.constant 0.000000e+00 : f32
    %69 = vector.broadcast %cst_92 : f32 to vector<16x16x4xf32>
    %70 = arith.maximumf %68, %69 : vector<16x16x4xf32>
    %c1_93 = arith.constant 1 : index
    %c1_94 = arith.constant 1 : index
    %c0_95 = arith.constant 0 : index
    %71 = vector.load %arg10[%c1_93, %c1_94, %c0_95] : memref<18x18x4xf32, #tpu.memory_space<vmem>>, vector<16x16x4xf32>
    tpu.vector_store %arg10[%c1_93, %c1_94, %c0_95], %70 {strides = array<i32>} : memref<18x18x4xf32, #tpu.memory_space<vmem>>, vector<16x16x4xf32>,
    %cst_96 = arith.constant 0.000000e+00 : f32
    %72 = vector.broadcast %cst_96 : f32 to vector<16x16x4xf32>
    %c0_97 = arith.constant 0 : index
    %c0_98 = arith.constant 0 : index
    %c0_99 = arith.constant 0 : index
    %73 = vector.load %arg10[%c0_97, %c0_98, %c0_99] : memref<18x18x4xf32, #tpu.memory_space<vmem>>, vector<16x16x4xf32>
    %c0_100 = arith.constant 0 : index
    %c0_101 = arith.constant 0 : index
    %c0_102 = arith.constant 0 : index
    %74 = vector.load %arg5[%c0_100, %c0_101, %c0_102] : memref<9x4x4xf32, #tpu.memory_space<vmem>>, vector<1x4x4xf32>
    %75 = vector.shape_cast %74 : vector<1x4x4xf32> to vector<4x4xf32>
    %cst_103 = arith.constant dense<0.000000e+00> : vector<16x16x4xf32>
    %76 = tpu.matmul %73, %75, %cst_103 {dimension_numbers = #tpu.dot_dimension_numbers<[2], [0], [0, 1], [1], [0, 0, 0, 1, 1, 1], [], []>} : vector<16x16x4xf32>, vector<4x4xf32>, vector<16x16x4xf32> -> vector<16x16x4xf32>
    %77 = arith.addf %72, %76 : vector<16x16x4xf32>
    %c0_104 = arith.constant 0 : index
    %c1_105 = arith.constant 1 : index
    %c0_106 = arith.constant 0 : index
    %78 = vector.load %arg10[%c0_104, %c1_105, %c0_106] : memref<18x18x4xf32, #tpu.memory_space<vmem>>, vector<16x16x4xf32>
    %c1_107 = arith.constant 1 : index
    %c0_108 = arith.constant 0 : index
    %c0_109 = arith.constant 0 : index
    %79 = vector.load %arg5[%c1_107, %c0_108, %c0_109] : memref<9x4x4xf32, #tpu.memory_space<vmem>>, vector<1x4x4xf32>
    %80 = vector.shape_cast %79 : vector<1x4x4xf32> to vector<4x4xf32>
    %cst_110 = arith.constant dense<0.000000e+00> : vector<16x16x4xf32>
    %81 = tpu.matmul %78, %80, %cst_110 {dimension_numbers = #tpu.dot_dimension_numbers<[2], [0], [0, 1], [1], [0, 0, 0, 1, 1, 1], [], []>} : vector<16x16x4xf32>, vector<4x4xf32>, vector<16x16x4xf32> -> vector<16x16x4xf32>
    %82 = arith.addf %77, %81 : vector<16x16x4xf32>
    %c0_111 = arith.constant 0 : index
    %c2_112 = arith.constant 2 : index
    %c0_113 = arith.constant 0 : index
    %83 = vector.load %arg10[%c0_111, %c2_112, %c0_113] : memref<18x18x4xf32, #tpu.memory_space<vmem>>, vector<16x16x4xf32>
    %c2_114 = arith.constant 2 : index
    %c0_115 = arith.constant 0 : index
    %c0_116 = arith.constant 0 : index
    %84 = vector.load %arg5[%c2_114, %c0_115, %c0_116] : memref<9x4x4xf32, #tpu.memory_space<vmem>>, vector<1x4x4xf32>
    %85 = vector.shape_cast %84 : vector<1x4x4xf32> to vector<4x4xf32>
    %cst_117 = arith.constant dense<0.000000e+00> : vector<16x16x4xf32>
    %86 = tpu.matmul %83, %85, %cst_117 {dimension_numbers = #tpu.dot_dimension_numbers<[2], [0], [0, 1], [1], [0, 0, 0, 1, 1, 1], [], []>} : vector<16x16x4xf32>, vector<4x4xf32>, vector<16x16x4xf32> -> vector<16x16x4xf32>
    %87 = arith.addf %82, %86 : vector<16x16x4xf32>
    %c1_118 = arith.constant 1 : index
    %c0_119 = arith.constant 0 : index
    %c0_120 = arith.constant 0 : index
    %88 = vector.load %arg10[%c1_118, %c0_119, %c0_120] : memref<18x18x4xf32, #tpu.memory_space<vmem>>, vector<16x16x4xf32>
    %c3_121 = arith.constant 3 : index
    %c0_122 = arith.constant 0 : index
    %c0_123 = arith.constant 0 : index
    %89 = vector.load %arg5[%c3_121, %c0_122, %c0_123] : memref<9x4x4xf32, #tpu.memory_space<vmem>>, vector<1x4x4xf32>
    %90 = vector.shape_cast %89 : vector<1x4x4xf32> to vector<4x4xf32>
    %cst_124 = arith.constant dense<0.000000e+00> : vector<16x16x4xf32>
    %91 = tpu.matmul %88, %90, %cst_124 {dimension_numbers = #tpu.dot_dimension_numbers<[2], [0], [0, 1], [1], [0, 0, 0, 1, 1, 1], [], []>} : vector<16x16x4xf32>, vector<4x4xf32>, vector<16x16x4xf32> -> vector<16x16x4xf32>
    %92 = arith.addf %87, %91 : vector<16x16x4xf32>
    %c1_125 = arith.constant 1 : index
    %c1_126 = arith.constant 1 : index
    %c0_127 = arith.constant 0 : index
    %93 = vector.load %arg10[%c1_125, %c1_126, %c0_127] : memref<18x18x4xf32, #tpu.memory_space<vmem>>, vector<16x16x4xf32>
    %c4_128 = arith.constant 4 : index
    %c0_129 = arith.constant 0 : index
    %c0_130 = arith.constant 0 : index
    %94 = vector.load %arg5[%c4_128, %c0_129, %c0_130] : memref<9x4x4xf32, #tpu.memory_space<vmem>>, vector<1x4x4xf32>
    %95 = vector.shape_cast %94 : vector<1x4x4xf32> to vector<4x4xf32>
    %cst_131 = arith.constant dense<0.000000e+00> : vector<16x16x4xf32>
    %96 = tpu.matmul %93, %95, %cst_131 {dimension_numbers = #tpu.dot_dimension_numbers<[2], [0], [0, 1], [1], [0, 0, 0, 1, 1, 1], [], []>} : vector<16x16x4xf32>, vector<4x4xf32>, vector<16x16x4xf32> -> vector<16x16x4xf32>
    %97 = arith.addf %92, %96 : vector<16x16x4xf32>
    %c1_132 = arith.constant 1 : index
    %c2_133 = arith.constant 2 : index
    %c0_134 = arith.constant 0 : index
    %98 = vector.load %arg10[%c1_132, %c2_133, %c0_134] : memref<18x18x4xf32, #tpu.memory_space<vmem>>, vector<16x16x4xf32>
    %c5_135 = arith.constant 5 : index
    %c0_136 = arith.constant 0 : index
    %c0_137 = arith.constant 0 : index
    %99 = vector.load %arg5[%c5_135, %c0_136, %c0_137] : memref<9x4x4xf32, #tpu.memory_space<vmem>>, vector<1x4x4xf32>
    %100 = vector.shape_cast %99 : vector<1x4x4xf32> to vector<4x4xf32>
    %cst_138 = arith.constant dense<0.000000e+00> : vector<16x16x4xf32>
    %101 = tpu.matmul %98, %100, %cst_138 {dimension_numbers = #tpu.dot_dimension_numbers<[2], [0], [0, 1], [1], [0, 0, 0, 1, 1, 1], [], []>} : vector<16x16x4xf32>, vector<4x4xf32>, vector<16x16x4xf32> -> vector<16x16x4xf32>
    %102 = arith.addf %97, %101 : vector<16x16x4xf32>
    %c2_139 = arith.constant 2 : index
    %c0_140 = arith.constant 0 : index
    %c0_141 = arith.constant 0 : index
    %103 = vector.load %arg10[%c2_139, %c0_140, %c0_141] : memref<18x18x4xf32, #tpu.memory_space<vmem>>, vector<16x16x4xf32>
    %c6_142 = arith.constant 6 : index
    %c0_143 = arith.constant 0 : index
    %c0_144 = arith.constant 0 : index
    %104 = vector.load %arg5[%c6_142, %c0_143, %c0_144] : memref<9x4x4xf32, #tpu.memory_space<vmem>>, vector<1x4x4xf32>
    %105 = vector.shape_cast %104 : vector<1x4x4xf32> to vector<4x4xf32>
    %cst_145 = arith.constant dense<0.000000e+00> : vector<16x16x4xf32>
    %106 = tpu.matmul %103, %105, %cst_145 {dimension_numbers = #tpu.dot_dimension_numbers<[2], [0], [0, 1], [1], [0, 0, 0, 1, 1, 1], [], []>} : vector<16x16x4xf32>, vector<4x4xf32>, vector<16x16x4xf32> -> vector<16x16x4xf32>
    %107 = arith.addf %102, %106 : vector<16x16x4xf32>
    %c2_146 = arith.constant 2 : index
    %c1_147 = arith.constant 1 : index
    %c0_148 = arith.constant 0 : index
    %108 = vector.load %arg10[%c2_146, %c1_147, %c0_148] : memref<18x18x4xf32, #tpu.memory_space<vmem>>, vector<16x16x4xf32>
    %c7_149 = arith.constant 7 : index
    %c0_150 = arith.constant 0 : index
    %c0_151 = arith.constant 0 : index
    %109 = vector.load %arg5[%c7_149, %c0_150, %c0_151] : memref<9x4x4xf32, #tpu.memory_space<vmem>>, vector<1x4x4xf32>
    %110 = vector.shape_cast %109 : vector<1x4x4xf32> to vector<4x4xf32>
    %cst_152 = arith.constant dense<0.000000e+00> : vector<16x16x4xf32>
    %111 = tpu.matmul %108, %110, %cst_152 {dimension_numbers = #tpu.dot_dimension_numbers<[2], [0], [0, 1], [1], [0, 0, 0, 1, 1, 1], [], []>} : vector<16x16x4xf32>, vector<4x4xf32>, vector<16x16x4xf32> -> vector<16x16x4xf32>
    %112 = arith.addf %107, %111 : vector<16x16x4xf32>
    %c2_153 = arith.constant 2 : index
    %c2_154 = arith.constant 2 : index
    %c0_155 = arith.constant 0 : index
    %113 = vector.load %arg10[%c2_153, %c2_154, %c0_155] : memref<18x18x4xf32, #tpu.memory_space<vmem>>, vector<16x16x4xf32>
    %c8_156 = arith.constant 8 : index
    %c0_157 = arith.constant 0 : index
    %c0_158 = arith.constant 0 : index
    %114 = vector.load %arg5[%c8_156, %c0_157, %c0_158] : memref<9x4x4xf32, #tpu.memory_space<vmem>>, vector<1x4x4xf32>
    %115 = vector.shape_cast %114 : vector<1x4x4xf32> to vector<4x4xf32>
    %cst_159 = arith.constant dense<0.000000e+00> : vector<16x16x4xf32>
    %116 = tpu.matmul %113, %115, %cst_159 {dimension_numbers = #tpu.dot_dimension_numbers<[2], [0], [0, 1], [1], [0, 0, 0, 1, 1, 1], [], []>} : vector<16x16x4xf32>, vector<4x4xf32>, vector<16x16x4xf32> -> vector<16x16x4xf32>
    %117 = arith.addf %112, %116 : vector<16x16x4xf32>
    %c0_160 = arith.constant 0 : index
    %c0_161 = arith.constant 0 : index
    %118 = vector.load %arg6[%c0_160, %c0_161] : memref<1x4xf32, #tpu.memory_space<vmem>>, vector<1x4xf32>
    %119 = vector.shape_cast %118 : vector<1x4xf32> to vector<1x1x4xf32>
    %120 = vector.broadcast %119 : vector<1x1x4xf32> to vector<16x16x4xf32>
    %121 = arith.mulf %117, %120 : vector<16x16x4xf32>
    %c0_162 = arith.constant 0 : index
    %c0_163 = arith.constant 0 : index
    %122 = vector.load %arg7[%c0_162, %c0_163] : memref<1x4xf32, #tpu.memory_space<vmem>>, vector<1x4xf32>
    %123 = vector.shape_cast %122 : vector<1x4xf32> to vector<1x1x4xf32>
    %124 = vector.broadcast %123 : vector<1x1x4xf32> to vector<16x16x4xf32>
    %125 = arith.addf %121, %124 : vector<16x16x4xf32>
    %126 = arith.addf %125, %13 : vector<16x16x4xf32>
    %cst_164 = arith.constant 0.000000e+00 : f32
    %127 = vector.broadcast %cst_164 : f32 to vector<16x16x4xf32>
    %128 = arith.maximumf %126, %127 : vector<16x16x4xf32>
    %c0_165 = arith.constant 0 : index
    %c0_166 = arith.constant 0 : index
    %c0_167 = arith.constant 0 : index
    %c0_168 = arith.constant 0 : index
    %129 = vector.load %arg8[%c0_165, %c0_166, %c0_167, %c0_168] : memref<1x16x16x4xf32, #tpu.memory_space<vmem>>, vector<1x16x16x4xf32>
    %130 = vector.shape_cast %129 : vector<1x16x16x4xf32> to vector<16x16x4xf32>
    %131 = vector.shape_cast %128 : vector<16x16x4xf32> to vector<1x16x16x4xf32>
    tpu.vector_store %arg8[%c0_165, %c0_166, %c0_167, %c0_168], %131 {strides = array<i32>} : memref<1x16x16x4xf32, #tpu.memory_space<vmem>>, vector<1x16x16x4xf32>,
    return
  }
  func.func @transform_0(%arg0: i32) -> (i32, i32, i32, i32) {
    %c0_i32 = arith.constant 0 : i32
    %c0_i32_0 = arith.constant 0 : i32
    %c0_i32_1 = arith.constant 0 : i32
    %c0_i32_2 = arith.constant 0 : i32
    return %arg0, %c0_i32, %c0_i32_0, %c0_i32_1 : i32, i32, i32, i32
  }
  func.func @transform_1(%arg0: i32) -> (i32, i32, i32) {
    %c0_i32 = arith.constant 0 : i32
    %c0_i32_0 = arith.constant 0 : i32
    %c0_i32_1 = arith.constant 0 : i32
    %c0_i32_2 = arith.constant 0 : i32
    return %c0_i32, %c0_i32_0, %c0_i32_1 : i32, i32, i32
  }
  func.func @transform_2(%arg0: i32) -> (i32, i32) {
    %c0_i32 = arith.constant 0 : i32
    %c0_i32_0 = arith.constant 0 : i32
    %c0_i32_1 = arith.constant 0 : i32
    return %c0_i32, %c0_i32_0 : i32, i32
  }
  func.func @transform_3(%arg0: i32) -> (i32, i32) {
    %c0_i32 = arith.constant 0 : i32
    %c0_i32_0 = arith.constant 0 : i32
    %c0_i32_1 = arith.constant 0 : i32
    return %c0_i32, %c0_i32_0 : i32, i32
  }
  func.func @transform_4(%arg0: i32) -> (i32, i32, i32) {
    %c0_i32 = arith.constant 0 : i32
    %c0_i32_0 = arith.constant 0 : i32
    %c0_i32_1 = arith.constant 0 : i32
    %c0_i32_2 = arith.constant 0 : i32
    return %c0_i32, %c0_i32_0, %c0_i32_1 : i32, i32, i32
  }
  func.func @transform_5(%arg0: i32) -> (i32, i32) {
    %c0_i32 = arith.constant 0 : i32
    %c0_i32_0 = arith.constant 0 : i32
    %c0_i32_1 = arith.constant 0 : i32
    return %c0_i32, %c0_i32_0 : i32, i32
  }
  func.func @transform_6(%arg0: i32) -> (i32, i32) {
    %c0_i32 = arith.constant 0 : i32
    %c0_i32_0 = arith.constant 0 : i32
    %c0_i32_1 = arith.constant 0 : i32
    return %c0_i32, %c0_i32_0 : i32, i32
  }
  func.func @transform_7(%arg0: i32) -> (i32, i32, i32, i32) {
    %c0_i32 = arith.constant 0 : i32
    %c0_i32_0 = arith.constant 0 : i32
    %c0_i32_1 = arith.constant 0 : i32
    %c0_i32_2 = arith.constant 0 : i32
    return %arg0, %c0_i32, %c0_i32_0, %c0_i32_1 : i32, i32, i32, i32
  }
}

</mosaic_0001>

<llo_original>
// kernel: resnet_block_forward.1
$region0: #{resnet_block_forward.1}
  #allocation0 [shape = 'u32[]', space=smem, size = 0x4, offset = 0x4, fixed_abs, tag = 'smem constant byte address 0x4 - core index']
  #allocation1 [shape = 'u32[144,128]{1,0:T(1,128)}', space=vmem, size = 0x12000, scoped, tag = 'internal scratch']
  #allocation2 [shape = 'f32[18,18,4]{2,1,0:T(8,128)}', space=vmem, size = 0x36000, scoped, tag = 'scratch operand']
  #allocation3 [shape = 'f32[18,18,4]{2,1,0:T(8,128)}', space=vmem, size = 0x36000, scoped, tag = 'scratch operand']
  %s0 = inlined_call_operand.vmem [shape: f32[2,16,16,4], index: 0, kind: input, shape index: {}]
  %s1 = inlined_call_operand.vmem [shape: f32[9,4,4], index: 1, kind: input, shape index: {}]
  %s2 = inlined_call_operand.vmem [shape: f32[1,4], index: 2, kind: input, shape index: {}]
  %s3 = inlined_call_operand.vmem [shape: f32[1,4], index: 3, kind: input, shape index: {}]
  %s4 = inlined_call_operand.vmem [shape: f32[9,4,4], index: 4, kind: input, shape index: {}]
  %s5 = inlined_call_operand.vmem [shape: f32[1,4], index: 5, kind: input, shape index: {}]
  %s6 = inlined_call_operand.vmem [shape: f32[1,4], index: 6, kind: input, shape index: {}]
  %s7 = inlined_call_operand.vmem [shape: f32[2,16,16,4], index: 7, kind: output, shape index: {}]
  %s8 = sld [smem:[#allocation0]]
  $region61: #{resnet_block_forward.1} parent=0
    _
  %s10 = ssub.s32 1, %s8
  %s11 = scalar_select 0, %s10, %s8
  loop: start=0, step=1, limit=4
  $region2: #{resnet_block_forward.1} parent=0 // loop_pre_header
    _
  $region3: #{resnet_block_forward.1} parent=0 // loop_header
    %s13 = sphi 0, %s17
    %p14 = scmp.ge.s32.totalorder %s13, 4
    %s23 = sphi 0, %s25
    %s26 = sphi 0, %s23
    %s27 = sphi 0, %s26
    %s43 = sphi 0, %s27
    %s47 = sphi 0, %s47
    %s49 = sphi 0, %s47
    %s50 = sphi 0, %s49
    %s64 = sphi 0, %s50
    %s68 = sphi 0, %s68
    %s70 = sphi 0, %s68
    %s71 = sphi 0, %s70
    %s85 = sphi 0, %s71
    %s89 = sphi 0, %s89
    %s91 = sphi 0, %s89
    %s92 = sphi 0, %s91
    %s106 = sphi 0, %s92
    %s110 = sphi 0, %s110
    %s112 = sphi 0, %s110
    %s113 = sphi 0, %s112
    %s127 = sphi 0, %s113
    %s131 = sphi 0, %s131
    %s133 = sphi 0, %s131
    %s134 = sphi 0, %s133
    %s148 = sphi 0, %s134
    %s152 = sphi 0, %s152
    %s154 = sphi 0, %s152
    %s155 = sphi 0, %s154
    %s169 = sphi 0, %s155
    %s175 = sphi 0, %s177
    %s178 = sphi 0, %s175
    %s179 = sphi 0, %s178
    %s195 = sphi 0, %s179
  $region4: #{resnet_block_forward.1} parent=0 // loop_header_branch
    %16 = sbr.rel (%p14) target = $region8
  $region5: #{resnet_block_forward.1} parent=0 // loop_body
    %s18 = ssub.s32 %s13, 1
    %s19 = ssub.s32 %s13, 2
    %s20 = sadd.s32 %s13, 1
    %s21 = ssub.s32 %s13, %s20
    %p22 = scmp.eq.s32.totalorder %s21, 0
    %s24 = sadd.s32 %s23, 1
    %s25 = scalar_select %p22, %s23, %s24
    %p28 = pneg %p22
    %p29 = scmp.eq.s32.totalorder %s13, 1
    %p30 = por %p28, %p29
    %p31 = scmp.ne.s32.totalorder %s23, %s26
    %p32 = scmp.eq.s32.totalorder %s13, 0
    %p33 = por %p31, %p32
    %p34 = scmp.ne.s32.totalorder %s23, %s26
    %p35 = scmp.eq.s32.totalorder %s18, 1
    %p36 = por %p34, %p35
    %p37 = scmp.ne.s32.totalorder %s26, %s27
    %p38 = scmp.eq.s32.totalorder %s18, 0
    %p39 = por %p37, %p38
    %p40 = scmp.ne.s32.totalorder %s26, %s27
    %p41 = scmp.eq.s32.totalorder %s19, 1
    %p42 = por %p40, %p41
    %p44 = scmp.ne.s32.totalorder %s27, %s43
    %p45 = scmp.eq.s32.totalorder %s19, 0
    %p46 = por %p44, %p45
    %s48 = sadd.s32 %s47, 1
    %p51 = scmp.eq.s32.totalorder %s13, 1
    %p52 = scmp.ne.s32.totalorder %s47, %s49
    %p53 = scmp.eq.s32.totalorder %s13, 0
    %p54 = por %p52, %p53
    %p55 = scmp.ne.s32.totalorder %s47, %s49
    %p56 = scmp.eq.s32.totalorder %s18, 1
    %p57 = por %p55, %p56
    %p58 = scmp.ne.s32.totalorder %s49, %s50
    %p59 = scmp.eq.s32.totalorder %s18, 0
    %p60 = por %p58, %p59
    %p61 = scmp.ne.s32.totalorder %s49, %s50
    %p62 = scmp.eq.s32.totalorder %s19, 1
    %p63 = por %p61, %p62
    %p65 = scmp.ne.s32.totalorder %s50, %s64
    %p66 = scmp.eq.s32.totalorder %s19, 0
    %p67 = por %p65, %p66
    %s69 = sadd.s32 %s68, 1
    %p72 = scmp.eq.s32.totalorder %s13, 1
    %p73 = scmp.ne.s32.totalorder %s68, %s70
    %p74 = scmp.eq.s32.totalorder %s13, 0
    %p75 = por %p73, %p74
    %p76 = scmp.ne.s32.totalorder %s68, %s70
    %p77 = scmp.eq.s32.totalorder %s18, 1
    %p78 = por %p76, %p77
    %p79 = scmp.ne.s32.totalorder %s70, %s71
    %p80 = scmp.eq.s32.totalorder %s18, 0
    %p81 = por %p79, %p80
    %p82 = scmp.ne.s32.totalorder %s70, %s71
    %p83 = scmp.eq.s32.totalorder %s19, 1
    %p84 = por %p82, %p83
    %p86 = scmp.ne.s32.totalorder %s71, %s85
    %p87 = scmp.eq.s32.totalorder %s19, 0
    %p88 = por %p86, %p87
    %s90 = sadd.s32 %s89, 1
    %p93 = scmp.eq.s32.totalorder %s13, 1
    %p94 = scmp.ne.s32.totalorder %s89, %s91
    %p95 = scmp.eq.s32.totalorder %s13, 0
    %p96 = por %p94, %p95
    %p97 = scmp.ne.s32.totalorder %s89, %s91
    %p98 = scmp.eq.s32.totalorder %s18, 1
    %p99 = por %p97, %p98
    %p100 = scmp.ne.s32.totalorder %s91, %s92
    %p101 = scmp.eq.s32.totalorder %s18, 0
    %p102 = por %p100, %p101
    %p103 = scmp.ne.s32.totalorder %s91, %s92
    %p104 = scmp.eq.s32.totalorder %s19, 1
    %p105 = por %p103, %p104
    %p107 = scmp.ne.s32.totalorder %s92, %s106
    %p108 = scmp.eq.s32.totalorder %s19, 0
    %p109 = por %p107, %p108
    %s111 = sadd.s32 %s110, 1
    %p114 = scmp.eq.s32.totalorder %s13, 1
    %p115 = scmp.ne.s32.totalorder %s110, %s112
    %p116 = scmp.eq.s32.totalorder %s13, 0
    %p117 = por %p115, %p116
    %p118 = scmp.ne.s32.totalorder %s110, %s112
    %p119 = scmp.eq.s32.totalorder %s18, 1
    %p120 = por %p118, %p119
    %p121 = scmp.ne.s32.totalorder %s112, %s113
    %p122 = scmp.eq.s32.totalorder %s18, 0
    %p123 = por %p121, %p122
    %p124 = scmp.ne.s32.totalorder %s112, %s113
    %p125 = scmp.eq.s32.totalorder %s19, 1
    %p126 = por %p124, %p125
    %p128 = scmp.ne.s32.totalorder %s113, %s127
    %p129 = scmp.eq.s32.totalorder %s19, 0
    %p130 = por %p128, %p129
    %s132 = sadd.s32 %s131, 1
    %p135 = scmp.eq.s32.totalorder %s13, 1
    %p136 = scmp.ne.s32.totalorder %s131, %s133
    %p137 = scmp.eq.s32.totalorder %s13, 0
    %p138 = por %p136, %p137
    %p139 = scmp.ne.s32.totalorder %s131, %s133
    %p140 = scmp.eq.s32.totalorder %s18, 1
    %p141 = por %p139, %p140
    %p142 = scmp.ne.s32.totalorder %s133, %s134
    %p143 = scmp.eq.s32.totalorder %s18, 0
    %p144 = por %p142, %p143
    %p145 = scmp.ne.s32.totalorder %s133, %s134
    %p146 = scmp.eq.s32.totalorder %s19, 1
    %p147 = por %p145, %p146
    %p149 = scmp.ne.s32.totalorder %s134, %s148
    %p150 = scmp.eq.s32.totalorder %s19, 0
    %p151 = por %p149, %p150
    %s153 = sadd.s32 %s152, 1
    %p156 = scmp.eq.s32.totalorder %s13, 1
    %p157 = scmp.ne.s32.totalorder %s152, %s154
    %p158 = scmp.eq.s32.totalorder %s13, 0
    %p159 = por %p157, %p158
    %p160 = scmp.ne.s32.totalorder %s152, %s154
    %p161 = scmp.eq.s32.totalorder %s18, 1
    %p162 = por %p160, %p161
    %p163 = scmp.ne.s32.totalorder %s154, %s155
    %p164 = scmp.eq.s32.totalorder %s18, 0
    %p165 = por %p163, %p164
    %p166 = scmp.ne.s32.totalorder %s154, %s155
    %p167 = scmp.eq.s32.totalorder %s19, 1
    %p168 = por %p166, %p167
    %p170 = scmp.ne.s32.totalorder %s155, %s169
    %p171 = scmp.eq.s32.totalorder %s19, 0
    %p172 = por %p170, %p171
    %s173 = ssub.s32 %s13, %s20
    %p174 = scmp.eq.s32.totalorder %s173, 0
    %s176 = sadd.s32 %s175, 1
    %s177 = scalar_select %p174, %s175, %s176
    %p180 = pneg %p174
    %p181 = scmp.eq.s32.totalorder %s13, 1
    %p182 = por %p180, %p181
    %p183 = scmp.ne.s32.totalorder %s175, %s178
    %p184 = scmp.eq.s32.totalorder %s13, 0
    %p185 = por %p183, %p184
    %p186 = scmp.ne.s32.totalorder %s175, %s178
    %p187 = scmp.eq.s32.totalorder %s18, 1
    %p188 = por %p186, %p187
    %p189 = scmp.ne.s32.totalorder %s178, %s179
    %p190 = scmp.eq.s32.totalorder %s18, 0
    %p191 = por %p189, %p190
    %p192 = scmp.ne.s32.totalorder %s178, %s179
    %p193 = scmp.eq.s32.totalorder %s19, 1
    %p194 = por %p192, %p193
    %p196 = scmp.ne.s32.totalorder %s179, %s195
    %p197 = scmp.eq.s32.totalorder %s19, 0
    %p198 = por %p196, %p197
    %p199 = scmp.le.s32.totalorder 1, %s13
    %p200 = scmp.lt.s32.totalorder %s13, 3
    %p201 = pnand %p199, %p200
    %p202 = pneg %p201
    // Predicated region
    $region9: #{resnet_block_forward.1} parent=5 // pred_check
      _
    $region10: #{resnet_block_forward.1} parent=5 // pred_check_branch
      %204 = sbr.rel (%p201) target = $region12
    $region11: #{resnet_block_forward.1} parent=5 // pred_region
      %s205 = ssub.s32 %s13, 1
      // Predicated region
      $region13: #{resnet_block_forward.1} parent=11 // pred_check
        %p206 = pneg %p60
      $region14: #{resnet_block_forward.1} parent=11 // pred_check_branch
        %208 = sbr.rel (%p206) target = $region16
      $region15: #{resnet_block_forward.1} parent=11 // pred_region
        _
      $region16: #{resnet_block_forward.1} parent=11 // pred_fallthru
        _
      // Predicated region
      $region17: #{resnet_block_forward.1} parent=11 // pred_check
        %p209 = pneg %p81
      $region18: #{resnet_block_forward.1} parent=11 // pred_check_branch
        %211 = sbr.rel (%p209) target = $region20
      $region19: #{resnet_block_forward.1} parent=11 // pred_region
        _
      $region20: #{resnet_block_forward.1} parent=11 // pred_fallthru
        _
      // Predicated region
      $region21: #{resnet_block_forward.1} parent=11 // pred_check
        %p212 = pneg %p102
      $region22: #{resnet_block_forward.1} parent=11 // pred_check_branch
        %214 = sbr.rel (%p212) target = $region24
      $region23: #{resnet_block_forward.1} parent=11 // pred_region
        _
      $region24: #{resnet_block_forward.1} parent=11 // pred_fallthru
        _
      // Predicated region
      $region25: #{resnet_block_forward.1} parent=11 // pred_check
        %p215 = pneg %p123
      $region26: #{resnet_block_forward.1} parent=11 // pred_check_branch
        %217 = sbr.rel (%p215) target = $region28
      $region27: #{resnet_block_forward.1} parent=11 // pred_region
        _
      $region28: #{resnet_block_forward.1} parent=11 // pred_fallthru
        _
      // Predicated region
      $region29: #{resnet_block_forward.1} parent=11 // pred_check
        %p218 = pneg %p144
      $region30: #{resnet_block_forward.1} parent=11 // pred_check_branch
        %220 = sbr.rel (%p218) target = $region32
      $region31: #{resnet_block_forward.1} parent=11 // pred_region
        _
      $region32: #{resnet_block_forward.1} parent=11 // pred_fallthru
        _
      // Predicated region
      $region33: #{resnet_block_forward.1} parent=11 // pred_check
        %p221 = pneg %p165
      $region34: #{resnet_block_forward.1} parent=11 // pred_check_branch
        %223 = sbr.rel (%p221) target = $region36
      $region35: #{resnet_block_forward.1} parent=11 // pred_region
        _
      $region36: #{resnet_block_forward.1} parent=11 // pred_fallthru
        _
    $region12: #{resnet_block_forward.1} parent=5 // pred_fallthru
      _
    %p224 = scmp.lt.s32.totalorder %s13, 2
    // Predicated region
    $region37: #{resnet_block_forward.1} parent=5 // pred_check
      %p225 = pneg %p224
    $region38: #{resnet_block_forward.1} parent=5 // pred_check_branch
      %227 = sbr.rel (%p225) target = $region40
    $region39: #{resnet_block_forward.1} parent=5 // pred_region
      // Predicated region
      $region41: #{resnet_block_forward.1} parent=39 // pred_check
        %p228 = pneg %p33
      $region42: #{resnet_block_forward.1} parent=39 // pred_check_branch
        %230 = sbr.rel (%p228) target = $region44
      $region43: #{resnet_block_forward.1} parent=39 // pred_region
        %p231 = scmp.lt.s32.totalorder %s13, 1
        %s232 = scalar_select %p231, %s13, 1
        %s233 = smul.addr %s232, 32
        %s234 = smul.addr %s233, 8
        %s235 = scalar_lea.vmem %s0, %s234
      $region44: #{resnet_block_forward.1} parent=39 // pred_fallthru
        _
    $region40: #{resnet_block_forward.1} parent=5 // pred_fallthru
      _
    %p236 = scmp.le.s32.totalorder 1, %s13
    %p237 = scmp.lt.s32.totalorder %s13, 3
    %p238 = pnand %p236, %p237
    %p239 = pneg %p238
    // Predicated region
    $region45: #{resnet_block_forward.1} parent=5 // pred_check
      _
    $region46: #{resnet_block_forward.1} parent=5 // pred_check_branch
      %241 = sbr.rel (%p238) target = $region48
    $region47: #{resnet_block_forward.1} parent=5 // pred_region
      %s242 = ssub.s32 %s13, 1
      %p243 = scmp.lt.s32.totalorder %s18, 1
      %s244 = scalar_select %p243, %s18, 1
      %s245 = smul.addr %s244, 32
      %s246 = smul.addr %s245, 8
      %s247 = scalar_lea.vmem %s0, %s246
      %p248 = pneg %p39
      %p249 = pneg %p36
      %p250 = pneg %p60
      %p251 = pneg %p57
      %p252 = pneg %p81
      %p253 = pneg %p78
      %p254 = pneg %p102
      %p255 = pneg %p99
      %p256 = pneg %p123
      %p257 = pneg %p120
      %p258 = pneg %p144
      %p259 = pneg %p141
      %p260 = pneg %p165
      %p261 = pneg %p162
      %p262 = pneg %p191
      %p263 = pneg %p188
      %p264 = scmp.lt.s32.totalorder %s18, 1
      %s265 = scalar_select %p264, %s18, 1
      %s266 = smul.addr %s265, 32
      %s267 = smul.addr %s266, 8
      %s268 = scalar_lea.vmem %s7, %s267
      %p269 = scmp.lt.s32.totalorder %s18, 1
      %s270 = scalar_select %p269, %s18, 1
      %s271 = smul.addr %s270, 32
      %s272 = smul.addr %s271, 8
      %s273 = scalar_lea.vmem %s0, %s272
      %p274 = scmp.lt.s32.totalorder %s18, 1
      %s275 = scalar_select %p274, %s18, 1
      %s276 = smul.addr %s275, 32
      %s277 = smul.addr %s276, 8
      %s278 = scalar_lea.vmem %s7, %s277
      %vm279 = vcmask 31744
      %280 = vst.msk [vmem:[#allocation2] sm:$0xff] %vm279, 0.0
      %281 = vst.msk [vmem:[#allocation2 + $0x8] sm:$0xff] %vm279, 0.0
      %vm282 = vcmask 25600
      %283 = vst.msk [vmem:[#allocation2 + $0x10] sm:$0x3] %vm282, 0.0
      %s284 = scalar_lea.vmem [#allocation2], 408
      %285 = vst.msk [vmem:[%s284] sm:$0xff] %vm279, 0.0
      %286 = vst.msk [vmem:[%s284 + $0x8] sm:$0xff] %vm279, 0.0
      %287 = vst.msk [vmem:[%s284 + $0x10] sm:$0x3] %vm282, 0.0
      %vm288 = vcmask 24576
      %289 = vst.msk [vmem:[#allocation2] sm:$0x1] %vm288, 0.0
      %290 = vst.msk [vmem:[#allocation2 + $0x18] sm:$0x1] %vm288, 0.0
      %291 = vst.msk [vmem:[#allocation2 + $0x30] sm:$0x1] %vm288, 0.0
      %292 = vst.msk [vmem:[#allocation2 + $0x48] sm:$0x1] %vm288, 0.0
      %293 = vst.msk [vmem:[#allocation2 + $0x60] sm:$0x1] %vm288, 0.0
      %294 = vst.msk [vmem:[#allocation2 + $0x78] sm:$0x1] %vm288, 0.0
      %295 = vst.msk [vmem:[#allocation2 + $0x90] sm:$0x1] %vm288, 0.0
      %296 = vst.msk [vmem:[#allocation2 + $0xa8] sm:$0x1] %vm288, 0.0
      %297 = vst.msk [vmem:[#allocation2 + $0xc0] sm:$0x1] %vm288, 0.0
      %298 = vst.msk [vmem:[#allocation2 + $0xd8] sm:$0x1] %vm288, 0.0
      %299 = vst.msk [vmem:[#allocation2 + $0xf0] sm:$0x1] %vm288, 0.0
      %300 = vst.msk [vmem:[#allocation2 + $0x108] sm:$0x1] %vm288, 0.0
      %301 = vst.msk [vmem:[#allocation2 + $0x120] sm:$0x1] %vm288, 0.0
      %302 = vst.msk [vmem:[#allocation2 + $0x138] sm:$0x1] %vm288, 0.0
      %303 = vst.msk [vmem:[#allocation2 + $0x150] sm:$0x1] %vm288, 0.0
      %304 = vst.msk [vmem:[#allocation2 + $0x168] sm:$0x1] %vm288, 0.0
      %305 = vst.msk [vmem:[#allocation2 + $0x180] sm:$0x1] %vm288, 0.0
      %306 = vst.msk [vmem:[#allocation2 + $0x198] sm:$0x1] %vm288, 0.0
      %307 = vst.msk [vmem:[#allocation2 + $0x11] sm:$0x1] %vm288, 0.0
      %308 = vst.msk [vmem:[#allocation2 + $0x29] sm:$0x1] %vm288, 0.0
      %309 = vst.msk [vmem:[#allocation2 + $0x41] sm:$0x1] %vm288, 0.0
      %310 = vst.msk [vmem:[#allocation2 + $0x59] sm:$0x1] %vm288, 0.0
      %311 = vst.msk [vmem:[#allocation2 + $0x71] sm:$0x1] %vm288, 0.0
      %312 = vst.msk [vmem:[#allocation2 + $0x89] sm:$0x1] %vm288, 0.0
      %313 = vst.msk [vmem:[#allocation2 + $0xa1] sm:$0x1] %vm288, 0.0
      %314 = vst.msk [vmem:[#allocation2 + $0xb9] sm:$0x1] %vm288, 0.0
      %315 = vst.msk [vmem:[#allocation2 + $0xd1] sm:$0x1] %vm288, 0.0
      %316 = vst.msk [vmem:[#allocation2 + $0xe9] sm:$0x1] %vm288, 0.0
      %317 = vst.msk [vmem:[#allocation2 + $0x101] sm:$0x1] %vm288, 0.0
      %318 = vst.msk [vmem:[#allocation2 + $0x119] sm:$0x1] %vm288, 0.0
      %319 = vst.msk [vmem:[#allocation2 + $0x131] sm:$0x1] %vm288, 0.0
      %320 = vst.msk [vmem:[#allocation2 + $0x149] sm:$0x1] %vm288, 0.0
      %321 = vst.msk [vmem:[#allocation2 + $0x161] sm:$0x1] %vm288, 0.0
      %322 = vst.msk [vmem:[#allocation2 + $0x179] sm:$0x1] %vm288, 0.0
      %323 = vst.msk [vmem:[#allocation2 + $0x191] sm:$0x1] %vm288, 0.0
      %324 = vst.msk [vmem:[#allocation2 + $0x1a9] sm:$0x1] %vm288, 0.0
      %325 = vst.msk [vmem:[#allocation3] sm:$0xff] %vm279, 0.0
      %326 = vst.msk [vmem:[#allocation3 + $0x8] sm:$0xff] %vm279, 0.0
      %327 = vst.msk [vmem:[#allocation3 + $0x10] sm:$0x3] %vm282, 0.0
      %s328 = scalar_lea.vmem [#allocation3], 408
      %329 = vst.msk [vmem:[%s328] sm:$0xff] %vm279, 0.0
      %330 = vst.msk [vmem:[%s328 + $0x8] sm:$0xff] %vm279, 0.0
      %331 = vst.msk [vmem:[%s328 + $0x10] sm:$0x3] %vm282, 0.0
      %332 = vst.msk [vmem:[#allocation3] sm:$0x1] %vm288, 0.0
      %333 = vst.msk [vmem:[#allocation3 + $0x18] sm:$0x1] %vm288, 0.0
      %334 = vst.msk [vmem:[#allocation3 + $0x30] sm:$0x1] %vm288, 0.0
      %335 = vst.msk [vmem:[#allocation3 + $0x48] sm:$0x1] %vm288, 0.0
      %336 = vst.msk [vmem:[#allocation3 + $0x60] sm:$0x1] %vm288, 0.0
      %337 = vst.msk [vmem:[#allocation3 + $0x78] sm:$0x1] %vm288, 0.0
      %338 = vst.msk [vmem:[#allocation3 + $0x90] sm:$0x1] %vm288, 0.0
      %339 = vst.msk [vmem:[#allocation3 + $0xa8] sm:$0x1] %vm288, 0.0
      %340 = vst.msk [vmem:[#allocation3 + $0xc0] sm:$0x1] %vm288, 0.0
      %341 = vst.msk [vmem:[#allocation3 + $0xd8] sm:$0x1] %vm288, 0.0
      %342 = vst.msk [vmem:[#allocation3 + $0xf0] sm:$0x1] %vm288, 0.0
      %343 = vst.msk [vmem:[#allocation3 + $0x108] sm:$0x1] %vm288, 0.0
      %344 = vst.msk [vmem:[#allocation3 + $0x120] sm:$0x1] %vm288, 0.0
      %345 = vst.msk [vmem:[#allocation3 + $0x138] sm:$0x1] %vm288, 0.0
      %346 = vst.msk [vmem:[#allocation3 + $0x150] sm:$0x1] %vm288, 0.0
      %347 = vst.msk [vmem:[#allocation3 + $0x168] sm:$0x1] %vm288, 0.0
      %348 = vst.msk [vmem:[#allocation3 + $0x180] sm:$0x1] %vm288, 0.0
      %349 = vst.msk [vmem:[#allocation3 + $0x198] sm:$0x1] %vm288, 0.0
      %350 = vst.msk [vmem:[#allocation3 + $0x11] sm:$0x1] %vm288, 0.0
      %351 = vst.msk [vmem:[#allocation3 + $0x29] sm:$0x1] %vm288, 0.0
      %352 = vst.msk [vmem:[#allocation3 + $0x41] sm:$0x1] %vm288, 0.0
      %353 = vst.msk [vmem:[#allocation3 + $0x59] sm:$0x1] %vm288, 0.0
      %354 = vst.msk [vmem:[#allocation3 + $0x71] sm:$0x1] %vm288, 0.0
      %355 = vst.msk [vmem:[#allocation3 + $0x89] sm:$0x1] %vm288, 0.0
      %356 = vst.msk [vmem:[#allocation3 + $0xa1] sm:$0x1] %vm288, 0.0
      %357 = vst.msk [vmem:[#allocation3 + $0xb9] sm:$0x1] %vm288, 0.0
      %358 = vst.msk [vmem:[#allocation3 + $0xd1] sm:$0x1] %vm288, 0.0
      %359 = vst.msk [vmem:[#allocation3 + $0xe9] sm:$0x1] %vm288, 0.0
      %360 = vst.msk [vmem:[#allocation3 + $0x101] sm:$0x1] %vm288, 0.0
      %361 = vst.msk [vmem:[#allocation3 + $0x119] sm:$0x1] %vm288, 0.0
      %362 = vst.msk [vmem:[#allocation3 + $0x131] sm:$0x1] %vm288, 0.0
      %363 = vst.msk [vmem:[#allocation3 + $0x149] sm:$0x1] %vm288, 0.0
      %364 = vst.msk [vmem:[#allocation3 + $0x161] sm:$0x1] %vm288, 0.0
      %365 = vst.msk [vmem:[#allocation3 + $0x179] sm:$0x1] %vm288, 0.0
      %366 = vst.msk [vmem:[#allocation3 + $0x191] sm:$0x1] %vm288, 0.0
      %367 = vst.msk [vmem:[#allocation3 + $0x1a9] sm:$0x1] %vm288, 0.0
      %v368 = vld [vmem:[%s273] sm:$0xff]
      %v369 = vld [vmem:[%s273 + $0x8] sm:$0xff]
      %v370 = vld [vmem:[%s273 + $0x10] sm:$0xff]
      %v371 = vld [vmem:[%s273 + $0x18] sm:$0xff]
      %v372 = vld [vmem:[%s273 + $0x20] sm:$0xff]
      %v373 = vld [vmem:[%s273 + $0x28] sm:$0xff]
      %v374 = vld [vmem:[%s273 + $0x30] sm:$0xff]
      %v375 = vld [vmem:[%s273 + $0x38] sm:$0xff]
      %v376 = vld [vmem:[%s273 + $0x40] sm:$0xff]
      %v377 = vld [vmem:[%s273 + $0x48] sm:$0xff]
      %v378 = vld [vmem:[%s273 + $0x50] sm:$0xff]
      %v379 = vld [vmem:[%s273 + $0x58] sm:$0xff]
      %v380 = vld [vmem:[%s273 + $0x60] sm:$0xff]
      %v381 = vld [vmem:[%s273 + $0x68] sm:$0xff]
      %v382 = vld [vmem:[%s273 + $0x70] sm:$0xff]
      %v383 = vld [vmem:[%s273 + $0x78] sm:$0xff]
      %v384 = vld [vmem:[%s273 + $0x80] sm:$0xff]
      %v385 = vld [vmem:[%s273 + $0x88] sm:$0xff]
      %v386 = vld [vmem:[%s273 + $0x90] sm:$0xff]
      %v387 = vld [vmem:[%s273 + $0x98] sm:$0xff]
      %v388 = vld [vmem:[%s273 + $0xa0] sm:$0xff]
      %v389 = vld [vmem:[%s273 + $0xa8] sm:$0xff]
      %v390 = vld [vmem:[%s273 + $0xb0] sm:$0xff]
      %v391 = vld [vmem:[%s273 + $0xb8] sm:$0xff]
      %v392 = vld [vmem:[%s273 + $0xc0] sm:$0xff]
      %v393 = vld [vmem:[%s273 + $0xc8] sm:$0xff]
      %v394 = vld [vmem:[%s273 + $0xd0] sm:$0xff]
      %v395 = vld [vmem:[%s273 + $0xd8] sm:$0xff]
      %v396 = vld [vmem:[%s273 + $0xe0] sm:$0xff]
      %v397 = vld [vmem:[%s273 + $0xe8] sm:$0xff]
      %v398 = vld [vmem:[%s273 + $0xf0] sm:$0xff]
      %v399 = vld [vmem:[%s273 + $0xf8] sm:$0xff]
      %s400 = scalar_lea.vmem [#allocation2], 24
      %401 = vst.msk [vmem:[%s400 + $0x1] sm:$0xff] %vm279, %v368
      %402 = vst.msk [vmem:[%s400 + $0x9] sm:$0xff] %vm279, %v369
      %403 = vst.msk [vmem:[%s400 + $0x19] sm:$0xff] %vm279, %v370
      %404 = vst.msk [vmem:[%s400 + $0x21] sm:$0xff] %vm279, %v371
      %405 = vst.msk [vmem:[%s400 + $0x31] sm:$0xff] %vm279, %v372
      %406 = vst.msk [vmem:[%s400 + $0x39] sm:$0xff] %vm279, %v373
      %407 = vst.msk [vmem:[%s400 + $0x49] sm:$0xff] %vm279, %v374
      %408 = vst.msk [vmem:[%s400 + $0x51] sm:$0xff] %vm279, %v375
      %409 = vst.msk [vmem:[%s400 + $0x61] sm:$0xff] %vm279, %v376
      %410 = vst.msk [vmem:[%s400 + $0x69] sm:$0xff] %vm279, %v377
      %411 = vst.msk [vmem:[%s400 + $0x79] sm:$0xff] %vm279, %v378
      %412 = vst.msk [vmem:[%s400 + $0x81] sm:$0xff] %vm279, %v379
      %413 = vst.msk [vmem:[%s400 + $0x91] sm:$0xff] %vm279, %v380
      %414 = vst.msk [vmem:[%s400 + $0x99] sm:$0xff] %vm279, %v381
      %415 = vst.msk [vmem:[%s400 + $0xa9] sm:$0xff] %vm279, %v382
      %416 = vst.msk [vmem:[%s400 + $0xb1] sm:$0xff] %vm279, %v383
      %417 = vst.msk [vmem:[%s400 + $0xc1] sm:$0xff] %vm279, %v384
      %418 = vst.msk [vmem:[%s400 + $0xc9] sm:$0xff] %vm279, %v385
      %419 = vst.msk [vmem:[%s400 + $0xd9] sm:$0xff] %vm279, %v386
      %420 = vst.msk [vmem:[%s400 + $0xe1] sm:$0xff] %vm279, %v387
      %421 = vst.msk [vmem:[%s400 + $0xf1] sm:$0xff] %vm279, %v388
      %422 = vst.msk [vmem:[%s400 + $0xf9] sm:$0xff] %vm279, %v389
      %423 = vst.msk [vmem:[%s400 + $0x109] sm:$0xff] %vm279, %v390
      %424 = vst.msk [vmem:[%s400 + $0x111] sm:$0xff] %vm279, %v391
      %425 = vst.msk [vmem:[%s400 + $0x121] sm:$0xff] %vm279, %v392
      %426 = vst.msk [vmem:[%s400 + $0x129] sm:$0xff] %vm279, %v393
      %427 = vst.msk [vmem:[%s400 + $0x139] sm:$0xff] %vm279, %v394
      %428 = vst.msk [vmem:[%s400 + $0x141] sm:$0xff] %vm279, %v395
      %429 = vst.msk [vmem:[%s400 + $0x151] sm:$0xff] %vm279, %v396
      %430 = vst.msk [vmem:[%s400 + $0x159] sm:$0xff] %vm279, %v397
      %431 = vst.msk [vmem:[%s400 + $0x169] sm:$0xff] %vm279, %v398
      %432 = vst.msk [vmem:[%s400 + $0x171] sm:$0xff] %vm279, %v399
      %v433 = vld [vmem:[#allocation2] sm:$0xff]
      %v434 = vld [vmem:[#allocation2 + $0x8] sm:$0xff]
      %v435 = vld [vmem:[#allocation2 + $0x18] sm:$0xff]
      %v436 = vld [vmem:[#allocation2 + $0x20] sm:$0xff]
      %v437 = vld [vmem:[#allocation2 + $0x30] sm:$0xff]
      %v438 = vld [vmem:[#allocation2 + $0x38] sm:$0xff]
      %v439 = vld [vmem:[#allocation2 + $0x48] sm:$0xff]
      %v440 = vld [vmem:[#allocation2 + $0x50] sm:$0xff]
      %v441 = vld [vmem:[#allocation2 + $0x60] sm:$0xff]
      %v442 = vld [vmem:[#allocation2 + $0x68] sm:$0xff]
      %v443 = vld [vmem:[#allocation2 + $0x78] sm:$0xff]
      %v444 = vld [vmem:[#allocation2 + $0x80] sm:$0xff]
      %v445 = vld [vmem:[#allocation2 + $0x90] sm:$0xff]
      %v446 = vld [vmem:[#allocation2 + $0x98] sm:$0xff]
      %v447 = vld [vmem:[#allocation2 + $0xa8] sm:$0xff]
      %v448 = vld [vmem:[#allocation2 + $0xb0] sm:$0xff]
      %v449 = vld [vmem:[#allocation2 + $0xc0] sm:$0xff]
      %v450 = vld [vmem:[#allocation2 + $0xc8] sm:$0xff]
      %v451 = vld [vmem:[#allocation2 + $0xd8] sm:$0xff]
      %v452 = vld [vmem:[#allocation2 + $0xe0] sm:$0xff]
      %v453 = vld [vmem:[#allocation2 + $0xf0] sm:$0xff]
      %v454 = vld [vmem:[#allocation2 + $0xf8] sm:$0xff]
      %v455 = vld [vmem:[#allocation2 + $0x108] sm:$0xff]
      %v456 = vld [vmem:[#allocation2 + $0x110] sm:$0xff]
      %v457 = vld [vmem:[#allocation2 + $0x120] sm:$0xff]
      %v458 = vld [vmem:[#allocation2 + $0x128] sm:$0xff]
      %v459 = vld [vmem:[#allocation2 + $0x138] sm:$0xff]
      %v460 = vld [vmem:[#allocation2 + $0x140] sm:$0xff]
      %v461 = vld [vmem:[#allocation2 + $0x150] sm:$0xff]
      %v462 = vld [vmem:[#allocation2 + $0x158] sm:$0xff]
      %v463 = vld [vmem:[#allocation2 + $0x168] sm:$0xff]
      %v464 = vld [vmem:[#allocation2 + $0x170] sm:$0xff]
      %v465 = vld [vmem:[%s1] sm:$0xf]
      %v466 = vld [vmem:[#allocation2 + $0x1] sm:$0xff]
      %v467 = vld [vmem:[#allocation2 + $0x9] sm:$0xff]
      %v468 = vld [vmem:[#allocation2 + $0x19] sm:$0xff]
      %v469 = vld [vmem:[#allocation2 + $0x21] sm:$0xff]
      %v470 = vld [vmem:[#allocation2 + $0x31] sm:$0xff]
      %v471 = vld [vmem:[#allocation2 + $0x39] sm:$0xff]
      %v472 = vld [vmem:[#allocation2 + $0x49] sm:$0xff]
      %v473 = vld [vmem:[#allocation2 + $0x51] sm:$0xff]
      %v474 = vld [vmem:[#allocation2 + $0x61] sm:$0xff]
      %v475 = vld [vmem:[#allocation2 + $0x69] sm:$0xff]
      %v476 = vld [vmem:[#allocation2 + $0x79] sm:$0xff]
      %v477 = vld [vmem:[#allocation2 + $0x81] sm:$0xff]
      %v478 = vld [vmem:[#allocation2 + $0x91] sm:$0xff]
      %v479 = vld [vmem:[#allocation2 + $0x99] sm:$0xff]
      %v480 = vld [vmem:[#allocation2 + $0xa9] sm:$0xff]
      %v481 = vld [vmem:[#allocation2 + $0xb1] sm:$0xff]
      %v482 = vld [vmem:[#allocation2 + $0xc1] sm:$0xff]
      %v483 = vld [vmem:[#allocation2 + $0xc9] sm:$0xff]
      %v484 = vld [vmem:[#allocation2 + $0xd9] sm:$0xff]
      %v485 = vld [vmem:[#allocation2 + $0xe1] sm:$0xff]
      %v486 = vld [vmem:[#allocation2 + $0xf1] sm:$0xff]
      %v487 = vld [vmem:[#allocation2 + $0xf9] sm:$0xff]
      %v488 = vld [vmem:[#allocation2 + $0x109] sm:$0xff]
      %v489 = vld [vmem:[#allocation2 + $0x111] sm:$0xff]
      %v490 = vld [vmem:[#allocation2 + $0x121] sm:$0xff]
      %v491 = vld [vmem:[#allocation2 + $0x129] sm:$0xff]
      %v492 = vld [vmem:[#allocation2 + $0x139] sm:$0xff]
      %v493 = vld [vmem:[#allocation2 + $0x141] sm:$0xff]
      %v494 = vld [vmem:[#allocation2 + $0x151] sm:$0xff]
      %v495 = vld [vmem:[#allocation2 + $0x159] sm:$0xff]
      %v496 = vld [vmem:[#allocation2 + $0x169] sm:$0xff]
      %v497 = vld [vmem:[#allocation2 + $0x171] sm:$0xff]
      %s498 = scalar_lea.vmem %s1, 4
      %v499 = vld [vmem:[%s498] sm:$0xf]
      %v501 = vsel %vm279, %v466, 0
      %v504 = vsel %vm279, %v467, 0
      %v507 = vsel %vm279, %v468, 0
      %v510 = vsel %vm279, %v469, 0
      %v513 = vsel %vm279, %v470, 0
      %v516 = vsel %vm279, %v471, 0
      %v519 = vsel %vm279, %v472, 0
      %v522 = vsel %vm279, %v473, 0
      %v525 = vsel %vm279, %v474, 0
      %v528 = vsel %vm279, %v475, 0
      %v531 = vsel %vm279, %v476, 0
      %v534 = vsel %vm279, %v477, 0
      %v537 = vsel %vm279, %v478, 0
      %v540 = vsel %vm279, %v479, 0
      %v543 = vsel %vm279, %v480, 0
      %v546 = vsel %vm279, %v481, 0
      %v549 = vsel %vm279, %v482, 0
      %v552 = vsel %vm279, %v483, 0
      %v555 = vsel %vm279, %v484, 0
      %v558 = vsel %vm279, %v485, 0
      %v561 = vsel %vm279, %v486, 0
      %v564 = vsel %vm279, %v487, 0
      %v567 = vsel %vm279, %v488, 0
      %v570 = vsel %vm279, %v489, 0
      %v573 = vsel %vm279, %v490, 0
      %v576 = vsel %vm279, %v491, 0
      %v579 = vsel %vm279, %v492, 0
      %v582 = vsel %vm279, %v493, 0
      %v585 = vsel %vm279, %v494, 0
      %v588 = vsel %vm279, %v495, 0
      %v591 = vsel %vm279, %v496, 0
      %v594 = vsel %vm279, %v497, 0
      %vm596 = vcmask 1043456
      %v598 = vsel %vm596, %v499, 0
      %600 = vmatprep.subr.mxu0 0.0
      %601 = vmatpush1.msra.mxu0 0.0
      %602 = vmatprep.subr.mxu0 0.0
      %603 = vmatpush1.msra.mxu0 0.0
      %604 = vmatprep.subr.mxu0 0.0
      %605 = vmatpush1.msra.mxu0 0.0
      %606 = vmatprep.subr.mxu0 0.0
      %607 = vmatpush1.msra.mxu0 0.0
      %608 = vmatprep.subr.mxu0 0.0
      %609 = vmatpush1.msra.mxu0 0.0
      %610 = vmatprep.subr.mxu0 0.0
      %611 = vmatpush1.msra.mxu0 0.0
      %612 = vmatprep.subr.mxu0 0.0
      %613 = vmatpush1.msra.mxu0 0.0
      %614 = vmatprep.subr.mxu0 0.0
      %615 = vmatpush1.msra.mxu0 0.0
      %616 = vmatprep.subr.mxu0 0.0
      %617 = vmatpush1.msra.mxu0 0.0
      %618 = vmatprep.subr.mxu0 0.0
      %619 = vmatpush1.msra.mxu0 0.0
      %620 = vmatprep.subr.mxu0 0.0
      %621 = vmatpush1.msra.mxu0 0.0
      %622 = vmatprep.subr.mxu0 0.0
      %623 = vmatpush1.msra.mxu0 0.0
      %624 = vmatprep.subr.mxu0 0.0
      %625 = vmatpush1.msra.mxu0 0.0
      %626 = vmatprep.subr.mxu0 0.0
      %627 = vmatpush1.msra.mxu0 0.0
      %628 = vmatprep.subr.mxu0 0.0
      %629 = vmatpush1.msra.mxu0 0.0
      %630 = vmatprep.subr.mxu0 0.0
      %631 = vmatpush1.msra.mxu0 %v598
      %632 = vmatprep.subr.mxu0 0.0
      %633 = vmatpush2.msra.mxu0 0.0
      %634 = vmatprep.subr.mxu0 0.0
      %635 = vmatpush2.msra.mxu0 0.0
      %636 = vmatprep.subr.mxu0 0.0
      %637 = vmatpush2.msra.mxu0 0.0
      %638 = vmatprep.subr.mxu0 0.0
      %639 = vmatpush2.msra.mxu0 0.0
      %640 = vmatprep.subr.mxu0 0.0
      %641 = vmatpush2.msra.mxu0 0.0
      %642 = vmatprep.subr.mxu0 0.0
      %643 = vmatpush2.msra.mxu0 0.0
      %644 = vmatprep.subr.mxu0 0.0
      %645 = vmatpush2.msra.mxu0 0.0
      %646 = vmatprep.subr.mxu0 0.0
      %647 = vmatpush2.msra.mxu0 0.0
      %648 = vmatprep.subr.mxu0 0.0
      %649 = vmatpush2.msra.mxu0 0.0
      %650 = vmatprep.subr.mxu0 0.0
      %651 = vmatpush2.msra.mxu0 0.0
      %652 = vmatprep.subr.mxu0 0.0
      %653 = vmatpush2.msra.mxu0 0.0
      %654 = vmatprep.subr.mxu0 0.0
      %655 = vmatpush2.msra.mxu0 0.0
      %656 = vmatprep.subr.mxu0 0.0
      %657 = vmatpush2.msra.mxu0 0.0
      %658 = vmatprep.subr.mxu0 0.0
      %659 = vmatpush2.msra.mxu0 0.0
      %660 = vmatprep.subr.mxu0 0.0
      %661 = vmatpush2.msra.mxu0 0.0
      %662 = vmatprep.subr.mxu0 0.0
      %663 = vmatpush2.msra.mxu0 0.0
      %664 = vmatprep.mubr.f32.mxu0 0.0
      %665 = vmatmul.mubr.f32.gmra.mxu0 %v501
      %v666 = vpop.f32.mrf.mxu0
      %v667 = vadd.f32 0.0, %v666
      %v668 = vpop.f32.mrf.mxu0
      %669 = vmatprep.mubr.f32.mxu0 0.0
      %670 = vmatmul.mubr.f32.gmra.mxu0 %v504
      %v671 = vpop.f32.mrf.mxu0
      %v672 = vadd.f32 0.0, %v671
      %v673 = vpop.f32.mrf.mxu0
      %674 = vmatprep.mubr.f32.mxu0 0.0
      %675 = vmatmul.mubr.f32.gmra.mxu0 %v507
      %v676 = vpop.f32.mrf.mxu0
      %v677 = vadd.f32 0.0, %v676
      %v678 = vpop.f32.mrf.mxu0
      %679 = vmatprep.mubr.f32.mxu0 0.0
      %680 = vmatmul.mubr.f32.gmra.mxu0 %v510
      %v681 = vpop.f32.mrf.mxu0
      %v682 = vadd.f32 0.0, %v681
      %v683 = vpop.f32.mrf.mxu0
      %684 = vmatprep.mubr.f32.mxu0 0.0
      %685 = vmatmul.mubr.f32.gmra.mxu0 %v513
      %v686 = vpop.f32.mrf.mxu0
      %v687 = vadd.f32 0.0, %v686
      %v688 = vpop.f32.mrf.mxu0
      %689 = vmatprep.mubr.f32.mxu0 0.0
      %690 = vmatmul.mubr.f32.gmra.mxu0 %v516
      %v691 = vpop.f32.mrf.mxu0
      %v692 = vadd.f32 0.0, %v691
      %v693 = vpop.f32.mrf.mxu0
      %694 = vmatprep.mubr.f32.mxu0 0.0
      %695 = vmatmul.mubr.f32.gmra.mxu0 %v519
      %v696 = vpop.f32.mrf.mxu0
      %v697 = vadd.f32 0.0, %v696
      %v698 = vpop.f32.mrf.mxu0
      %699 = vmatprep.mubr.f32.mxu0 0.0
      %700 = vmatmul.mubr.f32.gmra.mxu0 %v522
      %v701 = vpop.f32.mrf.mxu0
      %v702 = vadd.f32 0.0, %v701
      %v703 = vpop.f32.mrf.mxu0
      %704 = vmatprep.mubr.f32.mxu0 0.0
      %705 = vmatmul.mubr.f32.gmra.mxu0 %v525
      %v706 = vpop.f32.mrf.mxu0
      %v707 = vadd.f32 0.0, %v706
      %v708 = vpop.f32.mrf.mxu0
      %709 = vmatprep.mubr.f32.mxu0 0.0
      %710 = vmatmul.mubr.f32.gmra.mxu0 %v528
      %v711 = vpop.f32.mrf.mxu0
      %v712 = vadd.f32 0.0, %v711
      %v713 = vpop.f32.mrf.mxu0
      %714 = vmatprep.mubr.f32.mxu0 0.0
      %715 = vmatmul.mubr.f32.gmra.mxu0 %v531
      %v716 = vpop.f32.mrf.mxu0
      %v717 = vadd.f32 0.0, %v716
      %v718 = vpop.f32.mrf.mxu0
      %719 = vmatprep.mubr.f32.mxu0 0.0
      %720 = vmatmul.mubr.f32.gmra.mxu0 %v534
      %v721 = vpop.f32.mrf.mxu0
      %v722 = vadd.f32 0.0, %v721
      %v723 = vpop.f32.mrf.mxu0
      %724 = vmatprep.mubr.f32.mxu0 0.0
      %725 = vmatmul.mubr.f32.gmra.mxu0 %v537
      %v726 = vpop.f32.mrf.mxu0
      %v727 = vadd.f32 0.0, %v726
      %v728 = vpop.f32.mrf.mxu0
      %729 = vmatprep.mubr.f32.mxu0 0.0
      %730 = vmatmul.mubr.f32.gmra.mxu0 %v540
      %v731 = vpop.f32.mrf.mxu0
      %v732 = vadd.f32 0.0, %v731
      %v733 = vpop.f32.mrf.mxu0
      %734 = vmatprep.mubr.f32.mxu0 0.0
      %735 = vmatmul.mubr.f32.gmra.mxu0 %v543
      %v736 = vpop.f32.mrf.mxu0
      %v737 = vadd.f32 0.0, %v736
      %v738 = vpop.f32.mrf.mxu0
      %739 = vmatprep.mubr.f32.mxu0 0.0
      %740 = vmatmul.mubr.f32.gmra.mxu0 %v546
      %v741 = vpop.f32.mrf.mxu0
      %v742 = vadd.f32 0.0, %v741
      %v743 = vpop.f32.mrf.mxu0
      %744 = vmatprep.mubr.f32.mxu0 0.0
      %745 = vmatmul.mubr.f32.gmra.mxu0 %v549
      %v746 = vpop.f32.mrf.mxu0
      %v747 = vadd.f32 0.0, %v746
      %v748 = vpop.f32.mrf.mxu0
      %749 = vmatprep.mubr.f32.mxu0 0.0
      %750 = vmatmul.mubr.f32.gmra.mxu0 %v552
      %v751 = vpop.f32.mrf.mxu0
      %v752 = vadd.f32 0.0, %v751
      %v753 = vpop.f32.mrf.mxu0
      %754 = vmatprep.mubr.f32.mxu0 0.0
      %755 = vmatmul.mubr.f32.gmra.mxu0 %v555
      %v756 = vpop.f32.mrf.mxu0
      %v757 = vadd.f32 0.0, %v756
      %v758 = vpop.f32.mrf.mxu0
      %759 = vmatprep.mubr.f32.mxu0 0.0
      %760 = vmatmul.mubr.f32.gmra.mxu0 %v558
      %v761 = vpop.f32.mrf.mxu0
      %v762 = vadd.f32 0.0, %v761
      %v763 = vpop.f32.mrf.mxu0
      %764 = vmatprep.mubr.f32.mxu0 0.0
      %765 = vmatmul.mubr.f32.gmra.mxu0 %v561
      %v766 = vpop.f32.mrf.mxu0
      %v767 = vadd.f32 0.0, %v766
      %v768 = vpop.f32.mrf.mxu0
      %769 = vmatprep.mubr.f32.mxu0 0.0
      %770 = vmatmul.mubr.f32.gmra.mxu0 %v564
      %v771 = vpop.f32.mrf.mxu0
      %v772 = vadd.f32 0.0, %v771
      %v773 = vpop.f32.mrf.mxu0
      %774 = vmatprep.mubr.f32.mxu0 0.0
      %775 = vmatmul.mubr.f32.gmra.mxu0 %v567
      %v776 = vpop.f32.mrf.mxu0
      %v777 = vadd.f32 0.0, %v776
      %v778 = vpop.f32.mrf.mxu0
      %779 = vmatprep.mubr.f32.mxu0 0.0
      %780 = vmatmul.mubr.f32.gmra.mxu0 %v570
      %v781 = vpop.f32.mrf.mxu0
      %v782 = vadd.f32 0.0, %v781
      %v783 = vpop.f32.mrf.mxu0
      %784 = vmatprep.mubr.f32.mxu0 0.0
      %785 = vmatmul.mubr.f32.gmra.mxu0 %v573
      %v786 = vpop.f32.mrf.mxu0
      %v787 = vadd.f32 0.0, %v786
      %v788 = vpop.f32.mrf.mxu0
      %789 = vmatprep.mubr.f32.mxu0 0.0
      %790 = vmatmul.mubr.f32.gmra.mxu0 %v576
      %v791 = vpop.f32.mrf.mxu0
      %v792 = vadd.f32 0.0, %v791
      %v793 = vpop.f32.mrf.mxu0
      %794 = vmatprep.mubr.f32.mxu0 0.0
      %795 = vmatmul.mubr.f32.gmra.mxu0 %v579
      %v796 = vpop.f32.mrf.mxu0
      %v797 = vadd.f32 0.0, %v796
      %v798 = vpop.f32.mrf.mxu0
      %799 = vmatprep.mubr.f32.mxu0 0.0
      %800 = vmatmul.mubr.f32.gmra.mxu0 %v582
      %v801 = vpop.f32.mrf.mxu0
      %v802 = vadd.f32 0.0, %v801
      %v803 = vpop.f32.mrf.mxu0
      %804 = vmatprep.mubr.f32.mxu0 0.0
      %805 = vmatmul.mubr.f32.gmra.mxu0 %v585
      %v806 = vpop.f32.mrf.mxu0
      %v807 = vadd.f32 0.0, %v806
      %v808 = vpop.f32.mrf.mxu0
      %809 = vmatprep.mubr.f32.mxu0 0.0
      %810 = vmatmul.mubr.f32.gmra.mxu0 %v588
      %v811 = vpop.f32.mrf.mxu0
      %v812 = vadd.f32 0.0, %v811
      %v813 = vpop.f32.mrf.mxu0
      %814 = vmatprep.mubr.f32.mxu0 0.0
      %815 = vmatmul.mubr.f32.gmra.mxu0 %v591
      %v816 = vpop.f32.mrf.mxu0
      %v817 = vadd.f32 0.0, %v816
      %v818 = vpop.f32.mrf.mxu0
      %819 = vmatprep.mubr.f32.mxu0 0.0
      %820 = vmatmul.mubr.f32.gmra.mxu0 %v594
      %v821 = vpop.f32.mrf.mxu0
      %v822 = vadd.f32 0.0, %v821
      %v823 = vpop.f32.mrf.mxu0
      %824 = vdwg.mxu0
      %v826 = vsel %vm279, %v433, 0
      %v829 = vsel %vm279, %v434, 0
      %v832 = vsel %vm279, %v435, 0
      %v835 = vsel %vm279, %v436, 0
      %v838 = vsel %vm279, %v437, 0
      %v841 = vsel %vm279, %v438, 0
      %v844 = vsel %vm279, %v439, 0
      %v847 = vsel %vm279, %v440, 0
      %v850 = vsel %vm279, %v441, 0
      %v853 = vsel %vm279, %v442, 0
      %v856 = vsel %vm279, %v443, 0
      %v859 = vsel %vm279, %v444, 0
      %v862 = vsel %vm279, %v445, 0
      %v865 = vsel %vm279, %v446, 0
      %v868 = vsel %vm279, %v447, 0
      %v871 = vsel %vm279, %v448, 0
      %v874 = vsel %vm279, %v449, 0
      %v877 = vsel %vm279, %v450, 0
      %v880 = vsel %vm279, %v451, 0
      %v883 = vsel %vm279, %v452, 0
      %v886 = vsel %vm279, %v453, 0
      %v889 = vsel %vm279, %v454, 0
      %v892 = vsel %vm279, %v455, 0
      %v895 = vsel %vm279, %v456, 0
      %v898 = vsel %vm279, %v457, 0
      %v901 = vsel %vm279, %v458, 0
      %v904 = vsel %vm279, %v459, 0
      %v907 = vsel %vm279, %v460, 0
      %v910 = vsel %vm279, %v461, 0
      %v913 = vsel %vm279, %v462, 0
      %v916 = vsel %vm279, %v463, 0
      %v919 = vsel %vm279, %v464, 0
      %v922 = vsel %vm596, %v465, 0
      %924 = vmatprep.subr.mxu0 0.0
      %925 = vmatpush1.msra.mxu0 0.0
      %926 = vmatprep.subr.mxu0 0.0
      %927 = vmatpush1.msra.mxu0 0.0
      %928 = vmatprep.subr.mxu0 0.0
      %929 = vmatpush1.msra.mxu0 0.0
      %930 = vmatprep.subr.mxu0 0.0
      %931 = vmatpush1.msra.mxu0 0.0
      %932 = vmatprep.subr.mxu0 0.0
      %933 = vmatpush1.msra.mxu0 0.0
      %934 = vmatprep.subr.mxu0 0.0
      %935 = vmatpush1.msra.mxu0 0.0
      %936 = vmatprep.subr.mxu0 0.0
      %937 = vmatpush1.msra.mxu0 0.0
      %938 = vmatprep.subr.mxu0 0.0
      %939 = vmatpush1.msra.mxu0 0.0
      %940 = vmatprep.subr.mxu0 0.0
      %941 = vmatpush1.msra.mxu0 0.0
      %942 = vmatprep.subr.mxu0 0.0
      %943 = vmatpush1.msra.mxu0 0.0
      %944 = vmatprep.subr.mxu0 0.0
      %945 = vmatpush1.msra.mxu0 0.0
      %946 = vmatprep.subr.mxu0 0.0
      %947 = vmatpush1.msra.mxu0 0.0
      %948 = vmatprep.subr.mxu0 0.0
      %949 = vmatpush1.msra.mxu0 0.0
      %950 = vmatprep.subr.mxu0 0.0
      %951 = vmatpush1.msra.mxu0 0.0
      %952 = vmatprep.subr.mxu0 0.0
      %953 = vmatpush1.msra.mxu0 0.0
      %954 = vmatprep.subr.mxu0 0.0
      %955 = vmatpush1.msra.mxu0 %v922
      %956 = vmatprep.subr.mxu0 0.0
      %957 = vmatpush2.msra.mxu0 0.0
      %958 = vmatprep.subr.mxu0 0.0
      %959 = vmatpush2.msra.mxu0 0.0
      %960 = vmatprep.subr.mxu0 0.0
      %961 = vmatpush2.msra.mxu0 0.0
      %962 = vmatprep.subr.mxu0 0.0
      %963 = vmatpush2.msra.mxu0 0.0
      %964 = vmatprep.subr.mxu0 0.0
      %965 = vmatpush2.msra.mxu0 0.0
      %966 = vmatprep.subr.mxu0 0.0
      %967 = vmatpush2.msra.mxu0 0.0
      %968 = vmatprep.subr.mxu0 0.0
      %969 = vmatpush2.msra.mxu0 0.0
      %970 = vmatprep.subr.mxu0 0.0
      %971 = vmatpush2.msra.mxu0 0.0
      %972 = vmatprep.subr.mxu0 0.0
      %973 = vmatpush2.msra.mxu0 0.0
      %974 = vmatprep.subr.mxu0 0.0
      %975 = vmatpush2.msra.mxu0 0.0
      %976 = vmatprep.subr.mxu0 0.0
      %977 = vmatpush2.msra.mxu0 0.0
      %978 = vmatprep.subr.mxu0 0.0
      %979 = vmatpush2.msra.mxu0 0.0
      %980 = vmatprep.subr.mxu0 0.0
      %981 = vmatpush2.msra.mxu0 0.0
      %982 = vmatprep.subr.mxu0 0.0
      %983 = vmatpush2.msra.mxu0 0.0
      %984 = vmatprep.subr.mxu0 0.0
      %985 = vmatpush2.msra.mxu0 0.0
      %986 = vmatprep.subr.mxu0 0.0
      %987 = vmatpush2.msra.mxu0 0.0
      %988 = vmatprep.mubr.f32.mxu0 0.0
      %989 = vmatmul.mubr.f32.gmra.mxu0 %v826
      %v990 = vpop.f32.mrf.mxu0
      %v991 = vadd.f32 %v667, %v990
      %v992 = vpop.f32.mrf.mxu0
      %993 = vmatprep.mubr.f32.mxu0 0.0
      %994 = vmatmul.mubr.f32.gmra.mxu0 %v829
      %v995 = vpop.f32.mrf.mxu0
      %v996 = vadd.f32 %v672, %v995
      %v997 = vpop.f32.mrf.mxu0
      %998 = vmatprep.mubr.f32.mxu0 0.0
      %999 = vmatmul.mubr.f32.gmra.mxu0 %v832
      %v1000 = vpop.f32.mrf.mxu0
      %v1001 = vadd.f32 %v677, %v1000
      %v1002 = vpop.f32.mrf.mxu0
      %1003 = vmatprep.mubr.f32.mxu0 0.0
      %1004 = vmatmul.mubr.f32.gmra.mxu0 %v835
      %v1005 = vpop.f32.mrf.mxu0
      %v1006 = vadd.f32 %v682, %v1005
      %v1007 = vpop.f32.mrf.mxu0
      %1008 = vmatprep.mubr.f32.mxu0 0.0
      %1009 = vmatmul.mubr.f32.gmra.mxu0 %v838
      %v1010 = vpop.f32.mrf.mxu0
      %v1011 = vadd.f32 %v687, %v1010
      %v1012 = vpop.f32.mrf.mxu0
      %1013 = vmatprep.mubr.f32.mxu0 0.0
      %1014 = vmatmul.mubr.f32.gmra.mxu0 %v841
      %v1015 = vpop.f32.mrf.mxu0
      %v1016 = vadd.f32 %v692, %v1015
      %v1017 = vpop.f32.mrf.mxu0
      %1018 = vmatprep.mubr.f32.mxu0 0.0
      %1019 = vmatmul.mubr.f32.gmra.mxu0 %v844
      %v1020 = vpop.f32.mrf.mxu0
      %v1021 = vadd.f32 %v697, %v1020
      %v1022 = vpop.f32.mrf.mxu0
      %1023 = vmatprep.mubr.f32.mxu0 0.0
      %1024 = vmatmul.mubr.f32.gmra.mxu0 %v847
      %v1025 = vpop.f32.mrf.mxu0
      %v1026 = vadd.f32 %v702, %v1025
      %v1027 = vpop.f32.mrf.mxu0
      %1028 = vmatprep.mubr.f32.mxu0 0.0
      %1029 = vmatmul.mubr.f32.gmra.mxu0 %v850
      %v1030 = vpop.f32.mrf.mxu0
      %v1031 = vadd.f32 %v707, %v1030
      %v1032 = vpop.f32.mrf.mxu0
      %1033 = vmatprep.mubr.f32.mxu0 0.0
      %1034 = vmatmul.mubr.f32.gmra.mxu0 %v853
      %v1035 = vpop.f32.mrf.mxu0
      %v1036 = vadd.f32 %v712, %v1035
      %v1037 = vpop.f32.mrf.mxu0
      %1038 = vmatprep.mubr.f32.mxu0 0.0
      %1039 = vmatmul.mubr.f32.gmra.mxu0 %v856
      %v1040 = vpop.f32.mrf.mxu0
      %v1041 = vadd.f32 %v717, %v1040
      %v1042 = vpop.f32.mrf.mxu0
      %1043 = vmatprep.mubr.f32.mxu0 0.0
      %1044 = vmatmul.mubr.f32.gmra.mxu0 %v859
      %v1045 = vpop.f32.mrf.mxu0
      %v1046 = vadd.f32 %v722, %v1045
      %v1047 = vpop.f32.mrf.mxu0
      %1048 = vmatprep.mubr.f32.mxu0 0.0
      %1049 = vmatmul.mubr.f32.gmra.mxu0 %v862
      %v1050 = vpop.f32.mrf.mxu0
      %v1051 = vadd.f32 %v727, %v1050
      %v1052 = vpop.f32.mrf.mxu0
      %1053 = vmatprep.mubr.f32.mxu0 0.0
      %1054 = vmatmul.mubr.f32.gmra.mxu0 %v865
      %v1055 = vpop.f32.mrf.mxu0
      %v1056 = vadd.f32 %v732, %v1055
      %v1057 = vpop.f32.mrf.mxu0
      %1058 = vmatprep.mubr.f32.mxu0 0.0
      %1059 = vmatmul.mubr.f32.gmra.mxu0 %v868
      %v1060 = vpop.f32.mrf.mxu0
      %v1061 = vadd.f32 %v737, %v1060
      %v1062 = vpop.f32.mrf.mxu0
      %1063 = vmatprep.mubr.f32.mxu0 0.0
      %1064 = vmatmul.mubr.f32.gmra.mxu0 %v871
      %v1065 = vpop.f32.mrf.mxu0
      %v1066 = vadd.f32 %v742, %v1065
      %v1067 = vpop.f32.mrf.mxu0
      %1068 = vmatprep.mubr.f32.mxu0 0.0
      %1069 = vmatmul.mubr.f32.gmra.mxu0 %v874
      %v1070 = vpop.f32.mrf.mxu0
      %v1071 = vadd.f32 %v747, %v1070
      %v1072 = vpop.f32.mrf.mxu0
      %1073 = vmatprep.mubr.f32.mxu0 0.0
      %1074 = vmatmul.mubr.f32.gmra.mxu0 %v877
      %v1075 = vpop.f32.mrf.mxu0
      %v1076 = vadd.f32 %v752, %v1075
      %v1077 = vpop.f32.mrf.mxu0
      %1078 = vmatprep.mubr.f32.mxu0 0.0
      %1079 = vmatmul.mubr.f32.gmra.mxu0 %v880
      %v1080 = vpop.f32.mrf.mxu0
      %v1081 = vadd.f32 %v757, %v1080
      %v1082 = vpop.f32.mrf.mxu0
      %1083 = vmatprep.mubr.f32.mxu0 0.0
      %1084 = vmatmul.mubr.f32.gmra.mxu0 %v883
      %v1085 = vpop.f32.mrf.mxu0
      %v1086 = vadd.f32 %v762, %v1085
      %v1087 = vpop.f32.mrf.mxu0
      %1088 = vmatprep.mubr.f32.mxu0 0.0
      %1089 = vmatmul.mubr.f32.gmra.mxu0 %v886
      %v1090 = vpop.f32.mrf.mxu0
      %v1091 = vadd.f32 %v767, %v1090
      %v1092 = vpop.f32.mrf.mxu0
      %1093 = vmatprep.mubr.f32.mxu0 0.0
      %1094 = vmatmul.mubr.f32.gmra.mxu0 %v889
      %v1095 = vpop.f32.mrf.mxu0
      %v1096 = vadd.f32 %v772, %v1095
      %v1097 = vpop.f32.mrf.mxu0
      %1098 = vmatprep.mubr.f32.mxu0 0.0
      %1099 = vmatmul.mubr.f32.gmra.mxu0 %v892
      %v1100 = vpop.f32.mrf.mxu0
      %v1101 = vadd.f32 %v777, %v1100
      %v1102 = vpop.f32.mrf.mxu0
      %1103 = vmatprep.mubr.f32.mxu0 0.0
      %1104 = vmatmul.mubr.f32.gmra.mxu0 %v895
      %v1105 = vpop.f32.mrf.mxu0
      %v1106 = vadd.f32 %v782, %v1105
      %v1107 = vpop.f32.mrf.mxu0
      %1108 = vmatprep.mubr.f32.mxu0 0.0
      %1109 = vmatmul.mubr.f32.gmra.mxu0 %v898
      %v1110 = vpop.f32.mrf.mxu0
      %v1111 = vadd.f32 %v787, %v1110
      %v1112 = vpop.f32.mrf.mxu0
      %1113 = vmatprep.mubr.f32.mxu0 0.0
      %1114 = vmatmul.mubr.f32.gmra.mxu0 %v901
      %v1115 = vpop.f32.mrf.mxu0
      %v1116 = vadd.f32 %v792, %v1115
      %v1117 = vpop.f32.mrf.mxu0
      %1118 = vmatprep.mubr.f32.mxu0 0.0
      %1119 = vmatmul.mubr.f32.gmra.mxu0 %v904
      %v1120 = vpop.f32.mrf.mxu0
      %v1121 = vadd.f32 %v797, %v1120
      %v1122 = vpop.f32.mrf.mxu0
      %1123 = vmatprep.mubr.f32.mxu0 0.0
      %1124 = vmatmul.mubr.f32.gmra.mxu0 %v907
      %v1125 = vpop.f32.mrf.mxu0
      %v1126 = vadd.f32 %v802, %v1125
      %v1127 = vpop.f32.mrf.mxu0
      %1128 = vmatprep.mubr.f32.mxu0 0.0
      %1129 = vmatmul.mubr.f32.gmra.mxu0 %v910
      %v1130 = vpop.f32.mrf.mxu0
      %v1131 = vadd.f32 %v807, %v1130
      %v1132 = vpop.f32.mrf.mxu0
      %1133 = vmatprep.mubr.f32.mxu0 0.0
      %1134 = vmatmul.mubr.f32.gmra.mxu0 %v913
      %v1135 = vpop.f32.mrf.mxu0
      %v1136 = vadd.f32 %v812, %v1135
      %v1137 = vpop.f32.mrf.mxu0
      %1138 = vmatprep.mubr.f32.mxu0 0.0
      %1139 = vmatmul.mubr.f32.gmra.mxu0 %v916
      %v1140 = vpop.f32.mrf.mxu0
      %v1141 = vadd.f32 %v817, %v1140
      %v1142 = vpop.f32.mrf.mxu0
      %1143 = vmatprep.mubr.f32.mxu0 0.0
      %1144 = vmatmul.mubr.f32.gmra.mxu0 %v919
      %v1145 = vpop.f32.mrf.mxu0
      %v1146 = vadd.f32 %v822, %v1145
      %v1147 = vpop.f32.mrf.mxu0
      %1148 = vdwg.mxu0
      %v1149 = vld [vmem:[#allocation2 + $0x2] sm:$0xff]
      %v1150 = vld [vmem:[#allocation2 + $0xa] sm:$0xff]
      %v1151 = vld [vmem:[#allocation2 + $0x1a] sm:$0xff]
      %v1152 = vld [vmem:[#allocation2 + $0x22] sm:$0xff]
      %v1153 = vld [vmem:[#allocation2 + $0x32] sm:$0xff]
      %v1154 = vld [vmem:[#allocation2 + $0x3a] sm:$0xff]
      %v1155 = vld [vmem:[#allocation2 + $0x4a] sm:$0xff]
      %v1156 = vld [vmem:[#allocation2 + $0x52] sm:$0xff]
      %v1157 = vld [vmem:[#allocation2 + $0x62] sm:$0xff]
      %v1158 = vld [vmem:[#allocation2 + $0x6a] sm:$0xff]
      %v1159 = vld [vmem:[#allocation2 + $0x7a] sm:$0xff]
      %v1160 = vld [vmem:[#allocation2 + $0x82] sm:$0xff]
      %v1161 = vld [vmem:[#allocation2 + $0x92] sm:$0xff]
      %v1162 = vld [vmem:[#allocation2 + $0x9a] sm:$0xff]
      %v1163 = vld [vmem:[#allocation2 + $0xaa] sm:$0xff]
      %v1164 = vld [vmem:[#allocation2 + $0xb2] sm:$0xff]
      %v1165 = vld [vmem:[#allocation2 + $0xc2] sm:$0xff]
      %v1166 = vld [vmem:[#allocation2 + $0xca] sm:$0xff]
      %v1167 = vld [vmem:[#allocation2 + $0xda] sm:$0xff]
      %v1168 = vld [vmem:[#allocation2 + $0xe2] sm:$0xff]
      %v1169 = vld [vmem:[#allocation2 + $0xf2] sm:$0xff]
      %v1170 = vld [vmem:[#allocation2 + $0xfa] sm:$0xff]
      %v1171 = vld [vmem:[#allocation2 + $0x10a] sm:$0xff]
      %v1172 = vld [vmem:[#allocation2 + $0x112] sm:$0xff]
      %v1173 = vld [vmem:[#allocation2 + $0x122] sm:$0xff]
      %v1174 = vld [vmem:[#allocation2 + $0x12a] sm:$0xff]
      %v1175 = vld [vmem:[#allocation2 + $0x13a] sm:$0xff]
      %v1176 = vld [vmem:[#allocation2 + $0x142] sm:$0xff]
      %v1177 = vld [vmem:[#allocation2 + $0x152] sm:$0xff]
      %v1178 = vld [vmem:[#allocation2 + $0x15a] sm:$0xff]
      %v1179 = vld [vmem:[#allocation2 + $0x16a] sm:$0xff]
      %v1180 = vld [vmem:[#allocation2 + $0x172] sm:$0xff]
      %s1181 = scalar_lea.vmem %s1, 8
      %v1182 = vld [vmem:[%s1181] sm:$0xf]
      %v1184 = vsel %vm279, %v1149, 0
      %v1187 = vsel %vm279, %v1150, 0
      %v1190 = vsel %vm279, %v1151, 0
      %v1193 = vsel %vm279, %v1152, 0
      %v1196 = vsel %vm279, %v1153, 0
      %v1199 = vsel %vm279, %v1154, 0
      %v1202 = vsel %vm279, %v1155, 0
      %v1205 = vsel %vm279, %v1156, 0
      %v1208 = vsel %vm279, %v1157, 0
      %v1211 = vsel %vm279, %v1158, 0
      %v1214 = vsel %vm279, %v1159, 0
      %v1217 = vsel %vm279, %v1160, 0
      %v1220 = vsel %vm279, %v1161, 0
      %v1223 = vsel %vm279, %v1162, 0
      %v1226 = vsel %vm279, %v1163, 0
      %v1229 = vsel %vm279, %v1164, 0
      %v1232 = vsel %vm279, %v1165, 0
      %v1235 = vsel %vm279, %v1166, 0
      %v1238 = vsel %vm279, %v1167, 0
      %v1241 = vsel %vm279, %v1168, 0
      %v1244 = vsel %vm279, %v1169, 0
      %v1247 = vsel %vm279, %v1170, 0
      %v1250 = vsel %vm279, %v1171, 0
      %v1253 = vsel %vm279, %v1172, 0
      %v1256 = vsel %vm279, %v1173, 0
      %v1259 = vsel %vm279, %v1174, 0
      %v1262 = vsel %vm279, %v1175, 0
      %v1265 = vsel %vm279, %v1176, 0
      %v1268 = vsel %vm279, %v1177, 0
      %v1271 = vsel %vm279, %v1178, 0
      %v1274 = vsel %vm279, %v1179, 0
      %v1277 = vsel %vm279, %v1180, 0
      %v1280 = vsel %vm596, %v1182, 0
      %1282 = vmatprep.subr.mxu0 0.0
      %1283 = vmatpush1.msra.mxu0 0.0
      %1284 = vmatprep.subr.mxu0 0.0
      %1285 = vmatpush1.msra.mxu0 0.0
      %1286 = vmatprep.subr.mxu0 0.0
      %1287 = vmatpush1.msra.mxu0 0.0
      %1288 = vmatprep.subr.mxu0 0.0
      %1289 = vmatpush1.msra.mxu0 0.0
      %1290 = vmatprep.subr.mxu0 0.0
      %1291 = vmatpush1.msra.mxu0 0.0
      %1292 = vmatprep.subr.mxu0 0.0
      %1293 = vmatpush1.msra.mxu0 0.0
      %1294 = vmatprep.subr.mxu0 0.0
      %1295 = vmatpush1.msra.mxu0 0.0
      %1296 = vmatprep.subr.mxu0 0.0
      %1297 = vmatpush1.msra.mxu0 0.0
      %1298 = vmatprep.subr.mxu0 0.0
      %1299 = vmatpush1.msra.mxu0 0.0
      %1300 = vmatprep.subr.mxu0 0.0
      %1301 = vmatpush1.msra.mxu0 0.0
      %1302 = vmatprep.subr.mxu0 0.0
      %1303 = vmatpush1.msra.mxu0 0.0
      %1304 = vmatprep.subr.mxu0 0.0
      %1305 = vmatpush1.msra.mxu0 0.0
      %1306 = vmatprep.subr.mxu0 0.0
      %1307 = vmatpush1.msra.mxu0 0.0
      %1308 = vmatprep.subr.mxu0 0.0
      %1309 = vmatpush1.msra.mxu0 0.0
      %1310 = vmatprep.subr.mxu0 0.0
      %1311 = vmatpush1.msra.mxu0 0.0
      %1312 = vmatprep.subr.mxu0 0.0
      %1313 = vmatpush1.msra.mxu0 %v1280
      %1314 = vmatprep.subr.mxu0 0.0
      %1315 = vmatpush2.msra.mxu0 0.0
      %1316 = vmatprep.subr.mxu0 0.0
      %1317 = vmatpush2.msra.mxu0 0.0
      %1318 = vmatprep.subr.mxu0 0.0
      %1319 = vmatpush2.msra.mxu0 0.0
      %1320 = vmatprep.subr.mxu0 0.0
      %1321 = vmatpush2.msra.mxu0 0.0
      %1322 = vmatprep.subr.mxu0 0.0
      %1323 = vmatpush2.msra.mxu0 0.0
      %1324 = vmatprep.subr.mxu0 0.0
      %1325 = vmatpush2.msra.mxu0 0.0
      %1326 = vmatprep.subr.mxu0 0.0
      %1327 = vmatpush2.msra.mxu0 0.0
      %1328 = vmatprep.subr.mxu0 0.0
      %1329 = vmatpush2.msra.mxu0 0.0
      %1330 = vmatprep.subr.mxu0 0.0
      %1331 = vmatpush2.msra.mxu0 0.0
      %1332 = vmatprep.subr.mxu0 0.0
      %1333 = vmatpush2.msra.mxu0 0.0
      %1334 = vmatprep.subr.mxu0 0.0
      %1335 = vmatpush2.msra.mxu0 0.0
      %1336 = vmatprep.subr.mxu0 0.0
      %1337 = vmatpush2.msra.mxu0 0.0
      %1338 = vmatprep.subr.mxu0 0.0
      %1339 = vmatpush2.msra.mxu0 0.0
      %1340 = vmatprep.subr.mxu0 0.0
      %1341 = vmatpush2.msra.mxu0 0.0
      %1342 = vmatprep.subr.mxu0 0.0
      %1343 = vmatpush2.msra.mxu0 0.0
      %1344 = vmatprep.subr.mxu0 0.0
      %1345 = vmatpush2.msra.mxu0 0.0
      %1346 = vmatprep.mubr.f32.mxu0 0.0
      %1347 = vmatmul.mubr.f32.gmra.mxu0 %v1184
      %v1348 = vpop.f32.mrf.mxu0
      %v1349 = vadd.f32 0.0, %v1348
      %v1350 = vpop.f32.mrf.mxu0
      %1351 = vmatprep.mubr.f32.mxu0 0.0
      %1352 = vmatmul.mubr.f32.gmra.mxu0 %v1187
      %v1353 = vpop.f32.mrf.mxu0
      %v1354 = vadd.f32 0.0, %v1353
      %v1355 = vpop.f32.mrf.mxu0
      %1356 = vmatprep.mubr.f32.mxu0 0.0
      %1357 = vmatmul.mubr.f32.gmra.mxu0 %v1190
      %v1358 = vpop.f32.mrf.mxu0
      %v1359 = vadd.f32 0.0, %v1358
      %v1360 = vpop.f32.mrf.mxu0
      %1361 = vmatprep.mubr.f32.mxu0 0.0
      %1362 = vmatmul.mubr.f32.gmra.mxu0 %v1193
      %v1363 = vpop.f32.mrf.mxu0
      %v1364 = vadd.f32 0.0, %v1363
      %v1365 = vpop.f32.mrf.mxu0
      %1366 = vmatprep.mubr.f32.mxu0 0.0
      %1367 = vmatmul.mubr.f32.gmra.mxu0 %v1196
      %v1368 = vpop.f32.mrf.mxu0
      %v1369 = vadd.f32 0.0, %v1368
      %v1370 = vpop.f32.mrf.mxu0
      %1371 = vmatprep.mubr.f32.mxu0 0.0
      %1372 = vmatmul.mubr.f32.gmra.mxu0 %v1199
      %v1373 = vpop.f32.mrf.mxu0
      %v1374 = vadd.f32 0.0, %v1373
      %v1375 = vpop.f32.mrf.mxu0
      %1376 = vmatprep.mubr.f32.mxu0 0.0
      %1377 = vmatmul.mubr.f32.gmra.mxu0 %v1202
      %v1378 = vpop.f32.mrf.mxu0
      %v1379 = vadd.f32 0.0, %v1378
      %v1380 = vpop.f32.mrf.mxu0
      %1381 = vmatprep.mubr.f32.mxu0 0.0
      %1382 = vmatmul.mubr.f32.gmra.mxu0 %v1205
      %v1383 = vpop.f32.mrf.mxu0
      %v1384 = vadd.f32 0.0, %v1383
      %v1385 = vpop.f32.mrf.mxu0
      %1386 = vmatprep.mubr.f32.mxu0 0.0
      %1387 = vmatmul.mubr.f32.gmra.mxu0 %v1208
      %v1388 = vpop.f32.mrf.mxu0
      %v1389 = vadd.f32 0.0, %v1388
      %v1390 = vpop.f32.mrf.mxu0
      %1391 = vmatprep.mubr.f32.mxu0 0.0
      %1392 = vmatmul.mubr.f32.gmra.mxu0 %v1211
      %v1393 = vpop.f32.mrf.mxu0
      %v1394 = vadd.f32 0.0, %v1393
      %v1395 = vpop.f32.mrf.mxu0
      %1396 = vmatprep.mubr.f32.mxu0 0.0
      %1397 = vmatmul.mubr.f32.gmra.mxu0 %v1214
      %v1398 = vpop.f32.mrf.mxu0
      %v1399 = vadd.f32 0.0, %v1398
      %v1400 = vpop.f32.mrf.mxu0
      %1401 = vmatprep.mubr.f32.mxu0 0.0
      %1402 = vmatmul.mubr.f32.gmra.mxu0 %v1217
      %v1403 = vpop.f32.mrf.mxu0
      %v1404 = vadd.f32 0.0, %v1403
      %v1405 = vpop.f32.mrf.mxu0
      %1406 = vmatprep.mubr.f32.mxu0 0.0
      %1407 = vmatmul.mubr.f32.gmra.mxu0 %v1220
      %v1408 = vpop.f32.mrf.mxu0
      %v1409 = vadd.f32 0.0, %v1408
      %v1410 = vpop.f32.mrf.mxu0
      %1411 = vmatprep.mubr.f32.mxu0 0.0
      %1412 = vmatmul.mubr.f32.gmra.mxu0 %v1223
      %v1413 = vpop.f32.mrf.mxu0
      %v1414 = vadd.f32 0.0, %v1413
      %v1415 = vpop.f32.mrf.mxu0
      %1416 = vmatprep.mubr.f32.mxu0 0.0
      %1417 = vmatmul.mubr.f32.gmra.mxu0 %v1226
      %v1418 = vpop.f32.mrf.mxu0
      %v1419 = vadd.f32 0.0, %v1418
      %v1420 = vpop.f32.mrf.mxu0
      %1421 = vmatprep.mubr.f32.mxu0 0.0
      %1422 = vmatmul.mubr.f32.gmra.mxu0 %v1229
      %v1423 = vpop.f32.mrf.mxu0
      %v1424 = vadd.f32 0.0, %v1423
      %v1425 = vpop.f32.mrf.mxu0
      %1426 = vmatprep.mubr.f32.mxu0 0.0
      %1427 = vmatmul.mubr.f32.gmra.mxu0 %v1232
      %v1428 = vpop.f32.mrf.mxu0
      %v1429 = vadd.f32 0.0, %v1428
      %v1430 = vpop.f32.mrf.mxu0
      %1431 = vmatprep.mubr.f32.mxu0 0.0
      %1432 = vmatmul.mubr.f32.gmra.mxu0 %v1235
      %v1433 = vpop.f32.mrf.mxu0
      %v1434 = vadd.f32 0.0, %v1433
      %v1435 = vpop.f32.mrf.mxu0
      %1436 = vmatprep.mubr.f32.mxu0 0.0
      %1437 = vmatmul.mubr.f32.gmra.mxu0 %v1238
      %v1438 = vpop.f32.mrf.mxu0
      %v1439 = vadd.f32 0.0, %v1438
      %v1440 = vpop.f32.mrf.mxu0
      %1441 = vmatprep.mubr.f32.mxu0 0.0
      %1442 = vmatmul.mubr.f32.gmra.mxu0 %v1241
      %v1443 = vpop.f32.mrf.mxu0
      %v1444 = vadd.f32 0.0, %v1443
      %v1445 = vpop.f32.mrf.mxu0
      %1446 = vmatprep.mubr.f32.mxu0 0.0
      %1447 = vmatmul.mubr.f32.gmra.mxu0 %v1244
      %v1448 = vpop.f32.mrf.mxu0
      %v1449 = vadd.f32 0.0, %v1448
      %v1450 = vpop.f32.mrf.mxu0
      %1451 = vmatprep.mubr.f32.mxu0 0.0
      %1452 = vmatmul.mubr.f32.gmra.mxu0 %v1247
      %v1453 = vpop.f32.mrf.mxu0
      %v1454 = vadd.f32 0.0, %v1453
      %v1455 = vpop.f32.mrf.mxu0
      %1456 = vmatprep.mubr.f32.mxu0 0.0
      %1457 = vmatmul.mubr.f32.gmra.mxu0 %v1250
      %v1458 = vpop.f32.mrf.mxu0
      %v1459 = vadd.f32 0.0, %v1458
      %v1460 = vpop.f32.mrf.mxu0
      %1461 = vmatprep.mubr.f32.mxu0 0.0
      %1462 = vmatmul.mubr.f32.gmra.mxu0 %v1253
      %v1463 = vpop.f32.mrf.mxu0
      %v1464 = vadd.f32 0.0, %v1463
      %v1465 = vpop.f32.mrf.mxu0
      %1466 = vmatprep.mubr.f32.mxu0 0.0
      %1467 = vmatmul.mubr.f32.gmra.mxu0 %v1256
      %v1468 = vpop.f32.mrf.mxu0
      %v1469 = vadd.f32 0.0, %v1468
      %v1470 = vpop.f32.mrf.mxu0
      %1471 = vmatprep.mubr.f32.mxu0 0.0
      %1472 = vmatmul.mubr.f32.gmra.mxu0 %v1259
      %v1473 = vpop.f32.mrf.mxu0
      %v1474 = vadd.f32 0.0, %v1473
      %v1475 = vpop.f32.mrf.mxu0
      %1476 = vmatprep.mubr.f32.mxu0 0.0
      %1477 = vmatmul.mubr.f32.gmra.mxu0 %v1262
      %v1478 = vpop.f32.mrf.mxu0
      %v1479 = vadd.f32 0.0, %v1478
      %v1480 = vpop.f32.mrf.mxu0
      %1481 = vmatprep.mubr.f32.mxu0 0.0
      %1482 = vmatmul.mubr.f32.gmra.mxu0 %v1265
      %v1483 = vpop.f32.mrf.mxu0
      %v1484 = vadd.f32 0.0, %v1483
      %v1485 = vpop.f32.mrf.mxu0
      %1486 = vmatprep.mubr.f32.mxu0 0.0
      %1487 = vmatmul.mubr.f32.gmra.mxu0 %v1268
      %v1488 = vpop.f32.mrf.mxu0
      %v1489 = vadd.f32 0.0, %v1488
      %v1490 = vpop.f32.mrf.mxu0
      %1491 = vmatprep.mubr.f32.mxu0 0.0
      %1492 = vmatmul.mubr.f32.gmra.mxu0 %v1271
      %v1493 = vpop.f32.mrf.mxu0
      %v1494 = vadd.f32 0.0, %v1493
      %v1495 = vpop.f32.mrf.mxu0
      %1496 = vmatprep.mubr.f32.mxu0 0.0
      %1497 = vmatmul.mubr.f32.gmra.mxu0 %v1274
      %v1498 = vpop.f32.mrf.mxu0
      %v1499 = vadd.f32 0.0, %v1498
      %v1500 = vpop.f32.mrf.mxu0
      %1501 = vmatprep.mubr.f32.mxu0 0.0
      %1502 = vmatmul.mubr.f32.gmra.mxu0 %v1277
      %v1503 = vpop.f32.mrf.mxu0
      %v1504 = vadd.f32 0.0, %v1503
      %v1505 = vpop.f32.mrf.mxu0
      %1506 = vdwg.mxu0
      %v1507 = vadd.f32 %v991, %v1349
      %v1508 = vadd.f32 %v996, %v1354
      %v1509 = vadd.f32 %v1001, %v1359
      %v1510 = vadd.f32 %v1006, %v1364
      %v1511 = vadd.f32 %v1011, %v1369
      %v1512 = vadd.f32 %v1016, %v1374
      %v1513 = vadd.f32 %v1021, %v1379
      %v1514 = vadd.f32 %v1026, %v1384
      %v1515 = vadd.f32 %v1031, %v1389
      %v1516 = vadd.f32 %v1036, %v1394
      %v1517 = vadd.f32 %v1041, %v1399
      %v1518 = vadd.f32 %v1046, %v1404
      %v1519 = vadd.f32 %v1051, %v1409
      %v1520 = vadd.f32 %v1056, %v1414
      %v1521 = vadd.f32 %v1061, %v1419
      %v1522 = vadd.f32 %v1066, %v1424
      %v1523 = vadd.f32 %v1071, %v1429
      %v1524 = vadd.f32 %v1076, %v1434
      %v1525 = vadd.f32 %v1081, %v1439
      %v1526 = vadd.f32 %v1086, %v1444
      %v1527 = vadd.f32 %v1091, %v1449
      %v1528 = vadd.f32 %v1096, %v1454
      %v1529 = vadd.f32 %v1101, %v1459
      %v1530 = vadd.f32 %v1106, %v1464
      %v1531 = vadd.f32 %v1111, %v1469
      %v1532 = vadd.f32 %v1116, %v1474
      %v1533 = vadd.f32 %v1121, %v1479
      %v1534 = vadd.f32 %v1126, %v1484
      %v1535 = vadd.f32 %v1131, %v1489
      %v1536 = vadd.f32 %v1136, %v1494
      %v1537 = vadd.f32 %v1141, %v1499
      %v1538 = vadd.f32 %v1146, %v1504
      %v1539 = vld [vmem:[%s400] sm:$0xff]
      %v1540 = vld [vmem:[%s400 + $0x8] sm:$0xff]
      %v1541 = vld [vmem:[%s400 + $0x18] sm:$0xff]
      %v1542 = vld [vmem:[%s400 + $0x20] sm:$0xff]
      %v1543 = vld [vmem:[%s400 + $0x30] sm:$0xff]
      %v1544 = vld [vmem:[%s400 + $0x38] sm:$0xff]
      %v1545 = vld [vmem:[%s400 + $0x48] sm:$0xff]
      %v1546 = vld [vmem:[%s400 + $0x50] sm:$0xff]
      %v1547 = vld [vmem:[%s400 + $0x60] sm:$0xff]
      %v1548 = vld [vmem:[%s400 + $0x68] sm:$0xff]
      %v1549 = vld [vmem:[%s400 + $0x78] sm:$0xff]
      %v1550 = vld [vmem:[%s400 + $0x80] sm:$0xff]
      %v1551 = vld [vmem:[%s400 + $0x90] sm:$0xff]
      %v1552 = vld [vmem:[%s400 + $0x98] sm:$0xff]
      %v1553 = vld [vmem:[%s400 + $0xa8] sm:$0xff]
      %v1554 = vld [vmem:[%s400 + $0xb0] sm:$0xff]
      %v1555 = vld [vmem:[%s400 + $0xc0] sm:$0xff]
      %v1556 = vld [vmem:[%s400 + $0xc8] sm:$0xff]
      %v1557 = vld [vmem:[%s400 + $0xd8] sm:$0xff]
      %v1558 = vld [vmem:[%s400 + $0xe0] sm:$0xff]
      %v1559 = vld [vmem:[%s400 + $0xf0] sm:$0xff]
      %v1560 = vld [vmem:[%s400 + $0xf8] sm:$0xff]
      %v1561 = vld [vmem:[%s400 + $0x108] sm:$0xff]
      %v1562 = vld [vmem:[%s400 + $0x110] sm:$0xff]
      %v1563 = vld [vmem:[%s400 + $0x120] sm:$0xff]
      %v1564 = vld [vmem:[%s400 + $0x128] sm:$0xff]
      %v1565 = vld [vmem:[%s400 + $0x138] sm:$0xff]
      %v1566 = vld [vmem:[%s400 + $0x140] sm:$0xff]
      %v1567 = vld [vmem:[%s400 + $0x150] sm:$0xff]
      %v1568 = vld [vmem:[%s400 + $0x158] sm:$0xff]
      %v1569 = vld [vmem:[%s400 + $0x168] sm:$0xff]
      %v1570 = vld [vmem:[%s400 + $0x170] sm:$0xff]
      %s1571 = scalar_lea.vmem %s1, 12
      %v1572 = vld [vmem:[%s1571] sm:$0xf]
      %v1574 = vsel %vm279, %v1539, 0
      %v1577 = vsel %vm279, %v1540, 0
      %v1580 = vsel %vm279, %v1541, 0
      %v1583 = vsel %vm279, %v1542, 0
      %v1586 = vsel %vm279, %v1543, 0
      %v1589 = vsel %vm279, %v1544, 0
      %v1592 = vsel %vm279, %v1545, 0
      %v1595 = vsel %vm279, %v1546, 0
      %v1598 = vsel %vm279, %v1547, 0
      %v1601 = vsel %vm279, %v1548, 0
      %v1604 = vsel %vm279, %v1549, 0
      %v1607 = vsel %vm279, %v1550, 0
      %v1610 = vsel %vm279, %v1551, 0
      %v1613 = vsel %vm279, %v1552, 0
      %v1616 = vsel %vm279, %v1553, 0
      %v1619 = vsel %vm279, %v1554, 0
      %v1622 = vsel %vm279, %v1555, 0
      %v1625 = vsel %vm279, %v1556, 0
      %v1628 = vsel %vm279, %v1557, 0
      %v1631 = vsel %vm279, %v1558, 0
      %v1634 = vsel %vm279, %v1559, 0
      %v1637 = vsel %vm279, %v1560, 0
      %v1640 = vsel %vm279, %v1561, 0
      %v1643 = vsel %vm279, %v1562, 0
      %v1646 = vsel %vm279, %v1563, 0
      %v1649 = vsel %vm279, %v1564, 0
      %v1652 = vsel %vm279, %v1565, 0
      %v1655 = vsel %vm279, %v1566, 0
      %v1658 = vsel %vm279, %v1567, 0
      %v1661 = vsel %vm279, %v1568, 0
      %v1664 = vsel %vm279, %v1569, 0
      %v1667 = vsel %vm279, %v1570, 0
      %v1670 = vsel %vm596, %v1572, 0
      %1672 = vmatprep.subr.mxu0 0.0
      %1673 = vmatpush1.msra.mxu0 0.0
      %1674 = vmatprep.subr.mxu0 0.0
      %1675 = vmatpush1.msra.mxu0 0.0
      %1676 = vmatprep.subr.mxu0 0.0
      %1677 = vmatpush1.msra.mxu0 0.0
      %1678 = vmatprep.subr.mxu0 0.0
      %1679 = vmatpush1.msra.mxu0 0.0
      %1680 = vmatprep.subr.mxu0 0.0
      %1681 = vmatpush1.msra.mxu0 0.0
      %1682 = vmatprep.subr.mxu0 0.0
      %1683 = vmatpush1.msra.mxu0 0.0
      %1684 = vmatprep.subr.mxu0 0.0
      %1685 = vmatpush1.msra.mxu0 0.0
      %1686 = vmatprep.subr.mxu0 0.0
      %1687 = vmatpush1.msra.mxu0 0.0
      %1688 = vmatprep.subr.mxu0 0.0
      %1689 = vmatpush1.msra.mxu0 0.0
      %1690 = vmatprep.subr.mxu0 0.0
      %1691 = vmatpush1.msra.mxu0 0.0
      %1692 = vmatprep.subr.mxu0 0.0
      %1693 = vmatpush1.msra.mxu0 0.0
      %1694 = vmatprep.subr.mxu0 0.0
      %1695 = vmatpush1.msra.mxu0 0.0
      %1696 = vmatprep.subr.mxu0 0.0
      %1697 = vmatpush1.msra.mxu0 0.0
      %1698 = vmatprep.subr.mxu0 0.0
      %1699 = vmatpush1.msra.mxu0 0.0
      %1700 = vmatprep.subr.mxu0 0.0
      %1701 = vmatpush1.msra.mxu0 0.0
      %1702 = vmatprep.subr.mxu0 0.0
      %1703 = vmatpush1.msra.mxu0 %v1670
      %1704 = vmatprep.subr.mxu0 0.0
      %1705 = vmatpush2.msra.mxu0 0.0
      %1706 = vmatprep.subr.mxu0 0.0
      %1707 = vmatpush2.msra.mxu0 0.0
      %1708 = vmatprep.subr.mxu0 0.0
      %1709 = vmatpush2.msra.mxu0 0.0
      %1710 = vmatprep.subr.mxu0 0.0
      %1711 = vmatpush2.msra.mxu0 0.0
      %1712 = vmatprep.subr.mxu0 0.0
      %1713 = vmatpush2.msra.mxu0 0.0
      %1714 = vmatprep.subr.mxu0 0.0
      %1715 = vmatpush2.msra.mxu0 0.0
      %1716 = vmatprep.subr.mxu0 0.0
      %1717 = vmatpush2.msra.mxu0 0.0
      %1718 = vmatprep.subr.mxu0 0.0
      %1719 = vmatpush2.msra.mxu0 0.0
      %1720 = vmatprep.subr.mxu0 0.0
      %1721 = vmatpush2.msra.mxu0 0.0
      %1722 = vmatprep.subr.mxu0 0.0
      %1723 = vmatpush2.msra.mxu0 0.0
      %1724 = vmatprep.subr.mxu0 0.0
      %1725 = vmatpush2.msra.mxu0 0.0
      %1726 = vmatprep.subr.mxu0 0.0
      %1727 = vmatpush2.msra.mxu0 0.0
      %1728 = vmatprep.subr.mxu0 0.0
      %1729 = vmatpush2.msra.mxu0 0.0
      %1730 = vmatprep.subr.mxu0 0.0
      %1731 = vmatpush2.msra.mxu0 0.0
      %1732 = vmatprep.subr.mxu0 0.0
      %1733 = vmatpush2.msra.mxu0 0.0
      %1734 = vmatprep.subr.mxu0 0.0
      %1735 = vmatpush2.msra.mxu0 0.0
      %1736 = vmatprep.mubr.f32.mxu0 0.0
      %1737 = vmatmul.mubr.f32.gmra.mxu0 %v1574
      %v1738 = vpop.f32.mrf.mxu0
      %v1739 = vadd.f32 0.0, %v1738
      %v1740 = vpop.f32.mrf.mxu0
      %1741 = vmatprep.mubr.f32.mxu0 0.0
      %1742 = vmatmul.mubr.f32.gmra.mxu0 %v1577
      %v1743 = vpop.f32.mrf.mxu0
      %v1744 = vadd.f32 0.0, %v1743
      %v1745 = vpop.f32.mrf.mxu0
      %1746 = vmatprep.mubr.f32.mxu0 0.0
      %1747 = vmatmul.mubr.f32.gmra.mxu0 %v1580
      %v1748 = vpop.f32.mrf.mxu0
      %v1749 = vadd.f32 0.0, %v1748
      %v1750 = vpop.f32.mrf.mxu0
      %1751 = vmatprep.mubr.f32.mxu0 0.0
      %1752 = vmatmul.mubr.f32.gmra.mxu0 %v1583
      %v1753 = vpop.f32.mrf.mxu0
      %v1754 = vadd.f32 0.0, %v1753
      %v1755 = vpop.f32.mrf.mxu0
      %1756 = vmatprep.mubr.f32.mxu0 0.0
      %1757 = vmatmul.mubr.f32.gmra.mxu0 %v1586
      %v1758 = vpop.f32.mrf.mxu0
      %v1759 = vadd.f32 0.0, %v1758
      %v1760 = vpop.f32.mrf.mxu0
      %1761 = vmatprep.mubr.f32.mxu0 0.0
      %1762 = vmatmul.mubr.f32.gmra.mxu0 %v1589
      %v1763 = vpop.f32.mrf.mxu0
      %v1764 = vadd.f32 0.0, %v1763
      %v1765 = vpop.f32.mrf.mxu0
      %1766 = vmatprep.mubr.f32.mxu0 0.0
      %1767 = vmatmul.mubr.f32.gmra.mxu0 %v1592
      %v1768 = vpop.f32.mrf.mxu0
      %v1769 = vadd.f32 0.0, %v1768
      %v1770 = vpop.f32.mrf.mxu0
      %1771 = vmatprep.mubr.f32.mxu0 0.0
      %1772 = vmatmul.mubr.f32.gmra.mxu0 %v1595
      %v1773 = vpop.f32.mrf.mxu0
      %v1774 = vadd.f32 0.0, %v1773
      %v1775 = vpop.f32.mrf.mxu0
      %1776 = vmatprep.mubr.f32.mxu0 0.0
      %1777 = vmatmul.mubr.f32.gmra.mxu0 %v1598
      %v1778 = vpop.f32.mrf.mxu0
      %v1779 = vadd.f32 0.0, %v1778
      %v1780 = vpop.f32.mrf.mxu0
      %1781 = vmatprep.mubr.f32.mxu0 0.0
      %1782 = vmatmul.mubr.f32.gmra.mxu0 %v1601
      %v1783 = vpop.f32.mrf.mxu0
      %v1784 = vadd.f32 0.0, %v1783
      %v1785 = vpop.f32.mrf.mxu0
      %1786 = vmatprep.mubr.f32.mxu0 0.0
      %1787 = vmatmul.mubr.f32.gmra.mxu0 %v1604
      %v1788 = vpop.f32.mrf.mxu0
      %v1789 = vadd.f32 0.0, %v1788
      %v1790 = vpop.f32.mrf.mxu0
      %1791 = vmatprep.mubr.f32.mxu0 0.0
      %1792 = vmatmul.mubr.f32.gmra.mxu0 %v1607
      %v1793 = vpop.f32.mrf.mxu0
      %v1794 = vadd.f32 0.0, %v1793
      %v1795 = vpop.f32.mrf.mxu0
      %1796 = vmatprep.mubr.f32.mxu0 0.0
      %1797 = vmatmul.mubr.f32.gmra.mxu0 %v1610
      %v1798 = vpop.f32.mrf.mxu0
      %v1799 = vadd.f32 0.0, %v1798
      %v1800 = vpop.f32.mrf.mxu0
      %1801 = vmatprep.mubr.f32.mxu0 0.0
      %1802 = vmatmul.mubr.f32.gmra.mxu0 %v1613
      %v1803 = vpop.f32.mrf.mxu0
      %v1804 = vadd.f32 0.0, %v1803
      %v1805 = vpop.f32.mrf.mxu0
      %1806 = vmatprep.mubr.f32.mxu0 0.0
      %1807 = vmatmul.mubr.f32.gmra.mxu0 %v1616
      %v1808 = vpop.f32.mrf.mxu0
      %v1809 = vadd.f32 0.0, %v1808
      %v1810 = vpop.f32.mrf.mxu0
      %1811 = vmatprep.mubr.f32.mxu0 0.0
      %1812 = vmatmul.mubr.f32.gmra.mxu0 %v1619
      %v1813 = vpop.f32.mrf.mxu0
      %v1814 = vadd.f32 0.0, %v1813
      %v1815 = vpop.f32.mrf.mxu0
      %1816 = vmatprep.mubr.f32.mxu0 0.0
      %1817 = vmatmul.mubr.f32.gmra.mxu0 %v1622
      %v1818 = vpop.f32.mrf.mxu0
      %v1819 = vadd.f32 0.0, %v1818
      %v1820 = vpop.f32.mrf.mxu0
      %1821 = vmatprep.mubr.f32.mxu0 0.0
      %1822 = vmatmul.mubr.f32.gmra.mxu0 %v1625
      %v1823 = vpop.f32.mrf.mxu0
      %v1824 = vadd.f32 0.0, %v1823
      %v1825 = vpop.f32.mrf.mxu0
      %1826 = vmatprep.mubr.f32.mxu0 0.0
      %1827 = vmatmul.mubr.f32.gmra.mxu0 %v1628
      %v1828 = vpop.f32.mrf.mxu0
      %v1829 = vadd.f32 0.0, %v1828
      %v1830 = vpop.f32.mrf.mxu0
      %1831 = vmatprep.mubr.f32.mxu0 0.0
      %1832 = vmatmul.mubr.f32.gmra.mxu0 %v1631
      %v1833 = vpop.f32.mrf.mxu0
      %v1834 = vadd.f32 0.0, %v1833
      %v1835 = vpop.f32.mrf.mxu0
      %1836 = vmatprep.mubr.f32.mxu0 0.0
      %1837 = vmatmul.mubr.f32.gmra.mxu0 %v1634
      %v1838 = vpop.f32.mrf.mxu0
      %v1839 = vadd.f32 0.0, %v1838
      %v1840 = vpop.f32.mrf.mxu0
      %1841 = vmatprep.mubr.f32.mxu0 0.0
      %1842 = vmatmul.mubr.f32.gmra.mxu0 %v1637
      %v1843 = vpop.f32.mrf.mxu0
      %v1844 = vadd.f32 0.0, %v1843
      %v1845 = vpop.f32.mrf.mxu0
      %1846 = vmatprep.mubr.f32.mxu0 0.0
      %1847 = vmatmul.mubr.f32.gmra.mxu0 %v1640
      %v1848 = vpop.f32.mrf.mxu0
      %v1849 = vadd.f32 0.0, %v1848
      %v1850 = vpop.f32.mrf.mxu0
      %1851 = vmatprep.mubr.f32.mxu0 0.0
      %1852 = vmatmul.mubr.f32.gmra.mxu0 %v1643
      %v1853 = vpop.f32.mrf.mxu0
      %v1854 = vadd.f32 0.0, %v1853
      %v1855 = vpop.f32.mrf.mxu0
      %1856 = vmatprep.mubr.f32.mxu0 0.0
      %1857 = vmatmul.mubr.f32.gmra.mxu0 %v1646
      %v1858 = vpop.f32.mrf.mxu0
      %v1859 = vadd.f32 0.0, %v1858
      %v1860 = vpop.f32.mrf.mxu0
      %1861 = vmatprep.mubr.f32.mxu0 0.0
      %1862 = vmatmul.mubr.f32.gmra.mxu0 %v1649
      %v1863 = vpop.f32.mrf.mxu0
      %v1864 = vadd.f32 0.0, %v1863
      %v1865 = vpop.f32.mrf.mxu0
      %1866 = vmatprep.mubr.f32.mxu0 0.0
      %1867 = vmatmul.mubr.f32.gmra.mxu0 %v1652
      %v1868 = vpop.f32.mrf.mxu0
      %v1869 = vadd.f32 0.0, %v1868
      %v1870 = vpop.f32.mrf.mxu0
      %1871 = vmatprep.mubr.f32.mxu0 0.0
      %1872 = vmatmul.mubr.f32.gmra.mxu0 %v1655
      %v1873 = vpop.f32.mrf.mxu0
      %v1874 = vadd.f32 0.0, %v1873
      %v1875 = vpop.f32.mrf.mxu0
      %1876 = vmatprep.mubr.f32.mxu0 0.0
      %1877 = vmatmul.mubr.f32.gmra.mxu0 %v1658
      %v1878 = vpop.f32.mrf.mxu0
      %v1879 = vadd.f32 0.0, %v1878
      %v1880 = vpop.f32.mrf.mxu0
      %1881 = vmatprep.mubr.f32.mxu0 0.0
      %1882 = vmatmul.mubr.f32.gmra.mxu0 %v1661
      %v1883 = vpop.f32.mrf.mxu0
      %v1884 = vadd.f32 0.0, %v1883
      %v1885 = vpop.f32.mrf.mxu0
      %1886 = vmatprep.mubr.f32.mxu0 0.0
      %1887 = vmatmul.mubr.f32.gmra.mxu0 %v1664
      %v1888 = vpop.f32.mrf.mxu0
      %v1889 = vadd.f32 0.0, %v1888
      %v1890 = vpop.f32.mrf.mxu0
      %1891 = vmatprep.mubr.f32.mxu0 0.0
      %1892 = vmatmul.mubr.f32.gmra.mxu0 %v1667
      %v1893 = vpop.f32.mrf.mxu0
      %v1894 = vadd.f32 0.0, %v1893
      %v1895 = vpop.f32.mrf.mxu0
      %1896 = vdwg.mxu0
      %v1897 = vadd.f32 %v1507, %v1739
      %v1898 = vadd.f32 %v1508, %v1744
      %v1899 = vadd.f32 %v1509, %v1749
      %v1900 = vadd.f32 %v1510, %v1754
      %v1901 = vadd.f32 %v1511, %v1759
      %v1902 = vadd.f32 %v1512, %v1764
      %v1903 = vadd.f32 %v1513, %v1769
      %v1904 = vadd.f32 %v1514, %v1774
      %v1905 = vadd.f32 %v1515, %v1779
      %v1906 = vadd.f32 %v1516, %v1784
      %v1907 = vadd.f32 %v1517, %v1789
      %v1908 = vadd.f32 %v1518, %v1794
      %v1909 = vadd.f32 %v1519, %v1799
      %v1910 = vadd.f32 %v1520, %v1804
      %v1911 = vadd.f32 %v1521, %v1809
      %v1912 = vadd.f32 %v1522, %v1814
      %v1913 = vadd.f32 %v1523, %v1819
      %v1914 = vadd.f32 %v1524, %v1824
      %v1915 = vadd.f32 %v1525, %v1829
      %v1916 = vadd.f32 %v1526, %v1834
      %v1917 = vadd.f32 %v1527, %v1839
      %v1918 = vadd.f32 %v1528, %v1844
      %v1919 = vadd.f32 %v1529, %v1849
      %v1920 = vadd.f32 %v1530, %v1854
      %v1921 = vadd.f32 %v1531, %v1859
      %v1922 = vadd.f32 %v1532, %v1864
      %v1923 = vadd.f32 %v1533, %v1869
      %v1924 = vadd.f32 %v1534, %v1874
      %v1925 = vadd.f32 %v1535, %v1879
      %v1926 = vadd.f32 %v1536, %v1884
      %v1927 = vadd.f32 %v1537, %v1889
      %v1928 = vadd.f32 %v1538, %v1894
      %v1929 = vld [vmem:[%s400 + $0x1] sm:$0xff]
      %v1930 = vld [vmem:[%s400 + $0x9] sm:$0xff]
      %v1931 = vld [vmem:[%s400 + $0x19] sm:$0xff]
      %v1932 = vld [vmem:[%s400 + $0x21] sm:$0xff]
      %v1933 = vld [vmem:[%s400 + $0x31] sm:$0xff]
      %v1934 = vld [vmem:[%s400 + $0x39] sm:$0xff]
      %v1935 = vld [vmem:[%s400 + $0x49] sm:$0xff]
      %v1936 = vld [vmem:[%s400 + $0x51] sm:$0xff]
      %v1937 = vld [vmem:[%s400 + $0x61] sm:$0xff]
      %v1938 = vld [vmem:[%s400 + $0x69] sm:$0xff]
      %v1939 = vld [vmem:[%s400 + $0x79] sm:$0xff]
      %v1940 = vld [vmem:[%s400 + $0x81] sm:$0xff]
      %v1941 = vld [vmem:[%s400 + $0x91] sm:$0xff]
      %v1942 = vld [vmem:[%s400 + $0x99] sm:$0xff]
      %v1943 = vld [vmem:[%s400 + $0xa9] sm:$0xff]
      %v1944 = vld [vmem:[%s400 + $0xb1] sm:$0xff]
      %v1945 = vld [vmem:[%s400 + $0xc1] sm:$0xff]
      %v1946 = vld [vmem:[%s400 + $0xc9] sm:$0xff]
      %v1947 = vld [vmem:[%s400 + $0xd9] sm:$0xff]
      %v1948 = vld [vmem:[%s400 + $0xe1] sm:$0xff]
      %v1949 = vld [vmem:[%s400 + $0xf1] sm:$0xff]
      %v1950 = vld [vmem:[%s400 + $0xf9] sm:$0xff]
      %v1951 = vld [vmem:[%s400 + $0x109] sm:$0xff]
      %v1952 = vld [vmem:[%s400 + $0x111] sm:$0xff]
      %v1953 = vld [vmem:[%s400 + $0x121] sm:$0xff]
      %v1954 = vld [vmem:[%s400 + $0x129] sm:$0xff]
      %v1955 = vld [vmem:[%s400 + $0x139] sm:$0xff]
      %v1956 = vld [vmem:[%s400 + $0x141] sm:$0xff]
      %v1957 = vld [vmem:[%s400 + $0x151] sm:$0xff]
      %v1958 = vld [vmem:[%s400 + $0x159] sm:$0xff]
      %v1959 = vld [vmem:[%s400 + $0x169] sm:$0xff]
      %v1960 = vld [vmem:[%s400 + $0x171] sm:$0xff]
      %s1961 = scalar_lea.vmem %s1, 16
      %v1962 = vld [vmem:[%s1961] sm:$0xf]
      %v1964 = vsel %vm279, %v1929, 0
      %v1967 = vsel %vm279, %v1930, 0
      %v1970 = vsel %vm279, %v1931, 0
      %v1973 = vsel %vm279, %v1932, 0
      %v1976 = vsel %vm279, %v1933, 0
      %v1979 = vsel %vm279, %v1934, 0
      %v1982 = vsel %vm279, %v1935, 0
      %v1985 = vsel %vm279, %v1936, 0
      %v1988 = vsel %vm279, %v1937, 0
      %v1991 = vsel %vm279, %v1938, 0
      %v1994 = vsel %vm279, %v1939, 0
      %v1997 = vsel %vm279, %v1940, 0
      %v2000 = vsel %vm279, %v1941, 0
      %v2003 = vsel %vm279, %v1942, 0
      %v2006 = vsel %vm279, %v1943, 0
      %v2009 = vsel %vm279, %v1944, 0
      %v2012 = vsel %vm279, %v1945, 0
      %v2015 = vsel %vm279, %v1946, 0
      %v2018 = vsel %vm279, %v1947, 0
      %v2021 = vsel %vm279, %v1948, 0
      %v2024 = vsel %vm279, %v1949, 0
      %v2027 = vsel %vm279, %v1950, 0
      %v2030 = vsel %vm279, %v1951, 0
      %v2033 = vsel %vm279, %v1952, 0
      %v2036 = vsel %vm279, %v1953, 0
      %v2039 = vsel %vm279, %v1954, 0
      %v2042 = vsel %vm279, %v1955, 0
      %v2045 = vsel %vm279, %v1956, 0
      %v2048 = vsel %vm279, %v1957, 0
      %v2051 = vsel %vm279, %v1958, 0
      %v2054 = vsel %vm279, %v1959, 0
      %v2057 = vsel %vm279, %v1960, 0
      %v2060 = vsel %vm596, %v1962, 0
      %2062 = vmatprep.subr.mxu0 0.0
      %2063 = vmatpush1.msra.mxu0 0.0
      %2064 = vmatprep.subr.mxu0 0.0
      %2065 = vmatpush1.msra.mxu0 0.0
      %2066 = vmatprep.subr.mxu0 0.0
      %2067 = vmatpush1.msra.mxu0 0.0
      %2068 = vmatprep.subr.mxu0 0.0
      %2069 = vmatpush1.msra.mxu0 0.0
      %2070 = vmatprep.subr.mxu0 0.0
      %2071 = vmatpush1.msra.mxu0 0.0
      %2072 = vmatprep.subr.mxu0 0.0
      %2073 = vmatpush1.msra.mxu0 0.0
      %2074 = vmatprep.subr.mxu0 0.0
      %2075 = vmatpush1.msra.mxu0 0.0
      %2076 = vmatprep.subr.mxu0 0.0
      %2077 = vmatpush1.msra.mxu0 0.0
      %2078 = vmatprep.subr.mxu0 0.0
      %2079 = vmatpush1.msra.mxu0 0.0
      %2080 = vmatprep.subr.mxu0 0.0
      %2081 = vmatpush1.msra.mxu0 0.0
      %2082 = vmatprep.subr.mxu0 0.0
      %2083 = vmatpush1.msra.mxu0 0.0
      %2084 = vmatprep.subr.mxu0 0.0
      %2085 = vmatpush1.msra.mxu0 0.0
      %2086 = vmatprep.subr.mxu0 0.0
      %2087 = vmatpush1.msra.mxu0 0.0
      %2088 = vmatprep.subr.mxu0 0.0
      %2089 = vmatpush1.msra.mxu0 0.0
      %2090 = vmatprep.subr.mxu0 0.0
      %2091 = vmatpush1.msra.mxu0 0.0
      %2092 = vmatprep.subr.mxu0 0.0
      %2093 = vmatpush1.msra.mxu0 %v2060
      %2094 = vmatprep.subr.mxu0 0.0
      %2095 = vmatpush2.msra.mxu0 0.0
      %2096 = vmatprep.subr.mxu0 0.0
      %2097 = vmatpush2.msra.mxu0 0.0
      %2098 = vmatprep.subr.mxu0 0.0
      %2099 = vmatpush2.msra.mxu0 0.0
      %2100 = vmatprep.subr.mxu0 0.0
      %2101 = vmatpush2.msra.mxu0 0.0
      %2102 = vmatprep.subr.mxu0 0.0
      %2103 = vmatpush2.msra.mxu0 0.0
      %2104 = vmatprep.subr.mxu0 0.0
      %2105 = vmatpush2.msra.mxu0 0.0
      %2106 = vmatprep.subr.mxu0 0.0
      %2107 = vmatpush2.msra.mxu0 0.0
      %2108 = vmatprep.subr.mxu0 0.0
      %2109 = vmatpush2.msra.mxu0 0.0
      %2110 = vmatprep.subr.mxu0 0.0
      %2111 = vmatpush2.msra.mxu0 0.0
      %2112 = vmatprep.subr.mxu0 0.0
      %2113 = vmatpush2.msra.mxu0 0.0
      %2114 = vmatprep.subr.mxu0 0.0
      %2115 = vmatpush2.msra.mxu0 0.0
      %2116 = vmatprep.subr.mxu0 0.0
      %2117 = vmatpush2.msra.mxu0 0.0
      %2118 = vmatprep.subr.mxu0 0.0
      %2119 = vmatpush2.msra.mxu0 0.0
      %2120 = vmatprep.subr.mxu0 0.0
      %2121 = vmatpush2.msra.mxu0 0.0
      %2122 = vmatprep.subr.mxu0 0.0
      %2123 = vmatpush2.msra.mxu0 0.0
      %2124 = vmatprep.subr.mxu0 0.0
      %2125 = vmatpush2.msra.mxu0 0.0
      %2126 = vmatprep.mubr.f32.mxu0 0.0
      %2127 = vmatmul.mubr.f32.gmra.mxu0 %v1964
      %v2128 = vpop.f32.mrf.mxu0
      %v2129 = vadd.f32 0.0, %v2128
      %v2130 = vpop.f32.mrf.mxu0
      %2131 = vmatprep.mubr.f32.mxu0 0.0
      %2132 = vmatmul.mubr.f32.gmra.mxu0 %v1967
      %v2133 = vpop.f32.mrf.mxu0
      %v2134 = vadd.f32 0.0, %v2133
      %v2135 = vpop.f32.mrf.mxu0
      %2136 = vmatprep.mubr.f32.mxu0 0.0
      %2137 = vmatmul.mubr.f32.gmra.mxu0 %v1970
      %v2138 = vpop.f32.mrf.mxu0
      %v2139 = vadd.f32 0.0, %v2138
      %v2140 = vpop.f32.mrf.mxu0
      %2141 = vmatprep.mubr.f32.mxu0 0.0
      %2142 = vmatmul.mubr.f32.gmra.mxu0 %v1973
      %v2143 = vpop.f32.mrf.mxu0
      %v2144 = vadd.f32 0.0, %v2143
      %v2145 = vpop.f32.mrf.mxu0
      %2146 = vmatprep.mubr.f32.mxu0 0.0
      %2147 = vmatmul.mubr.f32.gmra.mxu0 %v1976
      %v2148 = vpop.f32.mrf.mxu0
      %v2149 = vadd.f32 0.0, %v2148
      %v2150 = vpop.f32.mrf.mxu0
      %2151 = vmatprep.mubr.f32.mxu0 0.0
      %2152 = vmatmul.mubr.f32.gmra.mxu0 %v1979
      %v2153 = vpop.f32.mrf.mxu0
      %v2154 = vadd.f32 0.0, %v2153
      %v2155 = vpop.f32.mrf.mxu0
      %2156 = vmatprep.mubr.f32.mxu0 0.0
      %2157 = vmatmul.mubr.f32.gmra.mxu0 %v1982
      %v2158 = vpop.f32.mrf.mxu0
      %v2159 = vadd.f32 0.0, %v2158
      %v2160 = vpop.f32.mrf.mxu0
      %2161 = vmatprep.mubr.f32.mxu0 0.0
      %2162 = vmatmul.mubr.f32.gmra.mxu0 %v1985
      %v2163 = vpop.f32.mrf.mxu0
      %v2164 = vadd.f32 0.0, %v2163
      %v2165 = vpop.f32.mrf.mxu0
      %2166 = vmatprep.mubr.f32.mxu0 0.0
      %2167 = vmatmul.mubr.f32.gmra.mxu0 %v1988
      %v2168 = vpop.f32.mrf.mxu0
      %v2169 = vadd.f32 0.0, %v2168
      %v2170 = vpop.f32.mrf.mxu0
      %2171 = vmatprep.mubr.f32.mxu0 0.0
      %2172 = vmatmul.mubr.f32.gmra.mxu0 %v1991
      %v2173 = vpop.f32.mrf.mxu0
      %v2174 = vadd.f32 0.0, %v2173
      %v2175 = vpop.f32.mrf.mxu0
      %2176 = vmatprep.mubr.f32.mxu0 0.0
      %2177 = vmatmul.mubr.f32.gmra.mxu0 %v1994
      %v2178 = vpop.f32.mrf.mxu0
      %v2179 = vadd.f32 0.0, %v2178
      %v2180 = vpop.f32.mrf.mxu0
      %2181 = vmatprep.mubr.f32.mxu0 0.0
      %2182 = vmatmul.mubr.f32.gmra.mxu0 %v1997
      %v2183 = vpop.f32.mrf.mxu0
      %v2184 = vadd.f32 0.0, %v2183
      %v2185 = vpop.f32.mrf.mxu0
      %2186 = vmatprep.mubr.f32.mxu0 0.0
      %2187 = vmatmul.mubr.f32.gmra.mxu0 %v2000
      %v2188 = vpop.f32.mrf.mxu0
      %v2189 = vadd.f32 0.0, %v2188
      %v2190 = vpop.f32.mrf.mxu0
      %2191 = vmatprep.mubr.f32.mxu0 0.0
      %2192 = vmatmul.mubr.f32.gmra.mxu0 %v2003
      %v2193 = vpop.f32.mrf.mxu0
      %v2194 = vadd.f32 0.0, %v2193
      %v2195 = vpop.f32.mrf.mxu0
      %2196 = vmatprep.mubr.f32.mxu0 0.0
      %2197 = vmatmul.mubr.f32.gmra.mxu0 %v2006
      %v2198 = vpop.f32.mrf.mxu0
      %v2199 = vadd.f32 0.0, %v2198
      %v2200 = vpop.f32.mrf.mxu0
      %2201 = vmatprep.mubr.f32.mxu0 0.0
      %2202 = vmatmul.mubr.f32.gmra.mxu0 %v2009
      %v2203 = vpop.f32.mrf.mxu0
      %v2204 = vadd.f32 0.0, %v2203
      %v2205 = vpop.f32.mrf.mxu0
      %2206 = vmatprep.mubr.f32.mxu0 0.0
      %2207 = vmatmul.mubr.f32.gmra.mxu0 %v2012
      %v2208 = vpop.f32.mrf.mxu0
      %v2209 = vadd.f32 0.0, %v2208
      %v2210 = vpop.f32.mrf.mxu0
      %2211 = vmatprep.mubr.f32.mxu0 0.0
      %2212 = vmatmul.mubr.f32.gmra.mxu0 %v2015
      %v2213 = vpop.f32.mrf.mxu0
      %v2214 = vadd.f32 0.0, %v2213
      %v2215 = vpop.f32.mrf.mxu0
      %2216 = vmatprep.mubr.f32.mxu0 0.0
      %2217 = vmatmul.mubr.f32.gmra.mxu0 %v2018
      %v2218 = vpop.f32.mrf.mxu0
      %v2219 = vadd.f32 0.0, %v2218
      %v2220 = vpop.f32.mrf.mxu0
      %2221 = vmatprep.mubr.f32.mxu0 0.0
      %2222 = vmatmul.mubr.f32.gmra.mxu0 %v2021
      %v2223 = vpop.f32.mrf.mxu0
      %v2224 = vadd.f32 0.0, %v2223
      %v2225 = vpop.f32.mrf.mxu0
      %2226 = vmatprep.mubr.f32.mxu0 0.0
      %2227 = vmatmul.mubr.f32.gmra.mxu0 %v2024
      %v2228 = vpop.f32.mrf.mxu0
      %v2229 = vadd.f32 0.0, %v2228
      %v2230 = vpop.f32.mrf.mxu0
      %2231 = vmatprep.mubr.f32.mxu0 0.0
      %2232 = vmatmul.mubr.f32.gmra.mxu0 %v2027
      %v2233 = vpop.f32.mrf.mxu0
      %v2234 = vadd.f32 0.0, %v2233
      %v2235 = vpop.f32.mrf.mxu0
      %2236 = vmatprep.mubr.f32.mxu0 0.0
      %2237 = vmatmul.mubr.f32.gmra.mxu0 %v2030
      %v2238 = vpop.f32.mrf.mxu0
      %v2239 = vadd.f32 0.0, %v2238
      %v2240 = vpop.f32.mrf.mxu0
      %2241 = vmatprep.mubr.f32.mxu0 0.0
      %2242 = vmatmul.mubr.f32.gmra.mxu0 %v2033
      %v2243 = vpop.f32.mrf.mxu0
      %v2244 = vadd.f32 0.0, %v2243
      %v2245 = vpop.f32.mrf.mxu0
      %2246 = vmatprep.mubr.f32.mxu0 0.0
      %2247 = vmatmul.mubr.f32.gmra.mxu0 %v2036
      %v2248 = vpop.f32.mrf.mxu0
      %v2249 = vadd.f32 0.0, %v2248
      %v2250 = vpop.f32.mrf.mxu0
      %2251 = vmatprep.mubr.f32.mxu0 0.0
      %2252 = vmatmul.mubr.f32.gmra.mxu0 %v2039
      %v2253 = vpop.f32.mrf.mxu0
      %v2254 = vadd.f32 0.0, %v2253
      %v2255 = vpop.f32.mrf.mxu0
      %2256 = vmatprep.mubr.f32.mxu0 0.0
      %2257 = vmatmul.mubr.f32.gmra.mxu0 %v2042
      %v2258 = vpop.f32.mrf.mxu0
      %v2259 = vadd.f32 0.0, %v2258
      %v2260 = vpop.f32.mrf.mxu0
      %2261 = vmatprep.mubr.f32.mxu0 0.0
      %2262 = vmatmul.mubr.f32.gmra.mxu0 %v2045
      %v2263 = vpop.f32.mrf.mxu0
      %v2264 = vadd.f32 0.0, %v2263
      %v2265 = vpop.f32.mrf.mxu0
      %2266 = vmatprep.mubr.f32.mxu0 0.0
      %2267 = vmatmul.mubr.f32.gmra.mxu0 %v2048
      %v2268 = vpop.f32.mrf.mxu0
      %v2269 = vadd.f32 0.0, %v2268
      %v2270 = vpop.f32.mrf.mxu0
      %2271 = vmatprep.mubr.f32.mxu0 0.0
      %2272 = vmatmul.mubr.f32.gmra.mxu0 %v2051
      %v2273 = vpop.f32.mrf.mxu0
      %v2274 = vadd.f32 0.0, %v2273
      %v2275 = vpop.f32.mrf.mxu0
      %2276 = vmatprep.mubr.f32.mxu0 0.0
      %2277 = vmatmul.mubr.f32.gmra.mxu0 %v2054
      %v2278 = vpop.f32.mrf.mxu0
      %v2279 = vadd.f32 0.0, %v2278
      %v2280 = vpop.f32.mrf.mxu0
      %2281 = vmatprep.mubr.f32.mxu0 0.0
      %2282 = vmatmul.mubr.f32.gmra.mxu0 %v2057
      %v2283 = vpop.f32.mrf.mxu0
      %v2284 = vadd.f32 0.0, %v2283
      %v2285 = vpop.f32.mrf.mxu0
      %2286 = vdwg.mxu0
      %v2287 = vadd.f32 %v1897, %v2129
      %v2288 = vadd.f32 %v1898, %v2134
      %v2289 = vadd.f32 %v1899, %v2139
      %v2290 = vadd.f32 %v1900, %v2144
      %v2291 = vadd.f32 %v1901, %v2149
      %v2292 = vadd.f32 %v1902, %v2154
      %v2293 = vadd.f32 %v1903, %v2159
      %v2294 = vadd.f32 %v1904, %v2164
      %v2295 = vadd.f32 %v1905, %v2169
      %v2296 = vadd.f32 %v1906, %v2174
      %v2297 = vadd.f32 %v1907, %v2179
      %v2298 = vadd.f32 %v1908, %v2184
      %v2299 = vadd.f32 %v1909, %v2189
      %v2300 = vadd.f32 %v1910, %v2194
      %v2301 = vadd.f32 %v1911, %v2199
      %v2302 = vadd.f32 %v1912, %v2204
      %v2303 = vadd.f32 %v1913, %v2209
      %v2304 = vadd.f32 %v1914, %v2214
      %v2305 = vadd.f32 %v1915, %v2219
      %v2306 = vadd.f32 %v1916, %v2224
      %v2307 = vadd.f32 %v1917, %v2229
      %v2308 = vadd.f32 %v1918, %v2234
      %v2309 = vadd.f32 %v1919, %v2239
      %v2310 = vadd.f32 %v1920, %v2244
      %v2311 = vadd.f32 %v1921, %v2249
      %v2312 = vadd.f32 %v1922, %v2254
      %v2313 = vadd.f32 %v1923, %v2259
      %v2314 = vadd.f32 %v1924, %v2264
      %v2315 = vadd.f32 %v1925, %v2269
      %v2316 = vadd.f32 %v1926, %v2274
      %v2317 = vadd.f32 %v1927, %v2279
      %v2318 = vadd.f32 %v1928, %v2284
      %v2319 = vld [vmem:[%s400 + $0x2] sm:$0xff]
      %v2320 = vld [vmem:[%s400 + $0xa] sm:$0xff]
      %v2321 = vld [vmem:[%s400 + $0x1a] sm:$0xff]
      %v2322 = vld [vmem:[%s400 + $0x22] sm:$0xff]
      %v2323 = vld [vmem:[%s400 + $0x32] sm:$0xff]
      %v2324 = vld [vmem:[%s400 + $0x3a] sm:$0xff]
      %v2325 = vld [vmem:[%s400 + $0x4a] sm:$0xff]
      %v2326 = vld [vmem:[%s400 + $0x52] sm:$0xff]
      %v2327 = vld [vmem:[%s400 + $0x62] sm:$0xff]
      %v2328 = vld [vmem:[%s400 + $0x6a] sm:$0xff]
      %v2329 = vld [vmem:[%s400 + $0x7a] sm:$0xff]
      %v2330 = vld [vmem:[%s400 + $0x82] sm:$0xff]
      %v2331 = vld [vmem:[%s400 + $0x92] sm:$0xff]
      %v2332 = vld [vmem:[%s400 + $0x9a] sm:$0xff]
      %v2333 = vld [vmem:[%s400 + $0xaa] sm:$0xff]
      %v2334 = vld [vmem:[%s400 + $0xb2] sm:$0xff]
      %v2335 = vld [vmem:[%s400 + $0xc2] sm:$0xff]
      %v2336 = vld [vmem:[%s400 + $0xca] sm:$0xff]
      %v2337 = vld [vmem:[%s400 + $0xda] sm:$0xff]
      %v2338 = vld [vmem:[%s400 + $0xe2] sm:$0xff]
      %v2339 = vld [vmem:[%s400 + $0xf2] sm:$0xff]
      %v2340 = vld [vmem:[%s400 + $0xfa] sm:$0xff]
      %v2341 = vld [vmem:[%s400 + $0x10a] sm:$0xff]
      %v2342 = vld [vmem:[%s400 + $0x112] sm:$0xff]
      %v2343 = vld [vmem:[%s400 + $0x122] sm:$0xff]
      %v2344 = vld [vmem:[%s400 + $0x12a] sm:$0xff]
      %v2345 = vld [vmem:[%s400 + $0x13a] sm:$0xff]
      %v2346 = vld [vmem:[%s400 + $0x142] sm:$0xff]
      %v2347 = vld [vmem:[%s400 + $0x152] sm:$0xff]
      %v2348 = vld [vmem:[%s400 + $0x15a] sm:$0xff]
      %v2349 = vld [vmem:[%s400 + $0x16a] sm:$0xff]
      %v2350 = vld [vmem:[%s400 + $0x172] sm:$0xff]
      %s2351 = scalar_lea.vmem %s1, 20
      %v2352 = vld [vmem:[%s2351] sm:$0xf]
      %v2354 = vsel %vm279, %v2319, 0
      %v2357 = vsel %vm279, %v2320, 0
      %v2360 = vsel %vm279, %v2321, 0
      %v2363 = vsel %vm279, %v2322, 0
      %v2366 = vsel %vm279, %v2323, 0
      %v2369 = vsel %vm279, %v2324, 0
      %v2372 = vsel %vm279, %v2325, 0
      %v2375 = vsel %vm279, %v2326, 0
      %v2378 = vsel %vm279, %v2327, 0
      %v2381 = vsel %vm279, %v2328, 0
      %v2384 = vsel %vm279, %v2329, 0
      %v2387 = vsel %vm279, %v2330, 0
      %v2390 = vsel %vm279, %v2331, 0
      %v2393 = vsel %vm279, %v2332, 0
      %v2396 = vsel %vm279, %v2333, 0
      %v2399 = vsel %vm279, %v2334, 0
      %v2402 = vsel %vm279, %v2335, 0
      %v2405 = vsel %vm279, %v2336, 0
      %v2408 = vsel %vm279, %v2337, 0
      %v2411 = vsel %vm279, %v2338, 0
      %v2414 = vsel %vm279, %v2339, 0
      %v2417 = vsel %vm279, %v2340, 0
      %v2420 = vsel %vm279, %v2341, 0
      %v2423 = vsel %vm279, %v2342, 0
      %v2426 = vsel %vm279, %v2343, 0
      %v2429 = vsel %vm279, %v2344, 0
      %v2432 = vsel %vm279, %v2345, 0
      %v2435 = vsel %vm279, %v2346, 0
      %v2438 = vsel %vm279, %v2347, 0
      %v2441 = vsel %vm279, %v2348, 0
      %v2444 = vsel %vm279, %v2349, 0
      %v2447 = vsel %vm279, %v2350, 0
      %v2450 = vsel %vm596, %v2352, 0
      %2452 = vmatprep.subr.mxu0 0.0
      %2453 = vmatpush1.msra.mxu0 0.0
      %2454 = vmatprep.subr.mxu0 0.0
      %2455 = vmatpush1.msra.mxu0 0.0
      %2456 = vmatprep.subr.mxu0 0.0
      %2457 = vmatpush1.msra.mxu0 0.0
      %2458 = vmatprep.subr.mxu0 0.0
      %2459 = vmatpush1.msra.mxu0 0.0
      %2460 = vmatprep.subr.mxu0 0.0
      %2461 = vmatpush1.msra.mxu0 0.0
      %2462 = vmatprep.subr.mxu0 0.0
      %2463 = vmatpush1.msra.mxu0 0.0
      %2464 = vmatprep.subr.mxu0 0.0
      %2465 = vmatpush1.msra.mxu0 0.0
      %2466 = vmatprep.subr.mxu0 0.0
      %2467 = vmatpush1.msra.mxu0 0.0
      %2468 = vmatprep.subr.mxu0 0.0
      %2469 = vmatpush1.msra.mxu0 0.0
      %2470 = vmatprep.subr.mxu0 0.0
      %2471 = vmatpush1.msra.mxu0 0.0
      %2472 = vmatprep.subr.mxu0 0.0
      %2473 = vmatpush1.msra.mxu0 0.0
      %2474 = vmatprep.subr.mxu0 0.0
      %2475 = vmatpush1.msra.mxu0 0.0
      %2476 = vmatprep.subr.mxu0 0.0
      %2477 = vmatpush1.msra.mxu0 0.0
      %2478 = vmatprep.subr.mxu0 0.0
      %2479 = vmatpush1.msra.mxu0 0.0
      %2480 = vmatprep.subr.mxu0 0.0
      %2481 = vmatpush1.msra.mxu0 0.0
      %2482 = vmatprep.subr.mxu0 0.0
      %2483 = vmatpush1.msra.mxu0 %v2450
      %2484 = vmatprep.subr.mxu0 0.0
      %2485 = vmatpush2.msra.mxu0 0.0
      %2486 = vmatprep.subr.mxu0 0.0
      %2487 = vmatpush2.msra.mxu0 0.0
      %2488 = vmatprep.subr.mxu0 0.0
      %2489 = vmatpush2.msra.mxu0 0.0
      %2490 = vmatprep.subr.mxu0 0.0
      %2491 = vmatpush2.msra.mxu0 0.0
      %2492 = vmatprep.subr.mxu0 0.0
      %2493 = vmatpush2.msra.mxu0 0.0
      %2494 = vmatprep.subr.mxu0 0.0
      %2495 = vmatpush2.msra.mxu0 0.0
      %2496 = vmatprep.subr.mxu0 0.0
      %2497 = vmatpush2.msra.mxu0 0.0
      %2498 = vmatprep.subr.mxu0 0.0
      %2499 = vmatpush2.msra.mxu0 0.0
      %2500 = vmatprep.subr.mxu0 0.0
      %2501 = vmatpush2.msra.mxu0 0.0
      %2502 = vmatprep.subr.mxu0 0.0
      %2503 = vmatpush2.msra.mxu0 0.0
      %2504 = vmatprep.subr.mxu0 0.0
      %2505 = vmatpush2.msra.mxu0 0.0
      %2506 = vmatprep.subr.mxu0 0.0
      %2507 = vmatpush2.msra.mxu0 0.0
      %2508 = vmatprep.subr.mxu0 0.0
      %2509 = vmatpush2.msra.mxu0 0.0
      %2510 = vmatprep.subr.mxu0 0.0
      %2511 = vmatpush2.msra.mxu0 0.0
      %2512 = vmatprep.subr.mxu0 0.0
      %2513 = vmatpush2.msra.mxu0 0.0
      %2514 = vmatprep.subr.mxu0 0.0
      %2515 = vmatpush2.msra.mxu0 0.0
      %2516 = vmatprep.mubr.f32.mxu0 0.0
      %2517 = vmatmul.mubr.f32.gmra.mxu0 %v2354
      %v2518 = vpop.f32.mrf.mxu0
      %v2519 = vadd.f32 0.0, %v2518
      %v2520 = vpop.f32.mrf.mxu0
      %2521 = vmatprep.mubr.f32.mxu0 0.0
      %2522 = vmatmul.mubr.f32.gmra.mxu0 %v2357
      %v2523 = vpop.f32.mrf.mxu0
      %v2524 = vadd.f32 0.0, %v2523
      %v2525 = vpop.f32.mrf.mxu0
      %2526 = vmatprep.mubr.f32.mxu0 0.0
      %2527 = vmatmul.mubr.f32.gmra.mxu0 %v2360
      %v2528 = vpop.f32.mrf.mxu0
      %v2529 = vadd.f32 0.0, %v2528
      %v2530 = vpop.f32.mrf.mxu0
      %2531 = vmatprep.mubr.f32.mxu0 0.0
      %2532 = vmatmul.mubr.f32.gmra.mxu0 %v2363
      %v2533 = vpop.f32.mrf.mxu0
      %v2534 = vadd.f32 0.0, %v2533
      %v2535 = vpop.f32.mrf.mxu0
      %2536 = vmatprep.mubr.f32.mxu0 0.0
      %2537 = vmatmul.mubr.f32.gmra.mxu0 %v2366
      %v2538 = vpop.f32.mrf.mxu0
      %v2539 = vadd.f32 0.0, %v2538
      %v2540 = vpop.f32.mrf.mxu0
      %2541 = vmatprep.mubr.f32.mxu0 0.0
      %2542 = vmatmul.mubr.f32.gmra.mxu0 %v2369
      %v2543 = vpop.f32.mrf.mxu0
      %v2544 = vadd.f32 0.0, %v2543
      %v2545 = vpop.f32.mrf.mxu0
      %2546 = vmatprep.mubr.f32.mxu0 0.0
      %2547 = vmatmul.mubr.f32.gmra.mxu0 %v2372
      %v2548 = vpop.f32.mrf.mxu0
      %v2549 = vadd.f32 0.0, %v2548
      %v2550 = vpop.f32.mrf.mxu0
      %2551 = vmatprep.mubr.f32.mxu0 0.0
      %2552 = vmatmul.mubr.f32.gmra.mxu0 %v2375
      %v2553 = vpop.f32.mrf.mxu0
      %v2554 = vadd.f32 0.0, %v2553
      %v2555 = vpop.f32.mrf.mxu0
      %2556 = vmatprep.mubr.f32.mxu0 0.0
      %2557 = vmatmul.mubr.f32.gmra.mxu0 %v2378
      %v2558 = vpop.f32.mrf.mxu0
      %v2559 = vadd.f32 0.0, %v2558
      %v2560 = vpop.f32.mrf.mxu0
      %2561 = vmatprep.mubr.f32.mxu0 0.0
      %2562 = vmatmul.mubr.f32.gmra.mxu0 %v2381
      %v2563 = vpop.f32.mrf.mxu0
      %v2564 = vadd.f32 0.0, %v2563
      %v2565 = vpop.f32.mrf.mxu0
      %2566 = vmatprep.mubr.f32.mxu0 0.0
      %2567 = vmatmul.mubr.f32.gmra.mxu0 %v2384
      %v2568 = vpop.f32.mrf.mxu0
      %v2569 = vadd.f32 0.0, %v2568
      %v2570 = vpop.f32.mrf.mxu0
      %2571 = vmatprep.mubr.f32.mxu0 0.0
      %2572 = vmatmul.mubr.f32.gmra.mxu0 %v2387
      %v2573 = vpop.f32.mrf.mxu0
      %v2574 = vadd.f32 0.0, %v2573
      %v2575 = vpop.f32.mrf.mxu0
      %2576 = vmatprep.mubr.f32.mxu0 0.0
      %2577 = vmatmul.mubr.f32.gmra.mxu0 %v2390
      %v2578 = vpop.f32.mrf.mxu0
      %v2579 = vadd.f32 0.0, %v2578
      %v2580 = vpop.f32.mrf.mxu0
      %2581 = vmatprep.mubr.f32.mxu0 0.0
      %2582 = vmatmul.mubr.f32.gmra.mxu0 %v2393
      %v2583 = vpop.f32.mrf.mxu0
      %v2584 = vadd.f32 0.0, %v2583
      %v2585 = vpop.f32.mrf.mxu0
      %2586 = vmatprep.mubr.f32.mxu0 0.0
      %2587 = vmatmul.mubr.f32.gmra.mxu0 %v2396
      %v2588 = vpop.f32.mrf.mxu0
      %v2589 = vadd.f32 0.0, %v2588
      %v2590 = vpop.f32.mrf.mxu0
      %2591 = vmatprep.mubr.f32.mxu0 0.0
      %2592 = vmatmul.mubr.f32.gmra.mxu0 %v2399
      %v2593 = vpop.f32.mrf.mxu0
      %v2594 = vadd.f32 0.0, %v2593
      %v2595 = vpop.f32.mrf.mxu0
      %2596 = vmatprep.mubr.f32.mxu0 0.0
      %2597 = vmatmul.mubr.f32.gmra.mxu0 %v2402
      %v2598 = vpop.f32.mrf.mxu0
      %v2599 = vadd.f32 0.0, %v2598
      %v2600 = vpop.f32.mrf.mxu0
      %2601 = vmatprep.mubr.f32.mxu0 0.0
      %2602 = vmatmul.mubr.f32.gmra.mxu0 %v2405
      %v2603 = vpop.f32.mrf.mxu0
      %v2604 = vadd.f32 0.0, %v2603
      %v2605 = vpop.f32.mrf.mxu0
      %2606 = vmatprep.mubr.f32.mxu0 0.0
      %2607 = vmatmul.mubr.f32.gmra.mxu0 %v2408
      %v2608 = vpop.f32.mrf.mxu0
      %v2609 = vadd.f32 0.0, %v2608
      %v2610 = vpop.f32.mrf.mxu0
      %2611 = vmatprep.mubr.f32.mxu0 0.0
      %2612 = vmatmul.mubr.f32.gmra.mxu0 %v2411
      %v2613 = vpop.f32.mrf.mxu0
      %v2614 = vadd.f32 0.0, %v2613
      %v2615 = vpop.f32.mrf.mxu0
      %2616 = vmatprep.mubr.f32.mxu0 0.0
      %2617 = vmatmul.mubr.f32.gmra.mxu0 %v2414
      %v2618 = vpop.f32.mrf.mxu0
      %v2619 = vadd.f32 0.0, %v2618
      %v2620 = vpop.f32.mrf.mxu0
      %2621 = vmatprep.mubr.f32.mxu0 0.0
      %2622 = vmatmul.mubr.f32.gmra.mxu0 %v2417
      %v2623 = vpop.f32.mrf.mxu0
      %v2624 = vadd.f32 0.0, %v2623
      %v2625 = vpop.f32.mrf.mxu0
      %2626 = vmatprep.mubr.f32.mxu0 0.0
      %2627 = vmatmul.mubr.f32.gmra.mxu0 %v2420
      %v2628 = vpop.f32.mrf.mxu0
      %v2629 = vadd.f32 0.0, %v2628
      %v2630 = vpop.f32.mrf.mxu0
      %2631 = vmatprep.mubr.f32.mxu0 0.0
      %2632 = vmatmul.mubr.f32.gmra.mxu0 %v2423
      %v2633 = vpop.f32.mrf.mxu0
      %v2634 = vadd.f32 0.0, %v2633
      %v2635 = vpop.f32.mrf.mxu0
      %2636 = vmatprep.mubr.f32.mxu0 0.0
      %2637 = vmatmul.mubr.f32.gmra.mxu0 %v2426
      %v2638 = vpop.f32.mrf.mxu0
      %v2639 = vadd.f32 0.0, %v2638
      %v2640 = vpop.f32.mrf.mxu0
      %2641 = vmatprep.mubr.f32.mxu0 0.0
      %2642 = vmatmul.mubr.f32.gmra.mxu0 %v2429
      %v2643 = vpop.f32.mrf.mxu0
      %v2644 = vadd.f32 0.0, %v2643
      %v2645 = vpop.f32.mrf.mxu0
      %2646 = vmatprep.mubr.f32.mxu0 0.0
      %2647 = vmatmul.mubr.f32.gmra.mxu0 %v2432
      %v2648 = vpop.f32.mrf.mxu0
      %v2649 = vadd.f32 0.0, %v2648
      %v2650 = vpop.f32.mrf.mxu0
      %2651 = vmatprep.mubr.f32.mxu0 0.0
      %2652 = vmatmul.mubr.f32.gmra.mxu0 %v2435
      %v2653 = vpop.f32.mrf.mxu0
      %v2654 = vadd.f32 0.0, %v2653
      %v2655 = vpop.f32.mrf.mxu0
      %2656 = vmatprep.mubr.f32.mxu0 0.0
      %2657 = vmatmul.mubr.f32.gmra.mxu0 %v2438
      %v2658 = vpop.f32.mrf.mxu0
      %v2659 = vadd.f32 0.0, %v2658
      %v2660 = vpop.f32.mrf.mxu0
      %2661 = vmatprep.mubr.f32.mxu0 0.0
      %2662 = vmatmul.mubr.f32.gmra.mxu0 %v2441
      %v2663 = vpop.f32.mrf.mxu0
      %v2664 = vadd.f32 0.0, %v2663
      %v2665 = vpop.f32.mrf.mxu0
      %2666 = vmatprep.mubr.f32.mxu0 0.0
      %2667 = vmatmul.mubr.f32.gmra.mxu0 %v2444
      %v2668 = vpop.f32.mrf.mxu0
      %v2669 = vadd.f32 0.0, %v2668
      %v2670 = vpop.f32.mrf.mxu0
      %2671 = vmatprep.mubr.f32.mxu0 0.0
      %2672 = vmatmul.mubr.f32.gmra.mxu0 %v2447
      %v2673 = vpop.f32.mrf.mxu0
      %v2674 = vadd.f32 0.0, %v2673
      %v2675 = vpop.f32.mrf.mxu0
      %2676 = vdwg.mxu0
      %v2677 = vadd.f32 %v2287, %v2519
      %v2678 = vadd.f32 %v2288, %v2524
      %v2679 = vadd.f32 %v2289, %v2529
      %v2680 = vadd.f32 %v2290, %v2534
      %v2681 = vadd.f32 %v2291, %v2539
      %v2682 = vadd.f32 %v2292, %v2544
      %v2683 = vadd.f32 %v2293, %v2549
      %v2684 = vadd.f32 %v2294, %v2554
      %v2685 = vadd.f32 %v2295, %v2559
      %v2686 = vadd.f32 %v2296, %v2564
      %v2687 = vadd.f32 %v2297, %v2569
      %v2688 = vadd.f32 %v2298, %v2574
      %v2689 = vadd.f32 %v2299, %v2579
      %v2690 = vadd.f32 %v2300, %v2584
      %v2691 = vadd.f32 %v2301, %v2589
      %v2692 = vadd.f32 %v2302, %v2594
      %v2693 = vadd.f32 %v2303, %v2599
      %v2694 = vadd.f32 %v2304, %v2604
      %v2695 = vadd.f32 %v2305, %v2609
      %v2696 = vadd.f32 %v2306, %v2614
      %v2697 = vadd.f32 %v2307, %v2619
      %v2698 = vadd.f32 %v2308, %v2624
      %v2699 = vadd.f32 %v2309, %v2629
      %v2700 = vadd.f32 %v2310, %v2634
      %v2701 = vadd.f32 %v2311, %v2639
      %v2702 = vadd.f32 %v2312, %v2644
      %v2703 = vadd.f32 %v2313, %v2649
      %v2704 = vadd.f32 %v2314, %v2654
      %v2705 = vadd.f32 %v2315, %v2659
      %v2706 = vadd.f32 %v2316, %v2664
      %v2707 = vadd.f32 %v2317, %v2669
      %v2708 = vadd.f32 %v2318, %v2674
      %s2709 = scalar_lea.vmem [#allocation2], 48
      %v2710 = vld [vmem:[%s2709] sm:$0xff]
      %v2711 = vld [vmem:[%s2709 + $0x8] sm:$0xff]
      %v2712 = vld [vmem:[%s2709 + $0x18] sm:$0xff]
      %v2713 = vld [vmem:[%s2709 + $0x20] sm:$0xff]
      %v2714 = vld [vmem:[%s2709 + $0x30] sm:$0xff]
      %v2715 = vld [vmem:[%s2709 + $0x38] sm:$0xff]
      %v2716 = vld [vmem:[%s2709 + $0x48] sm:$0xff]
      %v2717 = vld [vmem:[%s2709 + $0x50] sm:$0xff]
      %v2718 = vld [vmem:[%s2709 + $0x60] sm:$0xff]
      %v2719 = vld [vmem:[%s2709 + $0x68] sm:$0xff]
      %v2720 = vld [vmem:[%s2709 + $0x78] sm:$0xff]
      %v2721 = vld [vmem:[%s2709 + $0x80] sm:$0xff]
      %v2722 = vld [vmem:[%s2709 + $0x90] sm:$0xff]
      %v2723 = vld [vmem:[%s2709 + $0x98] sm:$0xff]
      %v2724 = vld [vmem:[%s2709 + $0xa8] sm:$0xff]
      %v2725 = vld [vmem:[%s2709 + $0xb0] sm:$0xff]
      %v2726 = vld [vmem:[%s2709 + $0xc0] sm:$0xff]
      %v2727 = vld [vmem:[%s2709 + $0xc8] sm:$0xff]
      %v2728 = vld [vmem:[%s2709 + $0xd8] sm:$0xff]
      %v2729 = vld [vmem:[%s2709 + $0xe0] sm:$0xff]
      %v2730 = vld [vmem:[%s2709 + $0xf0] sm:$0xff]
      %v2731 = vld [vmem:[%s2709 + $0xf8] sm:$0xff]
      %v2732 = vld [vmem:[%s2709 + $0x108] sm:$0xff]
      %v2733 = vld [vmem:[%s2709 + $0x110] sm:$0xff]
      %v2734 = vld [vmem:[%s2709 + $0x120] sm:$0xff]
      %v2735 = vld [vmem:[%s2709 + $0x128] sm:$0xff]
      %v2736 = vld [vmem:[%s2709 + $0x138] sm:$0xff]
      %v2737 = vld [vmem:[%s2709 + $0x140] sm:$0xff]
      %v2738 = vld [vmem:[%s2709 + $0x150] sm:$0xff]
      %v2739 = vld [vmem:[%s2709 + $0x158] sm:$0xff]
      %v2740 = vld [vmem:[%s2709 + $0x168] sm:$0xff]
      %v2741 = vld [vmem:[%s2709 + $0x170] sm:$0xff]
      %s2742 = scalar_lea.vmem %s1, 24
      %v2743 = vld [vmem:[%s2742] sm:$0xf]
      %v2745 = vsel %vm279, %v2710, 0
      %v2748 = vsel %vm279, %v2711, 0
      %v2751 = vsel %vm279, %v2712, 0
      %v2754 = vsel %vm279, %v2713, 0
      %v2757 = vsel %vm279, %v2714, 0
      %v2760 = vsel %vm279, %v2715, 0
      %v2763 = vsel %vm279, %v2716, 0
      %v2766 = vsel %vm279, %v2717, 0
      %v2769 = vsel %vm279, %v2718, 0
      %v2772 = vsel %vm279, %v2719, 0
      %v2775 = vsel %vm279, %v2720, 0
      %v2778 = vsel %vm279, %v2721, 0
      %v2781 = vsel %vm279, %v2722, 0
      %v2784 = vsel %vm279, %v2723, 0
      %v2787 = vsel %vm279, %v2724, 0
      %v2790 = vsel %vm279, %v2725, 0
      %v2793 = vsel %vm279, %v2726, 0
      %v2796 = vsel %vm279, %v2727, 0
      %v2799 = vsel %vm279, %v2728, 0
      %v2802 = vsel %vm279, %v2729, 0
      %v2805 = vsel %vm279, %v2730, 0
      %v2808 = vsel %vm279, %v2731, 0
      %v2811 = vsel %vm279, %v2732, 0
      %v2814 = vsel %vm279, %v2733, 0
      %v2817 = vsel %vm279, %v2734, 0
      %v2820 = vsel %vm279, %v2735, 0
      %v2823 = vsel %vm279, %v2736, 0
      %v2826 = vsel %vm279, %v2737, 0
      %v2829 = vsel %vm279, %v2738, 0
      %v2832 = vsel %vm279, %v2739, 0
      %v2835 = vsel %vm279, %v2740, 0
      %v2838 = vsel %vm279, %v2741, 0
      %v2841 = vsel %vm596, %v2743, 0
      %2843 = vmatprep.subr.mxu0 0.0
      %2844 = vmatpush1.msra.mxu0 0.0
      %2845 = vmatprep.subr.mxu0 0.0
      %2846 = vmatpush1.msra.mxu0 0.0
      %2847 = vmatprep.subr.mxu0 0.0
      %2848 = vmatpush1.msra.mxu0 0.0
      %2849 = vmatprep.subr.mxu0 0.0
      %2850 = vmatpush1.msra.mxu0 0.0
      %2851 = vmatprep.subr.mxu0 0.0
      %2852 = vmatpush1.msra.mxu0 0.0
      %2853 = vmatprep.subr.mxu0 0.0
      %2854 = vmatpush1.msra.mxu0 0.0
      %2855 = vmatprep.subr.mxu0 0.0
      %2856 = vmatpush1.msra.mxu0 0.0
      %2857 = vmatprep.subr.mxu0 0.0
      %2858 = vmatpush1.msra.mxu0 0.0
      %2859 = vmatprep.subr.mxu0 0.0
      %2860 = vmatpush1.msra.mxu0 0.0
      %2861 = vmatprep.subr.mxu0 0.0
      %2862 = vmatpush1.msra.mxu0 0.0
      %2863 = vmatprep.subr.mxu0 0.0
      %2864 = vmatpush1.msra.mxu0 0.0
      %2865 = vmatprep.subr.mxu0 0.0
      %2866 = vmatpush1.msra.mxu0 0.0
      %2867 = vmatprep.subr.mxu0 0.0
      %2868 = vmatpush1.msra.mxu0 0.0
      %2869 = vmatprep.subr.mxu0 0.0
      %2870 = vmatpush1.msra.mxu0 0.0
      %2871 = vmatprep.subr.mxu0 0.0
      %2872 = vmatpush1.msra.mxu0 0.0
      %2873 = vmatprep.subr.mxu0 0.0
      %2874 = vmatpush1.msra.mxu0 %v2841
      %2875 = vmatprep.subr.mxu0 0.0
      %2876 = vmatpush2.msra.mxu0 0.0
      %2877 = vmatprep.subr.mxu0 0.0
      %2878 = vmatpush2.msra.mxu0 0.0
      %2879 = vmatprep.subr.mxu0 0.0
      %2880 = vmatpush2.msra.mxu0 0.0
      %2881 = vmatprep.subr.mxu0 0.0
      %2882 = vmatpush2.msra.mxu0 0.0
      %2883 = vmatprep.subr.mxu0 0.0
      %2884 = vmatpush2.msra.mxu0 0.0
      %2885 = vmatprep.subr.mxu0 0.0
      %2886 = vmatpush2.msra.mxu0 0.0
      %2887 = vmatprep.subr.mxu0 0.0
      %2888 = vmatpush2.msra.mxu0 0.0
      %2889 = vmatprep.subr.mxu0 0.0
      %2890 = vmatpush2.msra.mxu0 0.0
      %2891 = vmatprep.subr.mxu0 0.0
      %2892 = vmatpush2.msra.mxu0 0.0
      %2893 = vmatprep.subr.mxu0 0.0
      %2894 = vmatpush2.msra.mxu0 0.0
      %2895 = vmatprep.subr.mxu0 0.0
      %2896 = vmatpush2.msra.mxu0 0.0
      %2897 = vmatprep.subr.mxu0 0.0
      %2898 = vmatpush2.msra.mxu0 0.0
      %2899 = vmatprep.subr.mxu0 0.0
      %2900 = vmatpush2.msra.mxu0 0.0
      %2901 = vmatprep.subr.mxu0 0.0
      %2902 = vmatpush2.msra.mxu0 0.0
      %2903 = vmatprep.subr.mxu0 0.0
      %2904 = vmatpush2.msra.mxu0 0.0
      %2905 = vmatprep.subr.mxu0 0.0
      %2906 = vmatpush2.msra.mxu0 0.0
      %2907 = vmatprep.mubr.f32.mxu0 0.0
      %2908 = vmatmul.mubr.f32.gmra.mxu0 %v2745
      %v2909 = vpop.f32.mrf.mxu0
      %v2910 = vadd.f32 0.0, %v2909
      %v2911 = vpop.f32.mrf.mxu0
      %2912 = vmatprep.mubr.f32.mxu0 0.0
      %2913 = vmatmul.mubr.f32.gmra.mxu0 %v2748
      %v2914 = vpop.f32.mrf.mxu0
      %v2915 = vadd.f32 0.0, %v2914
      %v2916 = vpop.f32.mrf.mxu0
      %2917 = vmatprep.mubr.f32.mxu0 0.0
      %2918 = vmatmul.mubr.f32.gmra.mxu0 %v2751
      %v2919 = vpop.f32.mrf.mxu0
      %v2920 = vadd.f32 0.0, %v2919
      %v2921 = vpop.f32.mrf.mxu0
      %2922 = vmatprep.mubr.f32.mxu0 0.0
      %2923 = vmatmul.mubr.f32.gmra.mxu0 %v2754
      %v2924 = vpop.f32.mrf.mxu0
      %v2925 = vadd.f32 0.0, %v2924
      %v2926 = vpop.f32.mrf.mxu0
      %2927 = vmatprep.mubr.f32.mxu0 0.0
      %2928 = vmatmul.mubr.f32.gmra.mxu0 %v2757
      %v2929 = vpop.f32.mrf.mxu0
      %v2930 = vadd.f32 0.0, %v2929
      %v2931 = vpop.f32.mrf.mxu0
      %2932 = vmatprep.mubr.f32.mxu0 0.0
      %2933 = vmatmul.mubr.f32.gmra.mxu0 %v2760
      %v2934 = vpop.f32.mrf.mxu0
      %v2935 = vadd.f32 0.0, %v2934
      %v2936 = vpop.f32.mrf.mxu0
      %2937 = vmatprep.mubr.f32.mxu0 0.0
      %2938 = vmatmul.mubr.f32.gmra.mxu0 %v2763
      %v2939 = vpop.f32.mrf.mxu0
      %v2940 = vadd.f32 0.0, %v2939
      %v2941 = vpop.f32.mrf.mxu0
      %2942 = vmatprep.mubr.f32.mxu0 0.0
      %2943 = vmatmul.mubr.f32.gmra.mxu0 %v2766
      %v2944 = vpop.f32.mrf.mxu0
      %v2945 = vadd.f32 0.0, %v2944
      %v2946 = vpop.f32.mrf.mxu0
      %2947 = vmatprep.mubr.f32.mxu0 0.0
      %2948 = vmatmul.mubr.f32.gmra.mxu0 %v2769
      %v2949 = vpop.f32.mrf.mxu0
      %v2950 = vadd.f32 0.0, %v2949
      %v2951 = vpop.f32.mrf.mxu0
      %2952 = vmatprep.mubr.f32.mxu0 0.0
      %2953 = vmatmul.mubr.f32.gmra.mxu0 %v2772
      %v2954 = vpop.f32.mrf.mxu0
      %v2955 = vadd.f32 0.0, %v2954
      %v2956 = vpop.f32.mrf.mxu0
      %2957 = vmatprep.mubr.f32.mxu0 0.0
      %2958 = vmatmul.mubr.f32.gmra.mxu0 %v2775
      %v2959 = vpop.f32.mrf.mxu0
      %v2960 = vadd.f32 0.0, %v2959
      %v2961 = vpop.f32.mrf.mxu0
      %2962 = vmatprep.mubr.f32.mxu0 0.0
      %2963 = vmatmul.mubr.f32.gmra.mxu0 %v2778
      %v2964 = vpop.f32.mrf.mxu0
      %v2965 = vadd.f32 0.0, %v2964
      %v2966 = vpop.f32.mrf.mxu0
      %2967 = vmatprep.mubr.f32.mxu0 0.0
      %2968 = vmatmul.mubr.f32.gmra.mxu0 %v2781
      %v2969 = vpop.f32.mrf.mxu0
      %v2970 = vadd.f32 0.0, %v2969
      %v2971 = vpop.f32.mrf.mxu0
      %2972 = vmatprep.mubr.f32.mxu0 0.0
      %2973 = vmatmul.mubr.f32.gmra.mxu0 %v2784
      %v2974 = vpop.f32.mrf.mxu0
      %v2975 = vadd.f32 0.0, %v2974
      %v2976 = vpop.f32.mrf.mxu0
      %2977 = vmatprep.mubr.f32.mxu0 0.0
      %2978 = vmatmul.mubr.f32.gmra.mxu0 %v2787
      %v2979 = vpop.f32.mrf.mxu0
      %v2980 = vadd.f32 0.0, %v2979
      %v2981 = vpop.f32.mrf.mxu0
      %2982 = vmatprep.mubr.f32.mxu0 0.0
      %2983 = vmatmul.mubr.f32.gmra.mxu0 %v2790
      %v2984 = vpop.f32.mrf.mxu0
      %v2985 = vadd.f32 0.0, %v2984
      %v2986 = vpop.f32.mrf.mxu0
      %2987 = vmatprep.mubr.f32.mxu0 0.0
      %2988 = vmatmul.mubr.f32.gmra.mxu0 %v2793
      %v2989 = vpop.f32.mrf.mxu0
      %v2990 = vadd.f32 0.0, %v2989
      %v2991 = vpop.f32.mrf.mxu0
      %2992 = vmatprep.mubr.f32.mxu0 0.0
      %2993 = vmatmul.mubr.f32.gmra.mxu0 %v2796
      %v2994 = vpop.f32.mrf.mxu0
      %v2995 = vadd.f32 0.0, %v2994
      %v2996 = vpop.f32.mrf.mxu0
      %2997 = vmatprep.mubr.f32.mxu0 0.0
      %2998 = vmatmul.mubr.f32.gmra.mxu0 %v2799
      %v2999 = vpop.f32.mrf.mxu0
      %v3000 = vadd.f32 0.0, %v2999
      %v3001 = vpop.f32.mrf.mxu0
      %3002 = vmatprep.mubr.f32.mxu0 0.0
      %3003 = vmatmul.mubr.f32.gmra.mxu0 %v2802
      %v3004 = vpop.f32.mrf.mxu0
      %v3005 = vadd.f32 0.0, %v3004
      %v3006 = vpop.f32.mrf.mxu0
      %3007 = vmatprep.mubr.f32.mxu0 0.0
      %3008 = vmatmul.mubr.f32.gmra.mxu0 %v2805
      %v3009 = vpop.f32.mrf.mxu0
      %v3010 = vadd.f32 0.0, %v3009
      %v3011 = vpop.f32.mrf.mxu0
      %3012 = vmatprep.mubr.f32.mxu0 0.0
      %3013 = vmatmul.mubr.f32.gmra.mxu0 %v2808
      %v3014 = vpop.f32.mrf.mxu0
      %v3015 = vadd.f32 0.0, %v3014
      %v3016 = vpop.f32.mrf.mxu0
      %3017 = vmatprep.mubr.f32.mxu0 0.0
      %3018 = vmatmul.mubr.f32.gmra.mxu0 %v2811
      %v3019 = vpop.f32.mrf.mxu0
      %v3020 = vadd.f32 0.0, %v3019
      %v3021 = vpop.f32.mrf.mxu0
      %3022 = vmatprep.mubr.f32.mxu0 0.0
      %3023 = vmatmul.mubr.f32.gmra.mxu0 %v2814
      %v3024 = vpop.f32.mrf.mxu0
      %v3025 = vadd.f32 0.0, %v3024
      %v3026 = vpop.f32.mrf.mxu0
      %3027 = vmatprep.mubr.f32.mxu0 0.0
      %3028 = vmatmul.mubr.f32.gmra.mxu0 %v2817
      %v3029 = vpop.f32.mrf.mxu0
      %v3030 = vadd.f32 0.0, %v3029
      %v3031 = vpop.f32.mrf.mxu0
      %3032 = vmatprep.mubr.f32.mxu0 0.0
      %3033 = vmatmul.mubr.f32.gmra.mxu0 %v2820
      %v3034 = vpop.f32.mrf.mxu0
      %v3035 = vadd.f32 0.0, %v3034
      %v3036 = vpop.f32.mrf.mxu0
      %3037 = vmatprep.mubr.f32.mxu0 0.0
      %3038 = vmatmul.mubr.f32.gmra.mxu0 %v2823
      %v3039 = vpop.f32.mrf.mxu0
      %v3040 = vadd.f32 0.0, %v3039
      %v3041 = vpop.f32.mrf.mxu0
      %3042 = vmatprep.mubr.f32.mxu0 0.0
      %3043 = vmatmul.mubr.f32.gmra.mxu0 %v2826
      %v3044 = vpop.f32.mrf.mxu0
      %v3045 = vadd.f32 0.0, %v3044
      %v3046 = vpop.f32.mrf.mxu0
      %3047 = vmatprep.mubr.f32.mxu0 0.0
      %3048 = vmatmul.mubr.f32.gmra.mxu0 %v2829
      %v3049 = vpop.f32.mrf.mxu0
      %v3050 = vadd.f32 0.0, %v3049
      %v3051 = vpop.f32.mrf.mxu0
      %3052 = vmatprep.mubr.f32.mxu0 0.0
      %3053 = vmatmul.mubr.f32.gmra.mxu0 %v2832
      %v3054 = vpop.f32.mrf.mxu0
      %v3055 = vadd.f32 0.0, %v3054
      %v3056 = vpop.f32.mrf.mxu0
      %3057 = vmatprep.mubr.f32.mxu0 0.0
      %3058 = vmatmul.mubr.f32.gmra.mxu0 %v2835
      %v3059 = vpop.f32.mrf.mxu0
      %v3060 = vadd.f32 0.0, %v3059
      %v3061 = vpop.f32.mrf.mxu0
      %3062 = vmatprep.mubr.f32.mxu0 0.0
      %3063 = vmatmul.mubr.f32.gmra.mxu0 %v2838
      %v3064 = vpop.f32.mrf.mxu0
      %v3065 = vadd.f32 0.0, %v3064
      %v3066 = vpop.f32.mrf.mxu0
      %3067 = vdwg.mxu0
      %v3068 = vadd.f32 %v2677, %v2910
      %v3069 = vadd.f32 %v2678, %v2915
      %v3070 = vadd.f32 %v2679, %v2920
      %v3071 = vadd.f32 %v2680, %v2925
      %v3072 = vadd.f32 %v2681, %v2930
      %v3073 = vadd.f32 %v2682, %v2935
      %v3074 = vadd.f32 %v2683, %v2940
      %v3075 = vadd.f32 %v2684, %v2945
      %v3076 = vadd.f32 %v2685, %v2950
      %v3077 = vadd.f32 %v2686, %v2955
      %v3078 = vadd.f32 %v2687, %v2960
      %v3079 = vadd.f32 %v2688, %v2965
      %v3080 = vadd.f32 %v2689, %v2970
      %v3081 = vadd.f32 %v2690, %v2975
      %v3082 = vadd.f32 %v2691, %v2980
      %v3083 = vadd.f32 %v2692, %v2985
      %v3084 = vadd.f32 %v2693, %v2990
      %v3085 = vadd.f32 %v2694, %v2995
      %v3086 = vadd.f32 %v2695, %v3000
      %v3087 = vadd.f32 %v2696, %v3005
      %v3088 = vadd.f32 %v2697, %v3010
      %v3089 = vadd.f32 %v2698, %v3015
      %v3090 = vadd.f32 %v2699, %v3020
      %v3091 = vadd.f32 %v2700, %v3025
      %v3092 = vadd.f32 %v2701, %v3030
      %v3093 = vadd.f32 %v2702, %v3035
      %v3094 = vadd.f32 %v2703, %v3040
      %v3095 = vadd.f32 %v2704, %v3045
      %v3096 = vadd.f32 %v2705, %v3050
      %v3097 = vadd.f32 %v2706, %v3055
      %v3098 = vadd.f32 %v2707, %v3060
      %v3099 = vadd.f32 %v2708, %v3065
      %v3100 = vld [vmem:[%s2709 + $0x1] sm:$0xff]
      %v3101 = vld [vmem:[%s2709 + $0x9] sm:$0xff]
      %v3102 = vld [vmem:[%s2709 + $0x19] sm:$0xff]
      %v3103 = vld [vmem:[%s2709 + $0x21] sm:$0xff]
      %v3104 = vld [vmem:[%s2709 + $0x31] sm:$0xff]
      %v3105 = vld [vmem:[%s2709 + $0x39] sm:$0xff]
      %v3106 = vld [vmem:[%s2709 + $0x49] sm:$0xff]
      %v3107 = vld [vmem:[%s2709 + $0x51] sm:$0xff]
      %v3108 = vld [vmem:[%s2709 + $0x61] sm:$0xff]
      %v3109 = vld [vmem:[%s2709 + $0x69] sm:$0xff]
      %v3110 = vld [vmem:[%s2709 + $0x79] sm:$0xff]
      %v3111 = vld [vmem:[%s2709 + $0x81] sm:$0xff]
      %v3112 = vld [vmem:[%s2709 + $0x91] sm:$0xff]
      %v3113 = vld [vmem:[%s2709 + $0x99] sm:$0xff]
      %v3114 = vld [vmem:[%s2709 + $0xa9] sm:$0xff]
      %v3115 = vld [vmem:[%s2709 + $0xb1] sm:$0xff]
      %v3116 = vld [vmem:[%s2709 + $0xc1] sm:$0xff]
      %v3117 = vld [vmem:[%s2709 + $0xc9] sm:$0xff]
      %v3118 = vld [vmem:[%s2709 + $0xd9] sm:$0xff]
      %v3119 = vld [vmem:[%s2709 + $0xe1] sm:$0xff]
      %v3120 = vld [vmem:[%s2709 + $0xf1] sm:$0xff]
      %v3121 = vld [vmem:[%s2709 + $0xf9] sm:$0xff]
      %v3122 = vld [vmem:[%s2709 + $0x109] sm:$0xff]
      %v3123 = vld [vmem:[%s2709 + $0x111] sm:$0xff]
      %v3124 = vld [vmem:[%s2709 + $0x121] sm:$0xff]
      %v3125 = vld [vmem:[%s2709 + $0x129] sm:$0xff]
      %v3126 = vld [vmem:[%s2709 + $0x139] sm:$0xff]
      %v3127 = vld [vmem:[%s2709 + $0x141] sm:$0xff]
      %v3128 = vld [vmem:[%s2709 + $0x151] sm:$0xff]
      %v3129 = vld [vmem:[%s2709 + $0x159] sm:$0xff]
      %v3130 = vld [vmem:[%s2709 + $0x169] sm:$0xff]
      %v3131 = vld [vmem:[%s2709 + $0x171] sm:$0xff]
      %s3132 = scalar_lea.vmem %s1, 28
      %v3133 = vld [vmem:[%s3132] sm:$0xf]
      %v3135 = vsel %vm279, %v3100, 0
      %v3138 = vsel %vm279, %v3101, 0
      %v3141 = vsel %vm279, %v3102, 0
      %v3144 = vsel %vm279, %v3103, 0
      %v3147 = vsel %vm279, %v3104, 0
      %v3150 = vsel %vm279, %v3105, 0
      %v3153 = vsel %vm279, %v3106, 0
      %v3156 = vsel %vm279, %v3107, 0
      %v3159 = vsel %vm279, %v3108, 0
      %v3162 = vsel %vm279, %v3109, 0
      %v3165 = vsel %vm279, %v3110, 0
      %v3168 = vsel %vm279, %v3111, 0
      %v3171 = vsel %vm279, %v3112, 0
      %v3174 = vsel %vm279, %v3113, 0
      %v3177 = vsel %vm279, %v3114, 0
      %v3180 = vsel %vm279, %v3115, 0
      %v3183 = vsel %vm279, %v3116, 0
      %v3186 = vsel %vm279, %v3117, 0
      %v3189 = vsel %vm279, %v3118, 0
      %v3192 = vsel %vm279, %v3119, 0
      %v3195 = vsel %vm279, %v3120, 0
      %v3198 = vsel %vm279, %v3121, 0
      %v3201 = vsel %vm279, %v3122, 0
      %v3204 = vsel %vm279, %v3123, 0
      %v3207 = vsel %vm279, %v3124, 0
      %v3210 = vsel %vm279, %v3125, 0
      %v3213 = vsel %vm279, %v3126, 0
      %v3216 = vsel %vm279, %v3127, 0
      %v3219 = vsel %vm279, %v3128, 0
      %v3222 = vsel %vm279, %v3129, 0
      %v3225 = vsel %vm279, %v3130, 0
      %v3228 = vsel %vm279, %v3131, 0
      %v3231 = vsel %vm596, %v3133, 0
      %3233 = vmatprep.subr.mxu0 0.0
      %3234 = vmatpush1.msra.mxu0 0.0
      %3235 = vmatprep.subr.mxu0 0.0
      %3236 = vmatpush1.msra.mxu0 0.0
      %3237 = vmatprep.subr.mxu0 0.0
      %3238 = vmatpush1.msra.mxu0 0.0
      %3239 = vmatprep.subr.mxu0 0.0
      %3240 = vmatpush1.msra.mxu0 0.0
      %3241 = vmatprep.subr.mxu0 0.0
      %3242 = vmatpush1.msra.mxu0 0.0
      %3243 = vmatprep.subr.mxu0 0.0
      %3244 = vmatpush1.msra.mxu0 0.0
      %3245 = vmatprep.subr.mxu0 0.0
      %3246 = vmatpush1.msra.mxu0 0.0
      %3247 = vmatprep.subr.mxu0 0.0
      %3248 = vmatpush1.msra.mxu0 0.0
      %3249 = vmatprep.subr.mxu0 0.0
      %3250 = vmatpush1.msra.mxu0 0.0
      %3251 = vmatprep.subr.mxu0 0.0
      %3252 = vmatpush1.msra.mxu0 0.0
      %3253 = vmatprep.subr.mxu0 0.0
      %3254 = vmatpush1.msra.mxu0 0.0
      %3255 = vmatprep.subr.mxu0 0.0
      %3256 = vmatpush1.msra.mxu0 0.0
      %3257 = vmatprep.subr.mxu0 0.0
      %3258 = vmatpush1.msra.mxu0 0.0
      %3259 = vmatprep.subr.mxu0 0.0
      %3260 = vmatpush1.msra.mxu0 0.0
      %3261 = vmatprep.subr.mxu0 0.0
      %3262 = vmatpush1.msra.mxu0 0.0
      %3263 = vmatprep.subr.mxu0 0.0
      %3264 = vmatpush1.msra.mxu0 %v3231
      %3265 = vmatprep.subr.mxu0 0.0
      %3266 = vmatpush2.msra.mxu0 0.0
      %3267 = vmatprep.subr.mxu0 0.0
      %3268 = vmatpush2.msra.mxu0 0.0
      %3269 = vmatprep.subr.mxu0 0.0
      %3270 = vmatpush2.msra.mxu0 0.0
      %3271 = vmatprep.subr.mxu0 0.0
      %3272 = vmatpush2.msra.mxu0 0.0
      %3273 = vmatprep.subr.mxu0 0.0
      %3274 = vmatpush2.msra.mxu0 0.0
      %3275 = vmatprep.subr.mxu0 0.0
      %3276 = vmatpush2.msra.mxu0 0.0
      %3277 = vmatprep.subr.mxu0 0.0
      %3278 = vmatpush2.msra.mxu0 0.0
      %3279 = vmatprep.subr.mxu0 0.0
      %3280 = vmatpush2.msra.mxu0 0.0
      %3281 = vmatprep.subr.mxu0 0.0
      %3282 = vmatpush2.msra.mxu0 0.0
      %3283 = vmatprep.subr.mxu0 0.0
      %3284 = vmatpush2.msra.mxu0 0.0
      %3285 = vmatprep.subr.mxu0 0.0
      %3286 = vmatpush2.msra.mxu0 0.0
      %3287 = vmatprep.subr.mxu0 0.0
      %3288 = vmatpush2.msra.mxu0 0.0
      %3289 = vmatprep.subr.mxu0 0.0
      %3290 = vmatpush2.msra.mxu0 0.0
      %3291 = vmatprep.subr.mxu0 0.0
      %3292 = vmatpush2.msra.mxu0 0.0
      %3293 = vmatprep.subr.mxu0 0.0
      %3294 = vmatpush2.msra.mxu0 0.0
      %3295 = vmatprep.subr.mxu0 0.0
      %3296 = vmatpush2.msra.mxu0 0.0
      %3297 = vmatprep.mubr.f32.mxu0 0.0
      %3298 = vmatmul.mubr.f32.gmra.mxu0 %v3135
      %v3299 = vpop.f32.mrf.mxu0
      %v3300 = vadd.f32 0.0, %v3299
      %v3301 = vpop.f32.mrf.mxu0
      %3302 = vmatprep.mubr.f32.mxu0 0.0
      %3303 = vmatmul.mubr.f32.gmra.mxu0 %v3138
      %v3304 = vpop.f32.mrf.mxu0
      %v3305 = vadd.f32 0.0, %v3304
      %v3306 = vpop.f32.mrf.mxu0
      %3307 = vmatprep.mubr.f32.mxu0 0.0
      %3308 = vmatmul.mubr.f32.gmra.mxu0 %v3141
      %v3309 = vpop.f32.mrf.mxu0
      %v3310 = vadd.f32 0.0, %v3309
      %v3311 = vpop.f32.mrf.mxu0
      %3312 = vmatprep.mubr.f32.mxu0 0.0
      %3313 = vmatmul.mubr.f32.gmra.mxu0 %v3144
      %v3314 = vpop.f32.mrf.mxu0
      %v3315 = vadd.f32 0.0, %v3314
      %v3316 = vpop.f32.mrf.mxu0
      %3317 = vmatprep.mubr.f32.mxu0 0.0
      %3318 = vmatmul.mubr.f32.gmra.mxu0 %v3147
      %v3319 = vpop.f32.mrf.mxu0
      %v3320 = vadd.f32 0.0, %v3319
      %v3321 = vpop.f32.mrf.mxu0
      %3322 = vmatprep.mubr.f32.mxu0 0.0
      %3323 = vmatmul.mubr.f32.gmra.mxu0 %v3150
      %v3324 = vpop.f32.mrf.mxu0
      %v3325 = vadd.f32 0.0, %v3324
      %v3326 = vpop.f32.mrf.mxu0
      %3327 = vmatprep.mubr.f32.mxu0 0.0
      %3328 = vmatmul.mubr.f32.gmra.mxu0 %v3153
      %v3329 = vpop.f32.mrf.mxu0
      %v3330 = vadd.f32 0.0, %v3329
      %v3331 = vpop.f32.mrf.mxu0
      %3332 = vmatprep.mubr.f32.mxu0 0.0
      %3333 = vmatmul.mubr.f32.gmra.mxu0 %v3156
      %v3334 = vpop.f32.mrf.mxu0
      %v3335 = vadd.f32 0.0, %v3334
      %v3336 = vpop.f32.mrf.mxu0
      %3337 = vmatprep.mubr.f32.mxu0 0.0
      %3338 = vmatmul.mubr.f32.gmra.mxu0 %v3159
      %v3339 = vpop.f32.mrf.mxu0
      %v3340 = vadd.f32 0.0, %v3339
      %v3341 = vpop.f32.mrf.mxu0
      %3342 = vmatprep.mubr.f32.mxu0 0.0
      %3343 = vmatmul.mubr.f32.gmra.mxu0 %v3162
      %v3344 = vpop.f32.mrf.mxu0
      %v3345 = vadd.f32 0.0, %v3344
      %v3346 = vpop.f32.mrf.mxu0
      %3347 = vmatprep.mubr.f32.mxu0 0.0
      %3348 = vmatmul.mubr.f32.gmra.mxu0 %v3165
      %v3349 = vpop.f32.mrf.mxu0
      %v3350 = vadd.f32 0.0, %v3349
      %v3351 = vpop.f32.mrf.mxu0
      %3352 = vmatprep.mubr.f32.mxu0 0.0
      %3353 = vmatmul.mubr.f32.gmra.mxu0 %v3168
      %v3354 = vpop.f32.mrf.mxu0
      %v3355 = vadd.f32 0.0, %v3354
      %v3356 = vpop.f32.mrf.mxu0
      %3357 = vmatprep.mubr.f32.mxu0 0.0
      %3358 = vmatmul.mubr.f32.gmra.mxu0 %v3171
      %v3359 = vpop.f32.mrf.mxu0
      %v3360 = vadd.f32 0.0, %v3359
      %v3361 = vpop.f32.mrf.mxu0
      %3362 = vmatprep.mubr.f32.mxu0 0.0
      %3363 = vmatmul.mubr.f32.gmra.mxu0 %v3174
      %v3364 = vpop.f32.mrf.mxu0
      %v3365 = vadd.f32 0.0, %v3364
      %v3366 = vpop.f32.mrf.mxu0
      %3367 = vmatprep.mubr.f32.mxu0 0.0
      %3368 = vmatmul.mubr.f32.gmra.mxu0 %v3177
      %v3369 = vpop.f32.mrf.mxu0
      %v3370 = vadd.f32 0.0, %v3369
      %v3371 = vpop.f32.mrf.mxu0
      %3372 = vmatprep.mubr.f32.mxu0 0.0
      %3373 = vmatmul.mubr.f32.gmra.mxu0 %v3180
      %v3374 = vpop.f32.mrf.mxu0
      %v3375 = vadd.f32 0.0, %v3374
      %v3376 = vpop.f32.mrf.mxu0
      %3377 = vmatprep.mubr.f32.mxu0 0.0
      %3378 = vmatmul.mubr.f32.gmra.mxu0 %v3183
      %v3379 = vpop.f32.mrf.mxu0
      %v3380 = vadd.f32 0.0, %v3379
      %v3381 = vpop.f32.mrf.mxu0
      %3382 = vmatprep.mubr.f32.mxu0 0.0
      %3383 = vmatmul.mubr.f32.gmra.mxu0 %v3186
      %v3384 = vpop.f32.mrf.mxu0
      %v3385 = vadd.f32 0.0, %v3384
      %v3386 = vpop.f32.mrf.mxu0
      %3387 = vmatprep.mubr.f32.mxu0 0.0
      %3388 = vmatmul.mubr.f32.gmra.mxu0 %v3189
      %v3389 = vpop.f32.mrf.mxu0
      %v3390 = vadd.f32 0.0, %v3389
      %v3391 = vpop.f32.mrf.mxu0
      %3392 = vmatprep.mubr.f32.mxu0 0.0
      %3393 = vmatmul.mubr.f32.gmra.mxu0 %v3192
      %v3394 = vpop.f32.mrf.mxu0
      %v3395 = vadd.f32 0.0, %v3394
      %v3396 = vpop.f32.mrf.mxu0
      %3397 = vmatprep.mubr.f32.mxu0 0.0
      %3398 = vmatmul.mubr.f32.gmra.mxu0 %v3195
      %v3399 = vpop.f32.mrf.mxu0
      %v3400 = vadd.f32 0.0, %v3399
      %v3401 = vpop.f32.mrf.mxu0
      %3402 = vmatprep.mubr.f32.mxu0 0.0
      %3403 = vmatmul.mubr.f32.gmra.mxu0 %v3198
      %v3404 = vpop.f32.mrf.mxu0
      %v3405 = vadd.f32 0.0, %v3404
      %v3406 = vpop.f32.mrf.mxu0
      %3407 = vmatprep.mubr.f32.mxu0 0.0
      %3408 = vmatmul.mubr.f32.gmra.mxu0 %v3201
      %v3409 = vpop.f32.mrf.mxu0
      %v3410 = vadd.f32 0.0, %v3409
      %v3411 = vpop.f32.mrf.mxu0
      %3412 = vmatprep.mubr.f32.mxu0 0.0
      %3413 = vmatmul.mubr.f32.gmra.mxu0 %v3204
      %v3414 = vpop.f32.mrf.mxu0
      %v3415 = vadd.f32 0.0, %v3414
      %v3416 = vpop.f32.mrf.mxu0
      %3417 = vmatprep.mubr.f32.mxu0 0.0
      %3418 = vmatmul.mubr.f32.gmra.mxu0 %v3207
      %v3419 = vpop.f32.mrf.mxu0
      %v3420 = vadd.f32 0.0, %v3419
      %v3421 = vpop.f32.mrf.mxu0
      %3422 = vmatprep.mubr.f32.mxu0 0.0
      %3423 = vmatmul.mubr.f32.gmra.mxu0 %v3210
      %v3424 = vpop.f32.mrf.mxu0
      %v3425 = vadd.f32 0.0, %v3424
      %v3426 = vpop.f32.mrf.mxu0
      %3427 = vmatprep.mubr.f32.mxu0 0.0
      %3428 = vmatmul.mubr.f32.gmra.mxu0 %v3213
      %v3429 = vpop.f32.mrf.mxu0
      %v3430 = vadd.f32 0.0, %v3429
      %v3431 = vpop.f32.mrf.mxu0
      %3432 = vmatprep.mubr.f32.mxu0 0.0
      %3433 = vmatmul.mubr.f32.gmra.mxu0 %v3216
      %v3434 = vpop.f32.mrf.mxu0
      %v3435 = vadd.f32 0.0, %v3434
      %v3436 = vpop.f32.mrf.mxu0
      %3437 = vmatprep.mubr.f32.mxu0 0.0
      %3438 = vmatmul.mubr.f32.gmra.mxu0 %v3219
      %v3439 = vpop.f32.mrf.mxu0
      %v3440 = vadd.f32 0.0, %v3439
      %v3441 = vpop.f32.mrf.mxu0
      %3442 = vmatprep.mubr.f32.mxu0 0.0
      %3443 = vmatmul.mubr.f32.gmra.mxu0 %v3222
      %v3444 = vpop.f32.mrf.mxu0
      %v3445 = vadd.f32 0.0, %v3444
      %v3446 = vpop.f32.mrf.mxu0
      %3447 = vmatprep.mubr.f32.mxu0 0.0
      %3448 = vmatmul.mubr.f32.gmra.mxu0 %v3225
      %v3449 = vpop.f32.mrf.mxu0
      %v3450 = vadd.f32 0.0, %v3449
      %v3451 = vpop.f32.mrf.mxu0
      %3452 = vmatprep.mubr.f32.mxu0 0.0
      %3453 = vmatmul.mubr.f32.gmra.mxu0 %v3228
      %v3454 = vpop.f32.mrf.mxu0
      %v3455 = vadd.f32 0.0, %v3454
      %v3456 = vpop.f32.mrf.mxu0
      %3457 = vdwg.mxu0
      %v3458 = vadd.f32 %v3068, %v3300
      %v3459 = vadd.f32 %v3069, %v3305
      %v3460 = vadd.f32 %v3070, %v3310
      %v3461 = vadd.f32 %v3071, %v3315
      %v3462 = vadd.f32 %v3072, %v3320
      %v3463 = vadd.f32 %v3073, %v3325
      %v3464 = vadd.f32 %v3074, %v3330
      %v3465 = vadd.f32 %v3075, %v3335
      %v3466 = vadd.f32 %v3076, %v3340
      %v3467 = vadd.f32 %v3077, %v3345
      %v3468 = vadd.f32 %v3078, %v3350
      %v3469 = vadd.f32 %v3079, %v3355
      %v3470 = vadd.f32 %v3080, %v3360
      %v3471 = vadd.f32 %v3081, %v3365
      %v3472 = vadd.f32 %v3082, %v3370
      %v3473 = vadd.f32 %v3083, %v3375
      %v3474 = vadd.f32 %v3084, %v3380
      %v3475 = vadd.f32 %v3085, %v3385
      %v3476 = vadd.f32 %v3086, %v3390
      %v3477 = vadd.f32 %v3087, %v3395
      %v3478 = vadd.f32 %v3088, %v3400
      %v3479 = vadd.f32 %v3089, %v3405
      %v3480 = vadd.f32 %v3090, %v3410
      %v3481 = vadd.f32 %v3091, %v3415
      %v3482 = vadd.f32 %v3092, %v3420
      %v3483 = vadd.f32 %v3093, %v3425
      %v3484 = vadd.f32 %v3094, %v3430
      %v3485 = vadd.f32 %v3095, %v3435
      %v3486 = vadd.f32 %v3096, %v3440
      %v3487 = vadd.f32 %v3097, %v3445
      %v3488 = vadd.f32 %v3098, %v3450
      %v3489 = vadd.f32 %v3099, %v3455
      %v3490 = vld [vmem:[%s2709 + $0x2] sm:$0xff]
      %v3491 = vld [vmem:[%s2709 + $0xa] sm:$0xff]
      %v3492 = vld [vmem:[%s2709 + $0x1a] sm:$0xff]
      %v3493 = vld [vmem:[%s2709 + $0x22] sm:$0xff]
      %v3494 = vld [vmem:[%s2709 + $0x32] sm:$0xff]
      %v3495 = vld [vmem:[%s2709 + $0x3a] sm:$0xff]
      %v3496 = vld [vmem:[%s2709 + $0x4a] sm:$0xff]
      %v3497 = vld [vmem:[%s2709 + $0x52] sm:$0xff]
      %v3498 = vld [vmem:[%s2709 + $0x62] sm:$0xff]
      %v3499 = vld [vmem:[%s2709 + $0x6a] sm:$0xff]
      %v3500 = vld [vmem:[%s2709 + $0x7a] sm:$0xff]
      %v3501 = vld [vmem:[%s2709 + $0x82] sm:$0xff]
      %v3502 = vld [vmem:[%s2709 + $0x92] sm:$0xff]
      %v3503 = vld [vmem:[%s2709 + $0x9a] sm:$0xff]
      %v3504 = vld [vmem:[%s2709 + $0xaa] sm:$0xff]
      %v3505 = vld [vmem:[%s2709 + $0xb2] sm:$0xff]
      %v3506 = vld [vmem:[%s2709 + $0xc2] sm:$0xff]
      %v3507 = vld [vmem:[%s2709 + $0xca] sm:$0xff]
      %v3508 = vld [vmem:[%s2709 + $0xda] sm:$0xff]
      %v3509 = vld [vmem:[%s2709 + $0xe2] sm:$0xff]
      %v3510 = vld [vmem:[%s2709 + $0xf2] sm:$0xff]
      %v3511 = vld [vmem:[%s2709 + $0xfa] sm:$0xff]
      %v3512 = vld [vmem:[%s2709 + $0x10a] sm:$0xff]
      %v3513 = vld [vmem:[%s2709 + $0x112] sm:$0xff]
      %v3514 = vld [vmem:[%s2709 + $0x122] sm:$0xff]
      %v3515 = vld [vmem:[%s2709 + $0x12a] sm:$0xff]
      %v3516 = vld [vmem:[%s2709 + $0x13a] sm:$0xff]
      %v3517 = vld [vmem:[%s2709 + $0x142] sm:$0xff]
      %v3518 = vld [vmem:[%s2709 + $0x152] sm:$0xff]
      %v3519 = vld [vmem:[%s2709 + $0x15a] sm:$0xff]
      %v3520 = vld [vmem:[%s2709 + $0x16a] sm:$0xff]
      %v3521 = vld [vmem:[%s2709 + $0x172] sm:$0xff]
      %s3522 = scalar_lea.vmem %s1, 32
      %v3523 = vld [vmem:[%s3522] sm:$0xf]
      %v3525 = vsel %vm279, %v3490, 0
      %v3528 = vsel %vm279, %v3491, 0
      %v3531 = vsel %vm279, %v3492, 0
      %v3534 = vsel %vm279, %v3493, 0
      %v3537 = vsel %vm279, %v3494, 0
      %v3540 = vsel %vm279, %v3495, 0
      %v3543 = vsel %vm279, %v3496, 0
      %v3546 = vsel %vm279, %v3497, 0
      %v3549 = vsel %vm279, %v3498, 0
      %v3552 = vsel %vm279, %v3499, 0
      %v3555 = vsel %vm279, %v3500, 0
      %v3558 = vsel %vm279, %v3501, 0
      %v3561 = vsel %vm279, %v3502, 0
      %v3564 = vsel %vm279, %v3503, 0
      %v3567 = vsel %vm279, %v3504, 0
      %v3570 = vsel %vm279, %v3505, 0
      %v3573 = vsel %vm279, %v3506, 0
      %v3576 = vsel %vm279, %v3507, 0
      %v3579 = vsel %vm279, %v3508, 0
      %v3582 = vsel %vm279, %v3509, 0
      %v3585 = vsel %vm279, %v3510, 0
      %v3588 = vsel %vm279, %v3511, 0
      %v3591 = vsel %vm279, %v3512, 0
      %v3594 = vsel %vm279, %v3513, 0
      %v3597 = vsel %vm279, %v3514, 0
      %v3600 = vsel %vm279, %v3515, 0
      %v3603 = vsel %vm279, %v3516, 0
      %v3606 = vsel %vm279, %v3517, 0
      %v3609 = vsel %vm279, %v3518, 0
      %v3612 = vsel %vm279, %v3519, 0
      %v3615 = vsel %vm279, %v3520, 0
      %v3618 = vsel %vm279, %v3521, 0
      %v3621 = vsel %vm596, %v3523, 0
      %3623 = vmatprep.subr.mxu0 0.0
      %3624 = vmatpush1.msra.mxu0 0.0
      %3625 = vmatprep.subr.mxu0 0.0
      %3626 = vmatpush1.msra.mxu0 0.0
      %3627 = vmatprep.subr.mxu0 0.0
      %3628 = vmatpush1.msra.mxu0 0.0
      %3629 = vmatprep.subr.mxu0 0.0
      %3630 = vmatpush1.msra.mxu0 0.0
      %3631 = vmatprep.subr.mxu0 0.0
      %3632 = vmatpush1.msra.mxu0 0.0
      %3633 = vmatprep.subr.mxu0 0.0
      %3634 = vmatpush1.msra.mxu0 0.0
      %3635 = vmatprep.subr.mxu0 0.0
      %3636 = vmatpush1.msra.mxu0 0.0
      %3637 = vmatprep.subr.mxu0 0.0
      %3638 = vmatpush1.msra.mxu0 0.0
      %3639 = vmatprep.subr.mxu0 0.0
      %3640 = vmatpush1.msra.mxu0 0.0
      %3641 = vmatprep.subr.mxu0 0.0
      %3642 = vmatpush1.msra.mxu0 0.0
      %3643 = vmatprep.subr.mxu0 0.0
      %3644 = vmatpush1.msra.mxu0 0.0
      %3645 = vmatprep.subr.mxu0 0.0
      %3646 = vmatpush1.msra.mxu0 0.0
      %3647 = vmatprep.subr.mxu0 0.0
      %3648 = vmatpush1.msra.mxu0 0.0
      %3649 = vmatprep.subr.mxu0 0.0
      %3650 = vmatpush1.msra.mxu0 0.0
      %3651 = vmatprep.subr.mxu0 0.0
      %3652 = vmatpush1.msra.mxu0 0.0
      %3653 = vmatprep.subr.mxu0 0.0
      %3654 = vmatpush1.msra.mxu0 %v3621
      %3655 = vmatprep.subr.mxu0 0.0
      %3656 = vmatpush2.msra.mxu0 0.0
      %3657 = vmatprep.subr.mxu0 0.0
      %3658 = vmatpush2.msra.mxu0 0.0
      %3659 = vmatprep.subr.mxu0 0.0
      %3660 = vmatpush2.msra.mxu0 0.0
      %3661 = vmatprep.subr.mxu0 0.0
      %3662 = vmatpush2.msra.mxu0 0.0
      %3663 = vmatprep.subr.mxu0 0.0
      %3664 = vmatpush2.msra.mxu0 0.0
      %3665 = vmatprep.subr.mxu0 0.0
      %3666 = vmatpush2.msra.mxu0 0.0
      %3667 = vmatprep.subr.mxu0 0.0
      %3668 = vmatpush2.msra.mxu0 0.0
      %3669 = vmatprep.subr.mxu0 0.0
      %3670 = vmatpush2.msra.mxu0 0.0
      %3671 = vmatprep.subr.mxu0 0.0
      %3672 = vmatpush2.msra.mxu0 0.0
      %3673 = vmatprep.subr.mxu0 0.0
      %3674 = vmatpush2.msra.mxu0 0.0
      %3675 = vmatprep.subr.mxu0 0.0
      %3676 = vmatpush2.msra.mxu0 0.0
      %3677 = vmatprep.subr.mxu0 0.0
      %3678 = vmatpush2.msra.mxu0 0.0
      %3679 = vmatprep.subr.mxu0 0.0
      %3680 = vmatpush2.msra.mxu0 0.0
      %3681 = vmatprep.subr.mxu0 0.0
      %3682 = vmatpush2.msra.mxu0 0.0
      %3683 = vmatprep.subr.mxu0 0.0
      %3684 = vmatpush2.msra.mxu0 0.0
      %3685 = vmatprep.subr.mxu0 0.0
      %3686 = vmatpush2.msra.mxu0 0.0
      %3687 = vmatprep.mubr.f32.mxu0 0.0
      %3688 = vmatmul.mubr.f32.gmra.mxu0 %v3525
      %v3689 = vpop.f32.mrf.mxu0
      %v3690 = vadd.f32 0.0, %v3689
      %v3691 = vpop.f32.mrf.mxu0
      %3692 = vmatprep.mubr.f32.mxu0 0.0
      %3693 = vmatmul.mubr.f32.gmra.mxu0 %v3528
      %v3694 = vpop.f32.mrf.mxu0
      %v3695 = vadd.f32 0.0, %v3694
      %v3696 = vpop.f32.mrf.mxu0
      %3697 = vmatprep.mubr.f32.mxu0 0.0
      %3698 = vmatmul.mubr.f32.gmra.mxu0 %v3531
      %v3699 = vpop.f32.mrf.mxu0
      %v3700 = vadd.f32 0.0, %v3699
      %v3701 = vpop.f32.mrf.mxu0
      %3702 = vmatprep.mubr.f32.mxu0 0.0
      %3703 = vmatmul.mubr.f32.gmra.mxu0 %v3534
      %v3704 = vpop.f32.mrf.mxu0
      %v3705 = vadd.f32 0.0, %v3704
      %v3706 = vpop.f32.mrf.mxu0
      %3707 = vmatprep.mubr.f32.mxu0 0.0
      %3708 = vmatmul.mubr.f32.gmra.mxu0 %v3537
      %v3709 = vpop.f32.mrf.mxu0
      %v3710 = vadd.f32 0.0, %v3709
      %v3711 = vpop.f32.mrf.mxu0
      %3712 = vmatprep.mubr.f32.mxu0 0.0
      %3713 = vmatmul.mubr.f32.gmra.mxu0 %v3540
      %v3714 = vpop.f32.mrf.mxu0
      %v3715 = vadd.f32 0.0, %v3714
      %v3716 = vpop.f32.mrf.mxu0
      %3717 = vmatprep.mubr.f32.mxu0 0.0
      %3718 = vmatmul.mubr.f32.gmra.mxu0 %v3543
      %v3719 = vpop.f32.mrf.mxu0
      %v3720 = vadd.f32 0.0, %v3719
      %v3721 = vpop.f32.mrf.mxu0
      %3722 = vmatprep.mubr.f32.mxu0 0.0
      %3723 = vmatmul.mubr.f32.gmra.mxu0 %v3546
      %v3724 = vpop.f32.mrf.mxu0
      %v3725 = vadd.f32 0.0, %v3724
      %v3726 = vpop.f32.mrf.mxu0
      %3727 = vmatprep.mubr.f32.mxu0 0.0
      %3728 = vmatmul.mubr.f32.gmra.mxu0 %v3549
      %v3729 = vpop.f32.mrf.mxu0
      %v3730 = vadd.f32 0.0, %v3729
      %v3731 = vpop.f32.mrf.mxu0
      %3732 = vmatprep.mubr.f32.mxu0 0.0
      %3733 = vmatmul.mubr.f32.gmra.mxu0 %v3552
      %v3734 = vpop.f32.mrf.mxu0
      %v3735 = vadd.f32 0.0, %v3734
      %v3736 = vpop.f32.mrf.mxu0
      %3737 = vmatprep.mubr.f32.mxu0 0.0
      %3738 = vmatmul.mubr.f32.gmra.mxu0 %v3555
      %v3739 = vpop.f32.mrf.mxu0
      %v3740 = vadd.f32 0.0, %v3739
      %v3741 = vpop.f32.mrf.mxu0
      %3742 = vmatprep.mubr.f32.mxu0 0.0
      %3743 = vmatmul.mubr.f32.gmra.mxu0 %v3558
      %v3744 = vpop.f32.mrf.mxu0
      %v3745 = vadd.f32 0.0, %v3744
      %v3746 = vpop.f32.mrf.mxu0
      %3747 = vmatprep.mubr.f32.mxu0 0.0
      %3748 = vmatmul.mubr.f32.gmra.mxu0 %v3561
      %v3749 = vpop.f32.mrf.mxu0
      %v3750 = vadd.f32 0.0, %v3749
      %v3751 = vpop.f32.mrf.mxu0
      %3752 = vmatprep.mubr.f32.mxu0 0.0
      %3753 = vmatmul.mubr.f32.gmra.mxu0 %v3564
      %v3754 = vpop.f32.mrf.mxu0
      %v3755 = vadd.f32 0.0, %v3754
      %v3756 = vpop.f32.mrf.mxu0
      %3757 = vmatprep.mubr.f32.mxu0 0.0
      %3758 = vmatmul.mubr.f32.gmra.mxu0 %v3567
      %v3759 = vpop.f32.mrf.mxu0
      %v3760 = vadd.f32 0.0, %v3759
      %v3761 = vpop.f32.mrf.mxu0
      %3762 = vmatprep.mubr.f32.mxu0 0.0
      %3763 = vmatmul.mubr.f32.gmra.mxu0 %v3570
      %v3764 = vpop.f32.mrf.mxu0
      %v3765 = vadd.f32 0.0, %v3764
      %v3766 = vpop.f32.mrf.mxu0
      %3767 = vmatprep.mubr.f32.mxu0 0.0
      %3768 = vmatmul.mubr.f32.gmra.mxu0 %v3573
      %v3769 = vpop.f32.mrf.mxu0
      %v3770 = vadd.f32 0.0, %v3769
      %v3771 = vpop.f32.mrf.mxu0
      %3772 = vmatprep.mubr.f32.mxu0 0.0
      %3773 = vmatmul.mubr.f32.gmra.mxu0 %v3576
      %v3774 = vpop.f32.mrf.mxu0
      %v3775 = vadd.f32 0.0, %v3774
      %v3776 = vpop.f32.mrf.mxu0
      %3777 = vmatprep.mubr.f32.mxu0 0.0
      %3778 = vmatmul.mubr.f32.gmra.mxu0 %v3579
      %v3779 = vpop.f32.mrf.mxu0
      %v3780 = vadd.f32 0.0, %v3779
      %v3781 = vpop.f32.mrf.mxu0
      %3782 = vmatprep.mubr.f32.mxu0 0.0
      %3783 = vmatmul.mubr.f32.gmra.mxu0 %v3582
      %v3784 = vpop.f32.mrf.mxu0
      %v3785 = vadd.f32 0.0, %v3784
      %v3786 = vpop.f32.mrf.mxu0
      %3787 = vmatprep.mubr.f32.mxu0 0.0
      %3788 = vmatmul.mubr.f32.gmra.mxu0 %v3585
      %v3789 = vpop.f32.mrf.mxu0
      %v3790 = vadd.f32 0.0, %v3789
      %v3791 = vpop.f32.mrf.mxu0
      %3792 = vmatprep.mubr.f32.mxu0 0.0
      %3793 = vmatmul.mubr.f32.gmra.mxu0 %v3588
      %v3794 = vpop.f32.mrf.mxu0
      %v3795 = vadd.f32 0.0, %v3794
      %v3796 = vpop.f32.mrf.mxu0
      %3797 = vmatprep.mubr.f32.mxu0 0.0
      %3798 = vmatmul.mubr.f32.gmra.mxu0 %v3591
      %v3799 = vpop.f32.mrf.mxu0
      %v3800 = vadd.f32 0.0, %v3799
      %v3801 = vpop.f32.mrf.mxu0
      %3802 = vmatprep.mubr.f32.mxu0 0.0
      %3803 = vmatmul.mubr.f32.gmra.mxu0 %v3594
      %v3804 = vpop.f32.mrf.mxu0
      %v3805 = vadd.f32 0.0, %v3804
      %v3806 = vpop.f32.mrf.mxu0
      %3807 = vmatprep.mubr.f32.mxu0 0.0
      %3808 = vmatmul.mubr.f32.gmra.mxu0 %v3597
      %v3809 = vpop.f32.mrf.mxu0
      %v3810 = vadd.f32 0.0, %v3809
      %v3811 = vpop.f32.mrf.mxu0
      %3812 = vmatprep.mubr.f32.mxu0 0.0
      %3813 = vmatmul.mubr.f32.gmra.mxu0 %v3600
      %v3814 = vpop.f32.mrf.mxu0
      %v3815 = vadd.f32 0.0, %v3814
      %v3816 = vpop.f32.mrf.mxu0
      %3817 = vmatprep.mubr.f32.mxu0 0.0
      %3818 = vmatmul.mubr.f32.gmra.mxu0 %v3603
      %v3819 = vpop.f32.mrf.mxu0
      %v3820 = vadd.f32 0.0, %v3819
      %v3821 = vpop.f32.mrf.mxu0
      %3822 = vmatprep.mubr.f32.mxu0 0.0
      %3823 = vmatmul.mubr.f32.gmra.mxu0 %v3606
      %v3824 = vpop.f32.mrf.mxu0
      %v3825 = vadd.f32 0.0, %v3824
      %v3826 = vpop.f32.mrf.mxu0
      %3827 = vmatprep.mubr.f32.mxu0 0.0
      %3828 = vmatmul.mubr.f32.gmra.mxu0 %v3609
      %v3829 = vpop.f32.mrf.mxu0
      %v3830 = vadd.f32 0.0, %v3829
      %v3831 = vpop.f32.mrf.mxu0
      %3832 = vmatprep.mubr.f32.mxu0 0.0
      %3833 = vmatmul.mubr.f32.gmra.mxu0 %v3612
      %v3834 = vpop.f32.mrf.mxu0
      %v3835 = vadd.f32 0.0, %v3834
      %v3836 = vpop.f32.mrf.mxu0
      %3837 = vmatprep.mubr.f32.mxu0 0.0
      %3838 = vmatmul.mubr.f32.gmra.mxu0 %v3615
      %v3839 = vpop.f32.mrf.mxu0
      %v3840 = vadd.f32 0.0, %v3839
      %v3841 = vpop.f32.mrf.mxu0
      %3842 = vmatprep.mubr.f32.mxu0 0.0
      %3843 = vmatmul.mubr.f32.gmra.mxu0 %v3618
      %v3844 = vpop.f32.mrf.mxu0
      %v3845 = vadd.f32 0.0, %v3844
      %v3846 = vpop.f32.mrf.mxu0
      %3847 = vdwg.mxu0
      %v3848 = vadd.f32 %v3458, %v3690
      %v3849 = vadd.f32 %v3459, %v3695
      %v3850 = vadd.f32 %v3460, %v3700
      %v3851 = vadd.f32 %v3461, %v3705
      %v3852 = vadd.f32 %v3462, %v3710
      %v3853 = vadd.f32 %v3463, %v3715
      %v3854 = vadd.f32 %v3464, %v3720
      %v3855 = vadd.f32 %v3465, %v3725
      %v3856 = vadd.f32 %v3466, %v3730
      %v3857 = vadd.f32 %v3467, %v3735
      %v3858 = vadd.f32 %v3468, %v3740
      %v3859 = vadd.f32 %v3469, %v3745
      %v3860 = vadd.f32 %v3470, %v3750
      %v3861 = vadd.f32 %v3471, %v3755
      %v3862 = vadd.f32 %v3472, %v3760
      %v3863 = vadd.f32 %v3473, %v3765
      %v3864 = vadd.f32 %v3474, %v3770
      %v3865 = vadd.f32 %v3475, %v3775
      %v3866 = vadd.f32 %v3476, %v3780
      %v3867 = vadd.f32 %v3477, %v3785
      %v3868 = vadd.f32 %v3478, %v3790
      %v3869 = vadd.f32 %v3479, %v3795
      %v3870 = vadd.f32 %v3480, %v3800
      %v3871 = vadd.f32 %v3481, %v3805
      %v3872 = vadd.f32 %v3482, %v3810
      %v3873 = vadd.f32 %v3483, %v3815
      %v3874 = vadd.f32 %v3484, %v3820
      %v3875 = vadd.f32 %v3485, %v3825
      %v3876 = vadd.f32 %v3486, %v3830
      %v3877 = vadd.f32 %v3487, %v3835
      %v3878 = vadd.f32 %v3488, %v3840
      %v3879 = vadd.f32 %v3489, %v3845
      %v3880 = vld [vmem:[%s2] sm:$0x1]
      %v3882 = vlaneseq
      %v3883 = vshrl.u32 %v3882, 7
      %v3884 = vsub.s32 0, %v3883
      %v3885 = vrot.slane %v3880, %v3884
      %v3887 = vmul.f32 %v3848, %v3885
      %v3888 = vmul.f32 %v3849, %v3885
      %v3889 = vmul.f32 %v3850, %v3885
      %v3890 = vmul.f32 %v3851, %v3885
      %v3891 = vmul.f32 %v3852, %v3885
      %v3892 = vmul.f32 %v3853, %v3885
      %v3893 = vmul.f32 %v3854, %v3885
      %v3894 = vmul.f32 %v3855, %v3885
      %v3895 = vmul.f32 %v3856, %v3885
      %v3896 = vmul.f32 %v3857, %v3885
      %v3897 = vmul.f32 %v3858, %v3885
      %v3898 = vmul.f32 %v3859, %v3885
      %v3899 = vmul.f32 %v3860, %v3885
      %v3900 = vmul.f32 %v3861, %v3885
      %v3901 = vmul.f32 %v3862, %v3885
      %v3902 = vmul.f32 %v3863, %v3885
      %v3903 = vmul.f32 %v3864, %v3885
      %v3904 = vmul.f32 %v3865, %v3885
      %v3905 = vmul.f32 %v3866, %v3885
      %v3906 = vmul.f32 %v3867, %v3885
      %v3907 = vmul.f32 %v3868, %v3885
      %v3908 = vmul.f32 %v3869, %v3885
      %v3909 = vmul.f32 %v3870, %v3885
      %v3910 = vmul.f32 %v3871, %v3885
      %v3911 = vmul.f32 %v3872, %v3885
      %v3912 = vmul.f32 %v3873, %v3885
      %v3913 = vmul.f32 %v3874, %v3885
      %v3914 = vmul.f32 %v3875, %v3885
      %v3915 = vmul.f32 %v3876, %v3885
      %v3916 = vmul.f32 %v3877, %v3885
      %v3917 = vmul.f32 %v3878, %v3885
      %v3918 = vmul.f32 %v3879, %v3885
      %v3919 = vld [vmem:[%s3] sm:$0x1]
      %v3921 = vlaneseq
      %v3922 = vshrl.u32 %v3921, 7
      %v3923 = vsub.s32 0, %v3922
      %v3924 = vrot.slane %v3919, %v3923
      %v3926 = vadd.f32 %v3887, %v3924
      %v3927 = vadd.f32 %v3888, %v3924
      %v3928 = vadd.f32 %v3889, %v3924
      %v3929 = vadd.f32 %v3890, %v3924
      %v3930 = vadd.f32 %v3891, %v3924
      %v3931 = vadd.f32 %v3892, %v3924
      %v3932 = vadd.f32 %v3893, %v3924
      %v3933 = vadd.f32 %v3894, %v3924
      %v3934 = vadd.f32 %v3895, %v3924
      %v3935 = vadd.f32 %v3896, %v3924
      %v3936 = vadd.f32 %v3897, %v3924
      %v3937 = vadd.f32 %v3898, %v3924
      %v3938 = vadd.f32 %v3899, %v3924
      %v3939 = vadd.f32 %v3900, %v3924
      %v3940 = vadd.f32 %v3901, %v3924
      %v3941 = vadd.f32 %v3902, %v3924
      %v3942 = vadd.f32 %v3903, %v3924
      %v3943 = vadd.f32 %v3904, %v3924
      %v3944 = vadd.f32 %v3905, %v3924
      %v3945 = vadd.f32 %v3906, %v3924
      %v3946 = vadd.f32 %v3907, %v3924
      %v3947 = vadd.f32 %v3908, %v3924
      %v3948 = vadd.f32 %v3909, %v3924
      %v3949 = vadd.f32 %v3910, %v3924
      %v3950 = vadd.f32 %v3911, %v3924
      %v3951 = vadd.f32 %v3912, %v3924
      %v3952 = vadd.f32 %v3913, %v3924
      %v3953 = vadd.f32 %v3914, %v3924
      %v3954 = vadd.f32 %v3915, %v3924
      %v3955 = vadd.f32 %v3916, %v3924
      %v3956 = vadd.f32 %v3917, %v3924
      %v3957 = vadd.f32 %v3918, %v3924
      %v3958 = vmax.f32 %v3926, 0.0
      %v3959 = vmax.f32 %v3927, 0.0
      %v3960 = vmax.f32 %v3928, 0.0
      %v3961 = vmax.f32 %v3929, 0.0
      %v3962 = vmax.f32 %v3930, 0.0
      %v3963 = vmax.f32 %v3931, 0.0
      %v3964 = vmax.f32 %v3932, 0.0
      %v3965 = vmax.f32 %v3933, 0.0
      %v3966 = vmax.f32 %v3934, 0.0
      %v3967 = vmax.f32 %v3935, 0.0
      %v3968 = vmax.f32 %v3936, 0.0
      %v3969 = vmax.f32 %v3937, 0.0
      %v3970 = vmax.f32 %v3938, 0.0
      %v3971 = vmax.f32 %v3939, 0.0
      %v3972 = vmax.f32 %v3940, 0.0
      %v3973 = vmax.f32 %v3941, 0.0
      %v3974 = vmax.f32 %v3942, 0.0
      %v3975 = vmax.f32 %v3943, 0.0
      %v3976 = vmax.f32 %v3944, 0.0
      %v3977 = vmax.f32 %v3945, 0.0
      %v3978 = vmax.f32 %v3946, 0.0
      %v3979 = vmax.f32 %v3947, 0.0
      %v3980 = vmax.f32 %v3948, 0.0
      %v3981 = vmax.f32 %v3949, 0.0
      %v3982 = vmax.f32 %v3950, 0.0
      %v3983 = vmax.f32 %v3951, 0.0
      %v3984 = vmax.f32 %v3952, 0.0
      %v3985 = vmax.f32 %v3953, 0.0
      %v3986 = vmax.f32 %v3954, 0.0
      %v3987 = vmax.f32 %v3955, 0.0
      %v3988 = vmax.f32 %v3956, 0.0
      %v3989 = vmax.f32 %v3957, 0.0
      %s3990 = scalar_lea.vmem [#allocation3], 24
      %3991 = vst.msk [vmem:[%s3990 + $0x1] sm:$0xff] %vm279, %v3958
      %3992 = vst.msk [vmem:[%s3990 + $0x9] sm:$0xff] %vm279, %v3959
      %3993 = vst.msk [vmem:[%s3990 + $0x19] sm:$0xff] %vm279, %v3960
      %3994 = vst.msk [vmem:[%s3990 + $0x21] sm:$0xff] %vm279, %v3961
      %3995 = vst.msk [vmem:[%s3990 + $0x31] sm:$0xff] %vm279, %v3962
      %3996 = vst.msk [vmem:[%s3990 + $0x39] sm:$0xff] %vm279, %v3963
      %3997 = vst.msk [vmem:[%s3990 + $0x49] sm:$0xff] %vm279, %v3964
      %3998 = vst.msk [vmem:[%s3990 + $0x51] sm:$0xff] %vm279, %v3965
      %3999 = vst.msk [vmem:[%s3990 + $0x61] sm:$0xff] %vm279, %v3966
      %4000 = vst.msk [vmem:[%s3990 + $0x69] sm:$0xff] %vm279, %v3967
      %4001 = vst.msk [vmem:[%s3990 + $0x79] sm:$0xff] %vm279, %v3968
      %4002 = vst.msk [vmem:[%s3990 + $0x81] sm:$0xff] %vm279, %v3969
      %4003 = vst.msk [vmem:[%s3990 + $0x91] sm:$0xff] %vm279, %v3970
      %4004 = vst.msk [vmem:[%s3990 + $0x99] sm:$0xff] %vm279, %v3971
      %4005 = vst.msk [vmem:[%s3990 + $0xa9] sm:$0xff] %vm279, %v3972
      %4006 = vst.msk [vmem:[%s3990 + $0xb1] sm:$0xff] %vm279, %v3973
      %4007 = vst.msk [vmem:[%s3990 + $0xc1] sm:$0xff] %vm279, %v3974
      %4008 = vst.msk [vmem:[%s3990 + $0xc9] sm:$0xff] %vm279, %v3975
      %4009 = vst.msk [vmem:[%s3990 + $0xd9] sm:$0xff] %vm279, %v3976
      %4010 = vst.msk [vmem:[%s3990 + $0xe1] sm:$0xff] %vm279, %v3977
      %4011 = vst.msk [vmem:[%s3990 + $0xf1] sm:$0xff] %vm279, %v3978
      %4012 = vst.msk [vmem:[%s3990 + $0xf9] sm:$0xff] %vm279, %v3979
      %4013 = vst.msk [vmem:[%s3990 + $0x109] sm:$0xff] %vm279, %v3980
      %4014 = vst.msk [vmem:[%s3990 + $0x111] sm:$0xff] %vm279, %v3981
      %4015 = vst.msk [vmem:[%s3990 + $0x121] sm:$0xff] %vm279, %v3982
      %4016 = vst.msk [vmem:[%s3990 + $0x129] sm:$0xff] %vm279, %v3983
      %4017 = vst.msk [vmem:[%s3990 + $0x139] sm:$0xff] %vm279, %v3984
      %4018 = vst.msk [vmem:[%s3990 + $0x141] sm:$0xff] %vm279, %v3985
      %4019 = vst.msk [vmem:[%s3990 + $0x151] sm:$0xff] %vm279, %v3986
      %4020 = vst.msk [vmem:[%s3990 + $0x159] sm:$0xff] %vm279, %v3987
      %4021 = vst.msk [vmem:[%s3990 + $0x169] sm:$0xff] %vm279, %v3988
      %4022 = vst.msk [vmem:[%s3990 + $0x171] sm:$0xff] %vm279, %v3989
      %v4023 = vld [vmem:[#allocation3] sm:$0xff]
      %v4024 = vld [vmem:[#allocation3 + $0x8] sm:$0xff]
      %v4025 = vld [vmem:[#allocation3 + $0x18] sm:$0xff]
      %v4026 = vld [vmem:[#allocation3 + $0x20] sm:$0xff]
      %v4027 = vld [vmem:[#allocation3 + $0x30] sm:$0xff]
      %v4028 = vld [vmem:[#allocation3 + $0x38] sm:$0xff]
      %v4029 = vld [vmem:[#allocation3 + $0x48] sm:$0xff]
      %v4030 = vld [vmem:[#allocation3 + $0x50] sm:$0xff]
      %v4031 = vld [vmem:[#allocation3 + $0x60] sm:$0xff]
      %v4032 = vld [vmem:[#allocation3 + $0x68] sm:$0xff]
      %v4033 = vld [vmem:[#allocation3 + $0x78] sm:$0xff]
      %v4034 = vld [vmem:[#allocation3 + $0x80] sm:$0xff]
      %v4035 = vld [vmem:[#allocation3 + $0x90] sm:$0xff]
      %v4036 = vld [vmem:[#allocation3 + $0x98] sm:$0xff]
      %v4037 = vld [vmem:[#allocation3 + $0xa8] sm:$0xff]
      %v4038 = vld [vmem:[#allocation3 + $0xb0] sm:$0xff]
      %v4039 = vld [vmem:[#allocation3 + $0xc0] sm:$0xff]
      %v4040 = vld [vmem:[#allocation3 + $0xc8] sm:$0xff]
      %v4041 = vld [vmem:[#allocation3 + $0xd8] sm:$0xff]
      %v4042 = vld [vmem:[#allocation3 + $0xe0] sm:$0xff]
      %v4043 = vld [vmem:[#allocation3 + $0xf0] sm:$0xff]
      %v4044 = vld [vmem:[#allocation3 + $0xf8] sm:$0xff]
      %v4045 = vld [vmem:[#allocation3 + $0x108] sm:$0xff]
      %v4046 = vld [vmem:[#allocation3 + $0x110] sm:$0xff]
      %v4047 = vld [vmem:[#allocation3 + $0x120] sm:$0xff]
      %v4048 = vld [vmem:[#allocation3 + $0x128] sm:$0xff]
      %v4049 = vld [vmem:[#allocation3 + $0x138] sm:$0xff]
      %v4050 = vld [vmem:[#allocation3 + $0x140] sm:$0xff]
      %v4051 = vld [vmem:[#allocation3 + $0x150] sm:$0xff]
      %v4052 = vld [vmem:[#allocation3 + $0x158] sm:$0xff]
      %v4053 = vld [vmem:[#allocation3 + $0x168] sm:$0xff]
      %v4054 = vld [vmem:[#allocation3 + $0x170] sm:$0xff]
      %v4055 = vld [vmem:[%s4] sm:$0xf]
      %v4056 = vld [vmem:[#allocation3 + $0x1] sm:$0xff]
      %v4057 = vld [vmem:[#allocation3 + $0x9] sm:$0xff]
      %v4058 = vld [vmem:[#allocation3 + $0x19] sm:$0xff]
      %v4059 = vld [vmem:[#allocation3 + $0x21] sm:$0xff]
      %v4060 = vld [vmem:[#allocation3 + $0x31] sm:$0xff]
      %v4061 = vld [vmem:[#allocation3 + $0x39] sm:$0xff]
      %v4062 = vld [vmem:[#allocation3 + $0x49] sm:$0xff]
      %v4063 = vld [vmem:[#allocation3 + $0x51] sm:$0xff]
      %v4064 = vld [vmem:[#allocation3 + $0x61] sm:$0xff]
      %v4065 = vld [vmem:[#allocation3 + $0x69] sm:$0xff]
      %v4066 = vld [vmem:[#allocation3 + $0x79] sm:$0xff]
      %v4067 = vld [vmem:[#allocation3 + $0x81] sm:$0xff]
      %v4068 = vld [vmem:[#allocation3 + $0x91] sm:$0xff]
      %v4069 = vld [vmem:[#allocation3 + $0x99] sm:$0xff]
      %v4070 = vld [vmem:[#allocation3 + $0xa9] sm:$0xff]
      %v4071 = vld [vmem:[#allocation3 + $0xb1] sm:$0xff]
      %v4072 = vld [vmem:[#allocation3 + $0xc1] sm:$0xff]
      %v4073 = vld [vmem:[#allocation3 + $0xc9] sm:$0xff]
      %v4074 = vld [vmem:[#allocation3 + $0xd9] sm:$0xff]
      %v4075 = vld [vmem:[#allocation3 + $0xe1] sm:$0xff]
      %v4076 = vld [vmem:[#allocation3 + $0xf1] sm:$0xff]
      %v4077 = vld [vmem:[#allocation3 + $0xf9] sm:$0xff]
      %v4078 = vld [vmem:[#allocation3 + $0x109] sm:$0xff]
      %v4079 = vld [vmem:[#allocation3 + $0x111] sm:$0xff]
      %v4080 = vld [vmem:[#allocation3 + $0x121] sm:$0xff]
      %v4081 = vld [vmem:[#allocation3 + $0x129] sm:$0xff]
      %v4082 = vld [vmem:[#allocation3 + $0x139] sm:$0xff]
      %v4083 = vld [vmem:[#allocation3 + $0x141] sm:$0xff]
      %v4084 = vld [vmem:[#allocation3 + $0x151] sm:$0xff]
      %v4085 = vld [vmem:[#allocation3 + $0x159] sm:$0xff]
      %v4086 = vld [vmem:[#allocation3 + $0x169] sm:$0xff]
      %v4087 = vld [vmem:[#allocation3 + $0x171] sm:$0xff]
      %s4088 = scalar_lea.vmem %s4, 4
      %v4089 = vld [vmem:[%s4088] sm:$0xf]
      %v4091 = vsel %vm279, %v4056, 0
      %v4094 = vsel %vm279, %v4057, 0
      %v4097 = vsel %vm279, %v4058, 0
      %v4100 = vsel %vm279, %v4059, 0
      %v4103 = vsel %vm279, %v4060, 0
      %v4106 = vsel %vm279, %v4061, 0
      %v4109 = vsel %vm279, %v4062, 0
      %v4112 = vsel %vm279, %v4063, 0
      %v4115 = vsel %vm279, %v4064, 0
      %v4118 = vsel %vm279, %v4065, 0
      %v4121 = vsel %vm279, %v4066, 0
      %v4124 = vsel %vm279, %v4067, 0
      %v4127 = vsel %vm279, %v4068, 0
      %v4130 = vsel %vm279, %v4069, 0
      %v4133 = vsel %vm279, %v4070, 0
      %v4136 = vsel %vm279, %v4071, 0
      %v4139 = vsel %vm279, %v4072, 0
      %v4142 = vsel %vm279, %v4073, 0
      %v4145 = vsel %vm279, %v4074, 0
      %v4148 = vsel %vm279, %v4075, 0
      %v4151 = vsel %vm279, %v4076, 0
      %v4154 = vsel %vm279, %v4077, 0
      %v4157 = vsel %vm279, %v4078, 0
      %v4160 = vsel %vm279, %v4079, 0
      %v4163 = vsel %vm279, %v4080, 0
      %v4166 = vsel %vm279, %v4081, 0
      %v4169 = vsel %vm279, %v4082, 0
      %v4172 = vsel %vm279, %v4083, 0
      %v4175 = vsel %vm279, %v4084, 0
      %v4178 = vsel %vm279, %v4085, 0
      %v4181 = vsel %vm279, %v4086, 0
      %v4184 = vsel %vm279, %v4087, 0
      %v4187 = vsel %vm596, %v4089, 0
      %4189 = vmatprep.subr.mxu0 0.0
      %4190 = vmatpush1.msra.mxu0 0.0
      %4191 = vmatprep.subr.mxu0 0.0
      %4192 = vmatpush1.msra.mxu0 0.0
      %4193 = vmatprep.subr.mxu0 0.0
      %4194 = vmatpush1.msra.mxu0 0.0
      %4195 = vmatprep.subr.mxu0 0.0
      %4196 = vmatpush1.msra.mxu0 0.0
      %4197 = vmatprep.subr.mxu0 0.0
      %4198 = vmatpush1.msra.mxu0 0.0
      %4199 = vmatprep.subr.mxu0 0.0
      %4200 = vmatpush1.msra.mxu0 0.0
      %4201 = vmatprep.subr.mxu0 0.0
      %4202 = vmatpush1.msra.mxu0 0.0
      %4203 = vmatprep.subr.mxu0 0.0
      %4204 = vmatpush1.msra.mxu0 0.0
      %4205 = vmatprep.subr.mxu0 0.0
      %4206 = vmatpush1.msra.mxu0 0.0
      %4207 = vmatprep.subr.mxu0 0.0
      %4208 = vmatpush1.msra.mxu0 0.0
      %4209 = vmatprep.subr.mxu0 0.0
      %4210 = vmatpush1.msra.mxu0 0.0
      %4211 = vmatprep.subr.mxu0 0.0
      %4212 = vmatpush1.msra.mxu0 0.0
      %4213 = vmatprep.subr.mxu0 0.0
      %4214 = vmatpush1.msra.mxu0 0.0
      %4215 = vmatprep.subr.mxu0 0.0
      %4216 = vmatpush1.msra.mxu0 0.0
      %4217 = vmatprep.subr.mxu0 0.0
      %4218 = vmatpush1.msra.mxu0 0.0
      %4219 = vmatprep.subr.mxu0 0.0
      %4220 = vmatpush1.msra.mxu0 %v4187
      %4221 = vmatprep.subr.mxu0 0.0
      %4222 = vmatpush2.msra.mxu0 0.0
      %4223 = vmatprep.subr.mxu0 0.0
      %4224 = vmatpush2.msra.mxu0 0.0
      %4225 = vmatprep.subr.mxu0 0.0
      %4226 = vmatpush2.msra.mxu0 0.0
      %4227 = vmatprep.subr.mxu0 0.0
      %4228 = vmatpush2.msra.mxu0 0.0
      %4229 = vmatprep.subr.mxu0 0.0
      %4230 = vmatpush2.msra.mxu0 0.0
      %4231 = vmatprep.subr.mxu0 0.0
      %4232 = vmatpush2.msra.mxu0 0.0
      %4233 = vmatprep.subr.mxu0 0.0
      %4234 = vmatpush2.msra.mxu0 0.0
      %4235 = vmatprep.subr.mxu0 0.0
      %4236 = vmatpush2.msra.mxu0 0.0
      %4237 = vmatprep.subr.mxu0 0.0
      %4238 = vmatpush2.msra.mxu0 0.0
      %4239 = vmatprep.subr.mxu0 0.0
      %4240 = vmatpush2.msra.mxu0 0.0
      %4241 = vmatprep.subr.mxu0 0.0
      %4242 = vmatpush2.msra.mxu0 0.0
      %4243 = vmatprep.subr.mxu0 0.0
      %4244 = vmatpush2.msra.mxu0 0.0
      %4245 = vmatprep.subr.mxu0 0.0
      %4246 = vmatpush2.msra.mxu0 0.0
      %4247 = vmatprep.subr.mxu0 0.0
      %4248 = vmatpush2.msra.mxu0 0.0
      %4249 = vmatprep.subr.mxu0 0.0
      %4250 = vmatpush2.msra.mxu0 0.0
      %4251 = vmatprep.subr.mxu0 0.0
      %4252 = vmatpush2.msra.mxu0 0.0
      %4253 = vmatprep.mubr.f32.mxu0 0.0
      %4254 = vmatmul.mubr.f32.gmra.mxu0 %v4091
      %v4255 = vpop.f32.mrf.mxu0
      %v4256 = vadd.f32 0.0, %v4255
      %v4257 = vpop.f32.mrf.mxu0
      %4258 = vmatprep.mubr.f32.mxu0 0.0
      %4259 = vmatmul.mubr.f32.gmra.mxu0 %v4094
      %v4260 = vpop.f32.mrf.mxu0
      %v4261 = vadd.f32 0.0, %v4260
      %v4262 = vpop.f32.mrf.mxu0
      %4263 = vmatprep.mubr.f32.mxu0 0.0
      %4264 = vmatmul.mubr.f32.gmra.mxu0 %v4097
      %v4265 = vpop.f32.mrf.mxu0
      %v4266 = vadd.f32 0.0, %v4265
      %v4267 = vpop.f32.mrf.mxu0
      %4268 = vmatprep.mubr.f32.mxu0 0.0
      %4269 = vmatmul.mubr.f32.gmra.mxu0 %v4100
      %v4270 = vpop.f32.mrf.mxu0
      %v4271 = vadd.f32 0.0, %v4270
      %v4272 = vpop.f32.mrf.mxu0
      %4273 = vmatprep.mubr.f32.mxu0 0.0
      %4274 = vmatmul.mubr.f32.gmra.mxu0 %v4103
      %v4275 = vpop.f32.mrf.mxu0
      %v4276 = vadd.f32 0.0, %v4275
      %v4277 = vpop.f32.mrf.mxu0
      %4278 = vmatprep.mubr.f32.mxu0 0.0
      %4279 = vmatmul.mubr.f32.gmra.mxu0 %v4106
      %v4280 = vpop.f32.mrf.mxu0
      %v4281 = vadd.f32 0.0, %v4280
      %v4282 = vpop.f32.mrf.mxu0
      %4283 = vmatprep.mubr.f32.mxu0 0.0
      %4284 = vmatmul.mubr.f32.gmra.mxu0 %v4109
      %v4285 = vpop.f32.mrf.mxu0
      %v4286 = vadd.f32 0.0, %v4285
      %v4287 = vpop.f32.mrf.mxu0
      %4288 = vmatprep.mubr.f32.mxu0 0.0
      %4289 = vmatmul.mubr.f32.gmra.mxu0 %v4112
      %v4290 = vpop.f32.mrf.mxu0
      %v4291 = vadd.f32 0.0, %v4290
      %v4292 = vpop.f32.mrf.mxu0
      %4293 = vmatprep.mubr.f32.mxu0 0.0
      %4294 = vmatmul.mubr.f32.gmra.mxu0 %v4115
      %v4295 = vpop.f32.mrf.mxu0
      %v4296 = vadd.f32 0.0, %v4295
      %v4297 = vpop.f32.mrf.mxu0
      %4298 = vmatprep.mubr.f32.mxu0 0.0
      %4299 = vmatmul.mubr.f32.gmra.mxu0 %v4118
      %v4300 = vpop.f32.mrf.mxu0
      %v4301 = vadd.f32 0.0, %v4300
      %v4302 = vpop.f32.mrf.mxu0
      %4303 = vmatprep.mubr.f32.mxu0 0.0
      %4304 = vmatmul.mubr.f32.gmra.mxu0 %v4121
      %v4305 = vpop.f32.mrf.mxu0
      %v4306 = vadd.f32 0.0, %v4305
      %v4307 = vpop.f32.mrf.mxu0
      %4308 = vmatprep.mubr.f32.mxu0 0.0
      %4309 = vmatmul.mubr.f32.gmra.mxu0 %v4124
      %v4310 = vpop.f32.mrf.mxu0
      %v4311 = vadd.f32 0.0, %v4310
      %v4312 = vpop.f32.mrf.mxu0
      %4313 = vmatprep.mubr.f32.mxu0 0.0
      %4314 = vmatmul.mubr.f32.gmra.mxu0 %v4127
      %v4315 = vpop.f32.mrf.mxu0
      %v4316 = vadd.f32 0.0, %v4315
      %v4317 = vpop.f32.mrf.mxu0
      %4318 = vmatprep.mubr.f32.mxu0 0.0
      %4319 = vmatmul.mubr.f32.gmra.mxu0 %v4130
      %v4320 = vpop.f32.mrf.mxu0
      %v4321 = vadd.f32 0.0, %v4320
      %v4322 = vpop.f32.mrf.mxu0
      %4323 = vmatprep.mubr.f32.mxu0 0.0
      %4324 = vmatmul.mubr.f32.gmra.mxu0 %v4133
      %v4325 = vpop.f32.mrf.mxu0
      %v4326 = vadd.f32 0.0, %v4325
      %v4327 = vpop.f32.mrf.mxu0
      %4328 = vmatprep.mubr.f32.mxu0 0.0
      %4329 = vmatmul.mubr.f32.gmra.mxu0 %v4136
      %v4330 = vpop.f32.mrf.mxu0
      %v4331 = vadd.f32 0.0, %v4330
      %v4332 = vpop.f32.mrf.mxu0
      %4333 = vmatprep.mubr.f32.mxu0 0.0
      %4334 = vmatmul.mubr.f32.gmra.mxu0 %v4139
      %v4335 = vpop.f32.mrf.mxu0
      %v4336 = vadd.f32 0.0, %v4335
      %v4337 = vpop.f32.mrf.mxu0
      %4338 = vmatprep.mubr.f32.mxu0 0.0
      %4339 = vmatmul.mubr.f32.gmra.mxu0 %v4142
      %v4340 = vpop.f32.mrf.mxu0
      %v4341 = vadd.f32 0.0, %v4340
      %v4342 = vpop.f32.mrf.mxu0
      %4343 = vmatprep.mubr.f32.mxu0 0.0
      %4344 = vmatmul.mubr.f32.gmra.mxu0 %v4145
      %v4345 = vpop.f32.mrf.mxu0
      %v4346 = vadd.f32 0.0, %v4345
      %v4347 = vpop.f32.mrf.mxu0
      %4348 = vmatprep.mubr.f32.mxu0 0.0
      %4349 = vmatmul.mubr.f32.gmra.mxu0 %v4148
      %v4350 = vpop.f32.mrf.mxu0
      %v4351 = vadd.f32 0.0, %v4350
      %v4352 = vpop.f32.mrf.mxu0
      %4353 = vmatprep.mubr.f32.mxu0 0.0
      %4354 = vmatmul.mubr.f32.gmra.mxu0 %v4151
      %v4355 = vpop.f32.mrf.mxu0
      %v4356 = vadd.f32 0.0, %v4355
      %v4357 = vpop.f32.mrf.mxu0
      %4358 = vmatprep.mubr.f32.mxu0 0.0
      %4359 = vmatmul.mubr.f32.gmra.mxu0 %v4154
      %v4360 = vpop.f32.mrf.mxu0
      %v4361 = vadd.f32 0.0, %v4360
      %v4362 = vpop.f32.mrf.mxu0
      %4363 = vmatprep.mubr.f32.mxu0 0.0
      %4364 = vmatmul.mubr.f32.gmra.mxu0 %v4157
      %v4365 = vpop.f32.mrf.mxu0
      %v4366 = vadd.f32 0.0, %v4365
      %v4367 = vpop.f32.mrf.mxu0
      %4368 = vmatprep.mubr.f32.mxu0 0.0
      %4369 = vmatmul.mubr.f32.gmra.mxu0 %v4160
      %v4370 = vpop.f32.mrf.mxu0
      %v4371 = vadd.f32 0.0, %v4370
      %v4372 = vpop.f32.mrf.mxu0
      %4373 = vmatprep.mubr.f32.mxu0 0.0
      %4374 = vmatmul.mubr.f32.gmra.mxu0 %v4163
      %v4375 = vpop.f32.mrf.mxu0
      %v4376 = vadd.f32 0.0, %v4375
      %v4377 = vpop.f32.mrf.mxu0
      %4378 = vmatprep.mubr.f32.mxu0 0.0
      %4379 = vmatmul.mubr.f32.gmra.mxu0 %v4166
      %v4380 = vpop.f32.mrf.mxu0
      %v4381 = vadd.f32 0.0, %v4380
      %v4382 = vpop.f32.mrf.mxu0
      %4383 = vmatprep.mubr.f32.mxu0 0.0
      %4384 = vmatmul.mubr.f32.gmra.mxu0 %v4169
      %v4385 = vpop.f32.mrf.mxu0
      %v4386 = vadd.f32 0.0, %v4385
      %v4387 = vpop.f32.mrf.mxu0
      %4388 = vmatprep.mubr.f32.mxu0 0.0
      %4389 = vmatmul.mubr.f32.gmra.mxu0 %v4172
      %v4390 = vpop.f32.mrf.mxu0
      %v4391 = vadd.f32 0.0, %v4390
      %v4392 = vpop.f32.mrf.mxu0
      %4393 = vmatprep.mubr.f32.mxu0 0.0
      %4394 = vmatmul.mubr.f32.gmra.mxu0 %v4175
      %v4395 = vpop.f32.mrf.mxu0
      %v4396 = vadd.f32 0.0, %v4395
      %v4397 = vpop.f32.mrf.mxu0
      %4398 = vmatprep.mubr.f32.mxu0 0.0
      %4399 = vmatmul.mubr.f32.gmra.mxu0 %v4178
      %v4400 = vpop.f32.mrf.mxu0
      %v4401 = vadd.f32 0.0, %v4400
      %v4402 = vpop.f32.mrf.mxu0
      %4403 = vmatprep.mubr.f32.mxu0 0.0
      %4404 = vmatmul.mubr.f32.gmra.mxu0 %v4181
      %v4405 = vpop.f32.mrf.mxu0
      %v4406 = vadd.f32 0.0, %v4405
      %v4407 = vpop.f32.mrf.mxu0
      %4408 = vmatprep.mubr.f32.mxu0 0.0
      %4409 = vmatmul.mubr.f32.gmra.mxu0 %v4184
      %v4410 = vpop.f32.mrf.mxu0
      %v4411 = vadd.f32 0.0, %v4410
      %v4412 = vpop.f32.mrf.mxu0
      %4413 = vdwg.mxu0
      %v4415 = vsel %vm279, %v4023, 0
      %v4418 = vsel %vm279, %v4024, 0
      %v4421 = vsel %vm279, %v4025, 0
      %v4424 = vsel %vm279, %v4026, 0
      %v4427 = vsel %vm279, %v4027, 0
      %v4430 = vsel %vm279, %v4028, 0
      %v4433 = vsel %vm279, %v4029, 0
      %v4436 = vsel %vm279, %v4030, 0
      %v4439 = vsel %vm279, %v4031, 0
      %v4442 = vsel %vm279, %v4032, 0
      %v4445 = vsel %vm279, %v4033, 0
      %v4448 = vsel %vm279, %v4034, 0
      %v4451 = vsel %vm279, %v4035, 0
      %v4454 = vsel %vm279, %v4036, 0
      %v4457 = vsel %vm279, %v4037, 0
      %v4460 = vsel %vm279, %v4038, 0
      %v4463 = vsel %vm279, %v4039, 0
      %v4466 = vsel %vm279, %v4040, 0
      %v4469 = vsel %vm279, %v4041, 0
      %v4472 = vsel %vm279, %v4042, 0
      %v4475 = vsel %vm279, %v4043, 0
      %v4478 = vsel %vm279, %v4044, 0
      %v4481 = vsel %vm279, %v4045, 0
      %v4484 = vsel %vm279, %v4046, 0
      %v4487 = vsel %vm279, %v4047, 0
      %v4490 = vsel %vm279, %v4048, 0
      %v4493 = vsel %vm279, %v4049, 0
      %v4496 = vsel %vm279, %v4050, 0
      %v4499 = vsel %vm279, %v4051, 0
      %v4502 = vsel %vm279, %v4052, 0
      %v4505 = vsel %vm279, %v4053, 0
      %v4508 = vsel %vm279, %v4054, 0
      %v4511 = vsel %vm596, %v4055, 0
      %4513 = vmatprep.subr.mxu0 0.0
      %4514 = vmatpush1.msra.mxu0 0.0
      %4515 = vmatprep.subr.mxu0 0.0
      %4516 = vmatpush1.msra.mxu0 0.0
      %4517 = vmatprep.subr.mxu0 0.0
      %4518 = vmatpush1.msra.mxu0 0.0
      %4519 = vmatprep.subr.mxu0 0.0
      %4520 = vmatpush1.msra.mxu0 0.0
      %4521 = vmatprep.subr.mxu0 0.0
      %4522 = vmatpush1.msra.mxu0 0.0
      %4523 = vmatprep.subr.mxu0 0.0
      %4524 = vmatpush1.msra.mxu0 0.0
      %4525 = vmatprep.subr.mxu0 0.0
      %4526 = vmatpush1.msra.mxu0 0.0
      %4527 = vmatprep.subr.mxu0 0.0
      %4528 = vmatpush1.msra.mxu0 0.0
      %4529 = vmatprep.subr.mxu0 0.0
      %4530 = vmatpush1.msra.mxu0 0.0
      %4531 = vmatprep.subr.mxu0 0.0
      %4532 = vmatpush1.msra.mxu0 0.0
      %4533 = vmatprep.subr.mxu0 0.0
      %4534 = vmatpush1.msra.mxu0 0.0
      %4535 = vmatprep.subr.mxu0 0.0
      %4536 = vmatpush1.msra.mxu0 0.0
      %4537 = vmatprep.subr.mxu0 0.0
      %4538 = vmatpush1.msra.mxu0 0.0
      %4539 = vmatprep.subr.mxu0 0.0
      %4540 = vmatpush1.msra.mxu0 0.0
      %4541 = vmatprep.subr.mxu0 0.0
      %4542 = vmatpush1.msra.mxu0 0.0
      %4543 = vmatprep.subr.mxu0 0.0
      %4544 = vmatpush1.msra.mxu0 %v4511
      %4545 = vmatprep.subr.mxu0 0.0
      %4546 = vmatpush2.msra.mxu0 0.0
      %4547 = vmatprep.subr.mxu0 0.0
      %4548 = vmatpush2.msra.mxu0 0.0
      %4549 = vmatprep.subr.mxu0 0.0
      %4550 = vmatpush2.msra.mxu0 0.0
      %4551 = vmatprep.subr.mxu0 0.0
      %4552 = vmatpush2.msra.mxu0 0.0
      %4553 = vmatprep.subr.mxu0 0.0
      %4554 = vmatpush2.msra.mxu0 0.0
      %4555 = vmatprep.subr.mxu0 0.0
      %4556 = vmatpush2.msra.mxu0 0.0
      %4557 = vmatprep.subr.mxu0 0.0
      %4558 = vmatpush2.msra.mxu0 0.0
      %4559 = vmatprep.subr.mxu0 0.0
      %4560 = vmatpush2.msra.mxu0 0.0
      %4561 = vmatprep.subr.mxu0 0.0
      %4562 = vmatpush2.msra.mxu0 0.0
      %4563 = vmatprep.subr.mxu0 0.0
      %4564 = vmatpush2.msra.mxu0 0.0
      %4565 = vmatprep.subr.mxu0 0.0
      %4566 = vmatpush2.msra.mxu0 0.0
      %4567 = vmatprep.subr.mxu0 0.0
      %4568 = vmatpush2.msra.mxu0 0.0
      %4569 = vmatprep.subr.mxu0 0.0
      %4570 = vmatpush2.msra.mxu0 0.0
      %4571 = vmatprep.subr.mxu0 0.0
      %4572 = vmatpush2.msra.mxu0 0.0
      %4573 = vmatprep.subr.mxu0 0.0
      %4574 = vmatpush2.msra.mxu0 0.0
      %4575 = vmatprep.subr.mxu0 0.0
      %4576 = vmatpush2.msra.mxu0 0.0
      %4577 = vmatprep.mubr.f32.mxu0 0.0
      %4578 = vmatmul.mubr.f32.gmra.mxu0 %v4415
      %v4579 = vpop.f32.mrf.mxu0
      %v4580 = vadd.f32 %v4256, %v4579
      %v4581 = vpop.f32.mrf.mxu0
      %4582 = vmatprep.mubr.f32.mxu0 0.0
      %4583 = vmatmul.mubr.f32.gmra.mxu0 %v4418
      %v4584 = vpop.f32.mrf.mxu0
      %v4585 = vadd.f32 %v4261, %v4584
      %v4586 = vpop.f32.mrf.mxu0
      %4587 = vmatprep.mubr.f32.mxu0 0.0
      %4588 = vmatmul.mubr.f32.gmra.mxu0 %v4421
      %v4589 = vpop.f32.mrf.mxu0
      %v4590 = vadd.f32 %v4266, %v4589
      %v4591 = vpop.f32.mrf.mxu0
      %4592 = vmatprep.mubr.f32.mxu0 0.0
      %4593 = vmatmul.mubr.f32.gmra.mxu0 %v4424
      %v4594 = vpop.f32.mrf.mxu0
      %v4595 = vadd.f32 %v4271, %v4594
      %v4596 = vpop.f32.mrf.mxu0
      %4597 = vmatprep.mubr.f32.mxu0 0.0
      %4598 = vmatmul.mubr.f32.gmra.mxu0 %v4427
      %v4599 = vpop.f32.mrf.mxu0
      %v4600 = vadd.f32 %v4276, %v4599
      %v4601 = vpop.f32.mrf.mxu0
      %4602 = vmatprep.mubr.f32.mxu0 0.0
      %4603 = vmatmul.mubr.f32.gmra.mxu0 %v4430
      %v4604 = vpop.f32.mrf.mxu0
      %v4605 = vadd.f32 %v4281, %v4604
      %v4606 = vpop.f32.mrf.mxu0
      %4607 = vmatprep.mubr.f32.mxu0 0.0
      %4608 = vmatmul.mubr.f32.gmra.mxu0 %v4433
      %v4609 = vpop.f32.mrf.mxu0
      %v4610 = vadd.f32 %v4286, %v4609
      %v4611 = vpop.f32.mrf.mxu0
      %4612 = vmatprep.mubr.f32.mxu0 0.0
      %4613 = vmatmul.mubr.f32.gmra.mxu0 %v4436
      %v4614 = vpop.f32.mrf.mxu0
      %v4615 = vadd.f32 %v4291, %v4614
      %v4616 = vpop.f32.mrf.mxu0
      %4617 = vmatprep.mubr.f32.mxu0 0.0
      %4618 = vmatmul.mubr.f32.gmra.mxu0 %v4439
      %v4619 = vpop.f32.mrf.mxu0
      %v4620 = vadd.f32 %v4296, %v4619
      %v4621 = vpop.f32.mrf.mxu0
      %4622 = vmatprep.mubr.f32.mxu0 0.0
      %4623 = vmatmul.mubr.f32.gmra.mxu0 %v4442
      %v4624 = vpop.f32.mrf.mxu0
      %v4625 = vadd.f32 %v4301, %v4624
      %v4626 = vpop.f32.mrf.mxu0
      %4627 = vmatprep.mubr.f32.mxu0 0.0
      %4628 = vmatmul.mubr.f32.gmra.mxu0 %v4445
      %v4629 = vpop.f32.mrf.mxu0
      %v4630 = vadd.f32 %v4306, %v4629
      %v4631 = vpop.f32.mrf.mxu0
      %4632 = vmatprep.mubr.f32.mxu0 0.0
      %4633 = vmatmul.mubr.f32.gmra.mxu0 %v4448
      %v4634 = vpop.f32.mrf.mxu0
      %v4635 = vadd.f32 %v4311, %v4634
      %v4636 = vpop.f32.mrf.mxu0
      %4637 = vmatprep.mubr.f32.mxu0 0.0
      %4638 = vmatmul.mubr.f32.gmra.mxu0 %v4451
      %v4639 = vpop.f32.mrf.mxu0
      %v4640 = vadd.f32 %v4316, %v4639
      %v4641 = vpop.f32.mrf.mxu0
      %4642 = vmatprep.mubr.f32.mxu0 0.0
      %4643 = vmatmul.mubr.f32.gmra.mxu0 %v4454
      %v4644 = vpop.f32.mrf.mxu0
      %v4645 = vadd.f32 %v4321, %v4644
      %v4646 = vpop.f32.mrf.mxu0
      %4647 = vmatprep.mubr.f32.mxu0 0.0
      %4648 = vmatmul.mubr.f32.gmra.mxu0 %v4457
      %v4649 = vpop.f32.mrf.mxu0
      %v4650 = vadd.f32 %v4326, %v4649
      %v4651 = vpop.f32.mrf.mxu0
      %4652 = vmatprep.mubr.f32.mxu0 0.0
      %4653 = vmatmul.mubr.f32.gmra.mxu0 %v4460
      %v4654 = vpop.f32.mrf.mxu0
      %v4655 = vadd.f32 %v4331, %v4654
      %v4656 = vpop.f32.mrf.mxu0
      %4657 = vmatprep.mubr.f32.mxu0 0.0
      %4658 = vmatmul.mubr.f32.gmra.mxu0 %v4463
      %v4659 = vpop.f32.mrf.mxu0
      %v4660 = vadd.f32 %v4336, %v4659
      %v4661 = vpop.f32.mrf.mxu0
      %4662 = vmatprep.mubr.f32.mxu0 0.0
      %4663 = vmatmul.mubr.f32.gmra.mxu0 %v4466
      %v4664 = vpop.f32.mrf.mxu0
      %v4665 = vadd.f32 %v4341, %v4664
      %v4666 = vpop.f32.mrf.mxu0
      %4667 = vmatprep.mubr.f32.mxu0 0.0
      %4668 = vmatmul.mubr.f32.gmra.mxu0 %v4469
      %v4669 = vpop.f32.mrf.mxu0
      %v4670 = vadd.f32 %v4346, %v4669
      %v4671 = vpop.f32.mrf.mxu0
      %4672 = vmatprep.mubr.f32.mxu0 0.0
      %4673 = vmatmul.mubr.f32.gmra.mxu0 %v4472
      %v4674 = vpop.f32.mrf.mxu0
      %v4675 = vadd.f32 %v4351, %v4674
      %v4676 = vpop.f32.mrf.mxu0
      %4677 = vmatprep.mubr.f32.mxu0 0.0
      %4678 = vmatmul.mubr.f32.gmra.mxu0 %v4475
      %v4679 = vpop.f32.mrf.mxu0
      %v4680 = vadd.f32 %v4356, %v4679
      %v4681 = vpop.f32.mrf.mxu0
      %4682 = vmatprep.mubr.f32.mxu0 0.0
      %4683 = vmatmul.mubr.f32.gmra.mxu0 %v4478
      %v4684 = vpop.f32.mrf.mxu0
      %v4685 = vadd.f32 %v4361, %v4684
      %v4686 = vpop.f32.mrf.mxu0
      %4687 = vmatprep.mubr.f32.mxu0 0.0
      %4688 = vmatmul.mubr.f32.gmra.mxu0 %v4481
      %v4689 = vpop.f32.mrf.mxu0
      %v4690 = vadd.f32 %v4366, %v4689
      %v4691 = vpop.f32.mrf.mxu0
      %4692 = vmatprep.mubr.f32.mxu0 0.0
      %4693 = vmatmul.mubr.f32.gmra.mxu0 %v4484
      %v4694 = vpop.f32.mrf.mxu0
      %v4695 = vadd.f32 %v4371, %v4694
      %v4696 = vpop.f32.mrf.mxu0
      %4697 = vmatprep.mubr.f32.mxu0 0.0
      %4698 = vmatmul.mubr.f32.gmra.mxu0 %v4487
      %v4699 = vpop.f32.mrf.mxu0
      %v4700 = vadd.f32 %v4376, %v4699
      %v4701 = vpop.f32.mrf.mxu0
      %4702 = vmatprep.mubr.f32.mxu0 0.0
      %4703 = vmatmul.mubr.f32.gmra.mxu0 %v4490
      %v4704 = vpop.f32.mrf.mxu0
      %v4705 = vadd.f32 %v4381, %v4704
      %v4706 = vpop.f32.mrf.mxu0
      %4707 = vmatprep.mubr.f32.mxu0 0.0
      %4708 = vmatmul.mubr.f32.gmra.mxu0 %v4493
      %v4709 = vpop.f32.mrf.mxu0
      %v4710 = vadd.f32 %v4386, %v4709
      %v4711 = vpop.f32.mrf.mxu0
      %4712 = vmatprep.mubr.f32.mxu0 0.0
      %4713 = vmatmul.mubr.f32.gmra.mxu0 %v4496
      %v4714 = vpop.f32.mrf.mxu0
      %v4715 = vadd.f32 %v4391, %v4714
      %v4716 = vpop.f32.mrf.mxu0
      %4717 = vmatprep.mubr.f32.mxu0 0.0
      %4718 = vmatmul.mubr.f32.gmra.mxu0 %v4499
      %v4719 = vpop.f32.mrf.mxu0
      %v4720 = vadd.f32 %v4396, %v4719
      %v4721 = vpop.f32.mrf.mxu0
      %4722 = vmatprep.mubr.f32.mxu0 0.0
      %4723 = vmatmul.mubr.f32.gmra.mxu0 %v4502
      %v4724 = vpop.f32.mrf.mxu0
      %v4725 = vadd.f32 %v4401, %v4724
      %v4726 = vpop.f32.mrf.mxu0
      %4727 = vmatprep.mubr.f32.mxu0 0.0
      %4728 = vmatmul.mubr.f32.gmra.mxu0 %v4505
      %v4729 = vpop.f32.mrf.mxu0
      %v4730 = vadd.f32 %v4406, %v4729
      %v4731 = vpop.f32.mrf.mxu0
      %4732 = vmatprep.mubr.f32.mxu0 0.0
      %4733 = vmatmul.mubr.f32.gmra.mxu0 %v4508
      %v4734 = vpop.f32.mrf.mxu0
      %v4735 = vadd.f32 %v4411, %v4734
      %v4736 = vpop.f32.mrf.mxu0
      %4737 = vdwg.mxu0
      %v4738 = vld [vmem:[#allocation3 + $0x2] sm:$0xff]
      %v4739 = vld [vmem:[#allocation3 + $0xa] sm:$0xff]
      %v4740 = vld [vmem:[#allocation3 + $0x1a] sm:$0xff]
      %v4741 = vld [vmem:[#allocation3 + $0x22] sm:$0xff]
      %v4742 = vld [vmem:[#allocation3 + $0x32] sm:$0xff]
      %v4743 = vld [vmem:[#allocation3 + $0x3a] sm:$0xff]
      %v4744 = vld [vmem:[#allocation3 + $0x4a] sm:$0xff]
      %v4745 = vld [vmem:[#allocation3 + $0x52] sm:$0xff]
      %v4746 = vld [vmem:[#allocation3 + $0x62] sm:$0xff]
      %v4747 = vld [vmem:[#allocation3 + $0x6a] sm:$0xff]
      %v4748 = vld [vmem:[#allocation3 + $0x7a] sm:$0xff]
      %v4749 = vld [vmem:[#allocation3 + $0x82] sm:$0xff]
      %v4750 = vld [vmem:[#allocation3 + $0x92] sm:$0xff]
      %v4751 = vld [vmem:[#allocation3 + $0x9a] sm:$0xff]
      %v4752 = vld [vmem:[#allocation3 + $0xaa] sm:$0xff]
      %v4753 = vld [vmem:[#allocation3 + $0xb2] sm:$0xff]
      %v4754 = vld [vmem:[#allocation3 + $0xc2] sm:$0xff]
      %v4755 = vld [vmem:[#allocation3 + $0xca] sm:$0xff]
      %v4756 = vld [vmem:[#allocation3 + $0xda] sm:$0xff]
      %v4757 = vld [vmem:[#allocation3 + $0xe2] sm:$0xff]
      %v4758 = vld [vmem:[#allocation3 + $0xf2] sm:$0xff]
      %v4759 = vld [vmem:[#allocation3 + $0xfa] sm:$0xff]
      %v4760 = vld [vmem:[#allocation3 + $0x10a] sm:$0xff]
      %v4761 = vld [vmem:[#allocation3 + $0x112] sm:$0xff]
      %v4762 = vld [vmem:[#allocation3 + $0x122] sm:$0xff]
      %v4763 = vld [vmem:[#allocation3 + $0x12a] sm:$0xff]
      %v4764 = vld [vmem:[#allocation3 + $0x13a] sm:$0xff]
      %v4765 = vld [vmem:[#allocation3 + $0x142] sm:$0xff]
      %v4766 = vld [vmem:[#allocation3 + $0x152] sm:$0xff]
      %v4767 = vld [vmem:[#allocation3 + $0x15a] sm:$0xff]
      %v4768 = vld [vmem:[#allocation3 + $0x16a] sm:$0xff]
      %v4769 = vld [vmem:[#allocation3 + $0x172] sm:$0xff]
      %s4770 = scalar_lea.vmem %s4, 8
      %v4771 = vld [vmem:[%s4770] sm:$0xf]
      %v4773 = vsel %vm279, %v4738, 0
      %v4776 = vsel %vm279, %v4739, 0
      %v4779 = vsel %vm279, %v4740, 0
      %v4782 = vsel %vm279, %v4741, 0
      %v4785 = vsel %vm279, %v4742, 0
      %v4788 = vsel %vm279, %v4743, 0
      %v4791 = vsel %vm279, %v4744, 0
      %v4794 = vsel %vm279, %v4745, 0
      %v4797 = vsel %vm279, %v4746, 0
      %v4800 = vsel %vm279, %v4747, 0
      %v4803 = vsel %vm279, %v4748, 0
      %v4806 = vsel %vm279, %v4749, 0
      %v4809 = vsel %vm279, %v4750, 0
      %v4812 = vsel %vm279, %v4751, 0
      %v4815 = vsel %vm279, %v4752, 0
      %v4818 = vsel %vm279, %v4753, 0
      %v4821 = vsel %vm279, %v4754, 0
      %v4824 = vsel %vm279, %v4755, 0
      %v4827 = vsel %vm279, %v4756, 0
      %v4830 = vsel %vm279, %v4757, 0
      %v4833 = vsel %vm279, %v4758, 0
      %v4836 = vsel %vm279, %v4759, 0
      %v4839 = vsel %vm279, %v4760, 0
      %v4842 = vsel %vm279, %v4761, 0
      %v4845 = vsel %vm279, %v4762, 0
      %v4848 = vsel %vm279, %v4763, 0
      %v4851 = vsel %vm279, %v4764, 0
      %v4854 = vsel %vm279, %v4765, 0
      %v4857 = vsel %vm279, %v4766, 0
      %v4860 = vsel %vm279, %v4767, 0
      %v4863 = vsel %vm279, %v4768, 0
      %v4866 = vsel %vm279, %v4769, 0
      %v4869 = vsel %vm596, %v4771, 0
      %4871 = vmatprep.subr.mxu0 0.0
      %4872 = vmatpush1.msra.mxu0 0.0
      %4873 = vmatprep.subr.mxu0 0.0
      %4874 = vmatpush1.msra.mxu0 0.0
      %4875 = vmatprep.subr.mxu0 0.0
      %4876 = vmatpush1.msra.mxu0 0.0
      %4877 = vmatprep.subr.mxu0 0.0
      %4878 = vmatpush1.msra.mxu0 0.0
      %4879 = vmatprep.subr.mxu0 0.0
      %4880 = vmatpush1.msra.mxu0 0.0
      %4881 = vmatprep.subr.mxu0 0.0
      %4882 = vmatpush1.msra.mxu0 0.0
      %4883 = vmatprep.subr.mxu0 0.0
      %4884 = vmatpush1.msra.mxu0 0.0
      %4885 = vmatprep.subr.mxu0 0.0
      %4886 = vmatpush1.msra.mxu0 0.0
      %4887 = vmatprep.subr.mxu0 0.0
      %4888 = vmatpush1.msra.mxu0 0.0
      %4889 = vmatprep.subr.mxu0 0.0
      %4890 = vmatpush1.msra.mxu0 0.0
      %4891 = vmatprep.subr.mxu0 0.0
      %4892 = vmatpush1.msra.mxu0 0.0
      %4893 = vmatprep.subr.mxu0 0.0
      %4894 = vmatpush1.msra.mxu0 0.0
      %4895 = vmatprep.subr.mxu0 0.0
      %4896 = vmatpush1.msra.mxu0 0.0
      %4897 = vmatprep.subr.mxu0 0.0
      %4898 = vmatpush1.msra.mxu0 0.0
      %4899 = vmatprep.subr.mxu0 0.0
      %4900 = vmatpush1.msra.mxu0 0.0
      %4901 = vmatprep.subr.mxu0 0.0
      %4902 = vmatpush1.msra.mxu0 %v4869
      %4903 = vmatprep.subr.mxu0 0.0
      %4904 = vmatpush2.msra.mxu0 0.0
      %4905 = vmatprep.subr.mxu0 0.0
      %4906 = vmatpush2.msra.mxu0 0.0
      %4907 = vmatprep.subr.mxu0 0.0
      %4908 = vmatpush2.msra.mxu0 0.0
      %4909 = vmatprep.subr.mxu0 0.0
      %4910 = vmatpush2.msra.mxu0 0.0
      %4911 = vmatprep.subr.mxu0 0.0
      %4912 = vmatpush2.msra.mxu0 0.0
      %4913 = vmatprep.subr.mxu0 0.0
      %4914 = vmatpush2.msra.mxu0 0.0
      %4915 = vmatprep.subr.mxu0 0.0
      %4916 = vmatpush2.msra.mxu0 0.0
      %4917 = vmatprep.subr.mxu0 0.0
      %4918 = vmatpush2.msra.mxu0 0.0
      %4919 = vmatprep.subr.mxu0 0.0
      %4920 = vmatpush2.msra.mxu0 0.0
      %4921 = vmatprep.subr.mxu0 0.0
      %4922 = vmatpush2.msra.mxu0 0.0
      %4923 = vmatprep.subr.mxu0 0.0
      %4924 = vmatpush2.msra.mxu0 0.0
      %4925 = vmatprep.subr.mxu0 0.0
      %4926 = vmatpush2.msra.mxu0 0.0
      %4927 = vmatprep.subr.mxu0 0.0
      %4928 = vmatpush2.msra.mxu0 0.0
      %4929 = vmatprep.subr.mxu0 0.0
      %4930 = vmatpush2.msra.mxu0 0.0
      %4931 = vmatprep.subr.mxu0 0.0
      %4932 = vmatpush2.msra.mxu0 0.0
      %4933 = vmatprep.subr.mxu0 0.0
      %4934 = vmatpush2.msra.mxu0 0.0
      %4935 = vmatprep.mubr.f32.mxu0 0.0
      %4936 = vmatmul.mubr.f32.gmra.mxu0 %v4773
      %v4937 = vpop.f32.mrf.mxu0
      %v4938 = vadd.f32 0.0, %v4937
      %v4939 = vpop.f32.mrf.mxu0
      %4940 = vmatprep.mubr.f32.mxu0 0.0
      %4941 = vmatmul.mubr.f32.gmra.mxu0 %v4776
      %v4942 = vpop.f32.mrf.mxu0
      %v4943 = vadd.f32 0.0, %v4942
      %v4944 = vpop.f32.mrf.mxu0
      %4945 = vmatprep.mubr.f32.mxu0 0.0
      %4946 = vmatmul.mubr.f32.gmra.mxu0 %v4779
      %v4947 = vpop.f32.mrf.mxu0
      %v4948 = vadd.f32 0.0, %v4947
      %v4949 = vpop.f32.mrf.mxu0
      %4950 = vmatprep.mubr.f32.mxu0 0.0
      %4951 = vmatmul.mubr.f32.gmra.mxu0 %v4782
      %v4952 = vpop.f32.mrf.mxu0
      %v4953 = vadd.f32 0.0, %v4952
      %v4954 = vpop.f32.mrf.mxu0
      %4955 = vmatprep.mubr.f32.mxu0 0.0
      %4956 = vmatmul.mubr.f32.gmra.mxu0 %v4785
      %v4957 = vpop.f32.mrf.mxu0
      %v4958 = vadd.f32 0.0, %v4957
      %v4959 = vpop.f32.mrf.mxu0
      %4960 = vmatprep.mubr.f32.mxu0 0.0
      %4961 = vmatmul.mubr.f32.gmra.mxu0 %v4788
      %v4962 = vpop.f32.mrf.mxu0
      %v4963 = vadd.f32 0.0, %v4962
      %v4964 = vpop.f32.mrf.mxu0
      %4965 = vmatprep.mubr.f32.mxu0 0.0
      %4966 = vmatmul.mubr.f32.gmra.mxu0 %v4791
      %v4967 = vpop.f32.mrf.mxu0
      %v4968 = vadd.f32 0.0, %v4967
      %v4969 = vpop.f32.mrf.mxu0
      %4970 = vmatprep.mubr.f32.mxu0 0.0
      %4971 = vmatmul.mubr.f32.gmra.mxu0 %v4794
      %v4972 = vpop.f32.mrf.mxu0
      %v4973 = vadd.f32 0.0, %v4972
      %v4974 = vpop.f32.mrf.mxu0
      %4975 = vmatprep.mubr.f32.mxu0 0.0
      %4976 = vmatmul.mubr.f32.gmra.mxu0 %v4797
      %v4977 = vpop.f32.mrf.mxu0
      %v4978 = vadd.f32 0.0, %v4977
      %v4979 = vpop.f32.mrf.mxu0
      %4980 = vmatprep.mubr.f32.mxu0 0.0
      %4981 = vmatmul.mubr.f32.gmra.mxu0 %v4800
      %v4982 = vpop.f32.mrf.mxu0
      %v4983 = vadd.f32 0.0, %v4982
      %v4984 = vpop.f32.mrf.mxu0
      %4985 = vmatprep.mubr.f32.mxu0 0.0
      %4986 = vmatmul.mubr.f32.gmra.mxu0 %v4803
      %v4987 = vpop.f32.mrf.mxu0
      %v4988 = vadd.f32 0.0, %v4987
      %v4989 = vpop.f32.mrf.mxu0
      %4990 = vmatprep.mubr.f32.mxu0 0.0
      %4991 = vmatmul.mubr.f32.gmra.mxu0 %v4806
      %v4992 = vpop.f32.mrf.mxu0
      %v4993 = vadd.f32 0.0, %v4992
      %v4994 = vpop.f32.mrf.mxu0
      %4995 = vmatprep.mubr.f32.mxu0 0.0
      %4996 = vmatmul.mubr.f32.gmra.mxu0 %v4809
      %v4997 = vpop.f32.mrf.mxu0
      %v4998 = vadd.f32 0.0, %v4997
      %v4999 = vpop.f32.mrf.mxu0
      %5000 = vmatprep.mubr.f32.mxu0 0.0
      %5001 = vmatmul.mubr.f32.gmra.mxu0 %v4812
      %v5002 = vpop.f32.mrf.mxu0
      %v5003 = vadd.f32 0.0, %v5002
      %v5004 = vpop.f32.mrf.mxu0
      %5005 = vmatprep.mubr.f32.mxu0 0.0
      %5006 = vmatmul.mubr.f32.gmra.mxu0 %v4815
      %v5007 = vpop.f32.mrf.mxu0
      %v5008 = vadd.f32 0.0, %v5007
      %v5009 = vpop.f32.mrf.mxu0
      %5010 = vmatprep.mubr.f32.mxu0 0.0
      %5011 = vmatmul.mubr.f32.gmra.mxu0 %v4818
      %v5012 = vpop.f32.mrf.mxu0
      %v5013 = vadd.f32 0.0, %v5012
      %v5014 = vpop.f32.mrf.mxu0
      %5015 = vmatprep.mubr.f32.mxu0 0.0
      %5016 = vmatmul.mubr.f32.gmra.mxu0 %v4821
      %v5017 = vpop.f32.mrf.mxu0
      %v5018 = vadd.f32 0.0, %v5017
      %v5019 = vpop.f32.mrf.mxu0
      %5020 = vmatprep.mubr.f32.mxu0 0.0
      %5021 = vmatmul.mubr.f32.gmra.mxu0 %v4824
      %v5022 = vpop.f32.mrf.mxu0
      %v5023 = vadd.f32 0.0, %v5022
      %v5024 = vpop.f32.mrf.mxu0
      %5025 = vmatprep.mubr.f32.mxu0 0.0
      %5026 = vmatmul.mubr.f32.gmra.mxu0 %v4827
      %v5027 = vpop.f32.mrf.mxu0
      %v5028 = vadd.f32 0.0, %v5027
      %v5029 = vpop.f32.mrf.mxu0
      %5030 = vmatprep.mubr.f32.mxu0 0.0
      %5031 = vmatmul.mubr.f32.gmra.mxu0 %v4830
      %v5032 = vpop.f32.mrf.mxu0
      %v5033 = vadd.f32 0.0, %v5032
      %v5034 = vpop.f32.mrf.mxu0
      %5035 = vmatprep.mubr.f32.mxu0 0.0
      %5036 = vmatmul.mubr.f32.gmra.mxu0 %v4833
      %v5037 = vpop.f32.mrf.mxu0
      %v5038 = vadd.f32 0.0, %v5037
      %v5039 = vpop.f32.mrf.mxu0
      %5040 = vmatprep.mubr.f32.mxu0 0.0
      %5041 = vmatmul.mubr.f32.gmra.mxu0 %v4836
      %v5042 = vpop.f32.mrf.mxu0
      %v5043 = vadd.f32 0.0, %v5042
      %v5044 = vpop.f32.mrf.mxu0
      %5045 = vmatprep.mubr.f32.mxu0 0.0
      %5046 = vmatmul.mubr.f32.gmra.mxu0 %v4839
      %v5047 = vpop.f32.mrf.mxu0
      %v5048 = vadd.f32 0.0, %v5047
      %v5049 = vpop.f32.mrf.mxu0
      %5050 = vmatprep.mubr.f32.mxu0 0.0
      %5051 = vmatmul.mubr.f32.gmra.mxu0 %v4842
      %v5052 = vpop.f32.mrf.mxu0
      %v5053 = vadd.f32 0.0, %v5052
      %v5054 = vpop.f32.mrf.mxu0
      %5055 = vmatprep.mubr.f32.mxu0 0.0
      %5056 = vmatmul.mubr.f32.gmra.mxu0 %v4845
      %v5057 = vpop.f32.mrf.mxu0
      %v5058 = vadd.f32 0.0, %v5057
      %v5059 = vpop.f32.mrf.mxu0
      %5060 = vmatprep.mubr.f32.mxu0 0.0
      %5061 = vmatmul.mubr.f32.gmra.mxu0 %v4848
      %v5062 = vpop.f32.mrf.mxu0
      %v5063 = vadd.f32 0.0, %v5062
      %v5064 = vpop.f32.mrf.mxu0
      %5065 = vmatprep.mubr.f32.mxu0 0.0
      %5066 = vmatmul.mubr.f32.gmra.mxu0 %v4851
      %v5067 = vpop.f32.mrf.mxu0
      %v5068 = vadd.f32 0.0, %v5067
      %v5069 = vpop.f32.mrf.mxu0
      %5070 = vmatprep.mubr.f32.mxu0 0.0
      %5071 = vmatmul.mubr.f32.gmra.mxu0 %v4854
      %v5072 = vpop.f32.mrf.mxu0
      %v5073 = vadd.f32 0.0, %v5072
      %v5074 = vpop.f32.mrf.mxu0
      %5075 = vmatprep.mubr.f32.mxu0 0.0
      %5076 = vmatmul.mubr.f32.gmra.mxu0 %v4857
      %v5077 = vpop.f32.mrf.mxu0
      %v5078 = vadd.f32 0.0, %v5077
      %v5079 = vpop.f32.mrf.mxu0
      %5080 = vmatprep.mubr.f32.mxu0 0.0
      %5081 = vmatmul.mubr.f32.gmra.mxu0 %v4860
      %v5082 = vpop.f32.mrf.mxu0
      %v5083 = vadd.f32 0.0, %v5082
      %v5084 = vpop.f32.mrf.mxu0
      %5085 = vmatprep.mubr.f32.mxu0 0.0
      %5086 = vmatmul.mubr.f32.gmra.mxu0 %v4863
      %v5087 = vpop.f32.mrf.mxu0
      %v5088 = vadd.f32 0.0, %v5087
      %v5089 = vpop.f32.mrf.mxu0
      %5090 = vmatprep.mubr.f32.mxu0 0.0
      %5091 = vmatmul.mubr.f32.gmra.mxu0 %v4866
      %v5092 = vpop.f32.mrf.mxu0
      %v5093 = vadd.f32 0.0, %v5092
      %v5094 = vpop.f32.mrf.mxu0
      %5095 = vdwg.mxu0
      %v5096 = vadd.f32 %v4580, %v4938
      %v5097 = vadd.f32 %v4585, %v4943
      %v5098 = vadd.f32 %v4590, %v4948
      %v5099 = vadd.f32 %v4595, %v4953
      %v5100 = vadd.f32 %v4600, %v4958
      %v5101 = vadd.f32 %v4605, %v4963
      %v5102 = vadd.f32 %v4610, %v4968
      %v5103 = vadd.f32 %v4615, %v4973
      %v5104 = vadd.f32 %v4620, %v4978
      %v5105 = vadd.f32 %v4625, %v4983
      %v5106 = vadd.f32 %v4630, %v4988
      %v5107 = vadd.f32 %v4635, %v4993
      %v5108 = vadd.f32 %v4640, %v4998
      %v5109 = vadd.f32 %v4645, %v5003
      %v5110 = vadd.f32 %v4650, %v5008
      %v5111 = vadd.f32 %v4655, %v5013
      %v5112 = vadd.f32 %v4660, %v5018
      %v5113 = vadd.f32 %v4665, %v5023
      %v5114 = vadd.f32 %v4670, %v5028
      %v5115 = vadd.f32 %v4675, %v5033
      %v5116 = vadd.f32 %v4680, %v5038
      %v5117 = vadd.f32 %v4685, %v5043
      %v5118 = vadd.f32 %v4690, %v5048
      %v5119 = vadd.f32 %v4695, %v5053
      %v5120 = vadd.f32 %v4700, %v5058
      %v5121 = vadd.f32 %v4705, %v5063
      %v5122 = vadd.f32 %v4710, %v5068
      %v5123 = vadd.f32 %v4715, %v5073
      %v5124 = vadd.f32 %v4720, %v5078
      %v5125 = vadd.f32 %v4725, %v5083
      %v5126 = vadd.f32 %v4730, %v5088
      %v5127 = vadd.f32 %v4735, %v5093
      %v5128 = vld [vmem:[%s3990] sm:$0xff]
      %v5129 = vld [vmem:[%s3990 + $0x8] sm:$0xff]
      %v5130 = vld [vmem:[%s3990 + $0x18] sm:$0xff]
      %v5131 = vld [vmem:[%s3990 + $0x20] sm:$0xff]
      %v5132 = vld [vmem:[%s3990 + $0x30] sm:$0xff]
      %v5133 = vld [vmem:[%s3990 + $0x38] sm:$0xff]
      %v5134 = vld [vmem:[%s3990 + $0x48] sm:$0xff]
      %v5135 = vld [vmem:[%s3990 + $0x50] sm:$0xff]
      %v5136 = vld [vmem:[%s3990 + $0x60] sm:$0xff]
      %v5137 = vld [vmem:[%s3990 + $0x68] sm:$0xff]
      %v5138 = vld [vmem:[%s3990 + $0x78] sm:$0xff]
      %v5139 = vld [vmem:[%s3990 + $0x80] sm:$0xff]
      %v5140 = vld [vmem:[%s3990 + $0x90] sm:$0xff]
      %v5141 = vld [vmem:[%s3990 + $0x98] sm:$0xff]
      %v5142 = vld [vmem:[%s3990 + $0xa8] sm:$0xff]
      %v5143 = vld [vmem:[%s3990 + $0xb0] sm:$0xff]
      %v5144 = vld [vmem:[%s3990 + $0xc0] sm:$0xff]
      %v5145 = vld [vmem:[%s3990 + $0xc8] sm:$0xff]
      %v5146 = vld [vmem:[%s3990 + $0xd8] sm:$0xff]
      %v5147 = vld [vmem:[%s3990 + $0xe0] sm:$0xff]
      %v5148 = vld [vmem:[%s3990 + $0xf0] sm:$0xff]
      %v5149 = vld [vmem:[%s3990 + $0xf8] sm:$0xff]
      %v5150 = vld [vmem:[%s3990 + $0x108] sm:$0xff]
      %v5151 = vld [vmem:[%s3990 + $0x110] sm:$0xff]
      %v5152 = vld [vmem:[%s3990 + $0x120] sm:$0xff]
      %v5153 = vld [vmem:[%s3990 + $0x128] sm:$0xff]
      %v5154 = vld [vmem:[%s3990 + $0x138] sm:$0xff]
      %v5155 = vld [vmem:[%s3990 + $0x140] sm:$0xff]
      %v5156 = vld [vmem:[%s3990 + $0x150] sm:$0xff]
      %v5157 = vld [vmem:[%s3990 + $0x158] sm:$0xff]
      %v5158 = vld [vmem:[%s3990 + $0x168] sm:$0xff]
      %v5159 = vld [vmem:[%s3990 + $0x170] sm:$0xff]
      %s5160 = scalar_lea.vmem %s4, 12
      %v5161 = vld [vmem:[%s5160] sm:$0xf]
      %v5163 = vsel %vm279, %v5128, 0
      %v5166 = vsel %vm279, %v5129, 0
      %v5169 = vsel %vm279, %v5130, 0
      %v5172 = vsel %vm279, %v5131, 0
      %v5175 = vsel %vm279, %v5132, 0
      %v5178 = vsel %vm279, %v5133, 0
      %v5181 = vsel %vm279, %v5134, 0
      %v5184 = vsel %vm279, %v5135, 0
      %v5187 = vsel %vm279, %v5136, 0
      %v5190 = vsel %vm279, %v5137, 0
      %v5193 = vsel %vm279, %v5138, 0
      %v5196 = vsel %vm279, %v5139, 0
      %v5199 = vsel %vm279, %v5140, 0
      %v5202 = vsel %vm279, %v5141, 0
      %v5205 = vsel %vm279, %v5142, 0
      %v5208 = vsel %vm279, %v5143, 0
      %v5211 = vsel %vm279, %v5144, 0
      %v5214 = vsel %vm279, %v5145, 0
      %v5217 = vsel %vm279, %v5146, 0
      %v5220 = vsel %vm279, %v5147, 0
      %v5223 = vsel %vm279, %v5148, 0
      %v5226 = vsel %vm279, %v5149, 0
      %v5229 = vsel %vm279, %v5150, 0
      %v5232 = vsel %vm279, %v5151, 0
      %v5235 = vsel %vm279, %v5152, 0
      %v5238 = vsel %vm279, %v5153, 0
      %v5241 = vsel %vm279, %v5154, 0
      %v5244 = vsel %vm279, %v5155, 0
      %v5247 = vsel %vm279, %v5156, 0
      %v5250 = vsel %vm279, %v5157, 0
      %v5253 = vsel %vm279, %v5158, 0
      %v5256 = vsel %vm279, %v5159, 0
      %v5259 = vsel %vm596, %v5161, 0
      %5261 = vmatprep.subr.mxu0 0.0
      %5262 = vmatpush1.msra.mxu0 0.0
      %5263 = vmatprep.subr.mxu0 0.0
      %5264 = vmatpush1.msra.mxu0 0.0
      %5265 = vmatprep.subr.mxu0 0.0
      %5266 = vmatpush1.msra.mxu0 0.0
      %5267 = vmatprep.subr.mxu0 0.0
      %5268 = vmatpush1.msra.mxu0 0.0
      %5269 = vmatprep.subr.mxu0 0.0
      %5270 = vmatpush1.msra.mxu0 0.0
      %5271 = vmatprep.subr.mxu0 0.0
      %5272 = vmatpush1.msra.mxu0 0.0
      %5273 = vmatprep.subr.mxu0 0.0
      %5274 = vmatpush1.msra.mxu0 0.0
      %5275 = vmatprep.subr.mxu0 0.0
      %5276 = vmatpush1.msra.mxu0 0.0
      %5277 = vmatprep.subr.mxu0 0.0
      %5278 = vmatpush1.msra.mxu0 0.0
      %5279 = vmatprep.subr.mxu0 0.0
      %5280 = vmatpush1.msra.mxu0 0.0
      %5281 = vmatprep.subr.mxu0 0.0
      %5282 = vmatpush1.msra.mxu0 0.0
      %5283 = vmatprep.subr.mxu0 0.0
      %5284 = vmatpush1.msra.mxu0 0.0
      %5285 = vmatprep.subr.mxu0 0.0
      %5286 = vmatpush1.msra.mxu0 0.0
      %5287 = vmatprep.subr.mxu0 0.0
      %5288 = vmatpush1.msra.mxu0 0.0
      %5289 = vmatprep.subr.mxu0 0.0
      %5290 = vmatpush1.msra.mxu0 0.0
      %5291 = vmatprep.subr.mxu0 0.0
      %5292 = vmatpush1.msra.mxu0 %v5259
      %5293 = vmatprep.subr.mxu0 0.0
      %5294 = vmatpush2.msra.mxu0 0.0
      %5295 = vmatprep.subr.mxu0 0.0
      %5296 = vmatpush2.msra.mxu0 0.0
      %5297 = vmatprep.subr.mxu0 0.0
      %5298 = vmatpush2.msra.mxu0 0.0
      %5299 = vmatprep.subr.mxu0 0.0
      %5300 = vmatpush2.msra.mxu0 0.0
      %5301 = vmatprep.subr.mxu0 0.0
      %5302 = vmatpush2.msra.mxu0 0.0
      %5303 = vmatprep.subr.mxu0 0.0
      %5304 = vmatpush2.msra.mxu0 0.0
      %5305 = vmatprep.subr.mxu0 0.0
      %5306 = vmatpush2.msra.mxu0 0.0
      %5307 = vmatprep.subr.mxu0 0.0
      %5308 = vmatpush2.msra.mxu0 0.0
      %5309 = vmatprep.subr.mxu0 0.0
      %5310 = vmatpush2.msra.mxu0 0.0
      %5311 = vmatprep.subr.mxu0 0.0
      %5312 = vmatpush2.msra.mxu0 0.0
      %5313 = vmatprep.subr.mxu0 0.0
      %5314 = vmatpush2.msra.mxu0 0.0
      %5315 = vmatprep.subr.mxu0 0.0
      %5316 = vmatpush2.msra.mxu0 0.0
      %5317 = vmatprep.subr.mxu0 0.0
      %5318 = vmatpush2.msra.mxu0 0.0
      %5319 = vmatprep.subr.mxu0 0.0
      %5320 = vmatpush2.msra.mxu0 0.0
      %5321 = vmatprep.subr.mxu0 0.0
      %5322 = vmatpush2.msra.mxu0 0.0
      %5323 = vmatprep.subr.mxu0 0.0
      %5324 = vmatpush2.msra.mxu0 0.0
      %5325 = vmatprep.mubr.f32.mxu0 0.0
      %5326 = vmatmul.mubr.f32.gmra.mxu0 %v5163
      %v5327 = vpop.f32.mrf.mxu0
      %v5328 = vadd.f32 0.0, %v5327
      %v5329 = vpop.f32.mrf.mxu0
      %5330 = vmatprep.mubr.f32.mxu0 0.0
      %5331 = vmatmul.mubr.f32.gmra.mxu0 %v5166
      %v5332 = vpop.f32.mrf.mxu0
      %v5333 = vadd.f32 0.0, %v5332
      %v5334 = vpop.f32.mrf.mxu0
      %5335 = vmatprep.mubr.f32.mxu0 0.0
      %5336 = vmatmul.mubr.f32.gmra.mxu0 %v5169
      %v5337 = vpop.f32.mrf.mxu0
      %v5338 = vadd.f32 0.0, %v5337
      %v5339 = vpop.f32.mrf.mxu0
      %5340 = vmatprep.mubr.f32.mxu0 0.0
      %5341 = vmatmul.mubr.f32.gmra.mxu0 %v5172
      %v5342 = vpop.f32.mrf.mxu0
      %v5343 = vadd.f32 0.0, %v5342
      %v5344 = vpop.f32.mrf.mxu0
      %5345 = vmatprep.mubr.f32.mxu0 0.0
      %5346 = vmatmul.mubr.f32.gmra.mxu0 %v5175
      %v5347 = vpop.f32.mrf.mxu0
      %v5348 = vadd.f32 0.0, %v5347
      %v5349 = vpop.f32.mrf.mxu0
      %5350 = vmatprep.mubr.f32.mxu0 0.0
      %5351 = vmatmul.mubr.f32.gmra.mxu0 %v5178
      %v5352 = vpop.f32.mrf.mxu0
      %v5353 = vadd.f32 0.0, %v5352
      %v5354 = vpop.f32.mrf.mxu0
      %5355 = vmatprep.mubr.f32.mxu0 0.0
      %5356 = vmatmul.mubr.f32.gmra.mxu0 %v5181
      %v5357 = vpop.f32.mrf.mxu0
      %v5358 = vadd.f32 0.0, %v5357
      %v5359 = vpop.f32.mrf.mxu0
      %5360 = vmatprep.mubr.f32.mxu0 0.0
      %5361 = vmatmul.mubr.f32.gmra.mxu0 %v5184
      %v5362 = vpop.f32.mrf.mxu0
      %v5363 = vadd.f32 0.0, %v5362
      %v5364 = vpop.f32.mrf.mxu0
      %5365 = vmatprep.mubr.f32.mxu0 0.0
      %5366 = vmatmul.mubr.f32.gmra.mxu0 %v5187
      %v5367 = vpop.f32.mrf.mxu0
      %v5368 = vadd.f32 0.0, %v5367
      %v5369 = vpop.f32.mrf.mxu0
      %5370 = vmatprep.mubr.f32.mxu0 0.0
      %5371 = vmatmul.mubr.f32.gmra.mxu0 %v5190
      %v5372 = vpop.f32.mrf.mxu0
      %v5373 = vadd.f32 0.0, %v5372
      %v5374 = vpop.f32.mrf.mxu0
      %5375 = vmatprep.mubr.f32.mxu0 0.0
      %5376 = vmatmul.mubr.f32.gmra.mxu0 %v5193
      %v5377 = vpop.f32.mrf.mxu0
      %v5378 = vadd.f32 0.0, %v5377
      %v5379 = vpop.f32.mrf.mxu0
      %5380 = vmatprep.mubr.f32.mxu0 0.0
      %5381 = vmatmul.mubr.f32.gmra.mxu0 %v5196
      %v5382 = vpop.f32.mrf.mxu0
      %v5383 = vadd.f32 0.0, %v5382
      %v5384 = vpop.f32.mrf.mxu0
      %5385 = vmatprep.mubr.f32.mxu0 0.0
      %5386 = vmatmul.mubr.f32.gmra.mxu0 %v5199
      %v5387 = vpop.f32.mrf.mxu0
      %v5388 = vadd.f32 0.0, %v5387
      %v5389 = vpop.f32.mrf.mxu0
      %5390 = vmatprep.mubr.f32.mxu0 0.0
      %5391 = vmatmul.mubr.f32.gmra.mxu0 %v5202
      %v5392 = vpop.f32.mrf.mxu0
      %v5393 = vadd.f32 0.0, %v5392
      %v5394 = vpop.f32.mrf.mxu0
      %5395 = vmatprep.mubr.f32.mxu0 0.0
      %5396 = vmatmul.mubr.f32.gmra.mxu0 %v5205
      %v5397 = vpop.f32.mrf.mxu0
      %v5398 = vadd.f32 0.0, %v5397
      %v5399 = vpop.f32.mrf.mxu0
      %5400 = vmatprep.mubr.f32.mxu0 0.0
      %5401 = vmatmul.mubr.f32.gmra.mxu0 %v5208
      %v5402 = vpop.f32.mrf.mxu0
      %v5403 = vadd.f32 0.0, %v5402
      %v5404 = vpop.f32.mrf.mxu0
      %5405 = vmatprep.mubr.f32.mxu0 0.0
      %5406 = vmatmul.mubr.f32.gmra.mxu0 %v5211
      %v5407 = vpop.f32.mrf.mxu0
      %v5408 = vadd.f32 0.0, %v5407
      %v5409 = vpop.f32.mrf.mxu0
      %5410 = vmatprep.mubr.f32.mxu0 0.0
      %5411 = vmatmul.mubr.f32.gmra.mxu0 %v5214
      %v5412 = vpop.f32.mrf.mxu0
      %v5413 = vadd.f32 0.0, %v5412
      %v5414 = vpop.f32.mrf.mxu0
      %5415 = vmatprep.mubr.f32.mxu0 0.0
      %5416 = vmatmul.mubr.f32.gmra.mxu0 %v5217
      %v5417 = vpop.f32.mrf.mxu0
      %v5418 = vadd.f32 0.0, %v5417
      %v5419 = vpop.f32.mrf.mxu0
      %5420 = vmatprep.mubr.f32.mxu0 0.0
      %5421 = vmatmul.mubr.f32.gmra.mxu0 %v5220
      %v5422 = vpop.f32.mrf.mxu0
      %v5423 = vadd.f32 0.0, %v5422
      %v5424 = vpop.f32.mrf.mxu0
      %5425 = vmatprep.mubr.f32.mxu0 0.0
      %5426 = vmatmul.mubr.f32.gmra.mxu0 %v5223
      %v5427 = vpop.f32.mrf.mxu0
      %v5428 = vadd.f32 0.0, %v5427
      %v5429 = vpop.f32.mrf.mxu0
      %5430 = vmatprep.mubr.f32.mxu0 0.0
      %5431 = vmatmul.mubr.f32.gmra.mxu0 %v5226
      %v5432 = vpop.f32.mrf.mxu0
      %v5433 = vadd.f32 0.0, %v5432
      %v5434 = vpop.f32.mrf.mxu0
      %5435 = vmatprep.mubr.f32.mxu0 0.0
      %5436 = vmatmul.mubr.f32.gmra.mxu0 %v5229
      %v5437 = vpop.f32.mrf.mxu0
      %v5438 = vadd.f32 0.0, %v5437
      %v5439 = vpop.f32.mrf.mxu0
      %5440 = vmatprep.mubr.f32.mxu0 0.0
      %5441 = vmatmul.mubr.f32.gmra.mxu0 %v5232
      %v5442 = vpop.f32.mrf.mxu0
      %v5443 = vadd.f32 0.0, %v5442
      %v5444 = vpop.f32.mrf.mxu0
      %5445 = vmatprep.mubr.f32.mxu0 0.0
      %5446 = vmatmul.mubr.f32.gmra.mxu0 %v5235
      %v5447 = vpop.f32.mrf.mxu0
      %v5448 = vadd.f32 0.0, %v5447
      %v5449 = vpop.f32.mrf.mxu0
      %5450 = vmatprep.mubr.f32.mxu0 0.0
      %5451 = vmatmul.mubr.f32.gmra.mxu0 %v5238
      %v5452 = vpop.f32.mrf.mxu0
      %v5453 = vadd.f32 0.0, %v5452
      %v5454 = vpop.f32.mrf.mxu0
      %5455 = vmatprep.mubr.f32.mxu0 0.0
      %5456 = vmatmul.mubr.f32.gmra.mxu0 %v5241
      %v5457 = vpop.f32.mrf.mxu0
      %v5458 = vadd.f32 0.0, %v5457
      %v5459 = vpop.f32.mrf.mxu0
      %5460 = vmatprep.mubr.f32.mxu0 0.0
      %5461 = vmatmul.mubr.f32.gmra.mxu0 %v5244
      %v5462 = vpop.f32.mrf.mxu0
      %v5463 = vadd.f32 0.0, %v5462
      %v5464 = vpop.f32.mrf.mxu0
      %5465 = vmatprep.mubr.f32.mxu0 0.0
      %5466 = vmatmul.mubr.f32.gmra.mxu0 %v5247
      %v5467 = vpop.f32.mrf.mxu0
      %v5468 = vadd.f32 0.0, %v5467
      %v5469 = vpop.f32.mrf.mxu0
      %5470 = vmatprep.mubr.f32.mxu0 0.0
      %5471 = vmatmul.mubr.f32.gmra.mxu0 %v5250
      %v5472 = vpop.f32.mrf.mxu0
      %v5473 = vadd.f32 0.0, %v5472
      %v5474 = vpop.f32.mrf.mxu0
      %5475 = vmatprep.mubr.f32.mxu0 0.0
      %5476 = vmatmul.mubr.f32.gmra.mxu0 %v5253
      %v5477 = vpop.f32.mrf.mxu0
      %v5478 = vadd.f32 0.0, %v5477
      %v5479 = vpop.f32.mrf.mxu0
      %5480 = vmatprep.mubr.f32.mxu0 0.0
      %5481 = vmatmul.mubr.f32.gmra.mxu0 %v5256
      %v5482 = vpop.f32.mrf.mxu0
      %v5483 = vadd.f32 0.0, %v5482
      %v5484 = vpop.f32.mrf.mxu0
      %5485 = vdwg.mxu0
      %v5486 = vadd.f32 %v5096, %v5328
      %v5487 = vadd.f32 %v5097, %v5333
      %v5488 = vadd.f32 %v5098, %v5338
      %v5489 = vadd.f32 %v5099, %v5343
      %v5490 = vadd.f32 %v5100, %v5348
      %v5491 = vadd.f32 %v5101, %v5353
      %v5492 = vadd.f32 %v5102, %v5358
      %v5493 = vadd.f32 %v5103, %v5363
      %v5494 = vadd.f32 %v5104, %v5368
      %v5495 = vadd.f32 %v5105, %v5373
      %v5496 = vadd.f32 %v5106, %v5378
      %v5497 = vadd.f32 %v5107, %v5383
      %v5498 = vadd.f32 %v5108, %v5388
      %v5499 = vadd.f32 %v5109, %v5393
      %v5500 = vadd.f32 %v5110, %v5398
      %v5501 = vadd.f32 %v5111, %v5403
      %v5502 = vadd.f32 %v5112, %v5408
      %v5503 = vadd.f32 %v5113, %v5413
      %v5504 = vadd.f32 %v5114, %v5418
      %v5505 = vadd.f32 %v5115, %v5423
      %v5506 = vadd.f32 %v5116, %v5428
      %v5507 = vadd.f32 %v5117, %v5433
      %v5508 = vadd.f32 %v5118, %v5438
      %v5509 = vadd.f32 %v5119, %v5443
      %v5510 = vadd.f32 %v5120, %v5448
      %v5511 = vadd.f32 %v5121, %v5453
      %v5512 = vadd.f32 %v5122, %v5458
      %v5513 = vadd.f32 %v5123, %v5463
      %v5514 = vadd.f32 %v5124, %v5468
      %v5515 = vadd.f32 %v5125, %v5473
      %v5516 = vadd.f32 %v5126, %v5478
      %v5517 = vadd.f32 %v5127, %v5483
      %v5518 = vld [vmem:[%s3990 + $0x1] sm:$0xff]
      %v5519 = vld [vmem:[%s3990 + $0x9] sm:$0xff]
      %v5520 = vld [vmem:[%s3990 + $0x19] sm:$0xff]
      %v5521 = vld [vmem:[%s3990 + $0x21] sm:$0xff]
      %v5522 = vld [vmem:[%s3990 + $0x31] sm:$0xff]
      %v5523 = vld [vmem:[%s3990 + $0x39] sm:$0xff]
      %v5524 = vld [vmem:[%s3990 + $0x49] sm:$0xff]
      %v5525 = vld [vmem:[%s3990 + $0x51] sm:$0xff]
      %v5526 = vld [vmem:[%s3990 + $0x61] sm:$0xff]
      %v5527 = vld [vmem:[%s3990 + $0x69] sm:$0xff]
      %v5528 = vld [vmem:[%s3990 + $0x79] sm:$0xff]
      %v5529 = vld [vmem:[%s3990 + $0x81] sm:$0xff]
      %v5530 = vld [vmem:[%s3990 + $0x91] sm:$0xff]
      %v5531 = vld [vmem:[%s3990 + $0x99] sm:$0xff]
      %v5532 = vld [vmem:[%s3990 + $0xa9] sm:$0xff]
      %v5533 = vld [vmem:[%s3990 + $0xb1] sm:$0xff]
      %v5534 = vld [vmem:[%s3990 + $0xc1] sm:$0xff]
      %v5535 = vld [vmem:[%s3990 + $0xc9] sm:$0xff]
      %v5536 = vld [vmem:[%s3990 + $0xd9] sm:$0xff]
      %v5537 = vld [vmem:[%s3990 + $0xe1] sm:$0xff]
      %v5538 = vld [vmem:[%s3990 + $0xf1] sm:$0xff]
      %v5539 = vld [vmem:[%s3990 + $0xf9] sm:$0xff]
      %v5540 = vld [vmem:[%s3990 + $0x109] sm:$0xff]
      %v5541 = vld [vmem:[%s3990 + $0x111] sm:$0xff]
      %v5542 = vld [vmem:[%s3990 + $0x121] sm:$0xff]
      %v5543 = vld [vmem:[%s3990 + $0x129] sm:$0xff]
      %v5544 = vld [vmem:[%s3990 + $0x139] sm:$0xff]
      %v5545 = vld [vmem:[%s3990 + $0x141] sm:$0xff]
      %v5546 = vld [vmem:[%s3990 + $0x151] sm:$0xff]
      %v5547 = vld [vmem:[%s3990 + $0x159] sm:$0xff]
      %v5548 = vld [vmem:[%s3990 + $0x169] sm:$0xff]
      %v5549 = vld [vmem:[%s3990 + $0x171] sm:$0xff]
      %s5550 = scalar_lea.vmem %s4, 16
      %v5551 = vld [vmem:[%s5550] sm:$0xf]
      %v5553 = vsel %vm279, %v5518, 0
      %v5556 = vsel %vm279, %v5519, 0
      %v5559 = vsel %vm279, %v5520, 0
      %v5562 = vsel %vm279, %v5521, 0
      %v5565 = vsel %vm279, %v5522, 0
      %v5568 = vsel %vm279, %v5523, 0
      %v5571 = vsel %vm279, %v5524, 0
      %v5574 = vsel %vm279, %v5525, 0
      %v5577 = vsel %vm279, %v5526, 0
      %v5580 = vsel %vm279, %v5527, 0
      %v5583 = vsel %vm279, %v5528, 0
      %v5586 = vsel %vm279, %v5529, 0
      %v5589 = vsel %vm279, %v5530, 0
      %v5592 = vsel %vm279, %v5531, 0
      %v5595 = vsel %vm279, %v5532, 0
      %v5598 = vsel %vm279, %v5533, 0
      %v5601 = vsel %vm279, %v5534, 0
      %v5604 = vsel %vm279, %v5535, 0
      %v5607 = vsel %vm279, %v5536, 0
      %v5610 = vsel %vm279, %v5537, 0
      %v5613 = vsel %vm279, %v5538, 0
      %v5616 = vsel %vm279, %v5539, 0
      %v5619 = vsel %vm279, %v5540, 0
      %v5622 = vsel %vm279, %v5541, 0
      %v5625 = vsel %vm279, %v5542, 0
      %v5628 = vsel %vm279, %v5543, 0
      %v5631 = vsel %vm279, %v5544, 0
      %v5634 = vsel %vm279, %v5545, 0
      %v5637 = vsel %vm279, %v5546, 0
      %v5640 = vsel %vm279, %v5547, 0
      %v5643 = vsel %vm279, %v5548, 0
      %v5646 = vsel %vm279, %v5549, 0
      %v5649 = vsel %vm596, %v5551, 0
      %5651 = vmatprep.subr.mxu0 0.0
      %5652 = vmatpush1.msra.mxu0 0.0
      %5653 = vmatprep.subr.mxu0 0.0
      %5654 = vmatpush1.msra.mxu0 0.0
      %5655 = vmatprep.subr.mxu0 0.0
      %5656 = vmatpush1.msra.mxu0 0.0
      %5657 = vmatprep.subr.mxu0 0.0
      %5658 = vmatpush1.msra.mxu0 0.0
      %5659 = vmatprep.subr.mxu0 0.0
      %5660 = vmatpush1.msra.mxu0 0.0
      %5661 = vmatprep.subr.mxu0 0.0
      %5662 = vmatpush1.msra.mxu0 0.0
      %5663 = vmatprep.subr.mxu0 0.0
      %5664 = vmatpush1.msra.mxu0 0.0
      %5665 = vmatprep.subr.mxu0 0.0
      %5666 = vmatpush1.msra.mxu0 0.0
      %5667 = vmatprep.subr.mxu0 0.0
      %5668 = vmatpush1.msra.mxu0 0.0
      %5669 = vmatprep.subr.mxu0 0.0
      %5670 = vmatpush1.msra.mxu0 0.0
      %5671 = vmatprep.subr.mxu0 0.0
      %5672 = vmatpush1.msra.mxu0 0.0
      %5673 = vmatprep.subr.mxu0 0.0
      %5674 = vmatpush1.msra.mxu0 0.0
      %5675 = vmatprep.subr.mxu0 0.0
      %5676 = vmatpush1.msra.mxu0 0.0
      %5677 = vmatprep.subr.mxu0 0.0
      %5678 = vmatpush1.msra.mxu0 0.0
      %5679 = vmatprep.subr.mxu0 0.0
      %5680 = vmatpush1.msra.mxu0 0.0
      %5681 = vmatprep.subr.mxu0 0.0
      %5682 = vmatpush1.msra.mxu0 %v5649
      %5683 = vmatprep.subr.mxu0 0.0
      %5684 = vmatpush2.msra.mxu0 0.0
      %5685 = vmatprep.subr.mxu0 0.0
      %5686 = vmatpush2.msra.mxu0 0.0
      %5687 = vmatprep.subr.mxu0 0.0
      %5688 = vmatpush2.msra.mxu0 0.0
      %5689 = vmatprep.subr.mxu0 0.0
      %5690 = vmatpush2.msra.mxu0 0.0
      %5691 = vmatprep.subr.mxu0 0.0
      %5692 = vmatpush2.msra.mxu0 0.0
      %5693 = vmatprep.subr.mxu0 0.0
      %5694 = vmatpush2.msra.mxu0 0.0
      %5695 = vmatprep.subr.mxu0 0.0
      %5696 = vmatpush2.msra.mxu0 0.0
      %5697 = vmatprep.subr.mxu0 0.0
      %5698 = vmatpush2.msra.mxu0 0.0
      %5699 = vmatprep.subr.mxu0 0.0
      %5700 = vmatpush2.msra.mxu0 0.0
      %5701 = vmatprep.subr.mxu0 0.0
      %5702 = vmatpush2.msra.mxu0 0.0
      %5703 = vmatprep.subr.mxu0 0.0
      %5704 = vmatpush2.msra.mxu0 0.0
      %5705 = vmatprep.subr.mxu0 0.0
      %5706 = vmatpush2.msra.mxu0 0.0
      %5707 = vmatprep.subr.mxu0 0.0
      %5708 = vmatpush2.msra.mxu0 0.0
      %5709 = vmatprep.subr.mxu0 0.0
      %5710 = vmatpush2.msra.mxu0 0.0
      %5711 = vmatprep.subr.mxu0 0.0
      %5712 = vmatpush2.msra.mxu0 0.0
      %5713 = vmatprep.subr.mxu0 0.0
      %5714 = vmatpush2.msra.mxu0 0.0
      %5715 = vmatprep.mubr.f32.mxu0 0.0
      %5716 = vmatmul.mubr.f32.gmra.mxu0 %v5553
      %v5717 = vpop.f32.mrf.mxu0
      %v5718 = vadd.f32 0.0, %v5717
      %v5719 = vpop.f32.mrf.mxu0
      %5720 = vmatprep.mubr.f32.mxu0 0.0
      %5721 = vmatmul.mubr.f32.gmra.mxu0 %v5556
      %v5722 = vpop.f32.mrf.mxu0
      %v5723 = vadd.f32 0.0, %v5722
      %v5724 = vpop.f32.mrf.mxu0
      %5725 = vmatprep.mubr.f32.mxu0 0.0
      %5726 = vmatmul.mubr.f32.gmra.mxu0 %v5559
      %v5727 = vpop.f32.mrf.mxu0
      %v5728 = vadd.f32 0.0, %v5727
      %v5729 = vpop.f32.mrf.mxu0
      %5730 = vmatprep.mubr.f32.mxu0 0.0
      %5731 = vmatmul.mubr.f32.gmra.mxu0 %v5562
      %v5732 = vpop.f32.mrf.mxu0
      %v5733 = vadd.f32 0.0, %v5732
      %v5734 = vpop.f32.mrf.mxu0
      %5735 = vmatprep.mubr.f32.mxu0 0.0
      %5736 = vmatmul.mubr.f32.gmra.mxu0 %v5565
      %v5737 = vpop.f32.mrf.mxu0
      %v5738 = vadd.f32 0.0, %v5737
      %v5739 = vpop.f32.mrf.mxu0
      %5740 = vmatprep.mubr.f32.mxu0 0.0
      %5741 = vmatmul.mubr.f32.gmra.mxu0 %v5568
      %v5742 = vpop.f32.mrf.mxu0
      %v5743 = vadd.f32 0.0, %v5742
      %v5744 = vpop.f32.mrf.mxu0
      %5745 = vmatprep.mubr.f32.mxu0 0.0
      %5746 = vmatmul.mubr.f32.gmra.mxu0 %v5571
      %v5747 = vpop.f32.mrf.mxu0
      %v5748 = vadd.f32 0.0, %v5747
      %v5749 = vpop.f32.mrf.mxu0
      %5750 = vmatprep.mubr.f32.mxu0 0.0
      %5751 = vmatmul.mubr.f32.gmra.mxu0 %v5574
      %v5752 = vpop.f32.mrf.mxu0
      %v5753 = vadd.f32 0.0, %v5752
      %v5754 = vpop.f32.mrf.mxu0
      %5755 = vmatprep.mubr.f32.mxu0 0.0
      %5756 = vmatmul.mubr.f32.gmra.mxu0 %v5577
      %v5757 = vpop.f32.mrf.mxu0
      %v5758 = vadd.f32 0.0, %v5757
      %v5759 = vpop.f32.mrf.mxu0
      %5760 = vmatprep.mubr.f32.mxu0 0.0
      %5761 = vmatmul.mubr.f32.gmra.mxu0 %v5580
      %v5762 = vpop.f32.mrf.mxu0
      %v5763 = vadd.f32 0.0, %v5762
      %v5764 = vpop.f32.mrf.mxu0
      %5765 = vmatprep.mubr.f32.mxu0 0.0
      %5766 = vmatmul.mubr.f32.gmra.mxu0 %v5583
      %v5767 = vpop.f32.mrf.mxu0
      %v5768 = vadd.f32 0.0, %v5767
      %v5769 = vpop.f32.mrf.mxu0
      %5770 = vmatprep.mubr.f32.mxu0 0.0
      %5771 = vmatmul.mubr.f32.gmra.mxu0 %v5586
      %v5772 = vpop.f32.mrf.mxu0
      %v5773 = vadd.f32 0.0, %v5772
      %v5774 = vpop.f32.mrf.mxu0
      %5775 = vmatprep.mubr.f32.mxu0 0.0
      %5776 = vmatmul.mubr.f32.gmra.mxu0 %v5589
      %v5777 = vpop.f32.mrf.mxu0
      %v5778 = vadd.f32 0.0, %v5777
      %v5779 = vpop.f32.mrf.mxu0
      %5780 = vmatprep.mubr.f32.mxu0 0.0
      %5781 = vmatmul.mubr.f32.gmra.mxu0 %v5592
      %v5782 = vpop.f32.mrf.mxu0
      %v5783 = vadd.f32 0.0, %v5782
      %v5784 = vpop.f32.mrf.mxu0
      %5785 = vmatprep.mubr.f32.mxu0 0.0
      %5786 = vmatmul.mubr.f32.gmra.mxu0 %v5595
      %v5787 = vpop.f32.mrf.mxu0
      %v5788 = vadd.f32 0.0, %v5787
      %v5789 = vpop.f32.mrf.mxu0
      %5790 = vmatprep.mubr.f32.mxu0 0.0
      %5791 = vmatmul.mubr.f32.gmra.mxu0 %v5598
      %v5792 = vpop.f32.mrf.mxu0
      %v5793 = vadd.f32 0.0, %v5792
      %v5794 = vpop.f32.mrf.mxu0
      %5795 = vmatprep.mubr.f32.mxu0 0.0
      %5796 = vmatmul.mubr.f32.gmra.mxu0 %v5601
      %v5797 = vpop.f32.mrf.mxu0
      %v5798 = vadd.f32 0.0, %v5797
      %v5799 = vpop.f32.mrf.mxu0
      %5800 = vmatprep.mubr.f32.mxu0 0.0
      %5801 = vmatmul.mubr.f32.gmra.mxu0 %v5604
      %v5802 = vpop.f32.mrf.mxu0
      %v5803 = vadd.f32 0.0, %v5802
      %v5804 = vpop.f32.mrf.mxu0
      %5805 = vmatprep.mubr.f32.mxu0 0.0
      %5806 = vmatmul.mubr.f32.gmra.mxu0 %v5607
      %v5807 = vpop.f32.mrf.mxu0
      %v5808 = vadd.f32 0.0, %v5807
      %v5809 = vpop.f32.mrf.mxu0
      %5810 = vmatprep.mubr.f32.mxu0 0.0
      %5811 = vmatmul.mubr.f32.gmra.mxu0 %v5610
      %v5812 = vpop.f32.mrf.mxu0
      %v5813 = vadd.f32 0.0, %v5812
      %v5814 = vpop.f32.mrf.mxu0
      %5815 = vmatprep.mubr.f32.mxu0 0.0
      %5816 = vmatmul.mubr.f32.gmra.mxu0 %v5613
      %v5817 = vpop.f32.mrf.mxu0
      %v5818 = vadd.f32 0.0, %v5817
      %v5819 = vpop.f32.mrf.mxu0
      %5820 = vmatprep.mubr.f32.mxu0 0.0
      %5821 = vmatmul.mubr.f32.gmra.mxu0 %v5616
      %v5822 = vpop.f32.mrf.mxu0
      %v5823 = vadd.f32 0.0, %v5822
      %v5824 = vpop.f32.mrf.mxu0
      %5825 = vmatprep.mubr.f32.mxu0 0.0
      %5826 = vmatmul.mubr.f32.gmra.mxu0 %v5619
      %v5827 = vpop.f32.mrf.mxu0
      %v5828 = vadd.f32 0.0, %v5827
      %v5829 = vpop.f32.mrf.mxu0
      %5830 = vmatprep.mubr.f32.mxu0 0.0
      %5831 = vmatmul.mubr.f32.gmra.mxu0 %v5622
      %v5832 = vpop.f32.mrf.mxu0
      %v5833 = vadd.f32 0.0, %v5832
      %v5834 = vpop.f32.mrf.mxu0
      %5835 = vmatprep.mubr.f32.mxu0 0.0
      %5836 = vmatmul.mubr.f32.gmra.mxu0 %v5625
      %v5837 = vpop.f32.mrf.mxu0
      %v5838 = vadd.f32 0.0, %v5837
      %v5839 = vpop.f32.mrf.mxu0
      %5840 = vmatprep.mubr.f32.mxu0 0.0
      %5841 = vmatmul.mubr.f32.gmra.mxu0 %v5628
      %v5842 = vpop.f32.mrf.mxu0
      %v5843 = vadd.f32 0.0, %v5842
      %v5844 = vpop.f32.mrf.mxu0
      %5845 = vmatprep.mubr.f32.mxu0 0.0
      %5846 = vmatmul.mubr.f32.gmra.mxu0 %v5631
      %v5847 = vpop.f32.mrf.mxu0
      %v5848 = vadd.f32 0.0, %v5847
      %v5849 = vpop.f32.mrf.mxu0
      %5850 = vmatprep.mubr.f32.mxu0 0.0
      %5851 = vmatmul.mubr.f32.gmra.mxu0 %v5634
      %v5852 = vpop.f32.mrf.mxu0
      %v5853 = vadd.f32 0.0, %v5852
      %v5854 = vpop.f32.mrf.mxu0
      %5855 = vmatprep.mubr.f32.mxu0 0.0
      %5856 = vmatmul.mubr.f32.gmra.mxu0 %v5637
      %v5857 = vpop.f32.mrf.mxu0
      %v5858 = vadd.f32 0.0, %v5857
      %v5859 = vpop.f32.mrf.mxu0
      %5860 = vmatprep.mubr.f32.mxu0 0.0
      %5861 = vmatmul.mubr.f32.gmra.mxu0 %v5640
      %v5862 = vpop.f32.mrf.mxu0
      %v5863 = vadd.f32 0.0, %v5862
      %v5864 = vpop.f32.mrf.mxu0
      %5865 = vmatprep.mubr.f32.mxu0 0.0
      %5866 = vmatmul.mubr.f32.gmra.mxu0 %v5643
      %v5867 = vpop.f32.mrf.mxu0
      %v5868 = vadd.f32 0.0, %v5867
      %v5869 = vpop.f32.mrf.mxu0
      %5870 = vmatprep.mubr.f32.mxu0 0.0
      %5871 = vmatmul.mubr.f32.gmra.mxu0 %v5646
      %v5872 = vpop.f32.mrf.mxu0
      %v5873 = vadd.f32 0.0, %v5872
      %v5874 = vpop.f32.mrf.mxu0
      %5875 = vdwg.mxu0
      %v5876 = vadd.f32 %v5486, %v5718
      %v5877 = vadd.f32 %v5487, %v5723
      %v5878 = vadd.f32 %v5488, %v5728
      %v5879 = vadd.f32 %v5489, %v5733
      %v5880 = vadd.f32 %v5490, %v5738
      %v5881 = vadd.f32 %v5491, %v5743
      %v5882 = vadd.f32 %v5492, %v5748
      %v5883 = vadd.f32 %v5493, %v5753
      %v5884 = vadd.f32 %v5494, %v5758
      %v5885 = vadd.f32 %v5495, %v5763
      %v5886 = vadd.f32 %v5496, %v5768
      %v5887 = vadd.f32 %v5497, %v5773
      %v5888 = vadd.f32 %v5498, %v5778
      %v5889 = vadd.f32 %v5499, %v5783
      %v5890 = vadd.f32 %v5500, %v5788
      %v5891 = vadd.f32 %v5501, %v5793
      %v5892 = vadd.f32 %v5502, %v5798
      %v5893 = vadd.f32 %v5503, %v5803
      %v5894 = vadd.f32 %v5504, %v5808
      %v5895 = vadd.f32 %v5505, %v5813
      %v5896 = vadd.f32 %v5506, %v5818
      %v5897 = vadd.f32 %v5507, %v5823
      %v5898 = vadd.f32 %v5508, %v5828
      %v5899 = vadd.f32 %v5509, %v5833
      %v5900 = vadd.f32 %v5510, %v5838
      %v5901 = vadd.f32 %v5511, %v5843
      %v5902 = vadd.f32 %v5512, %v5848
      %v5903 = vadd.f32 %v5513, %v5853
      %v5904 = vadd.f32 %v5514, %v5858
      %v5905 = vadd.f32 %v5515, %v5863
      %v5906 = vadd.f32 %v5516, %v5868
      %v5907 = vadd.f32 %v5517, %v5873
      %v5908 = vld [vmem:[%s3990 + $0x2] sm:$0xff]
      %v5909 = vld [vmem:[%s3990 + $0xa] sm:$0xff]
      %v5910 = vld [vmem:[%s3990 + $0x1a] sm:$0xff]
      %v5911 = vld [vmem:[%s3990 + $0x22] sm:$0xff]
      %v5912 = vld [vmem:[%s3990 + $0x32] sm:$0xff]
      %v5913 = vld [vmem:[%s3990 + $0x3a] sm:$0xff]
      %v5914 = vld [vmem:[%s3990 + $0x4a] sm:$0xff]
      %v5915 = vld [vmem:[%s3990 + $0x52] sm:$0xff]
      %v5916 = vld [vmem:[%s3990 + $0x62] sm:$0xff]
      %v5917 = vld [vmem:[%s3990 + $0x6a] sm:$0xff]
      %v5918 = vld [vmem:[%s3990 + $0x7a] sm:$0xff]
      %v5919 = vld [vmem:[%s3990 + $0x82] sm:$0xff]
      %v5920 = vld [vmem:[%s3990 + $0x92] sm:$0xff]
      %v5921 = vld [vmem:[%s3990 + $0x9a] sm:$0xff]
      %v5922 = vld [vmem:[%s3990 + $0xaa] sm:$0xff]
      %v5923 = vld [vmem:[%s3990 + $0xb2] sm:$0xff]
      %v5924 = vld [vmem:[%s3990 + $0xc2] sm:$0xff]
      %v5925 = vld [vmem:[%s3990 + $0xca] sm:$0xff]
      %v5926 = vld [vmem:[%s3990 + $0xda] sm:$0xff]
      %v5927 = vld [vmem:[%s3990 + $0xe2] sm:$0xff]
      %v5928 = vld [vmem:[%s3990 + $0xf2] sm:$0xff]
      %v5929 = vld [vmem:[%s3990 + $0xfa] sm:$0xff]
      %v5930 = vld [vmem:[%s3990 + $0x10a] sm:$0xff]
      %v5931 = vld [vmem:[%s3990 + $0x112] sm:$0xff]
      %v5932 = vld [vmem:[%s3990 + $0x122] sm:$0xff]
      %v5933 = vld [vmem:[%s3990 + $0x12a] sm:$0xff]
      %v5934 = vld [vmem:[%s3990 + $0x13a] sm:$0xff]
      %v5935 = vld [vmem:[%s3990 + $0x142] sm:$0xff]
      %v5936 = vld [vmem:[%s3990 + $0x152] sm:$0xff]
      %v5937 = vld [vmem:[%s3990 + $0x15a] sm:$0xff]
      %v5938 = vld [vmem:[%s3990 + $0x16a] sm:$0xff]
      %v5939 = vld [vmem:[%s3990 + $0x172] sm:$0xff]
      %s5940 = scalar_lea.vmem %s4, 20
      %v5941 = vld [vmem:[%s5940] sm:$0xf]
      %v5943 = vsel %vm279, %v5908, 0
      %v5946 = vsel %vm279, %v5909, 0
      %v5949 = vsel %vm279, %v5910, 0
      %v5952 = vsel %vm279, %v5911, 0
      %v5955 = vsel %vm279, %v5912, 0
      %v5958 = vsel %vm279, %v5913, 0
      %v5961 = vsel %vm279, %v5914, 0
      %v5964 = vsel %vm279, %v5915, 0
      %v5967 = vsel %vm279, %v5916, 0
      %v5970 = vsel %vm279, %v5917, 0
      %v5973 = vsel %vm279, %v5918, 0
      %v5976 = vsel %vm279, %v5919, 0
      %v5979 = vsel %vm279, %v5920, 0
      %v5982 = vsel %vm279, %v5921, 0
      %v5985 = vsel %vm279, %v5922, 0
      %v5988 = vsel %vm279, %v5923, 0
      %v5991 = vsel %vm279, %v5924, 0
      %v5994 = vsel %vm279, %v5925, 0
      %v5997 = vsel %vm279, %v5926, 0
      %v6000 = vsel %vm279, %v5927, 0
      %v6003 = vsel %vm279, %v5928, 0
      %v6006 = vsel %vm279, %v5929, 0
      %v6009 = vsel %vm279, %v5930, 0
      %v6012 = vsel %vm279, %v5931, 0
      %v6015 = vsel %vm279, %v5932, 0
      %v6018 = vsel %vm279, %v5933, 0
      %v6021 = vsel %vm279, %v5934, 0
      %v6024 = vsel %vm279, %v5935, 0
      %v6027 = vsel %vm279, %v5936, 0
      %v6030 = vsel %vm279, %v5937, 0
      %v6033 = vsel %vm279, %v5938, 0
      %v6036 = vsel %vm279, %v5939, 0
      %v6039 = vsel %vm596, %v5941, 0
      %6041 = vmatprep.subr.mxu0 0.0
      %6042 = vmatpush1.msra.mxu0 0.0
      %6043 = vmatprep.subr.mxu0 0.0
      %6044 = vmatpush1.msra.mxu0 0.0
      %6045 = vmatprep.subr.mxu0 0.0
      %6046 = vmatpush1.msra.mxu0 0.0
      %6047 = vmatprep.subr.mxu0 0.0
      %6048 = vmatpush1.msra.mxu0 0.0
      %6049 = vmatprep.subr.mxu0 0.0
      %6050 = vmatpush1.msra.mxu0 0.0
      %6051 = vmatprep.subr.mxu0 0.0
      %6052 = vmatpush1.msra.mxu0 0.0
      %6053 = vmatprep.subr.mxu0 0.0
      %6054 = vmatpush1.msra.mxu0 0.0
      %6055 = vmatprep.subr.mxu0 0.0
      %6056 = vmatpush1.msra.mxu0 0.0
      %6057 = vmatprep.subr.mxu0 0.0
      %6058 = vmatpush1.msra.mxu0 0.0
      %6059 = vmatprep.subr.mxu0 0.0
      %6060 = vmatpush1.msra.mxu0 0.0
      %6061 = vmatprep.subr.mxu0 0.0
      %6062 = vmatpush1.msra.mxu0 0.0
      %6063 = vmatprep.subr.mxu0 0.0
      %6064 = vmatpush1.msra.mxu0 0.0
      %6065 = vmatprep.subr.mxu0 0.0
      %6066 = vmatpush1.msra.mxu0 0.0
      %6067 = vmatprep.subr.mxu0 0.0
      %6068 = vmatpush1.msra.mxu0 0.0
      %6069 = vmatprep.subr.mxu0 0.0
      %6070 = vmatpush1.msra.mxu0 0.0
      %6071 = vmatprep.subr.mxu0 0.0
      %6072 = vmatpush1.msra.mxu0 %v6039
      %6073 = vmatprep.subr.mxu0 0.0
      %6074 = vmatpush2.msra.mxu0 0.0
      %6075 = vmatprep.subr.mxu0 0.0
      %6076 = vmatpush2.msra.mxu0 0.0
      %6077 = vmatprep.subr.mxu0 0.0
      %6078 = vmatpush2.msra.mxu0 0.0
      %6079 = vmatprep.subr.mxu0 0.0
      %6080 = vmatpush2.msra.mxu0 0.0
      %6081 = vmatprep.subr.mxu0 0.0
      %6082 = vmatpush2.msra.mxu0 0.0
      %6083 = vmatprep.subr.mxu0 0.0
      %6084 = vmatpush2.msra.mxu0 0.0
      %6085 = vmatprep.subr.mxu0 0.0
      %6086 = vmatpush2.msra.mxu0 0.0
      %6087 = vmatprep.subr.mxu0 0.0
      %6088 = vmatpush2.msra.mxu0 0.0
      %6089 = vmatprep.subr.mxu0 0.0
      %6090 = vmatpush2.msra.mxu0 0.0
      %6091 = vmatprep.subr.mxu0 0.0
      %6092 = vmatpush2.msra.mxu0 0.0
      %6093 = vmatprep.subr.mxu0 0.0
      %6094 = vmatpush2.msra.mxu0 0.0
      %6095 = vmatprep.subr.mxu0 0.0
      %6096 = vmatpush2.msra.mxu0 0.0
      %6097 = vmatprep.subr.mxu0 0.0
      %6098 = vmatpush2.msra.mxu0 0.0
      %6099 = vmatprep.subr.mxu0 0.0
      %6100 = vmatpush2.msra.mxu0 0.0
      %6101 = vmatprep.subr.mxu0 0.0
      %6102 = vmatpush2.msra.mxu0 0.0
      %6103 = vmatprep.subr.mxu0 0.0
      %6104 = vmatpush2.msra.mxu0 0.0
      %6105 = vmatprep.mubr.f32.mxu0 0.0
      %6106 = vmatmul.mubr.f32.gmra.mxu0 %v5943
      %v6107 = vpop.f32.mrf.mxu0
      %v6108 = vadd.f32 0.0, %v6107
      %v6109 = vpop.f32.mrf.mxu0
      %6110 = vmatprep.mubr.f32.mxu0 0.0
      %6111 = vmatmul.mubr.f32.gmra.mxu0 %v5946
      %v6112 = vpop.f32.mrf.mxu0
      %v6113 = vadd.f32 0.0, %v6112
      %v6114 = vpop.f32.mrf.mxu0
      %6115 = vmatprep.mubr.f32.mxu0 0.0
      %6116 = vmatmul.mubr.f32.gmra.mxu0 %v5949
      %v6117 = vpop.f32.mrf.mxu0
      %v6118 = vadd.f32 0.0, %v6117
      %v6119 = vpop.f32.mrf.mxu0
      %6120 = vmatprep.mubr.f32.mxu0 0.0
      %6121 = vmatmul.mubr.f32.gmra.mxu0 %v5952
      %v6122 = vpop.f32.mrf.mxu0
      %v6123 = vadd.f32 0.0, %v6122
      %v6124 = vpop.f32.mrf.mxu0
      %6125 = vmatprep.mubr.f32.mxu0 0.0
      %6126 = vmatmul.mubr.f32.gmra.mxu0 %v5955
      %v6127 = vpop.f32.mrf.mxu0
      %v6128 = vadd.f32 0.0, %v6127
      %v6129 = vpop.f32.mrf.mxu0
      %6130 = vmatprep.mubr.f32.mxu0 0.0
      %6131 = vmatmul.mubr.f32.gmra.mxu0 %v5958
      %v6132 = vpop.f32.mrf.mxu0
      %v6133 = vadd.f32 0.0, %v6132
      %v6134 = vpop.f32.mrf.mxu0
      %6135 = vmatprep.mubr.f32.mxu0 0.0
      %6136 = vmatmul.mubr.f32.gmra.mxu0 %v5961
      %v6137 = vpop.f32.mrf.mxu0
      %v6138 = vadd.f32 0.0, %v6137
      %v6139 = vpop.f32.mrf.mxu0
      %6140 = vmatprep.mubr.f32.mxu0 0.0
      %6141 = vmatmul.mubr.f32.gmra.mxu0 %v5964
      %v6142 = vpop.f32.mrf.mxu0
      %v6143 = vadd.f32 0.0, %v6142
      %v6144 = vpop.f32.mrf.mxu0
      %6145 = vmatprep.mubr.f32.mxu0 0.0
      %6146 = vmatmul.mubr.f32.gmra.mxu0 %v5967
      %v6147 = vpop.f32.mrf.mxu0
      %v6148 = vadd.f32 0.0, %v6147
      %v6149 = vpop.f32.mrf.mxu0
      %6150 = vmatprep.mubr.f32.mxu0 0.0
      %6151 = vmatmul.mubr.f32.gmra.mxu0 %v5970
      %v6152 = vpop.f32.mrf.mxu0
      %v6153 = vadd.f32 0.0, %v6152
      %v6154 = vpop.f32.mrf.mxu0
      %6155 = vmatprep.mubr.f32.mxu0 0.0
      %6156 = vmatmul.mubr.f32.gmra.mxu0 %v5973
      %v6157 = vpop.f32.mrf.mxu0
      %v6158 = vadd.f32 0.0, %v6157
      %v6159 = vpop.f32.mrf.mxu0
      %6160 = vmatprep.mubr.f32.mxu0 0.0
      %6161 = vmatmul.mubr.f32.gmra.mxu0 %v5976
      %v6162 = vpop.f32.mrf.mxu0
      %v6163 = vadd.f32 0.0, %v6162
      %v6164 = vpop.f32.mrf.mxu0
      %6165 = vmatprep.mubr.f32.mxu0 0.0
      %6166 = vmatmul.mubr.f32.gmra.mxu0 %v5979
      %v6167 = vpop.f32.mrf.mxu0
      %v6168 = vadd.f32 0.0, %v6167
      %v6169 = vpop.f32.mrf.mxu0
      %6170 = vmatprep.mubr.f32.mxu0 0.0
      %6171 = vmatmul.mubr.f32.gmra.mxu0 %v5982
      %v6172 = vpop.f32.mrf.mxu0
      %v6173 = vadd.f32 0.0, %v6172
      %v6174 = vpop.f32.mrf.mxu0
      %6175 = vmatprep.mubr.f32.mxu0 0.0
      %6176 = vmatmul.mubr.f32.gmra.mxu0 %v5985
      %v6177 = vpop.f32.mrf.mxu0
      %v6178 = vadd.f32 0.0, %v6177
      %v6179 = vpop.f32.mrf.mxu0
      %6180 = vmatprep.mubr.f32.mxu0 0.0
      %6181 = vmatmul.mubr.f32.gmra.mxu0 %v5988
      %v6182 = vpop.f32.mrf.mxu0
      %v6183 = vadd.f32 0.0, %v6182
      %v6184 = vpop.f32.mrf.mxu0
      %6185 = vmatprep.mubr.f32.mxu0 0.0
      %6186 = vmatmul.mubr.f32.gmra.mxu0 %v5991
      %v6187 = vpop.f32.mrf.mxu0
      %v6188 = vadd.f32 0.0, %v6187
      %v6189 = vpop.f32.mrf.mxu0
      %6190 = vmatprep.mubr.f32.mxu0 0.0
      %6191 = vmatmul.mubr.f32.gmra.mxu0 %v5994
      %v6192 = vpop.f32.mrf.mxu0
      %v6193 = vadd.f32 0.0, %v6192
      %v6194 = vpop.f32.mrf.mxu0
      %6195 = vmatprep.mubr.f32.mxu0 0.0
      %6196 = vmatmul.mubr.f32.gmra.mxu0 %v5997
      %v6197 = vpop.f32.mrf.mxu0
      %v6198 = vadd.f32 0.0, %v6197
      %v6199 = vpop.f32.mrf.mxu0
      %6200 = vmatprep.mubr.f32.mxu0 0.0
      %6201 = vmatmul.mubr.f32.gmra.mxu0 %v6000
      %v6202 = vpop.f32.mrf.mxu0
      %v6203 = vadd.f32 0.0, %v6202
      %v6204 = vpop.f32.mrf.mxu0
      %6205 = vmatprep.mubr.f32.mxu0 0.0
      %6206 = vmatmul.mubr.f32.gmra.mxu0 %v6003
      %v6207 = vpop.f32.mrf.mxu0
      %v6208 = vadd.f32 0.0, %v6207
      %v6209 = vpop.f32.mrf.mxu0
      %6210 = vmatprep.mubr.f32.mxu0 0.0
      %6211 = vmatmul.mubr.f32.gmra.mxu0 %v6006
      %v6212 = vpop.f32.mrf.mxu0
      %v6213 = vadd.f32 0.0, %v6212
      %v6214 = vpop.f32.mrf.mxu0
      %6215 = vmatprep.mubr.f32.mxu0 0.0
      %6216 = vmatmul.mubr.f32.gmra.mxu0 %v6009
      %v6217 = vpop.f32.mrf.mxu0
      %v6218 = vadd.f32 0.0, %v6217
      %v6219 = vpop.f32.mrf.mxu0
      %6220 = vmatprep.mubr.f32.mxu0 0.0
      %6221 = vmatmul.mubr.f32.gmra.mxu0 %v6012
      %v6222 = vpop.f32.mrf.mxu0
      %v6223 = vadd.f32 0.0, %v6222
      %v6224 = vpop.f32.mrf.mxu0
      %6225 = vmatprep.mubr.f32.mxu0 0.0
      %6226 = vmatmul.mubr.f32.gmra.mxu0 %v6015
      %v6227 = vpop.f32.mrf.mxu0
      %v6228 = vadd.f32 0.0, %v6227
      %v6229 = vpop.f32.mrf.mxu0
      %6230 = vmatprep.mubr.f32.mxu0 0.0
      %6231 = vmatmul.mubr.f32.gmra.mxu0 %v6018
      %v6232 = vpop.f32.mrf.mxu0
      %v6233 = vadd.f32 0.0, %v6232
      %v6234 = vpop.f32.mrf.mxu0
      %6235 = vmatprep.mubr.f32.mxu0 0.0
      %6236 = vmatmul.mubr.f32.gmra.mxu0 %v6021
      %v6237 = vpop.f32.mrf.mxu0
      %v6238 = vadd.f32 0.0, %v6237
      %v6239 = vpop.f32.mrf.mxu0
      %6240 = vmatprep.mubr.f32.mxu0 0.0
      %6241 = vmatmul.mubr.f32.gmra.mxu0 %v6024
      %v6242 = vpop.f32.mrf.mxu0
      %v6243 = vadd.f32 0.0, %v6242
      %v6244 = vpop.f32.mrf.mxu0
      %6245 = vmatprep.mubr.f32.mxu0 0.0
      %6246 = vmatmul.mubr.f32.gmra.mxu0 %v6027
      %v6247 = vpop.f32.mrf.mxu0
      %v6248 = vadd.f32 0.0, %v6247
      %v6249 = vpop.f32.mrf.mxu0
      %6250 = vmatprep.mubr.f32.mxu0 0.0
      %6251 = vmatmul.mubr.f32.gmra.mxu0 %v6030
      %v6252 = vpop.f32.mrf.mxu0
      %v6253 = vadd.f32 0.0, %v6252
      %v6254 = vpop.f32.mrf.mxu0
      %6255 = vmatprep.mubr.f32.mxu0 0.0
      %6256 = vmatmul.mubr.f32.gmra.mxu0 %v6033
      %v6257 = vpop.f32.mrf.mxu0
      %v6258 = vadd.f32 0.0, %v6257
      %v6259 = vpop.f32.mrf.mxu0
      %6260 = vmatprep.mubr.f32.mxu0 0.0
      %6261 = vmatmul.mubr.f32.gmra.mxu0 %v6036
      %v6262 = vpop.f32.mrf.mxu0
      %v6263 = vadd.f32 0.0, %v6262
      %v6264 = vpop.f32.mrf.mxu0
      %6265 = vdwg.mxu0
      %v6266 = vadd.f32 %v5876, %v6108
      %v6267 = vadd.f32 %v5877, %v6113
      %v6268 = vadd.f32 %v5878, %v6118
      %v6269 = vadd.f32 %v5879, %v6123
      %v6270 = vadd.f32 %v5880, %v6128
      %v6271 = vadd.f32 %v5881, %v6133
      %v6272 = vadd.f32 %v5882, %v6138
      %v6273 = vadd.f32 %v5883, %v6143
      %v6274 = vadd.f32 %v5884, %v6148
      %v6275 = vadd.f32 %v5885, %v6153
      %v6276 = vadd.f32 %v5886, %v6158
      %v6277 = vadd.f32 %v5887, %v6163
      %v6278 = vadd.f32 %v5888, %v6168
      %v6279 = vadd.f32 %v5889, %v6173
      %v6280 = vadd.f32 %v5890, %v6178
      %v6281 = vadd.f32 %v5891, %v6183
      %v6282 = vadd.f32 %v5892, %v6188
      %v6283 = vadd.f32 %v5893, %v6193
      %v6284 = vadd.f32 %v5894, %v6198
      %v6285 = vadd.f32 %v5895, %v6203
      %v6286 = vadd.f32 %v5896, %v6208
      %v6287 = vadd.f32 %v5897, %v6213
      %v6288 = vadd.f32 %v5898, %v6218
      %v6289 = vadd.f32 %v5899, %v6223
      %v6290 = vadd.f32 %v5900, %v6228
      %v6291 = vadd.f32 %v5901, %v6233
      %v6292 = vadd.f32 %v5902, %v6238
      %v6293 = vadd.f32 %v5903, %v6243
      %v6294 = vadd.f32 %v5904, %v6248
      %v6295 = vadd.f32 %v5905, %v6253
      %v6296 = vadd.f32 %v5906, %v6258
      %v6297 = vadd.f32 %v5907, %v6263
      %s6298 = scalar_lea.vmem [#allocation3], 48
      %v6299 = vld [vmem:[%s6298] sm:$0xff]
      %v6300 = vld [vmem:[%s6298 + $0x8] sm:$0xff]
      %v6301 = vld [vmem:[%s6298 + $0x18] sm:$0xff]
      %v6302 = vld [vmem:[%s6298 + $0x20] sm:$0xff]
      %v6303 = vld [vmem:[%s6298 + $0x30] sm:$0xff]
      %v6304 = vld [vmem:[%s6298 + $0x38] sm:$0xff]
      %v6305 = vld [vmem:[%s6298 + $0x48] sm:$0xff]
      %v6306 = vld [vmem:[%s6298 + $0x50] sm:$0xff]
      %v6307 = vld [vmem:[%s6298 + $0x60] sm:$0xff]
      %v6308 = vld [vmem:[%s6298 + $0x68] sm:$0xff]
      %v6309 = vld [vmem:[%s6298 + $0x78] sm:$0xff]
      %v6310 = vld [vmem:[%s6298 + $0x80] sm:$0xff]
      %v6311 = vld [vmem:[%s6298 + $0x90] sm:$0xff]
      %v6312 = vld [vmem:[%s6298 + $0x98] sm:$0xff]
      %v6313 = vld [vmem:[%s6298 + $0xa8] sm:$0xff]
      %v6314 = vld [vmem:[%s6298 + $0xb0] sm:$0xff]
      %v6315 = vld [vmem:[%s6298 + $0xc0] sm:$0xff]
      %v6316 = vld [vmem:[%s6298 + $0xc8] sm:$0xff]
      %v6317 = vld [vmem:[%s6298 + $0xd8] sm:$0xff]
      %v6318 = vld [vmem:[%s6298 + $0xe0] sm:$0xff]
      %v6319 = vld [vmem:[%s6298 + $0xf0] sm:$0xff]
      %v6320 = vld [vmem:[%s6298 + $0xf8] sm:$0xff]
      %v6321 = vld [vmem:[%s6298 + $0x108] sm:$0xff]
      %v6322 = vld [vmem:[%s6298 + $0x110] sm:$0xff]
      %v6323 = vld [vmem:[%s6298 + $0x120] sm:$0xff]
      %v6324 = vld [vmem:[%s6298 + $0x128] sm:$0xff]
      %v6325 = vld [vmem:[%s6298 + $0x138] sm:$0xff]
      %v6326 = vld [vmem:[%s6298 + $0x140] sm:$0xff]
      %v6327 = vld [vmem:[%s6298 + $0x150] sm:$0xff]
      %v6328 = vld [vmem:[%s6298 + $0x158] sm:$0xff]
      %v6329 = vld [vmem:[%s6298 + $0x168] sm:$0xff]
      %v6330 = vld [vmem:[%s6298 + $0x170] sm:$0xff]
      %s6331 = scalar_lea.vmem %s4, 24
      %v6332 = vld [vmem:[%s6331] sm:$0xf]
      %v6334 = vsel %vm279, %v6299, 0
      %v6337 = vsel %vm279, %v6300, 0
      %v6340 = vsel %vm279, %v6301, 0
      %v6343 = vsel %vm279, %v6302, 0
      %v6346 = vsel %vm279, %v6303, 0
      %v6349 = vsel %vm279, %v6304, 0
      %v6352 = vsel %vm279, %v6305, 0
      %v6355 = vsel %vm279, %v6306, 0
      %v6358 = vsel %vm279, %v6307, 0
      %v6361 = vsel %vm279, %v6308, 0
      %v6364 = vsel %vm279, %v6309, 0
      %v6367 = vsel %vm279, %v6310, 0
      %v6370 = vsel %vm279, %v6311, 0
      %v6373 = vsel %vm279, %v6312, 0
      %v6376 = vsel %vm279, %v6313, 0
      %v6379 = vsel %vm279, %v6314, 0
      %v6382 = vsel %vm279, %v6315, 0
      %v6385 = vsel %vm279, %v6316, 0
      %v6388 = vsel %vm279, %v6317, 0
      %v6391 = vsel %vm279, %v6318, 0
      %v6394 = vsel %vm279, %v6319, 0
      %v6397 = vsel %vm279, %v6320, 0
      %v6400 = vsel %vm279, %v6321, 0
      %v6403 = vsel %vm279, %v6322, 0
      %v6406 = vsel %vm279, %v6323, 0
      %v6409 = vsel %vm279, %v6324, 0
      %v6412 = vsel %vm279, %v6325, 0
      %v6415 = vsel %vm279, %v6326, 0
      %v6418 = vsel %vm279, %v6327, 0
      %v6421 = vsel %vm279, %v6328, 0
      %v6424 = vsel %vm279, %v6329, 0
      %v6427 = vsel %vm279, %v6330, 0
      %v6430 = vsel %vm596, %v6332, 0
      %6432 = vmatprep.subr.mxu0 0.0
      %6433 = vmatpush1.msra.mxu0 0.0
      %6434 = vmatprep.subr.mxu0 0.0
      %6435 = vmatpush1.msra.mxu0 0.0
      %6436 = vmatprep.subr.mxu0 0.0
      %6437 = vmatpush1.msra.mxu0 0.0
      %6438 = vmatprep.subr.mxu0 0.0
      %6439 = vmatpush1.msra.mxu0 0.0
      %6440 = vmatprep.subr.mxu0 0.0
      %6441 = vmatpush1.msra.mxu0 0.0
      %6442 = vmatprep.subr.mxu0 0.0
      %6443 = vmatpush1.msra.mxu0 0.0
      %6444 = vmatprep.subr.mxu0 0.0
      %6445 = vmatpush1.msra.mxu0 0.0
      %6446 = vmatprep.subr.mxu0 0.0
      %6447 = vmatpush1.msra.mxu0 0.0
      %6448 = vmatprep.subr.mxu0 0.0
      %6449 = vmatpush1.msra.mxu0 0.0
      %6450 = vmatprep.subr.mxu0 0.0
      %6451 = vmatpush1.msra.mxu0 0.0
      %6452 = vmatprep.subr.mxu0 0.0
      %6453 = vmatpush1.msra.mxu0 0.0
      %6454 = vmatprep.subr.mxu0 0.0
      %6455 = vmatpush1.msra.mxu0 0.0
      %6456 = vmatprep.subr.mxu0 0.0
      %6457 = vmatpush1.msra.mxu0 0.0
      %6458 = vmatprep.subr.mxu0 0.0
      %6459 = vmatpush1.msra.mxu0 0.0
      %6460 = vmatprep.subr.mxu0 0.0
      %6461 = vmatpush1.msra.mxu0 0.0
      %6462 = vmatprep.subr.mxu0 0.0
      %6463 = vmatpush1.msra.mxu0 %v6430
      %6464 = vmatprep.subr.mxu0 0.0
      %6465 = vmatpush2.msra.mxu0 0.0
      %6466 = vmatprep.subr.mxu0 0.0
      %6467 = vmatpush2.msra.mxu0 0.0
      %6468 = vmatprep.subr.mxu0 0.0
      %6469 = vmatpush2.msra.mxu0 0.0
      %6470 = vmatprep.subr.mxu0 0.0
      %6471 = vmatpush2.msra.mxu0 0.0
      %6472 = vmatprep.subr.mxu0 0.0
      %6473 = vmatpush2.msra.mxu0 0.0
      %6474 = vmatprep.subr.mxu0 0.0
      %6475 = vmatpush2.msra.mxu0 0.0
      %6476 = vmatprep.subr.mxu0 0.0
      %6477 = vmatpush2.msra.mxu0 0.0
      %6478 = vmatprep.subr.mxu0 0.0
      %6479 = vmatpush2.msra.mxu0 0.0
      %6480 = vmatprep.subr.mxu0 0.0
      %6481 = vmatpush2.msra.mxu0 0.0
      %6482 = vmatprep.subr.mxu0 0.0
      %6483 = vmatpush2.msra.mxu0 0.0
      %6484 = vmatprep.subr.mxu0 0.0
      %6485 = vmatpush2.msra.mxu0 0.0
      %6486 = vmatprep.subr.mxu0 0.0
      %6487 = vmatpush2.msra.mxu0 0.0
      %6488 = vmatprep.subr.mxu0 0.0
      %6489 = vmatpush2.msra.mxu0 0.0
      %6490 = vmatprep.subr.mxu0 0.0
      %6491 = vmatpush2.msra.mxu0 0.0
      %6492 = vmatprep.subr.mxu0 0.0
      %6493 = vmatpush2.msra.mxu0 0.0
      %6494 = vmatprep.subr.mxu0 0.0
      %6495 = vmatpush2.msra.mxu0 0.0
      %6496 = vmatprep.mubr.f32.mxu0 0.0
      %6497 = vmatmul.mubr.f32.gmra.mxu0 %v6334
      %v6498 = vpop.f32.mrf.mxu0
      %v6499 = vadd.f32 0.0, %v6498
      %v6500 = vpop.f32.mrf.mxu0
      %6501 = vmatprep.mubr.f32.mxu0 0.0
      %6502 = vmatmul.mubr.f32.gmra.mxu0 %v6337
      %v6503 = vpop.f32.mrf.mxu0
      %v6504 = vadd.f32 0.0, %v6503
      %v6505 = vpop.f32.mrf.mxu0
      %6506 = vmatprep.mubr.f32.mxu0 0.0
      %6507 = vmatmul.mubr.f32.gmra.mxu0 %v6340
      %v6508 = vpop.f32.mrf.mxu0
      %v6509 = vadd.f32 0.0, %v6508
      %v6510 = vpop.f32.mrf.mxu0
      %6511 = vmatprep.mubr.f32.mxu0 0.0
      %6512 = vmatmul.mubr.f32.gmra.mxu0 %v6343
      %v6513 = vpop.f32.mrf.mxu0
      %v6514 = vadd.f32 0.0, %v6513
      %v6515 = vpop.f32.mrf.mxu0
      %6516 = vmatprep.mubr.f32.mxu0 0.0
      %6517 = vmatmul.mubr.f32.gmra.mxu0 %v6346
      %v6518 = vpop.f32.mrf.mxu0
      %v6519 = vadd.f32 0.0, %v6518
      %v6520 = vpop.f32.mrf.mxu0
      %6521 = vmatprep.mubr.f32.mxu0 0.0
      %6522 = vmatmul.mubr.f32.gmra.mxu0 %v6349
      %v6523 = vpop.f32.mrf.mxu0
      %v6524 = vadd.f32 0.0, %v6523
      %v6525 = vpop.f32.mrf.mxu0
      %6526 = vmatprep.mubr.f32.mxu0 0.0
      %6527 = vmatmul.mubr.f32.gmra.mxu0 %v6352
      %v6528 = vpop.f32.mrf.mxu0
      %v6529 = vadd.f32 0.0, %v6528
      %v6530 = vpop.f32.mrf.mxu0
      %6531 = vmatprep.mubr.f32.mxu0 0.0
      %6532 = vmatmul.mubr.f32.gmra.mxu0 %v6355
      %v6533 = vpop.f32.mrf.mxu0
      %v6534 = vadd.f32 0.0, %v6533
      %v6535 = vpop.f32.mrf.mxu0
      %6536 = vmatprep.mubr.f32.mxu0 0.0
      %6537 = vmatmul.mubr.f32.gmra.mxu0 %v6358
      %v6538 = vpop.f32.mrf.mxu0
      %v6539 = vadd.f32 0.0, %v6538
      %v6540 = vpop.f32.mrf.mxu0
      %6541 = vmatprep.mubr.f32.mxu0 0.0
      %6542 = vmatmul.mubr.f32.gmra.mxu0 %v6361
      %v6543 = vpop.f32.mrf.mxu0
      %v6544 = vadd.f32 0.0, %v6543
      %v6545 = vpop.f32.mrf.mxu0
      %6546 = vmatprep.mubr.f32.mxu0 0.0
      %6547 = vmatmul.mubr.f32.gmra.mxu0 %v6364
      %v6548 = vpop.f32.mrf.mxu0
      %v6549 = vadd.f32 0.0, %v6548
      %v6550 = vpop.f32.mrf.mxu0
      %6551 = vmatprep.mubr.f32.mxu0 0.0
      %6552 = vmatmul.mubr.f32.gmra.mxu0 %v6367
      %v6553 = vpop.f32.mrf.mxu0
      %v6554 = vadd.f32 0.0, %v6553
      %v6555 = vpop.f32.mrf.mxu0
      %6556 = vmatprep.mubr.f32.mxu0 0.0
      %6557 = vmatmul.mubr.f32.gmra.mxu0 %v6370
      %v6558 = vpop.f32.mrf.mxu0
      %v6559 = vadd.f32 0.0, %v6558
      %v6560 = vpop.f32.mrf.mxu0
      %6561 = vmatprep.mubr.f32.mxu0 0.0
      %6562 = vmatmul.mubr.f32.gmra.mxu0 %v6373
      %v6563 = vpop.f32.mrf.mxu0
      %v6564 = vadd.f32 0.0, %v6563
      %v6565 = vpop.f32.mrf.mxu0
      %6566 = vmatprep.mubr.f32.mxu0 0.0
      %6567 = vmatmul.mubr.f32.gmra.mxu0 %v6376
      %v6568 = vpop.f32.mrf.mxu0
      %v6569 = vadd.f32 0.0, %v6568
      %v6570 = vpop.f32.mrf.mxu0
      %6571 = vmatprep.mubr.f32.mxu0 0.0
      %6572 = vmatmul.mubr.f32.gmra.mxu0 %v6379
      %v6573 = vpop.f32.mrf.mxu0
      %v6574 = vadd.f32 0.0, %v6573
      %v6575 = vpop.f32.mrf.mxu0
      %6576 = vmatprep.mubr.f32.mxu0 0.0
      %6577 = vmatmul.mubr.f32.gmra.mxu0 %v6382
      %v6578 = vpop.f32.mrf.mxu0
      %v6579 = vadd.f32 0.0, %v6578
      %v6580 = vpop.f32.mrf.mxu0
      %6581 = vmatprep.mubr.f32.mxu0 0.0
      %6582 = vmatmul.mubr.f32.gmra.mxu0 %v6385
      %v6583 = vpop.f32.mrf.mxu0
      %v6584 = vadd.f32 0.0, %v6583
      %v6585 = vpop.f32.mrf.mxu0
      %6586 = vmatprep.mubr.f32.mxu0 0.0
      %6587 = vmatmul.mubr.f32.gmra.mxu0 %v6388
      %v6588 = vpop.f32.mrf.mxu0
      %v6589 = vadd.f32 0.0, %v6588
      %v6590 = vpop.f32.mrf.mxu0
      %6591 = vmatprep.mubr.f32.mxu0 0.0
      %6592 = vmatmul.mubr.f32.gmra.mxu0 %v6391
      %v6593 = vpop.f32.mrf.mxu0
      %v6594 = vadd.f32 0.0, %v6593
      %v6595 = vpop.f32.mrf.mxu0
      %6596 = vmatprep.mubr.f32.mxu0 0.0
      %6597 = vmatmul.mubr.f32.gmra.mxu0 %v6394
      %v6598 = vpop.f32.mrf.mxu0
      %v6599 = vadd.f32 0.0, %v6598
      %v6600 = vpop.f32.mrf.mxu0
      %6601 = vmatprep.mubr.f32.mxu0 0.0
      %6602 = vmatmul.mubr.f32.gmra.mxu0 %v6397
      %v6603 = vpop.f32.mrf.mxu0
      %v6604 = vadd.f32 0.0, %v6603
      %v6605 = vpop.f32.mrf.mxu0
      %6606 = vmatprep.mubr.f32.mxu0 0.0
      %6607 = vmatmul.mubr.f32.gmra.mxu0 %v6400
      %v6608 = vpop.f32.mrf.mxu0
      %v6609 = vadd.f32 0.0, %v6608
      %v6610 = vpop.f32.mrf.mxu0
      %6611 = vmatprep.mubr.f32.mxu0 0.0
      %6612 = vmatmul.mubr.f32.gmra.mxu0 %v6403
      %v6613 = vpop.f32.mrf.mxu0
      %v6614 = vadd.f32 0.0, %v6613
      %v6615 = vpop.f32.mrf.mxu0
      %6616 = vmatprep.mubr.f32.mxu0 0.0
      %6617 = vmatmul.mubr.f32.gmra.mxu0 %v6406
      %v6618 = vpop.f32.mrf.mxu0
      %v6619 = vadd.f32 0.0, %v6618
      %v6620 = vpop.f32.mrf.mxu0
      %6621 = vmatprep.mubr.f32.mxu0 0.0
      %6622 = vmatmul.mubr.f32.gmra.mxu0 %v6409
      %v6623 = vpop.f32.mrf.mxu0
      %v6624 = vadd.f32 0.0, %v6623
      %v6625 = vpop.f32.mrf.mxu0
      %6626 = vmatprep.mubr.f32.mxu0 0.0
      %6627 = vmatmul.mubr.f32.gmra.mxu0 %v6412
      %v6628 = vpop.f32.mrf.mxu0
      %v6629 = vadd.f32 0.0, %v6628
      %v6630 = vpop.f32.mrf.mxu0
      %6631 = vmatprep.mubr.f32.mxu0 0.0
      %6632 = vmatmul.mubr.f32.gmra.mxu0 %v6415
      %v6633 = vpop.f32.mrf.mxu0
      %v6634 = vadd.f32 0.0, %v6633
      %v6635 = vpop.f32.mrf.mxu0
      %6636 = vmatprep.mubr.f32.mxu0 0.0
      %6637 = vmatmul.mubr.f32.gmra.mxu0 %v6418
      %v6638 = vpop.f32.mrf.mxu0
      %v6639 = vadd.f32 0.0, %v6638
      %v6640 = vpop.f32.mrf.mxu0
      %6641 = vmatprep.mubr.f32.mxu0 0.0
      %6642 = vmatmul.mubr.f32.gmra.mxu0 %v6421
      %v6643 = vpop.f32.mrf.mxu0
      %v6644 = vadd.f32 0.0, %v6643
      %v6645 = vpop.f32.mrf.mxu0
      %6646 = vmatprep.mubr.f32.mxu0 0.0
      %6647 = vmatmul.mubr.f32.gmra.mxu0 %v6424
      %v6648 = vpop.f32.mrf.mxu0
      %v6649 = vadd.f32 0.0, %v6648
      %v6650 = vpop.f32.mrf.mxu0
      %6651 = vmatprep.mubr.f32.mxu0 0.0
      %6652 = vmatmul.mubr.f32.gmra.mxu0 %v6427
      %v6653 = vpop.f32.mrf.mxu0
      %v6654 = vadd.f32 0.0, %v6653
      %v6655 = vpop.f32.mrf.mxu0
      %6656 = vdwg.mxu0
      %v6657 = vadd.f32 %v6266, %v6499
      %v6658 = vadd.f32 %v6267, %v6504
      %v6659 = vadd.f32 %v6268, %v6509
      %v6660 = vadd.f32 %v6269, %v6514
      %v6661 = vadd.f32 %v6270, %v6519
      %v6662 = vadd.f32 %v6271, %v6524
      %v6663 = vadd.f32 %v6272, %v6529
      %v6664 = vadd.f32 %v6273, %v6534
      %v6665 = vadd.f32 %v6274, %v6539
      %v6666 = vadd.f32 %v6275, %v6544
      %v6667 = vadd.f32 %v6276, %v6549
      %v6668 = vadd.f32 %v6277, %v6554
      %v6669 = vadd.f32 %v6278, %v6559
      %v6670 = vadd.f32 %v6279, %v6564
      %v6671 = vadd.f32 %v6280, %v6569
      %v6672 = vadd.f32 %v6281, %v6574
      %v6673 = vadd.f32 %v6282, %v6579
      %v6674 = vadd.f32 %v6283, %v6584
      %v6675 = vadd.f32 %v6284, %v6589
      %v6676 = vadd.f32 %v6285, %v6594
      %v6677 = vadd.f32 %v6286, %v6599
      %v6678 = vadd.f32 %v6287, %v6604
      %v6679 = vadd.f32 %v6288, %v6609
      %v6680 = vadd.f32 %v6289, %v6614
      %v6681 = vadd.f32 %v6290, %v6619
      %v6682 = vadd.f32 %v6291, %v6624
      %v6683 = vadd.f32 %v6292, %v6629
      %v6684 = vadd.f32 %v6293, %v6634
      %v6685 = vadd.f32 %v6294, %v6639
      %v6686 = vadd.f32 %v6295, %v6644
      %v6687 = vadd.f32 %v6296, %v6649
      %v6688 = vadd.f32 %v6297, %v6654
      %v6689 = vld [vmem:[%s6298 + $0x1] sm:$0xff]
      %v6690 = vld [vmem:[%s6298 + $0x9] sm:$0xff]
      %v6691 = vld [vmem:[%s6298 + $0x19] sm:$0xff]
      %v6692 = vld [vmem:[%s6298 + $0x21] sm:$0xff]
      %v6693 = vld [vmem:[%s6298 + $0x31] sm:$0xff]
      %v6694 = vld [vmem:[%s6298 + $0x39] sm:$0xff]
      %v6695 = vld [vmem:[%s6298 + $0x49] sm:$0xff]
      %v6696 = vld [vmem:[%s6298 + $0x51] sm:$0xff]
      %v6697 = vld [vmem:[%s6298 + $0x61] sm:$0xff]
      %v6698 = vld [vmem:[%s6298 + $0x69] sm:$0xff]
      %v6699 = vld [vmem:[%s6298 + $0x79] sm:$0xff]
      %v6700 = vld [vmem:[%s6298 + $0x81] sm:$0xff]
      %v6701 = vld [vmem:[%s6298 + $0x91] sm:$0xff]
      %v6702 = vld [vmem:[%s6298 + $0x99] sm:$0xff]
      %v6703 = vld [vmem:[%s6298 + $0xa9] sm:$0xff]
      %v6704 = vld [vmem:[%s6298 + $0xb1] sm:$0xff]
      %v6705 = vld [vmem:[%s6298 + $0xc1] sm:$0xff]
      %v6706 = vld [vmem:[%s6298 + $0xc9] sm:$0xff]
      %v6707 = vld [vmem:[%s6298 + $0xd9] sm:$0xff]
      %v6708 = vld [vmem:[%s6298 + $0xe1] sm:$0xff]
      %v6709 = vld [vmem:[%s6298 + $0xf1] sm:$0xff]
      %v6710 = vld [vmem:[%s6298 + $0xf9] sm:$0xff]
      %v6711 = vld [vmem:[%s6298 + $0x109] sm:$0xff]
      %v6712 = vld [vmem:[%s6298 + $0x111] sm:$0xff]
      %v6713 = vld [vmem:[%s6298 + $0x121] sm:$0xff]
      %v6714 = vld [vmem:[%s6298 + $0x129] sm:$0xff]
      %v6715 = vld [vmem:[%s6298 + $0x139] sm:$0xff]
      %v6716 = vld [vmem:[%s6298 + $0x141] sm:$0xff]
      %v6717 = vld [vmem:[%s6298 + $0x151] sm:$0xff]
      %v6718 = vld [vmem:[%s6298 + $0x159] sm:$0xff]
      %v6719 = vld [vmem:[%s6298 + $0x169] sm:$0xff]
      %v6720 = vld [vmem:[%s6298 + $0x171] sm:$0xff]
      %s6721 = scalar_lea.vmem %s4, 28
      %v6722 = vld [vmem:[%s6721] sm:$0xf]
      %v6724 = vsel %vm279, %v6689, 0
      %v6727 = vsel %vm279, %v6690, 0
      %v6730 = vsel %vm279, %v6691, 0
      %v6733 = vsel %vm279, %v6692, 0
      %v6736 = vsel %vm279, %v6693, 0
      %v6739 = vsel %vm279, %v6694, 0
      %v6742 = vsel %vm279, %v6695, 0
      %v6745 = vsel %vm279, %v6696, 0
      %v6748 = vsel %vm279, %v6697, 0
      %v6751 = vsel %vm279, %v6698, 0
      %v6754 = vsel %vm279, %v6699, 0
      %v6757 = vsel %vm279, %v6700, 0
      %v6760 = vsel %vm279, %v6701, 0
      %v6763 = vsel %vm279, %v6702, 0
      %v6766 = vsel %vm279, %v6703, 0
      %v6769 = vsel %vm279, %v6704, 0
      %v6772 = vsel %vm279, %v6705, 0
      %v6775 = vsel %vm279, %v6706, 0
      %v6778 = vsel %vm279, %v6707, 0
      %v6781 = vsel %vm279, %v6708, 0
      %v6784 = vsel %vm279, %v6709, 0
      %v6787 = vsel %vm279, %v6710, 0
      %v6790 = vsel %vm279, %v6711, 0
      %v6793 = vsel %vm279, %v6712, 0
      %v6796 = vsel %vm279, %v6713, 0
      %v6799 = vsel %vm279, %v6714, 0
      %v6802 = vsel %vm279, %v6715, 0
      %v6805 = vsel %vm279, %v6716, 0
      %v6808 = vsel %vm279, %v6717, 0
      %v6811 = vsel %vm279, %v6718, 0
      %v6814 = vsel %vm279, %v6719, 0
      %v6817 = vsel %vm279, %v6720, 0
      %v6820 = vsel %vm596, %v6722, 0
      %6822 = vmatprep.subr.mxu0 0.0
      %6823 = vmatpush1.msra.mxu0 0.0
      %6824 = vmatprep.subr.mxu0 0.0
      %6825 = vmatpush1.msra.mxu0 0.0
      %6826 = vmatprep.subr.mxu0 0.0
      %6827 = vmatpush1.msra.mxu0 0.0
      %6828 = vmatprep.subr.mxu0 0.0
      %6829 = vmatpush1.msra.mxu0 0.0
      %6830 = vmatprep.subr.mxu0 0.0
      %6831 = vmatpush1.msra.mxu0 0.0
      %6832 = vmatprep.subr.mxu0 0.0
      %6833 = vmatpush1.msra.mxu0 0.0
      %6834 = vmatprep.subr.mxu0 0.0
      %6835 = vmatpush1.msra.mxu0 0.0
      %6836 = vmatprep.subr.mxu0 0.0
      %6837 = vmatpush1.msra.mxu0 0.0
      %6838 = vmatprep.subr.mxu0 0.0
      %6839 = vmatpush1.msra.mxu0 0.0
      %6840 = vmatprep.subr.mxu0 0.0
      %6841 = vmatpush1.msra.mxu0 0.0
      %6842 = vmatprep.subr.mxu0 0.0
      %6843 = vmatpush1.msra.mxu0 0.0
      %6844 = vmatprep.subr.mxu0 0.0
      %6845 = vmatpush1.msra.mxu0 0.0
      %6846 = vmatprep.subr.mxu0 0.0
      %6847 = vmatpush1.msra.mxu0 0.0
      %6848 = vmatprep.subr.mxu0 0.0
      %6849 = vmatpush1.msra.mxu0 0.0
      %6850 = vmatprep.subr.mxu0 0.0
      %6851 = vmatpush1.msra.mxu0 0.0
      %6852 = vmatprep.subr.mxu0 0.0
      %6853 = vmatpush1.msra.mxu0 %v6820
      %6854 = vmatprep.subr.mxu0 0.0
      %6855 = vmatpush2.msra.mxu0 0.0
      %6856 = vmatprep.subr.mxu0 0.0
      %6857 = vmatpush2.msra.mxu0 0.0
      %6858 = vmatprep.subr.mxu0 0.0
      %6859 = vmatpush2.msra.mxu0 0.0
      %6860 = vmatprep.subr.mxu0 0.0
      %6861 = vmatpush2.msra.mxu0 0.0
      %6862 = vmatprep.subr.mxu0 0.0
      %6863 = vmatpush2.msra.mxu0 0.0
      %6864 = vmatprep.subr.mxu0 0.0
      %6865 = vmatpush2.msra.mxu0 0.0
      %6866 = vmatprep.subr.mxu0 0.0
      %6867 = vmatpush2.msra.mxu0 0.0
      %6868 = vmatprep.subr.mxu0 0.0
      %6869 = vmatpush2.msra.mxu0 0.0
      %6870 = vmatprep.subr.mxu0 0.0
      %6871 = vmatpush2.msra.mxu0 0.0
      %6872 = vmatprep.subr.mxu0 0.0
      %6873 = vmatpush2.msra.mxu0 0.0
      %6874 = vmatprep.subr.mxu0 0.0
      %6875 = vmatpush2.msra.mxu0 0.0
      %6876 = vmatprep.subr.mxu0 0.0
      %6877 = vmatpush2.msra.mxu0 0.0
      %6878 = vmatprep.subr.mxu0 0.0
      %6879 = vmatpush2.msra.mxu0 0.0
      %6880 = vmatprep.subr.mxu0 0.0
      %6881 = vmatpush2.msra.mxu0 0.0
      %6882 = vmatprep.subr.mxu0 0.0
      %6883 = vmatpush2.msra.mxu0 0.0
      %6884 = vmatprep.subr.mxu0 0.0
      %6885 = vmatpush2.msra.mxu0 0.0
      %6886 = vmatprep.mubr.f32.mxu0 0.0
      %6887 = vmatmul.mubr.f32.gmra.mxu0 %v6724
      %v6888 = vpop.f32.mrf.mxu0
      %v6889 = vadd.f32 0.0, %v6888
      %v6890 = vpop.f32.mrf.mxu0
      %6891 = vmatprep.mubr.f32.mxu0 0.0
      %6892 = vmatmul.mubr.f32.gmra.mxu0 %v6727
      %v6893 = vpop.f32.mrf.mxu0
      %v6894 = vadd.f32 0.0, %v6893
      %v6895 = vpop.f32.mrf.mxu0
      %6896 = vmatprep.mubr.f32.mxu0 0.0
      %6897 = vmatmul.mubr.f32.gmra.mxu0 %v6730
      %v6898 = vpop.f32.mrf.mxu0
      %v6899 = vadd.f32 0.0, %v6898
      %v6900 = vpop.f32.mrf.mxu0
      %6901 = vmatprep.mubr.f32.mxu0 0.0
      %6902 = vmatmul.mubr.f32.gmra.mxu0 %v6733
      %v6903 = vpop.f32.mrf.mxu0
      %v6904 = vadd.f32 0.0, %v6903
      %v6905 = vpop.f32.mrf.mxu0
      %6906 = vmatprep.mubr.f32.mxu0 0.0
      %6907 = vmatmul.mubr.f32.gmra.mxu0 %v6736
      %v6908 = vpop.f32.mrf.mxu0
      %v6909 = vadd.f32 0.0, %v6908
      %v6910 = vpop.f32.mrf.mxu0
      %6911 = vmatprep.mubr.f32.mxu0 0.0
      %6912 = vmatmul.mubr.f32.gmra.mxu0 %v6739
      %v6913 = vpop.f32.mrf.mxu0
      %v6914 = vadd.f32 0.0, %v6913
      %v6915 = vpop.f32.mrf.mxu0
      %6916 = vmatprep.mubr.f32.mxu0 0.0
      %6917 = vmatmul.mubr.f32.gmra.mxu0 %v6742
      %v6918 = vpop.f32.mrf.mxu0
      %v6919 = vadd.f32 0.0, %v6918
      %v6920 = vpop.f32.mrf.mxu0
      %6921 = vmatprep.mubr.f32.mxu0 0.0
      %6922 = vmatmul.mubr.f32.gmra.mxu0 %v6745
      %v6923 = vpop.f32.mrf.mxu0
      %v6924 = vadd.f32 0.0, %v6923
      %v6925 = vpop.f32.mrf.mxu0
      %6926 = vmatprep.mubr.f32.mxu0 0.0
      %6927 = vmatmul.mubr.f32.gmra.mxu0 %v6748
      %v6928 = vpop.f32.mrf.mxu0
      %v6929 = vadd.f32 0.0, %v6928
      %v6930 = vpop.f32.mrf.mxu0
      %6931 = vmatprep.mubr.f32.mxu0 0.0
      %6932 = vmatmul.mubr.f32.gmra.mxu0 %v6751
      %v6933 = vpop.f32.mrf.mxu0
      %v6934 = vadd.f32 0.0, %v6933
      %v6935 = vpop.f32.mrf.mxu0
      %6936 = vmatprep.mubr.f32.mxu0 0.0
      %6937 = vmatmul.mubr.f32.gmra.mxu0 %v6754
      %v6938 = vpop.f32.mrf.mxu0
      %v6939 = vadd.f32 0.0, %v6938
      %v6940 = vpop.f32.mrf.mxu0
      %6941 = vmatprep.mubr.f32.mxu0 0.0
      %6942 = vmatmul.mubr.f32.gmra.mxu0 %v6757
      %v6943 = vpop.f32.mrf.mxu0
      %v6944 = vadd.f32 0.0, %v6943
      %v6945 = vpop.f32.mrf.mxu0
      %6946 = vmatprep.mubr.f32.mxu0 0.0
      %6947 = vmatmul.mubr.f32.gmra.mxu0 %v6760
      %v6948 = vpop.f32.mrf.mxu0
      %v6949 = vadd.f32 0.0, %v6948
      %v6950 = vpop.f32.mrf.mxu0
      %6951 = vmatprep.mubr.f32.mxu0 0.0
      %6952 = vmatmul.mubr.f32.gmra.mxu0 %v6763
      %v6953 = vpop.f32.mrf.mxu0
      %v6954 = vadd.f32 0.0, %v6953
      %v6955 = vpop.f32.mrf.mxu0
      %6956 = vmatprep.mubr.f32.mxu0 0.0
      %6957 = vmatmul.mubr.f32.gmra.mxu0 %v6766
      %v6958 = vpop.f32.mrf.mxu0
      %v6959 = vadd.f32 0.0, %v6958
      %v6960 = vpop.f32.mrf.mxu0
      %6961 = vmatprep.mubr.f32.mxu0 0.0
      %6962 = vmatmul.mubr.f32.gmra.mxu0 %v6769
      %v6963 = vpop.f32.mrf.mxu0
      %v6964 = vadd.f32 0.0, %v6963
      %v6965 = vpop.f32.mrf.mxu0
      %6966 = vmatprep.mubr.f32.mxu0 0.0
      %6967 = vmatmul.mubr.f32.gmra.mxu0 %v6772
      %v6968 = vpop.f32.mrf.mxu0
      %v6969 = vadd.f32 0.0, %v6968
      %v6970 = vpop.f32.mrf.mxu0
      %6971 = vmatprep.mubr.f32.mxu0 0.0
      %6972 = vmatmul.mubr.f32.gmra.mxu0 %v6775
      %v6973 = vpop.f32.mrf.mxu0
      %v6974 = vadd.f32 0.0, %v6973
      %v6975 = vpop.f32.mrf.mxu0
      %6976 = vmatprep.mubr.f32.mxu0 0.0
      %6977 = vmatmul.mubr.f32.gmra.mxu0 %v6778
      %v6978 = vpop.f32.mrf.mxu0
      %v6979 = vadd.f32 0.0, %v6978
      %v6980 = vpop.f32.mrf.mxu0
      %6981 = vmatprep.mubr.f32.mxu0 0.0
      %6982 = vmatmul.mubr.f32.gmra.mxu0 %v6781
      %v6983 = vpop.f32.mrf.mxu0
      %v6984 = vadd.f32 0.0, %v6983
      %v6985 = vpop.f32.mrf.mxu0
      %6986 = vmatprep.mubr.f32.mxu0 0.0
      %6987 = vmatmul.mubr.f32.gmra.mxu0 %v6784
      %v6988 = vpop.f32.mrf.mxu0
      %v6989 = vadd.f32 0.0, %v6988
      %v6990 = vpop.f32.mrf.mxu0
      %6991 = vmatprep.mubr.f32.mxu0 0.0
      %6992 = vmatmul.mubr.f32.gmra.mxu0 %v6787
      %v6993 = vpop.f32.mrf.mxu0
      %v6994 = vadd.f32 0.0, %v6993
      %v6995 = vpop.f32.mrf.mxu0
      %6996 = vmatprep.mubr.f32.mxu0 0.0
      %6997 = vmatmul.mubr.f32.gmra.mxu0 %v6790
      %v6998 = vpop.f32.mrf.mxu0
      %v6999 = vadd.f32 0.0, %v6998
      %v7000 = vpop.f32.mrf.mxu0
      %7001 = vmatprep.mubr.f32.mxu0 0.0
      %7002 = vmatmul.mubr.f32.gmra.mxu0 %v6793
      %v7003 = vpop.f32.mrf.mxu0
      %v7004 = vadd.f32 0.0, %v7003
      %v7005 = vpop.f32.mrf.mxu0
      %7006 = vmatprep.mubr.f32.mxu0 0.0
      %7007 = vmatmul.mubr.f32.gmra.mxu0 %v6796
      %v7008 = vpop.f32.mrf.mxu0
      %v7009 = vadd.f32 0.0, %v7008
      %v7010 = vpop.f32.mrf.mxu0
      %7011 = vmatprep.mubr.f32.mxu0 0.0
      %7012 = vmatmul.mubr.f32.gmra.mxu0 %v6799
      %v7013 = vpop.f32.mrf.mxu0
      %v7014 = vadd.f32 0.0, %v7013
      %v7015 = vpop.f32.mrf.mxu0
      %7016 = vmatprep.mubr.f32.mxu0 0.0
      %7017 = vmatmul.mubr.f32.gmra.mxu0 %v6802
      %v7018 = vpop.f32.mrf.mxu0
      %v7019 = vadd.f32 0.0, %v7018
      %v7020 = vpop.f32.mrf.mxu0
      %7021 = vmatprep.mubr.f32.mxu0 0.0
      %7022 = vmatmul.mubr.f32.gmra.mxu0 %v6805
      %v7023 = vpop.f32.mrf.mxu0
      %v7024 = vadd.f32 0.0, %v7023
      %v7025 = vpop.f32.mrf.mxu0
      %7026 = vmatprep.mubr.f32.mxu0 0.0
      %7027 = vmatmul.mubr.f32.gmra.mxu0 %v6808
      %v7028 = vpop.f32.mrf.mxu0
      %v7029 = vadd.f32 0.0, %v7028
      %v7030 = vpop.f32.mrf.mxu0
      %7031 = vmatprep.mubr.f32.mxu0 0.0
      %7032 = vmatmul.mubr.f32.gmra.mxu0 %v6811
      %v7033 = vpop.f32.mrf.mxu0
      %v7034 = vadd.f32 0.0, %v7033
      %v7035 = vpop.f32.mrf.mxu0
      %7036 = vmatprep.mubr.f32.mxu0 0.0
      %7037 = vmatmul.mubr.f32.gmra.mxu0 %v6814
      %v7038 = vpop.f32.mrf.mxu0
      %v7039 = vadd.f32 0.0, %v7038
      %v7040 = vpop.f32.mrf.mxu0
      %7041 = vmatprep.mubr.f32.mxu0 0.0
      %7042 = vmatmul.mubr.f32.gmra.mxu0 %v6817
      %v7043 = vpop.f32.mrf.mxu0
      %v7044 = vadd.f32 0.0, %v7043
      %v7045 = vpop.f32.mrf.mxu0
      %7046 = vdwg.mxu0
      %v7047 = vadd.f32 %v6657, %v6889
      %v7048 = vadd.f32 %v6658, %v6894
      %v7049 = vadd.f32 %v6659, %v6899
      %v7050 = vadd.f32 %v6660, %v6904
      %v7051 = vadd.f32 %v6661, %v6909
      %v7052 = vadd.f32 %v6662, %v6914
      %v7053 = vadd.f32 %v6663, %v6919
      %v7054 = vadd.f32 %v6664, %v6924
      %v7055 = vadd.f32 %v6665, %v6929
      %v7056 = vadd.f32 %v6666, %v6934
      %v7057 = vadd.f32 %v6667, %v6939
      %v7058 = vadd.f32 %v6668, %v6944
      %v7059 = vadd.f32 %v6669, %v6949
      %v7060 = vadd.f32 %v6670, %v6954
      %v7061 = vadd.f32 %v6671, %v6959
      %v7062 = vadd.f32 %v6672, %v6964
      %v7063 = vadd.f32 %v6673, %v6969
      %v7064 = vadd.f32 %v6674, %v6974
      %v7065 = vadd.f32 %v6675, %v6979
      %v7066 = vadd.f32 %v6676, %v6984
      %v7067 = vadd.f32 %v6677, %v6989
      %v7068 = vadd.f32 %v6678, %v6994
      %v7069 = vadd.f32 %v6679, %v6999
      %v7070 = vadd.f32 %v6680, %v7004
      %v7071 = vadd.f32 %v6681, %v7009
      %v7072 = vadd.f32 %v6682, %v7014
      %v7073 = vadd.f32 %v6683, %v7019
      %v7074 = vadd.f32 %v6684, %v7024
      %v7075 = vadd.f32 %v6685, %v7029
      %v7076 = vadd.f32 %v6686, %v7034
      %v7077 = vadd.f32 %v6687, %v7039
      %v7078 = vadd.f32 %v6688, %v7044
      %v7079 = vld [vmem:[%s6298 + $0x2] sm:$0xff]
      %v7080 = vld [vmem:[%s6298 + $0xa] sm:$0xff]
      %v7081 = vld [vmem:[%s6298 + $0x1a] sm:$0xff]
      %v7082 = vld [vmem:[%s6298 + $0x22] sm:$0xff]
      %v7083 = vld [vmem:[%s6298 + $0x32] sm:$0xff]
      %v7084 = vld [vmem:[%s6298 + $0x3a] sm:$0xff]
      %v7085 = vld [vmem:[%s6298 + $0x4a] sm:$0xff]
      %v7086 = vld [vmem:[%s6298 + $0x52] sm:$0xff]
      %v7087 = vld [vmem:[%s6298 + $0x62] sm:$0xff]
      %v7088 = vld [vmem:[%s6298 + $0x6a] sm:$0xff]
      %v7089 = vld [vmem:[%s6298 + $0x7a] sm:$0xff]
      %v7090 = vld [vmem:[%s6298 + $0x82] sm:$0xff]
      %v7091 = vld [vmem:[%s6298 + $0x92] sm:$0xff]
      %v7092 = vld [vmem:[%s6298 + $0x9a] sm:$0xff]
      %v7093 = vld [vmem:[%s6298 + $0xaa] sm:$0xff]
      %v7094 = vld [vmem:[%s6298 + $0xb2] sm:$0xff]
      %v7095 = vld [vmem:[%s6298 + $0xc2] sm:$0xff]
      %v7096 = vld [vmem:[%s6298 + $0xca] sm:$0xff]
      %v7097 = vld [vmem:[%s6298 + $0xda] sm:$0xff]
      %v7098 = vld [vmem:[%s6298 + $0xe2] sm:$0xff]
      %v7099 = vld [vmem:[%s6298 + $0xf2] sm:$0xff]
      %v7100 = vld [vmem:[%s6298 + $0xfa] sm:$0xff]
      %v7101 = vld [vmem:[%s6298 + $0x10a] sm:$0xff]
      %v7102 = vld [vmem:[%s6298 + $0x112] sm:$0xff]
      %v7103 = vld [vmem:[%s6298 + $0x122] sm:$0xff]
      %v7104 = vld [vmem:[%s6298 + $0x12a] sm:$0xff]
      %v7105 = vld [vmem:[%s6298 + $0x13a] sm:$0xff]
      %v7106 = vld [vmem:[%s6298 + $0x142] sm:$0xff]
      %v7107 = vld [vmem:[%s6298 + $0x152] sm:$0xff]
      %v7108 = vld [vmem:[%s6298 + $0x15a] sm:$0xff]
      %v7109 = vld [vmem:[%s6298 + $0x16a] sm:$0xff]
      %v7110 = vld [vmem:[%s6298 + $0x172] sm:$0xff]
      %s7111 = scalar_lea.vmem %s4, 32
      %v7112 = vld [vmem:[%s7111] sm:$0xf]
      %v7114 = vsel %vm279, %v7079, 0
      %v7117 = vsel %vm279, %v7080, 0
      %v7120 = vsel %vm279, %v7081, 0
      %v7123 = vsel %vm279, %v7082, 0
      %v7126 = vsel %vm279, %v7083, 0
      %v7129 = vsel %vm279, %v7084, 0
      %v7132 = vsel %vm279, %v7085, 0
      %v7135 = vsel %vm279, %v7086, 0
      %v7138 = vsel %vm279, %v7087, 0
      %v7141 = vsel %vm279, %v7088, 0
      %v7144 = vsel %vm279, %v7089, 0
      %v7147 = vsel %vm279, %v7090, 0
      %v7150 = vsel %vm279, %v7091, 0
      %v7153 = vsel %vm279, %v7092, 0
      %v7156 = vsel %vm279, %v7093, 0
      %v7159 = vsel %vm279, %v7094, 0
      %v7162 = vsel %vm279, %v7095, 0
      %v7165 = vsel %vm279, %v7096, 0
      %v7168 = vsel %vm279, %v7097, 0
      %v7171 = vsel %vm279, %v7098, 0
      %v7174 = vsel %vm279, %v7099, 0
      %v7177 = vsel %vm279, %v7100, 0
      %v7180 = vsel %vm279, %v7101, 0
      %v7183 = vsel %vm279, %v7102, 0
      %v7186 = vsel %vm279, %v7103, 0
      %v7189 = vsel %vm279, %v7104, 0
      %v7192 = vsel %vm279, %v7105, 0
      %v7195 = vsel %vm279, %v7106, 0
      %v7198 = vsel %vm279, %v7107, 0
      %v7201 = vsel %vm279, %v7108, 0
      %v7204 = vsel %vm279, %v7109, 0
      %v7207 = vsel %vm279, %v7110, 0
      %v7210 = vsel %vm596, %v7112, 0
      %7212 = vmatprep.subr.mxu0 0.0
      %7213 = vmatpush1.msra.mxu0 0.0
      %7214 = vmatprep.subr.mxu0 0.0
      %7215 = vmatpush1.msra.mxu0 0.0
      %7216 = vmatprep.subr.mxu0 0.0
      %7217 = vmatpush1.msra.mxu0 0.0
      %7218 = vmatprep.subr.mxu0 0.0
      %7219 = vmatpush1.msra.mxu0 0.0
      %7220 = vmatprep.subr.mxu0 0.0
      %7221 = vmatpush1.msra.mxu0 0.0
      %7222 = vmatprep.subr.mxu0 0.0
      %7223 = vmatpush1.msra.mxu0 0.0
      %7224 = vmatprep.subr.mxu0 0.0
      %7225 = vmatpush1.msra.mxu0 0.0
      %7226 = vmatprep.subr.mxu0 0.0
      %7227 = vmatpush1.msra.mxu0 0.0
      %7228 = vmatprep.subr.mxu0 0.0
      %7229 = vmatpush1.msra.mxu0 0.0
      %7230 = vmatprep.subr.mxu0 0.0
      %7231 = vmatpush1.msra.mxu0 0.0
      %7232 = vmatprep.subr.mxu0 0.0
      %7233 = vmatpush1.msra.mxu0 0.0
      %7234 = vmatprep.subr.mxu0 0.0
      %7235 = vmatpush1.msra.mxu0 0.0
      %7236 = vmatprep.subr.mxu0 0.0
      %7237 = vmatpush1.msra.mxu0 0.0
      %7238 = vmatprep.subr.mxu0 0.0
      %7239 = vmatpush1.msra.mxu0 0.0
      %7240 = vmatprep.subr.mxu0 0.0
      %7241 = vmatpush1.msra.mxu0 0.0
      %7242 = vmatprep.subr.mxu0 0.0
      %7243 = vmatpush1.msra.mxu0 %v7210
      %7244 = vmatprep.subr.mxu0 0.0
      %7245 = vmatpush2.msra.mxu0 0.0
      %7246 = vmatprep.subr.mxu0 0.0
      %7247 = vmatpush2.msra.mxu0 0.0
      %7248 = vmatprep.subr.mxu0 0.0
      %7249 = vmatpush2.msra.mxu0 0.0
      %7250 = vmatprep.subr.mxu0 0.0
      %7251 = vmatpush2.msra.mxu0 0.0
      %7252 = vmatprep.subr.mxu0 0.0
      %7253 = vmatpush2.msra.mxu0 0.0
      %7254 = vmatprep.subr.mxu0 0.0
      %7255 = vmatpush2.msra.mxu0 0.0
      %7256 = vmatprep.subr.mxu0 0.0
      %7257 = vmatpush2.msra.mxu0 0.0
      %7258 = vmatprep.subr.mxu0 0.0
      %7259 = vmatpush2.msra.mxu0 0.0
      %7260 = vmatprep.subr.mxu0 0.0
      %7261 = vmatpush2.msra.mxu0 0.0
      %7262 = vmatprep.subr.mxu0 0.0
      %7263 = vmatpush2.msra.mxu0 0.0
      %7264 = vmatprep.subr.mxu0 0.0
      %7265 = vmatpush2.msra.mxu0 0.0
      %7266 = vmatprep.subr.mxu0 0.0
      %7267 = vmatpush2.msra.mxu0 0.0
      %7268 = vmatprep.subr.mxu0 0.0
      %7269 = vmatpush2.msra.mxu0 0.0
      %7270 = vmatprep.subr.mxu0 0.0
      %7271 = vmatpush2.msra.mxu0 0.0
      %7272 = vmatprep.subr.mxu0 0.0
      %7273 = vmatpush2.msra.mxu0 0.0
      %7274 = vmatprep.subr.mxu0 0.0
      %7275 = vmatpush2.msra.mxu0 0.0
      %7276 = vmatprep.mubr.f32.mxu0 0.0
      %7277 = vmatmul.mubr.f32.gmra.mxu0 %v7114
      %v7278 = vpop.f32.mrf.mxu0
      %v7279 = vadd.f32 0.0, %v7278
      %v7280 = vpop.f32.mrf.mxu0
      %7281 = vmatprep.mubr.f32.mxu0 0.0
      %7282 = vmatmul.mubr.f32.gmra.mxu0 %v7117
      %v7283 = vpop.f32.mrf.mxu0
      %v7284 = vadd.f32 0.0, %v7283
      %v7285 = vpop.f32.mrf.mxu0
      %7286 = vmatprep.mubr.f32.mxu0 0.0
      %7287 = vmatmul.mubr.f32.gmra.mxu0 %v7120
      %v7288 = vpop.f32.mrf.mxu0
      %v7289 = vadd.f32 0.0, %v7288
      %v7290 = vpop.f32.mrf.mxu0
      %7291 = vmatprep.mubr.f32.mxu0 0.0
      %7292 = vmatmul.mubr.f32.gmra.mxu0 %v7123
      %v7293 = vpop.f32.mrf.mxu0
      %v7294 = vadd.f32 0.0, %v7293
      %v7295 = vpop.f32.mrf.mxu0
      %7296 = vmatprep.mubr.f32.mxu0 0.0
      %7297 = vmatmul.mubr.f32.gmra.mxu0 %v7126
      %v7298 = vpop.f32.mrf.mxu0
      %v7299 = vadd.f32 0.0, %v7298
      %v7300 = vpop.f32.mrf.mxu0
      %7301 = vmatprep.mubr.f32.mxu0 0.0
      %7302 = vmatmul.mubr.f32.gmra.mxu0 %v7129
      %v7303 = vpop.f32.mrf.mxu0
      %v7304 = vadd.f32 0.0, %v7303
      %v7305 = vpop.f32.mrf.mxu0
      %7306 = vmatprep.mubr.f32.mxu0 0.0
      %7307 = vmatmul.mubr.f32.gmra.mxu0 %v7132
      %v7308 = vpop.f32.mrf.mxu0
      %v7309 = vadd.f32 0.0, %v7308
      %v7310 = vpop.f32.mrf.mxu0
      %7311 = vmatprep.mubr.f32.mxu0 0.0
      %7312 = vmatmul.mubr.f32.gmra.mxu0 %v7135
      %v7313 = vpop.f32.mrf.mxu0
      %v7314 = vadd.f32 0.0, %v7313
      %v7315 = vpop.f32.mrf.mxu0
      %7316 = vmatprep.mubr.f32.mxu0 0.0
      %7317 = vmatmul.mubr.f32.gmra.mxu0 %v7138
      %v7318 = vpop.f32.mrf.mxu0
      %v7319 = vadd.f32 0.0, %v7318
      %v7320 = vpop.f32.mrf.mxu0
      %7321 = vmatprep.mubr.f32.mxu0 0.0
      %7322 = vmatmul.mubr.f32.gmra.mxu0 %v7141
      %v7323 = vpop.f32.mrf.mxu0
      %v7324 = vadd.f32 0.0, %v7323
      %v7325 = vpop.f32.mrf.mxu0
      %7326 = vmatprep.mubr.f32.mxu0 0.0
      %7327 = vmatmul.mubr.f32.gmra.mxu0 %v7144
      %v7328 = vpop.f32.mrf.mxu0
      %v7329 = vadd.f32 0.0, %v7328
      %v7330 = vpop.f32.mrf.mxu0
      %7331 = vmatprep.mubr.f32.mxu0 0.0
      %7332 = vmatmul.mubr.f32.gmra.mxu0 %v7147
      %v7333 = vpop.f32.mrf.mxu0
      %v7334 = vadd.f32 0.0, %v7333
      %v7335 = vpop.f32.mrf.mxu0
      %7336 = vmatprep.mubr.f32.mxu0 0.0
      %7337 = vmatmul.mubr.f32.gmra.mxu0 %v7150
      %v7338 = vpop.f32.mrf.mxu0
      %v7339 = vadd.f32 0.0, %v7338
      %v7340 = vpop.f32.mrf.mxu0
      %7341 = vmatprep.mubr.f32.mxu0 0.0
      %7342 = vmatmul.mubr.f32.gmra.mxu0 %v7153
      %v7343 = vpop.f32.mrf.mxu0
      %v7344 = vadd.f32 0.0, %v7343
      %v7345 = vpop.f32.mrf.mxu0
      %7346 = vmatprep.mubr.f32.mxu0 0.0
      %7347 = vmatmul.mubr.f32.gmra.mxu0 %v7156
      %v7348 = vpop.f32.mrf.mxu0
      %v7349 = vadd.f32 0.0, %v7348
      %v7350 = vpop.f32.mrf.mxu0
      %7351 = vmatprep.mubr.f32.mxu0 0.0
      %7352 = vmatmul.mubr.f32.gmra.mxu0 %v7159
      %v7353 = vpop.f32.mrf.mxu0
      %v7354 = vadd.f32 0.0, %v7353
      %v7355 = vpop.f32.mrf.mxu0
      %7356 = vmatprep.mubr.f32.mxu0 0.0
      %7357 = vmatmul.mubr.f32.gmra.mxu0 %v7162
      %v7358 = vpop.f32.mrf.mxu0
      %v7359 = vadd.f32 0.0, %v7358
      %v7360 = vpop.f32.mrf.mxu0
      %7361 = vmatprep.mubr.f32.mxu0 0.0
      %7362 = vmatmul.mubr.f32.gmra.mxu0 %v7165
      %v7363 = vpop.f32.mrf.mxu0
      %v7364 = vadd.f32 0.0, %v7363
      %v7365 = vpop.f32.mrf.mxu0
      %7366 = vmatprep.mubr.f32.mxu0 0.0
      %7367 = vmatmul.mubr.f32.gmra.mxu0 %v7168
      %v7368 = vpop.f32.mrf.mxu0
      %v7369 = vadd.f32 0.0, %v7368
      %v7370 = vpop.f32.mrf.mxu0
      %7371 = vmatprep.mubr.f32.mxu0 0.0
      %7372 = vmatmul.mubr.f32.gmra.mxu0 %v7171
      %v7373 = vpop.f32.mrf.mxu0
      %v7374 = vadd.f32 0.0, %v7373
      %v7375 = vpop.f32.mrf.mxu0
      %7376 = vmatprep.mubr.f32.mxu0 0.0
      %7377 = vmatmul.mubr.f32.gmra.mxu0 %v7174
      %v7378 = vpop.f32.mrf.mxu0
      %v7379 = vadd.f32 0.0, %v7378
      %v7380 = vpop.f32.mrf.mxu0
      %7381 = vmatprep.mubr.f32.mxu0 0.0
      %7382 = vmatmul.mubr.f32.gmra.mxu0 %v7177
      %v7383 = vpop.f32.mrf.mxu0
      %v7384 = vadd.f32 0.0, %v7383
      %v7385 = vpop.f32.mrf.mxu0
      %7386 = vmatprep.mubr.f32.mxu0 0.0
      %7387 = vmatmul.mubr.f32.gmra.mxu0 %v7180
      %v7388 = vpop.f32.mrf.mxu0
      %v7389 = vadd.f32 0.0, %v7388
      %v7390 = vpop.f32.mrf.mxu0
      %7391 = vmatprep.mubr.f32.mxu0 0.0
      %7392 = vmatmul.mubr.f32.gmra.mxu0 %v7183
      %v7393 = vpop.f32.mrf.mxu0
      %v7394 = vadd.f32 0.0, %v7393
      %v7395 = vpop.f32.mrf.mxu0
      %7396 = vmatprep.mubr.f32.mxu0 0.0
      %7397 = vmatmul.mubr.f32.gmra.mxu0 %v7186
      %v7398 = vpop.f32.mrf.mxu0
      %v7399 = vadd.f32 0.0, %v7398
      %v7400 = vpop.f32.mrf.mxu0
      %7401 = vmatprep.mubr.f32.mxu0 0.0
      %7402 = vmatmul.mubr.f32.gmra.mxu0 %v7189
      %v7403 = vpop.f32.mrf.mxu0
      %v7404 = vadd.f32 0.0, %v7403
      %v7405 = vpop.f32.mrf.mxu0
      %7406 = vmatprep.mubr.f32.mxu0 0.0
      %7407 = vmatmul.mubr.f32.gmra.mxu0 %v7192
      %v7408 = vpop.f32.mrf.mxu0
      %v7409 = vadd.f32 0.0, %v7408
      %v7410 = vpop.f32.mrf.mxu0
      %7411 = vmatprep.mubr.f32.mxu0 0.0
      %7412 = vmatmul.mubr.f32.gmra.mxu0 %v7195
      %v7413 = vpop.f32.mrf.mxu0
      %v7414 = vadd.f32 0.0, %v7413
      %v7415 = vpop.f32.mrf.mxu0
      %7416 = vmatprep.mubr.f32.mxu0 0.0
      %7417 = vmatmul.mubr.f32.gmra.mxu0 %v7198
      %v7418 = vpop.f32.mrf.mxu0
      %v7419 = vadd.f32 0.0, %v7418
      %v7420 = vpop.f32.mrf.mxu0
      %7421 = vmatprep.mubr.f32.mxu0 0.0
      %7422 = vmatmul.mubr.f32.gmra.mxu0 %v7201
      %v7423 = vpop.f32.mrf.mxu0
      %v7424 = vadd.f32 0.0, %v7423
      %v7425 = vpop.f32.mrf.mxu0
      %7426 = vmatprep.mubr.f32.mxu0 0.0
      %7427 = vmatmul.mubr.f32.gmra.mxu0 %v7204
      %v7428 = vpop.f32.mrf.mxu0
      %v7429 = vadd.f32 0.0, %v7428
      %v7430 = vpop.f32.mrf.mxu0
      %7431 = vmatprep.mubr.f32.mxu0 0.0
      %7432 = vmatmul.mubr.f32.gmra.mxu0 %v7207
      %v7433 = vpop.f32.mrf.mxu0
      %v7434 = vadd.f32 0.0, %v7433
      %v7435 = vpop.f32.mrf.mxu0
      %7436 = vdwg.mxu0
      %v7437 = vadd.f32 %v7047, %v7279
      %v7438 = vadd.f32 %v7048, %v7284
      %v7439 = vadd.f32 %v7049, %v7289
      %v7440 = vadd.f32 %v7050, %v7294
      %v7441 = vadd.f32 %v7051, %v7299
      %v7442 = vadd.f32 %v7052, %v7304
      %v7443 = vadd.f32 %v7053, %v7309
      %v7444 = vadd.f32 %v7054, %v7314
      %v7445 = vadd.f32 %v7055, %v7319
      %v7446 = vadd.f32 %v7056, %v7324
      %v7447 = vadd.f32 %v7057, %v7329
      %v7448 = vadd.f32 %v7058, %v7334
      %v7449 = vadd.f32 %v7059, %v7339
      %v7450 = vadd.f32 %v7060, %v7344
      %v7451 = vadd.f32 %v7061, %v7349
      %v7452 = vadd.f32 %v7062, %v7354
      %v7453 = vadd.f32 %v7063, %v7359
      %v7454 = vadd.f32 %v7064, %v7364
      %v7455 = vadd.f32 %v7065, %v7369
      %v7456 = vadd.f32 %v7066, %v7374
      %v7457 = vadd.f32 %v7067, %v7379
      %v7458 = vadd.f32 %v7068, %v7384
      %v7459 = vadd.f32 %v7069, %v7389
      %v7460 = vadd.f32 %v7070, %v7394
      %v7461 = vadd.f32 %v7071, %v7399
      %v7462 = vadd.f32 %v7072, %v7404
      %v7463 = vadd.f32 %v7073, %v7409
      %v7464 = vadd.f32 %v7074, %v7414
      %v7465 = vadd.f32 %v7075, %v7419
      %v7466 = vadd.f32 %v7076, %v7424
      %v7467 = vadd.f32 %v7077, %v7429
      %v7468 = vadd.f32 %v7078, %v7434
      %v7469 = vld [vmem:[%s5] sm:$0x1]
      %v7471 = vlaneseq
      %v7472 = vshrl.u32 %v7471, 7
      %v7473 = vsub.s32 0, %v7472
      %v7474 = vrot.slane %v7469, %v7473
      %v7476 = vmul.f32 %v7437, %v7474
      %v7477 = vmul.f32 %v7438, %v7474
      %v7478 = vmul.f32 %v7439, %v7474
      %v7479 = vmul.f32 %v7440, %v7474
      %v7480 = vmul.f32 %v7441, %v7474
      %v7481 = vmul.f32 %v7442, %v7474
      %v7482 = vmul.f32 %v7443, %v7474
      %v7483 = vmul.f32 %v7444, %v7474
      %v7484 = vmul.f32 %v7445, %v7474
      %v7485 = vmul.f32 %v7446, %v7474
      %v7486 = vmul.f32 %v7447, %v7474
      %v7487 = vmul.f32 %v7448, %v7474
      %v7488 = vmul.f32 %v7449, %v7474
      %v7489 = vmul.f32 %v7450, %v7474
      %v7490 = vmul.f32 %v7451, %v7474
      %v7491 = vmul.f32 %v7452, %v7474
      %v7492 = vmul.f32 %v7453, %v7474
      %v7493 = vmul.f32 %v7454, %v7474
      %v7494 = vmul.f32 %v7455, %v7474
      %v7495 = vmul.f32 %v7456, %v7474
      %v7496 = vmul.f32 %v7457, %v7474
      %v7497 = vmul.f32 %v7458, %v7474
      %v7498 = vmul.f32 %v7459, %v7474
      %v7499 = vmul.f32 %v7460, %v7474
      %v7500 = vmul.f32 %v7461, %v7474
      %v7501 = vmul.f32 %v7462, %v7474
      %v7502 = vmul.f32 %v7463, %v7474
      %v7503 = vmul.f32 %v7464, %v7474
      %v7504 = vmul.f32 %v7465, %v7474
      %v7505 = vmul.f32 %v7466, %v7474
      %v7506 = vmul.f32 %v7467, %v7474
      %v7507 = vmul.f32 %v7468, %v7474
      %v7508 = vld [vmem:[%s6] sm:$0x1]
      %v7510 = vlaneseq
      %v7511 = vshrl.u32 %v7510, 7
      %v7512 = vsub.s32 0, %v7511
      %v7513 = vrot.slane %v7508, %v7512
      %v7515 = vadd.f32 %v7476, %v7513
      %v7516 = vadd.f32 %v7477, %v7513
      %v7517 = vadd.f32 %v7478, %v7513
      %v7518 = vadd.f32 %v7479, %v7513
      %v7519 = vadd.f32 %v7480, %v7513
      %v7520 = vadd.f32 %v7481, %v7513
      %v7521 = vadd.f32 %v7482, %v7513
      %v7522 = vadd.f32 %v7483, %v7513
      %v7523 = vadd.f32 %v7484, %v7513
      %v7524 = vadd.f32 %v7485, %v7513
      %v7525 = vadd.f32 %v7486, %v7513
      %v7526 = vadd.f32 %v7487, %v7513
      %v7527 = vadd.f32 %v7488, %v7513
      %v7528 = vadd.f32 %v7489, %v7513
      %v7529 = vadd.f32 %v7490, %v7513
      %v7530 = vadd.f32 %v7491, %v7513
      %v7531 = vadd.f32 %v7492, %v7513
      %v7532 = vadd.f32 %v7493, %v7513
      %v7533 = vadd.f32 %v7494, %v7513
      %v7534 = vadd.f32 %v7495, %v7513
      %v7535 = vadd.f32 %v7496, %v7513
      %v7536 = vadd.f32 %v7497, %v7513
      %v7537 = vadd.f32 %v7498, %v7513
      %v7538 = vadd.f32 %v7499, %v7513
      %v7539 = vadd.f32 %v7500, %v7513
      %v7540 = vadd.f32 %v7501, %v7513
      %v7541 = vadd.f32 %v7502, %v7513
      %v7542 = vadd.f32 %v7503, %v7513
      %v7543 = vadd.f32 %v7504, %v7513
      %v7544 = vadd.f32 %v7505, %v7513
      %v7545 = vadd.f32 %v7506, %v7513
      %v7546 = vadd.f32 %v7507, %v7513
      %v7547 = vadd.f32 %v7515, %v368
      %v7548 = vadd.f32 %v7516, %v369
      %v7549 = vadd.f32 %v7517, %v370
      %v7550 = vadd.f32 %v7518, %v371
      %v7551 = vadd.f32 %v7519, %v372
      %v7552 = vadd.f32 %v7520, %v373
      %v7553 = vadd.f32 %v7521, %v374
      %v7554 = vadd.f32 %v7522, %v375
      %v7555 = vadd.f32 %v7523, %v376
      %v7556 = vadd.f32 %v7524, %v377
      %v7557 = vadd.f32 %v7525, %v378
      %v7558 = vadd.f32 %v7526, %v379
      %v7559 = vadd.f32 %v7527, %v380
      %v7560 = vadd.f32 %v7528, %v381
      %v7561 = vadd.f32 %v7529, %v382
      %v7562 = vadd.f32 %v7530, %v383
      %v7563 = vadd.f32 %v7531, %v384
      %v7564 = vadd.f32 %v7532, %v385
      %v7565 = vadd.f32 %v7533, %v386
      %v7566 = vadd.f32 %v7534, %v387
      %v7567 = vadd.f32 %v7535, %v388
      %v7568 = vadd.f32 %v7536, %v389
      %v7569 = vadd.f32 %v7537, %v390
      %v7570 = vadd.f32 %v7538, %v391
      %v7571 = vadd.f32 %v7539, %v392
      %v7572 = vadd.f32 %v7540, %v393
      %v7573 = vadd.f32 %v7541, %v394
      %v7574 = vadd.f32 %v7542, %v395
      %v7575 = vadd.f32 %v7543, %v396
      %v7576 = vadd.f32 %v7544, %v397
      %v7577 = vadd.f32 %v7545, %v398
      %v7578 = vadd.f32 %v7546, %v399
      %v7579 = vmax.f32 %v7547, 0.0
      %v7580 = vmax.f32 %v7548, 0.0
      %v7581 = vmax.f32 %v7549, 0.0
      %v7582 = vmax.f32 %v7550, 0.0
      %v7583 = vmax.f32 %v7551, 0.0
      %v7584 = vmax.f32 %v7552, 0.0
      %v7585 = vmax.f32 %v7553, 0.0
      %v7586 = vmax.f32 %v7554, 0.0
      %v7587 = vmax.f32 %v7555, 0.0
      %v7588 = vmax.f32 %v7556, 0.0
      %v7589 = vmax.f32 %v7557, 0.0
      %v7590 = vmax.f32 %v7558, 0.0
      %v7591 = vmax.f32 %v7559, 0.0
      %v7592 = vmax.f32 %v7560, 0.0
      %v7593 = vmax.f32 %v7561, 0.0
      %v7594 = vmax.f32 %v7562, 0.0
      %v7595 = vmax.f32 %v7563, 0.0
      %v7596 = vmax.f32 %v7564, 0.0
      %v7597 = vmax.f32 %v7565, 0.0
      %v7598 = vmax.f32 %v7566, 0.0
      %v7599 = vmax.f32 %v7567, 0.0
      %v7600 = vmax.f32 %v7568, 0.0
      %v7601 = vmax.f32 %v7569, 0.0
      %v7602 = vmax.f32 %v7570, 0.0
      %v7603 = vmax.f32 %v7571, 0.0
      %v7604 = vmax.f32 %v7572, 0.0
      %v7605 = vmax.f32 %v7573, 0.0
      %v7606 = vmax.f32 %v7574, 0.0
      %v7607 = vmax.f32 %v7575, 0.0
      %v7608 = vmax.f32 %v7576, 0.0
      %v7609 = vmax.f32 %v7577, 0.0
      %v7610 = vmax.f32 %v7578, 0.0
      %7611 = vst.msk [vmem:[%s278] sm:$0xff] %vm279, %v7579
      %7612 = vst.msk [vmem:[%s278 + $0x8] sm:$0xff] %vm279, %v7580
      %7613 = vst.msk [vmem:[%s278 + $0x10] sm:$0xff] %vm279, %v7581
      %7614 = vst.msk [vmem:[%s278 + $0x18] sm:$0xff] %vm279, %v7582
      %7615 = vst.msk [vmem:[%s278 + $0x20] sm:$0xff] %vm279, %v7583
      %7616 = vst.msk [vmem:[%s278 + $0x28] sm:$0xff] %vm279, %v7584
      %7617 = vst.msk [vmem:[%s278 + $0x30] sm:$0xff] %vm279, %v7585
      %7618 = vst.msk [vmem:[%s278 + $0x38] sm:$0xff] %vm279, %v7586
      %7619 = vst.msk [vmem:[%s278 + $0x40] sm:$0xff] %vm279, %v7587
      %7620 = vst.msk [vmem:[%s278 + $0x48] sm:$0xff] %vm279, %v7588
      %7621 = vst.msk [vmem:[%s278 + $0x50] sm:$0xff] %vm279, %v7589
      %7622 = vst.msk [vmem:[%s278 + $0x58] sm:$0xff] %vm279, %v7590
      %7623 = vst.msk [vmem:[%s278 + $0x60] sm:$0xff] %vm279, %v7591
      %7624 = vst.msk [vmem:[%s278 + $0x68] sm:$0xff] %vm279, %v7592
      %7625 = vst.msk [vmem:[%s278 + $0x70] sm:$0xff] %vm279, %v7593
      %7626 = vst.msk [vmem:[%s278 + $0x78] sm:$0xff] %vm279, %v7594
      %7627 = vst.msk [vmem:[%s278 + $0x80] sm:$0xff] %vm279, %v7595
      %7628 = vst.msk [vmem:[%s278 + $0x88] sm:$0xff] %vm279, %v7596
      %7629 = vst.msk [vmem:[%s278 + $0x90] sm:$0xff] %vm279, %v7597
      %7630 = vst.msk [vmem:[%s278 + $0x98] sm:$0xff] %vm279, %v7598
      %7631 = vst.msk [vmem:[%s278 + $0xa0] sm:$0xff] %vm279, %v7599
      %7632 = vst.msk [vmem:[%s278 + $0xa8] sm:$0xff] %vm279, %v7600
      %7633 = vst.msk [vmem:[%s278 + $0xb0] sm:$0xff] %vm279, %v7601
      %7634 = vst.msk [vmem:[%s278 + $0xb8] sm:$0xff] %vm279, %v7602
      %7635 = vst.msk [vmem:[%s278 + $0xc0] sm:$0xff] %vm279, %v7603
      %7636 = vst.msk [vmem:[%s278 + $0xc8] sm:$0xff] %vm279, %v7604
      %7637 = vst.msk [vmem:[%s278 + $0xd0] sm:$0xff] %vm279, %v7605
      %7638 = vst.msk [vmem:[%s278 + $0xd8] sm:$0xff] %vm279, %v7606
      %7639 = vst.msk [vmem:[%s278 + $0xe0] sm:$0xff] %vm279, %v7607
      %7640 = vst.msk [vmem:[%s278 + $0xe8] sm:$0xff] %vm279, %v7608
      %7641 = vst.msk [vmem:[%s278 + $0xf0] sm:$0xff] %vm279, %v7609
      %7642 = vst.msk [vmem:[%s278 + $0xf8] sm:$0xff] %vm279, %v7610
      %p7643 = scmp.lt.s32.totalorder %s18, 1
      %s7644 = scalar_select %p7643, %s18, 1
      %s7645 = smul.addr %s7644, 32
      %s7646 = smul.addr %s7645, 8
      %s7647 = scalar_lea.vmem %s7, %s7646
      // Predicated region
      $region49: #{resnet_block_forward.1} parent=47 // pred_check
        %p7648 = pneg %p188
      $region50: #{resnet_block_forward.1} parent=47 // pred_check_branch
        %7650 = sbr.rel (%p7648) target = $region52
      $region51: #{resnet_block_forward.1} parent=47 // pred_region
        _
      $region52: #{resnet_block_forward.1} parent=47 // pred_fallthru
        _
    $region48: #{resnet_block_forward.1} parent=5 // pred_fallthru
      _
    %p7651 = scmp.le.s32.totalorder 2, %s13
    // Predicated region
    $region53: #{resnet_block_forward.1} parent=5 // pred_check
      %p7652 = pneg %p7651
    $region54: #{resnet_block_forward.1} parent=5 // pred_check_branch
      %7654 = sbr.rel (%p7652) target = $region56
    $region55: #{resnet_block_forward.1} parent=5 // pred_region
      %s7655 = ssub.s32 %s13, 2
      // Predicated region
      $region57: #{resnet_block_forward.1} parent=55 // pred_check
        %p7656 = pneg %p194
      $region58: #{resnet_block_forward.1} parent=55 // pred_check_branch
        %7658 = sbr.rel (%p7656) target = $region60
      $region59: #{resnet_block_forward.1} parent=55 // pred_region
        %p7659 = scmp.lt.s32.totalorder %s19, 1
        %s7660 = scalar_select %p7659, %s19, 1
        %s7661 = smul.addr %s7660, 32
        %s7662 = smul.addr %s7661, 8
        %s7663 = scalar_lea.vmem %s7, %s7662
      $region60: #{resnet_block_forward.1} parent=55 // pred_fallthru
        _
    $region56: #{resnet_block_forward.1} parent=5 // pred_fallthru
      _
  $region6: #{resnet_block_forward.1} parent=0 // loop_footer
    %s17 = sadd.s32 1, %s13
  $region7: #{resnet_block_forward.1} parent=0 // loop_footer_branch
    %12 = sbr.rel target = $region3
  $region8: #{resnet_block_forward.1} parent=0 // loop_exit
    _

</llo_original>
